<compile_context>
chip_gen: v7x
topology: tpu7x:2x2x1
jax: 0.10.0
libtpu: 0.0.40
codegen_flags: <defaults>
</compile_context>

<pallas_src>
import numpy as np
import jax
import jax.numpy as jnp
from jax.experimental import pallas as pl
from jax.experimental.pallas import tpu as pltpu

# ----------------------------- configuration (scaled-down SAM) --------------
IMG = 64            # analogue of img_size = 1024
PATCH = 16
NH = IMG // PATCH   # 4  -> 16 tokens
S_ENC = NH * NH
EMB = 32            # ViT embed dim
HEADS = 2
DH = EMB // HEADS
MLP_DIM = 64
DEPTH = 2
OUT_CH = 32         # encoder neck output channels
DHO = OUT_CH // HEADS
NUM_MASKS = 4
C_UP = 8            # upscaled embedding channels
LOWRES = 4 * NH     # 16x16 low-res masks

VMEM_LIMIT = 32 * 1024 * 1024


# ----------------------------- in-kernel helpers -----------------------------

def _bdot(a, b):
    """MXU matmul with bf16 inputs and f32 accumulation."""
    return jnp.dot(a.astype(jnp.bfloat16), b.astype(jnp.bfloat16),
                   preferred_element_type=jnp.float32)


def _bdot_nt(a, b):
    """a @ b.T with bf16 inputs, f32 accumulation, no transpose materialized."""
    return jax.lax.dot_general(a.astype(jnp.bfloat16), b.astype(jnp.bfloat16),
                               (((1,), (1,)), ((), ())),
                               preferred_element_type=jnp.float32)


def _gelu(x):
    # TODO(synk): tanh-approx GELU; PyTorch nn.GELU defaults to the erf form.
    c = 0.7978845608028654
    return 0.5 * x * (1.0 + jnp.tanh(c * (x + 0.044715 * x * x * x)))


def _softmax(x):
    m = jnp.max(x, axis=-1, keepdims=True)
    e = jnp.exp(x - m)
    return e * pl.reciprocal(jnp.sum(e, axis=-1, keepdims=True), approx=True)


def _ln(x, g, b, eps=1e-6):
    mu = jnp.mean(x, axis=-1, keepdims=True)
    var = jnp.mean((x - mu) ** 2, axis=-1, keepdims=True)
    return (x - mu) * jax.lax.rsqrt(var + eps) * g + b


def _shift_rows(y, k):
    """out[i] = y[i + k] with zero-fill for rows that fall outside [0, S)."""
    if k == 0:
        return y
    n, c = y.shape
    pad = jnp.zeros((abs(k), c), y.dtype)
    if k > 0:
        return jnp.concatenate([y[k:], pad], axis=0)
    return jnp.concatenate([pad, y[:n + k]], axis=0)


def _const_spec(shape):
    """Full-array block re-used across the batch grid (loaded once)."""
    nd = len(shape)
    return pl.BlockSpec(shape, lambda *_: (0,) * nd)


# ----------------------------- kernel 1: preprocess ---------------------------

def _preprocess_kernel(x_ref, s_ref, b_ref, o_ref):
    # per-row affine (x*255 - mean)/std on a lane-dense (B*C, H*W) layout
    o_ref[...] = x_ref[...] * s_ref[...] + b_ref[...]


def preprocess_normalize(x2d, scale_rows, bias_rows):
    M, N = x2d.shape
    return pl.pallas_call(
        _preprocess_kernel,
        out_shape=jax.ShapeDtypeStruct((M, N), jnp.float32),
        grid=(1,),
        in_specs=[_const_spec((M, N)), _const_spec((M, 1)), _const_spec((M, 1))],
        out_specs=_const_spec((M, N)),
    )(x2d.astype(jnp.float32), scale_rows, bias_rows)


# ----------------------------- kernel 2: fused ViT encoder --------------------

def _encoder_kernel(patches_ref, pw_ref, pb_ref, pos_ref,
                    ln1g_ref, ln1b_ref, wqkv_ref, bqkv_ref, wo_ref, bo_ref,
                    ln2g_ref, ln2b_ref, w1_ref, b1_ref, w2_ref, b2_ref,
                    nw1_ref, nb1_ref, nln1g_ref, nln1b_ref,
                    tapm_ref, nw2_ref, nb2_ref, nln2g_ref, nln2b_ref,
                    o_ref):
    scale = DH ** -0.5

    # patch embed (Conv2d kernel==stride as a 768-wide matmul) + pos embedding
    x = _bdot(patches_ref[0], pw_ref[...]) + pb_ref[...] + pos_ref[...]  # (S,EMB)

    # TODO(synk): real SAM ViT uses windowed attention + relative position bias;
    # plain global attention is used for the synthetic stand-in.
    for d in range(DEPTH):
        xn = _ln(x, ln1g_ref[d], ln1b_ref[d])
        # one wide QKV projection for all heads
        qkv = _bdot(xn, wqkv_ref[d]) + bqkv_ref[d]           # (S, 3*EMB)
        av_heads = []
        for h in range(HEADS):
            q = qkv[:, h * DH:(h + 1) * DH]
            k = qkv[:, EMB + h * DH: EMB + (h + 1) * DH]
            v = qkv[:, 2 * EMB + h * DH: 2 * EMB + (h + 1) * DH]
            s = _bdot_nt(q * scale, k)                       # (S, S)
            p = _softmax(s)
            av_heads.append(_bdot(p, v))                     # bf16 AV matmul
        av = jnp.concatenate(av_heads, axis=-1)              # (S, EMB)
        x = x + _bdot(av, wo_ref[d]) + bo_ref[d]             # wide output proj

        xn = _ln(x, ln2g_ref[d], ln2b_ref[d])
        h1 = _gelu(_bdot(xn, w1_ref[d]) + b1_ref[d])
        x = x + _bdot(h1, w2_ref[d]) + b2_ref[d]

    # neck: 1x1 conv -> LN -> 3x3 conv (sublane shifts + edge mask) -> LN
    y = _ln(_bdot(x, nw1_ref[...]) + nb1_ref[...], nln1g_ref[...], nln1b_ref[...])
    acc = jnp.zeros((S_ENC, OUT_CH), jnp.float32)
    for tap in range(9):
        dy, dx = tap // 3 - 1, tap % 3 - 1
        shifted = _shift_rows(y, dy * NH + dx) * tapm_ref[tap]
        acc = acc + _bdot(shifted, nw2_ref[tap])
    acc = acc + nb2_ref[...]
    o_ref[0] = _ln(acc, nln2g_ref[...], nln2b_ref[...])


def image_encoder(patches, tap_masks, p):
    B = patches.shape[0]
    const_args = [p["patch_w"], p["patch_b"], p["pos_embed"],
                  p["ln1_g"], p["ln1_b"], p["wqkv"], p["bqkv"], p["wo"], p["bo"],
                  p["ln2_g"], p["ln2_b"], p["mlp_w1"], p["mlp_b1"],
                  p["mlp_w2"], p["mlp_b2"],
                  p["neck_w1"], p["neck_b1"], p["neck_ln1_g"], p["neck_ln1_b"],
                  tap_masks, p["neck_w2"], p["neck_b2"],
                  p["neck_ln2_g"], p["neck_ln2_b"]]
    in_specs = [pl.BlockSpec((1, S_ENC, 3 * PATCH * PATCH), lambda b: (b, 0, 0))]
    in_specs += [_const_spec(a.shape) for a in const_args]
    # TODO(synk): at real SAM scale (DEPTH>=12, EMB>=768) per-layer weights
    # should be streamed via a depth grid axis / emit_pipeline to fit v7x VMEM.
    return pl.pallas_call(
        _encoder_kernel,
        out_shape=jax.ShapeDtypeStruct((B, S_ENC, OUT_CH), jnp.float32),
        grid=(B,),
        in_specs=in_specs,
        out_specs=pl.BlockSpec((1, S_ENC, OUT_CH), lambda b: (b, 0, 0)),
        compiler_params=pltpu.CompilerParams(
            dimension_semantics=("parallel",),
            vmem_limit_bytes=VMEM_LIMIT),
    )(patches, *const_args)


# ----------------------------- kernel 3: fused mask decoder -------------------

def _decoder_kernel(src_ref, pe_ref, tok_ref,
                    wq_ref, bq_ref, wk_ref, bk_ref, wv_ref, bv_ref,
                    wo_ref, bo_ref, lng_ref, lnb_ref,
                    mw1_ref, mb1_ref, mw2_ref, mb2_ref,
                    upw_ref, upb_ref, hw_ref, hb_ref,
                    hyper_ref, up_ref):
    src = src_ref[0]                              # (S, C)
    tok = tok_ref[...]                            # (T, C) mask tokens
    srcpe = src + pe_ref[...]
    scale = DHO ** -0.5

    # TODO(synk): real SAM runs a TwoWayTransformer (token self-attn, two-way
    # cross-attn); a single token->image cross-attention block is the stand-in.
    q = _bdot(tok, wq_ref[...]) + bq_ref[...]     # (T, H*DHO) all heads stacked
    k = _bdot(srcpe, wk_ref[...]) + bk_ref[...]   # (S, H*DHO)
    v = _bdot(src, wv_ref[...]) + bv_ref[...]     # (S, H*DHO)

    av_heads = []
    for h in range(HEADS):
        sl = slice(h * DHO, (h + 1) * DHO)
        s = _bdot_nt(q[:, sl] * scale, k[:, sl])  # (T, S)
        p = _softmax(s)
        av_heads.append(_bdot(p, v[:, sl]))       # bf16 AV matmul
    att = _bdot(jnp.concatenate(av_heads, axis=-1), wo_ref[...]) + bo_ref[...]

    t1 = tok + att
    tn = _ln(t1, lng_ref[...], lnb_ref[...])
    m = _bdot(_gelu(_bdot(tn, mw1_ref[...]) + mb1_ref[...]),
              mw2_ref[...]) + mb2_ref[...]
    t2 = t1 + m
    hyper_ref[0] = _bdot(t2, hw_ref[...]) + hb_ref[...]           # (T, C_UP)

    # TODO(synk): SAM upscales with two ConvTranspose2d layers; a learned
    # stride-4 pixel-shuffle projection (kernel==stride) is used instead.
    up_ref[0] = _gelu(_bdot(src, upw_ref[...]) + upb_ref[...])    # (S, 16*C_UP)


def mask_decoder(src, pe, p):
    B = src.shape[0]
    const_args = [pe, p["mask_tokens"], p["wq"], p["bq"], p["wk"], p["bk"],
                  p["wv"], p["bv"], p["wo"], p["bo"], p["ln_g"], p["ln_b"],
                  p["mlp_w1"], p["mlp_b1"], p["mlp_w2"], p["mlp_b2"],
                  p["up_w"], p["up_b"], p["hyper_w"], p["hyper_b"]]
    in_specs = [pl.BlockSpec((1, S_ENC, OUT_CH), lambda b: (b, 0, 0))]
    in_specs += [_const_spec(a.shape) for a in const_args]
    out_shape = (jax.ShapeDtypeStruct((B, NUM_MASKS, C_UP), jnp.float32),
                 jax.ShapeDtypeStruct((B, S_ENC, 16 * C_UP), jnp.float32))
    out_specs = (pl.BlockSpec((1, NUM_MASKS, C_UP), lambda b: (b, 0, 0)),
                 pl.BlockSpec((1, S_ENC, 16 * C_UP), lambda b: (b, 0, 0)))
    return pl.pallas_call(
        _decoder_kernel,
        out_shape=out_shape,
        grid=(B,),
        in_specs=in_specs,
        out_specs=out_specs,
        compiler_params=pltpu.CompilerParams(
            dimension_semantics=("parallel",),
            vmem_limit_bytes=VMEM_LIMIT),
    )(src, *const_args)


# -------- kernel 4: low-res hypernet combine + bilinear upsample + softmax ----

def _upsample_softmax_kernel(hyper_s, upsh_ref, ah_ref, awt_ref, o_ref):
    b = pl.program_id(0)
    ah = ah_ref[...]        # (IMG, LOWRES), loaded once, reused across grid
    awt = awt_ref[...]      # (LOWRES, IMG)
    base = b * NUM_MASKS * C_UP

    # hypernetwork combine at LOW resolution, then upsample only NUM_MASKS maps
    masks = []
    for t in range(NUM_MASKS):
        m = jnp.zeros((LOWRES, LOWRES), jnp.float32)
        for c in range(C_UP):
            m = m + hyper_s[base + t * C_UP + c] * upsh_ref[0, c]
        tmp = jnp.dot(ah, m, preferred_element_type=jnp.float32)      # (IMG, LR)
        masks.append(jnp.dot(tmp, awt, preferred_element_type=jnp.float32))

    # channel softmax across the NUM_MASKS maps
    mx = masks[0]
    for t in range(1, NUM_MASKS):
        mx = jnp.maximum(mx, masks[t])
    exps = [jnp.exp(v - mx) for v in masks]
    den = exps[0]
    for t in range(1, NUM_MASKS):
        den = den + exps[t]
    inv = pl.reciprocal(den, approx=True)
    # lane-dense store: (IMG, NUM_MASKS*IMG), last dim = 256
    o_ref[0] = jnp.concatenate([e * inv for e in exps], axis=-1)


def upsample_and_softmax(hyper_flat, upsh, ah, awt):
    B = upsh.shape[0]
    return pl.pallas_call(
        _upsample_softmax_kernel,
        out_shape=jax.ShapeDtypeStruct((B, IMG, NUM_MASKS * IMG), jnp.float32),
        grid=(B,),
        in_specs=[
            pl.BlockSpec(memory_space=pltpu.MemorySpace.SMEM),
            pl.BlockSpec((1, C_UP, LOWRES, LOWRES), lambda b: (b, 0, 0, 0)),
            pl.BlockSpec((IMG, LOWRES), lambda b: (0, 0)),
            pl.BlockSpec((LOWRES, IMG), lambda b: (0, 0)),
        ],
        out_specs=pl.BlockSpec((1, IMG, NUM_MASKS * IMG), lambda b: (b, 0, 0)),
        compiler_params=pltpu.CompilerParams(
            dimension_semantics=("parallel",),
            vmem_limit_bytes=VMEM_LIMIT),
    )(hyper_flat, upsh, ah, awt)


# ----------------------------- host-side setup glue ---------------------------

def bilinear_matrix(out_size, in_size):
    """Interpolation matrix matching F.interpolate(bilinear, align_corners=False)."""
    i = np.arange(out_size)
    x = (i + 0.5) * (in_size / out_size) - 0.5
    x0 = np.floor(x).astype(np.int64)
    w1 = (x - x0).astype(np.float32)
    i0 = np.clip(x0, 0, in_size - 1)
    i1 = np.clip(x0 + 1, 0, in_size - 1)
    A = np.zeros((out_size, in_size), np.float32)
    A[i, i0] += (1.0 - w1)
    A[i, i1] += w1
    return A


def build_tap_masks(n):
    """(9, n*n, 1) validity masks for the 9 zero-padded 3x3 conv taps."""
    m = np.zeros((9, n * n, 1), np.float32)
    for tap in range(9):
        dy, dx = tap // 3 - 1, tap % 3 - 1
        for h in range(n):
            for w_ in range(n):
                if 0 <= h + dy < n and 0 <= w_ + dx < n:
                    m[tap, h * n + w_, 0] = 1.0
    return jnp.asarray(m)


def dense_pe(gauss, n):
    """PromptEncoder.get_dense_pe(): random-Fourier positional encoding (glue)."""
    ys = (jnp.arange(n, dtype=jnp.float32) + 0.5) / n
    xs = (jnp.arange(n, dtype=jnp.float32) + 0.5) / n
    yy = jnp.tile(ys[:, None], (1, n))
    xx = jnp.tile(xs[None, :], (n, 1))
    coords = 2.0 * jnp.stack([xx, yy], axis=-1) - 1.0
    proj = 2.0 * jnp.pi * (coords.reshape(-1, 2) @ gauss)
    return jnp.concatenate([jnp.sin(proj), jnp.cos(proj)], axis=-1)   # (S, OUT_CH)


# ----------------------------- full SAM forward --------------------------------

def sam_forward(images, params):
    B, C3, H, W = images.shape
    assert H == IMG or W == IMG, "Input image longer edge must be resized to IMG"
    assert H <= IMG and W <= IMG, "Input image size must be <= IMG"

    # preprocess: (x*255 - mean)/std on lane-dense (B*C, H*W), then pad to square
    x2d = images.reshape(B * C3, H * W)
    scale_rows = jnp.tile(params["px_scale"], B).reshape(B * C3, 1)
    bias_rows = jnp.tile(params["px_bias"], B).reshape(B * C3, 1)
    xn = preprocess_normalize(x2d, scale_rows, bias_rows).reshape(B, C3, H, W)
    xp = jnp.pad(xn, ((0, 0), (0, 0), (0, IMG - H), (0, IMG - W)))

    # patchify (layout glue only)
    patches = (xp.reshape(B, 3, NH, PATCH, NH, PATCH)
                 .transpose(0, 2, 4, 1, 3, 5)
                 .reshape(B, S_ENC, 3 * PATCH * PATCH))

    tap_masks = build_tap_masks(NH)
    emb = image_encoder(patches, tap_masks, params["enc"])           # (B, S, C)

    pe = dense_pe(params["pe_gauss"], NH)                            # (S, C) shared
    hyper, up = mask_decoder(emb, pe, params["dec"])

    # pixel-shuffle the upscaled embedding to channels-first low-res layout (glue)
    upsh = (up.reshape(B, NH, NH, 4, 4, C_UP)
              .transpose(0, 5, 1, 3, 2, 4)
              .reshape(B, C_UP, LOWRES, LOWRES))

    ah = jnp.asarray(bilinear_matrix(IMG, LOWRES))
    awt = jnp.asarray(bilinear_matrix(IMG, LOWRES).T)
    flat = upsample_and_softmax(hyper.reshape(-1), upsh, ah, awt)    # (B,IMG,T*IMG)
    masks = flat.reshape(B, IMG, NUM_MASKS, IMG).transpose(0, 2, 1, 3)
    return masks[:, :, :H, :W]


# ----------------------------- deterministic parameter init -------------------

def init_params(key):
    keys = iter(jax.random.split(key, 32))

    def w(shape, scale=0.02, dtype=jnp.bfloat16):
        return (jax.random.normal(next(keys), shape, jnp.float32) * scale).astype(dtype)

    def zf(shape):
        return jnp.zeros(shape, jnp.float32)

    def onf(shape):
        return jnp.ones(shape, jnp.float32)

    enc = {
        "patch_w": w((3 * PATCH * PATCH, EMB)),
        "patch_b": zf((1, EMB)),
        "pos_embed": w((S_ENC, EMB), dtype=jnp.float32),
        "ln1_g": onf((DEPTH, 1, EMB)), "ln1_b": zf((DEPTH, 1, EMB)),
        "wqkv": w((DEPTH, EMB, 3 * EMB)), "bqkv": zf((DEPTH, 1, 3 * EMB)),
        "wo": w((DEPTH, EMB, EMB)), "bo": zf((DEPTH, 1, EMB)),
        "ln2_g": onf((DEPTH, 1, EMB)), "ln2_b": zf((DEPTH, 1, EMB)),
        "mlp_w1": w((DEPTH, EMB, MLP_DIM)), "mlp_b1": zf((DEPTH, 1, MLP_DIM)),
        "mlp_w2": w((DEPTH, MLP_DIM, EMB)), "mlp_b2": zf((DEPTH, 1, EMB)),
        "neck_w1": w((EMB, OUT_CH)), "neck_b1": zf((1, OUT_CH)),
        "neck_ln1_g": onf((1, OUT_CH)), "neck_ln1_b": zf((1, OUT_CH)),
        "neck_w2": w((9, OUT_CH, OUT_CH)), "neck_b2": zf((1, OUT_CH)),
        "neck_ln2_g": onf((1, OUT_CH)), "neck_ln2_b": zf((1, OUT_CH)),
    }
    dec = {
        "mask_tokens": w((NUM_MASKS, OUT_CH), dtype=jnp.float32),
        "wq": w((OUT_CH, HEADS * DHO)), "bq": zf((1, HEADS * DHO)),
        "wk": w((OUT_CH, HEADS * DHO)), "bk": zf((1, HEADS * DHO)),
        "wv": w((OUT_CH, HEADS * DHO)), "bv": zf((1, HEADS * DHO)),
        "wo": w((HEADS * DHO, OUT_CH)), "bo": zf((1, OUT_CH)),
        "ln_g": onf((1, OUT_CH)), "ln_b": zf((1, OUT_CH)),
        "mlp_w1": w((OUT_CH, MLP_DIM)), "mlp_b1": zf((1, MLP_DIM)),
        "mlp_w2": w((MLP_DIM, OUT_CH)), "mlp_b2": zf((1, OUT_CH)),
        "up_w": w((OUT_CH, 4 * 4 * C_UP)), "up_b": zf((1, 4 * 4 * C_UP)),
        "hyper_w": w((OUT_CH, C_UP)), "hyper_b": zf((1, C_UP)),
    }
    pixel_mean = jnp.array([123.675, 116.28, 103.53], jnp.float32)
    pixel_std = jnp.array([58.395, 57.12, 57.375], jnp.float32)
    return {
        # fused affine for (x*255 - mean)/std
        "px_scale": 255.0 / pixel_std,
        "px_bias": -pixel_mean / pixel_std,
        "pe_gauss": w((2, OUT_CH // 2), scale=1.0, dtype=jnp.float32),
        "enc": enc,
        "dec": dec,
    }


# ----------------------------- main -------------------------------------------

if __name__ == "__main__":
    key = jax.random.PRNGKey(0)
    pkey, xkey = jax.random.split(key)
    params = init_params(pkey)

    # scaled-down analogue of images [b, 3, 640, 1024] -> [2, 3, 40, 64]
    images = jax.random.uniform(xkey, (2, 3, 40, 64), jnp.float32)

    fwd = jax.jit(sam_forward)
    masks = fwd(images, params)
    jax.block_until_ready(masks)

    assert masks.shape == (2, NUM_MASKS, 40, 64), masks.shape
    s = jnp.sum(masks, axis=1)          # channel softmax must sum to ~1
    assert bool(jnp.all(jnp.abs(s - 1.0) < 1e-2))
    assert bool(jnp.all(jnp.isfinite(masks)))
    print("KERNEL_OK")
</pallas_src>

<mosaic_0001>
module attributes {stable_mosaic.version = 11 : i64} {
  func.func @_preprocess_kernel(%arg0: i32, %arg1: memref<6x2560xf32, #tpu.memory_space<vmem>>, %arg2: memref<6x1xf32, #tpu.memory_space<vmem>>, %arg3: memref<6x1xf32, #tpu.memory_space<vmem>>, %arg4: memref<6x2560xf32, #tpu.memory_space<vmem>>) attributes {dimension_semantics = [#tpu.dimension_semantics<arbitrary>], iteration_bounds = array<i64: 1>, scalar_prefetch = 0 : i64, scratch_operands = 0 : i64, tpu.core_type = #tpu.core_type<tc>, window_params = [{pipeline_mode = #tpu.pipeline_mode<synchronous>, transform_indices = @transform_0, window_bounds = array<i64: 6, 2560>}, {pipeline_mode = #tpu.pipeline_mode<synchronous>, transform_indices = @transform_1, window_bounds = array<i64: 6, 1>}, {pipeline_mode = #tpu.pipeline_mode<synchronous>, transform_indices = @transform_2, window_bounds = array<i64: 6, 1>}, {pipeline_mode = #tpu.pipeline_mode<synchronous>, transform_indices = @transform_3, window_bounds = array<i64: 6, 2560>}]} {
    %c0 = arith.constant 0 : index
    %c0_0 = arith.constant 0 : index
    %0 = vector.load %arg1[%c0, %c0_0] : memref<6x2560xf32, #tpu.memory_space<vmem>>, vector<6x2560xf32>
    %c0_1 = arith.constant 0 : index
    %c0_2 = arith.constant 0 : index
    %1 = vector.load %arg2[%c0_1, %c0_2] : memref<6x1xf32, #tpu.memory_space<vmem>>, vector<6x1xf32>
    %2 = vector.broadcast %1 : vector<6x1xf32> to vector<6x2560xf32>
    %3 = arith.mulf %0, %2 : vector<6x2560xf32>
    %c0_3 = arith.constant 0 : index
    %c0_4 = arith.constant 0 : index
    %4 = vector.load %arg3[%c0_3, %c0_4] : memref<6x1xf32, #tpu.memory_space<vmem>>, vector<6x1xf32>
    %5 = vector.broadcast %4 : vector<6x1xf32> to vector<6x2560xf32>
    %6 = arith.addf %3, %5 : vector<6x2560xf32>
    %c0_5 = arith.constant 0 : index
    %c0_6 = arith.constant 0 : index
    %7 = vector.load %arg4[%c0_5, %c0_6] : memref<6x2560xf32, #tpu.memory_space<vmem>>, vector<6x2560xf32>
    tpu.vector_store %arg4[%c0_5, %c0_6], %6 {strides = array<i32>} : memref<6x2560xf32, #tpu.memory_space<vmem>>, vector<6x2560xf32>,
    return
  }
  func.func @transform_0(%arg0: i32) -> (i32, i32) {
    %c0_i32 = arith.constant 0 : i32
    %c0_i32_0 = arith.constant 0 : i32
    %c0_i32_1 = arith.constant 0 : i32
    return %c0_i32, %c0_i32_0 : i32, i32
  }
  func.func @transform_1(%arg0: i32) -> (i32, i32) {
    %c0_i32 = arith.constant 0 : i32
    %c0_i32_0 = arith.constant 0 : i32
    %c0_i32_1 = arith.constant 0 : i32
    return %c0_i32, %c0_i32_0 : i32, i32
  }
  func.func @transform_2(%arg0: i32) -> (i32, i32) {
    %c0_i32 = arith.constant 0 : i32
    %c0_i32_0 = arith.constant 0 : i32
    %c0_i32_1 = arith.constant 0 : i32
    return %c0_i32, %c0_i32_0 : i32, i32
  }
  func.func @transform_3(%arg0: i32) -> (i32, i32) {
    %c0_i32 = arith.constant 0 : i32
    %c0_i32_0 = arith.constant 0 : i32
    %c0_i32_1 = arith.constant 0 : i32
    return %c0_i32, %c0_i32_0 : i32, i32
  }
}

module attributes {stable_mosaic.version = 11 : i64} {
  func.func @_encoder_kernel(%arg0: i32, %arg1: memref<1x16x768xf32, #tpu.memory_space<vmem>>, %arg2: memref<768x32xbf16, #tpu.memory_space<vmem>>, %arg3: memref<1x32xf32, #tpu.memory_space<vmem>>, %arg4: memref<16x32xf32, #tpu.memory_space<vmem>>, %arg5: memref<2x1x32xf32, #tpu.memory_space<vmem>>, %arg6: memref<2x1x32xf32, #tpu.memory_space<vmem>>, %arg7: memref<2x32x96xbf16, #tpu.memory_space<vmem>>, %arg8: memref<2x1x96xf32, #tpu.memory_space<vmem>>, %arg9: memref<2x32x32xbf16, #tpu.memory_space<vmem>>, %arg10: memref<2x1x32xf32, #tpu.memory_space<vmem>>, %arg11: memref<2x1x32xf32, #tpu.memory_space<vmem>>, %arg12: memref<2x1x32xf32, #tpu.memory_space<vmem>>, %arg13: memref<2x32x64xbf16, #tpu.memory_space<vmem>>, %arg14: memref<2x1x64xf32, #tpu.memory_space<vmem>>, %arg15: memref<2x64x32xbf16, #tpu.memory_space<vmem>>, %arg16: memref<2x1x32xf32, #tpu.memory_space<vmem>>, %arg17: memref<32x32xbf16, #tpu.memory_space<vmem>>, %arg18: memref<1x32xf32, #tpu.memory_space<vmem>>, %arg19: memref<1x32xf32, #tpu.memory_space<vmem>>, %arg20: memref<1x32xf32, #tpu.memory_space<vmem>>, %arg21: memref<9x16x1xf32, #tpu.memory_space<vmem>>, %arg22: memref<9x32x32xbf16, #tpu.memory_space<vmem>>, %arg23: memref<1x32xf32, #tpu.memory_space<vmem>>, %arg24: memref<1x32xf32, #tpu.memory_space<vmem>>, %arg25: memref<1x32xf32, #tpu.memory_space<vmem>>, %arg26: memref<1x16x32xf32, #tpu.memory_space<vmem>>) attributes {dimension_semantics = [#tpu.dimension_semantics<parallel>], iteration_bounds = array<i64: 2>, scalar_prefetch = 0 : i64, scratch_operands = 0 : i64, tpu.core_type = #tpu.core_type<tc>, window_params = [{transform_indices = @transform_0, window_bounds = array<i64: 1, 16, 768>}, {pipeline_mode = #tpu.pipeline_mode<synchronous>, transform_indices = @transform_1, window_bounds = array<i64: 768, 32>}, {pipeline_mode = #tpu.pipeline_mode<synchronous>, transform_indices = @transform_2, window_bounds = array<i64: 1, 32>}, {pipeline_mode = #tpu.pipeline_mode<synchronous>, transform_indices = @transform_3, window_bounds = array<i64: 16, 32>}, {pipeline_mode = #tpu.pipeline_mode<synchronous>, transform_indices = @transform_4, window_bounds = array<i64: 2, 1, 32>}, {pipeline_mode = #tpu.pipeline_mode<synchronous>, transform_indices = @transform_5, window_bounds = array<i64: 2, 1, 32>}, {pipeline_mode = #tpu.pipeline_mode<synchronous>, transform_indices = @transform_6, window_bounds = array<i64: 2, 32, 96>}, {pipeline_mode = #tpu.pipeline_mode<synchronous>, transform_indices = @transform_7, window_bounds = array<i64: 2, 1, 96>}, {pipeline_mode = #tpu.pipeline_mode<synchronous>, transform_indices = @transform_8, window_bounds = array<i64: 2, 32, 32>}, {pipeline_mode = #tpu.pipeline_mode<synchronous>, transform_indices = @transform_9, window_bounds = array<i64: 2, 1, 32>}, {pipeline_mode = #tpu.pipeline_mode<synchronous>, transform_indices = @transform_10, window_bounds = array<i64: 2, 1, 32>}, {pipeline_mode = #tpu.pipeline_mode<synchronous>, transform_indices = @transform_11, window_bounds = array<i64: 2, 1, 32>}, {pipeline_mode = #tpu.pipeline_mode<synchronous>, transform_indices = @transform_12, window_bounds = array<i64: 2, 32, 64>}, {pipeline_mode = #tpu.pipeline_mode<synchronous>, transform_indices = @transform_13, window_bounds = array<i64: 2, 1, 64>}, {pipeline_mode = #tpu.pipeline_mode<synchronous>, transform_indices = @transform_14, window_bounds = array<i64: 2, 64, 32>}, {pipeline_mode = #tpu.pipeline_mode<synchronous>, transform_indices = @transform_15, window_bounds = array<i64: 2, 1, 32>}, {pipeline_mode = #tpu.pipeline_mode<synchronous>, transform_indices = @transform_16, window_bounds = array<i64: 32, 32>}, {pipeline_mode = #tpu.pipeline_mode<synchronous>, transform_indices = @transform_17, window_bounds = array<i64: 1, 32>}, {pipeline_mode = #tpu.pipeline_mode<synchronous>, transform_indices = @transform_18, window_bounds = array<i64: 1, 32>}, {pipeline_mode = #tpu.pipeline_mode<synchronous>, transform_indices = @transform_19, window_bounds = array<i64: 1, 32>}, {pipeline_mode = #tpu.pipeline_mode<synchronous>, transform_indices = @transform_20, window_bounds = array<i64: 9, 16, 1>}, {pipeline_mode = #tpu.pipeline_mode<synchronous>, transform_indices = @transform_21, window_bounds = array<i64: 9, 32, 32>}, {pipeline_mode = #tpu.pipeline_mode<synchronous>, transform_indices = @transform_22, window_bounds = array<i64: 1, 32>}, {pipeline_mode = #tpu.pipeline_mode<synchronous>, transform_indices = @transform_23, window_bounds = array<i64: 1, 32>}, {pipeline_mode = #tpu.pipeline_mode<synchronous>, transform_indices = @transform_24, window_bounds = array<i64: 1, 32>}, {transform_indices = @transform_25, window_bounds = array<i64: 1, 16, 32>}]} {
    %c0 = arith.constant 0 : index
    %c0_0 = arith.constant 0 : index
    %c0_1 = arith.constant 0 : index
    %0 = vector.load %arg1[%c0, %c0_0, %c0_1] : memref<1x16x768xf32, #tpu.memory_space<vmem>>, vector<1x16x768xf32>
    %1 = vector.shape_cast %0 : vector<1x16x768xf32> to vector<16x768xf32>
    %c0_2 = arith.constant 0 : index
    %c0_3 = arith.constant 0 : index
    %2 = vector.load %arg2[%c0_2, %c0_3] : memref<768x32xbf16, #tpu.memory_space<vmem>>, vector<768x32xbf16>
    %3 = arith.truncf %1 : vector<16x768xf32> to vector<16x768xbf16>
    %cst = arith.constant dense<0.000000e+00> : vector<16x32xf32>
    %4 = tpu.matmul %3, %2, %cst {dimension_numbers = #tpu.dot_dimension_numbers<[1], [0], [0], [1], [0, 0, 1, 1], [], []>} : vector<16x768xbf16>, vector<768x32xbf16>, vector<16x32xf32> -> vector<16x32xf32>
    %c0_4 = arith.constant 0 : index
    %c0_5 = arith.constant 0 : index
    %5 = vector.load %arg3[%c0_4, %c0_5] : memref<1x32xf32, #tpu.memory_space<vmem>>, vector<1x32xf32>
    %6 = vector.broadcast %5 : vector<1x32xf32> to vector<16x32xf32>
    %7 = arith.addf %4, %6 : vector<16x32xf32>
    %c0_6 = arith.constant 0 : index
    %c0_7 = arith.constant 0 : index
    %8 = vector.load %arg4[%c0_6, %c0_7] : memref<16x32xf32, #tpu.memory_space<vmem>>, vector<16x32xf32>
    %9 = arith.addf %7, %8 : vector<16x32xf32>
    %c0_8 = arith.constant 0 : index
    %c0_9 = arith.constant 0 : index
    %c0_10 = arith.constant 0 : index
    %10 = vector.load %arg5[%c0_8, %c0_9, %c0_10] : memref<2x1x32xf32, #tpu.memory_space<vmem>>, vector<1x1x32xf32>
    %11 = vector.shape_cast %10 : vector<1x1x32xf32> to vector<1x32xf32>
    %c0_11 = arith.constant 0 : index
    %c0_12 = arith.constant 0 : index
    %c0_13 = arith.constant 0 : index
    %12 = vector.load %arg6[%c0_11, %c0_12, %c0_13] : memref<2x1x32xf32, #tpu.memory_space<vmem>>, vector<1x1x32xf32>
    %13 = vector.shape_cast %12 : vector<1x1x32xf32> to vector<1x32xf32>
    %cst_14 = arith.constant dense<0.000000e+00> : vector<16xf32>
    %14 = vector.multi_reduction <add>, %9, %cst_14 [1] : vector<16x32xf32> to vector<16xf32>
    %15 = vector.shape_cast %14 : vector<16xf32> to vector<16x1xf32>
    %cst_15 = arith.constant 3.200000e+01 : f32
    %16 = vector.broadcast %cst_15 : f32 to vector<16x1xf32>
    %17 = arith.divf %15, %16 : vector<16x1xf32>
    %18 = vector.broadcast %17 : vector<16x1xf32> to vector<16x32xf32>
    %19 = arith.subf %9, %18 : vector<16x32xf32>
    %20 = arith.mulf %19, %19 : vector<16x32xf32>
    %cst_16 = arith.constant dense<0.000000e+00> : vector<16xf32>
    %21 = vector.multi_reduction <add>, %20, %cst_16 [1] : vector<16x32xf32> to vector<16xf32>
    %22 = vector.shape_cast %21 : vector<16xf32> to vector<16x1xf32>
    %cst_17 = arith.constant 3.200000e+01 : f32
    %23 = vector.broadcast %cst_17 : f32 to vector<16x1xf32>
    %24 = arith.divf %22, %23 : vector<16x1xf32>
    %25 = vector.broadcast %17 : vector<16x1xf32> to vector<16x32xf32>
    %26 = arith.subf %9, %25 : vector<16x32xf32>
    %cst_18 = arith.constant 9.99999997E-7 : f32
    %27 = vector.broadcast %cst_18 : f32 to vector<16x1xf32>
    %28 = arith.addf %24, %27 : vector<16x1xf32>
    %29 = math.rsqrt %28 : vector<16x1xf32>
    %30 = vector.broadcast %29 : vector<16x1xf32> to vector<16x32xf32>
    %31 = arith.mulf %26, %30 : vector<16x32xf32>
    %32 = vector.broadcast %11 : vector<1x32xf32> to vector<16x32xf32>
    %33 = arith.mulf %31, %32 : vector<16x32xf32>
    %34 = vector.broadcast %13 : vector<1x32xf32> to vector<16x32xf32>
    %35 = arith.addf %33, %34 : vector<16x32xf32>
    %c0_19 = arith.constant 0 : index
    %c0_20 = arith.constant 0 : index
    %c0_21 = arith.constant 0 : index
    %36 = vector.load %arg7[%c0_19, %c0_20, %c0_21] : memref<2x32x96xbf16, #tpu.memory_space<vmem>>, vector<1x32x96xbf16>
    %37 = vector.shape_cast %36 : vector<1x32x96xbf16> to vector<32x96xbf16>
    %38 = arith.truncf %35 : vector<16x32xf32> to vector<16x32xbf16>
    %cst_22 = arith.constant dense<0.000000e+00> : vector<16x96xf32>
    %39 = tpu.matmul %38, %37, %cst_22 {dimension_numbers = #tpu.dot_dimension_numbers<[1], [0], [0], [1], [0, 0, 1, 1], [], []>} : vector<16x32xbf16>, vector<32x96xbf16>, vector<16x96xf32> -> vector<16x96xf32>
    %c0_23 = arith.constant 0 : index
    %c0_24 = arith.constant 0 : index
    %c0_25 = arith.constant 0 : index
    %40 = vector.load %arg8[%c0_23, %c0_24, %c0_25] : memref<2x1x96xf32, #tpu.memory_space<vmem>>, vector<1x1x96xf32>
    %41 = vector.shape_cast %40 : vector<1x1x96xf32> to vector<1x96xf32>
    %42 = vector.broadcast %41 : vector<1x96xf32> to vector<16x96xf32>
    %43 = arith.addf %39, %42 : vector<16x96xf32>
    %44 = vector.extract_strided_slice %43 {offsets = [0, 0], sizes = [16, 16], strides = [1, 1]} : vector<16x96xf32> to vector<16x16xf32>
    %45 = vector.extract_strided_slice %43 {offsets = [0, 32], sizes = [16, 16], strides = [1, 1]} : vector<16x96xf32> to vector<16x16xf32>
    %46 = vector.extract_strided_slice %43 {offsets = [0, 64], sizes = [16, 16], strides = [1, 1]} : vector<16x96xf32> to vector<16x16xf32>
    %cst_26 = arith.constant 2.500000e-01 : f32
    %47 = vector.broadcast %cst_26 : f32 to vector<16x16xf32>
    %48 = arith.mulf %44, %47 : vector<16x16xf32>
    %49 = arith.truncf %48 : vector<16x16xf32> to vector<16x16xbf16>
    %50 = arith.truncf %45 : vector<16x16xf32> to vector<16x16xbf16>
    %cst_27 = arith.constant dense<0.000000e+00> : vector<16x16xf32>
    %51 = tpu.matmul %49, %50, %cst_27 {dimension_numbers = #tpu.dot_dimension_numbers<[1], [1], [0], [0], [0, 0, 1, 0], [], []>} : vector<16x16xbf16>, vector<16x16xbf16>, vector<16x16xf32> -> vector<16x16xf32>
    %cst_28 = arith.constant dense<0xFF800000> : vector<16xf32>
    %52 = vector.multi_reduction <maximumf>, %51, %cst_28 [1] : vector<16x16xf32> to vector<16xf32>
    %53 = vector.shape_cast %52 : vector<16xf32> to vector<16x1xf32>
    %54 = vector.broadcast %53 : vector<16x1xf32> to vector<16x16xf32>
    %55 = arith.subf %51, %54 : vector<16x16xf32>
    %56 = math.exp %55 : vector<16x16xf32>
    %cst_29 = arith.constant dense<0.000000e+00> : vector<16xf32>
    %57 = vector.multi_reduction <add>, %56, %cst_29 [1] : vector<16x16xf32> to vector<16xf32>
    %58 = vector.shape_cast %57 : vector<16xf32> to vector<16x1xf32>
    %59 = tpu.reciprocal %58 {approx = true} : vector<16x1xf32> -> vector<16x1xf32>
    %60 = vector.broadcast %59 : vector<16x1xf32> to vector<16x16xf32>
    %61 = arith.mulf %56, %60 : vector<16x16xf32>
    %62 = arith.truncf %61 : vector<16x16xf32> to vector<16x16xbf16>
    %63 = arith.truncf %46 : vector<16x16xf32> to vector<16x16xbf16>
    %cst_30 = arith.constant dense<0.000000e+00> : vector<16x16xf32>
    %64 = tpu.matmul %62, %63, %cst_30 {dimension_numbers = #tpu.dot_dimension_numbers<[1], [0], [0], [1], [0, 0, 1, 1], [], []>} : vector<16x16xbf16>, vector<16x16xbf16>, vector<16x16xf32> -> vector<16x16xf32>
    %65 = vector.extract_strided_slice %43 {offsets = [0, 16], sizes = [16, 16], strides = [1, 1]} : vector<16x96xf32> to vector<16x16xf32>
    %66 = vector.extract_strided_slice %43 {offsets = [0, 48], sizes = [16, 16], strides = [1, 1]} : vector<16x96xf32> to vector<16x16xf32>
    %67 = vector.extract_strided_slice %43 {offsets = [0, 80], sizes = [16, 16], strides = [1, 1]} : vector<16x96xf32> to vector<16x16xf32>
    %cst_31 = arith.constant 2.500000e-01 : f32
    %68 = vector.broadcast %cst_31 : f32 to vector<16x16xf32>
    %69 = arith.mulf %65, %68 : vector<16x16xf32>
    %70 = arith.truncf %69 : vector<16x16xf32> to vector<16x16xbf16>
    %71 = arith.truncf %66 : vector<16x16xf32> to vector<16x16xbf16>
    %cst_32 = arith.constant dense<0.000000e+00> : vector<16x16xf32>
    %72 = tpu.matmul %70, %71, %cst_32 {dimension_numbers = #tpu.dot_dimension_numbers<[1], [1], [0], [0], [0, 0, 1, 0], [], []>} : vector<16x16xbf16>, vector<16x16xbf16>, vector<16x16xf32> -> vector<16x16xf32>
    %cst_33 = arith.constant dense<0xFF800000> : vector<16xf32>
    %73 = vector.multi_reduction <maximumf>, %72, %cst_33 [1] : vector<16x16xf32> to vector<16xf32>
    %74 = vector.shape_cast %73 : vector<16xf32> to vector<16x1xf32>
    %75 = vector.broadcast %74 : vector<16x1xf32> to vector<16x16xf32>
    %76 = arith.subf %72, %75 : vector<16x16xf32>
    %77 = math.exp %76 : vector<16x16xf32>
    %cst_34 = arith.constant dense<0.000000e+00> : vector<16xf32>
    %78 = vector.multi_reduction <add>, %77, %cst_34 [1] : vector<16x16xf32> to vector<16xf32>
    %79 = vector.shape_cast %78 : vector<16xf32> to vector<16x1xf32>
    %80 = tpu.reciprocal %79 {approx = true} : vector<16x1xf32> -> vector<16x1xf32>
    %81 = vector.broadcast %80 : vector<16x1xf32> to vector<16x16xf32>
    %82 = arith.mulf %77, %81 : vector<16x16xf32>
    %83 = arith.truncf %82 : vector<16x16xf32> to vector<16x16xbf16>
    %84 = arith.truncf %67 : vector<16x16xf32> to vector<16x16xbf16>
    %cst_35 = arith.constant dense<0.000000e+00> : vector<16x16xf32>
    %85 = tpu.matmul %83, %84, %cst_35 {dimension_numbers = #tpu.dot_dimension_numbers<[1], [0], [0], [1], [0, 0, 1, 1], [], []>} : vector<16x16xbf16>, vector<16x16xbf16>, vector<16x16xf32> -> vector<16x16xf32>
    %86 = tpu.concatenate %64, %85 in 1 : vector<16x16xf32>, vector<16x16xf32> -> vector<16x32xf32>
    %c0_36 = arith.constant 0 : index
    %c0_37 = arith.constant 0 : index
    %c0_38 = arith.constant 0 : index
    %87 = vector.load %arg9[%c0_36, %c0_37, %c0_38] : memref<2x32x32xbf16, #tpu.memory_space<vmem>>, vector<1x32x32xbf16>
    %88 = vector.shape_cast %87 : vector<1x32x32xbf16> to vector<32x32xbf16>
    %89 = arith.truncf %86 : vector<16x32xf32> to vector<16x32xbf16>
    %cst_39 = arith.constant dense<0.000000e+00> : vector<16x32xf32>
    %90 = tpu.matmul %89, %88, %cst_39 {dimension_numbers = #tpu.dot_dimension_numbers<[1], [0], [0], [1], [0, 0, 1, 1], [], []>} : vector<16x32xbf16>, vector<32x32xbf16>, vector<16x32xf32> -> vector<16x32xf32>
    %91 = arith.addf %9, %90 : vector<16x32xf32>
    %c0_40 = arith.constant 0 : index
    %c0_41 = arith.constant 0 : index
    %c0_42 = arith.constant 0 : index
    %92 = vector.load %arg10[%c0_40, %c0_41, %c0_42] : memref<2x1x32xf32, #tpu.memory_space<vmem>>, vector<1x1x32xf32>
    %93 = vector.shape_cast %92 : vector<1x1x32xf32> to vector<1x32xf32>
    %94 = vector.broadcast %93 : vector<1x32xf32> to vector<16x32xf32>
    %95 = arith.addf %91, %94 : vector<16x32xf32>
    %c0_43 = arith.constant 0 : index
    %c0_44 = arith.constant 0 : index
    %c0_45 = arith.constant 0 : index
    %96 = vector.load %arg11[%c0_43, %c0_44, %c0_45] : memref<2x1x32xf32, #tpu.memory_space<vmem>>, vector<1x1x32xf32>
    %97 = vector.shape_cast %96 : vector<1x1x32xf32> to vector<1x32xf32>
    %c0_46 = arith.constant 0 : index
    %c0_47 = arith.constant 0 : index
    %c0_48 = arith.constant 0 : index
    %98 = vector.load %arg12[%c0_46, %c0_47, %c0_48] : memref<2x1x32xf32, #tpu.memory_space<vmem>>, vector<1x1x32xf32>
    %99 = vector.shape_cast %98 : vector<1x1x32xf32> to vector<1x32xf32>
    %cst_49 = arith.constant dense<0.000000e+00> : vector<16xf32>
    %100 = vector.multi_reduction <add>, %95, %cst_49 [1] : vector<16x32xf32> to vector<16xf32>
    %101 = vector.shape_cast %100 : vector<16xf32> to vector<16x1xf32>
    %cst_50 = arith.constant 3.200000e+01 : f32
    %102 = vector.broadcast %cst_50 : f32 to vector<16x1xf32>
    %103 = arith.divf %101, %102 : vector<16x1xf32>
    %104 = vector.broadcast %103 : vector<16x1xf32> to vector<16x32xf32>
    %105 = arith.subf %95, %104 : vector<16x32xf32>
    %106 = arith.mulf %105, %105 : vector<16x32xf32>
    %cst_51 = arith.constant dense<0.000000e+00> : vector<16xf32>
    %107 = vector.multi_reduction <add>, %106, %cst_51 [1] : vector<16x32xf32> to vector<16xf32>
    %108 = vector.shape_cast %107 : vector<16xf32> to vector<16x1xf32>
    %cst_52 = arith.constant 3.200000e+01 : f32
    %109 = vector.broadcast %cst_52 : f32 to vector<16x1xf32>
    %110 = arith.divf %108, %109 : vector<16x1xf32>
    %111 = vector.broadcast %103 : vector<16x1xf32> to vector<16x32xf32>
    %112 = arith.subf %95, %111 : vector<16x32xf32>
    %cst_53 = arith.constant 9.99999997E-7 : f32
    %113 = vector.broadcast %cst_53 : f32 to vector<16x1xf32>
    %114 = arith.addf %110, %113 : vector<16x1xf32>
    %115 = math.rsqrt %114 : vector<16x1xf32>
    %116 = vector.broadcast %115 : vector<16x1xf32> to vector<16x32xf32>
    %117 = arith.mulf %112, %116 : vector<16x32xf32>
    %118 = vector.broadcast %97 : vector<1x32xf32> to vector<16x32xf32>
    %119 = arith.mulf %117, %118 : vector<16x32xf32>
    %120 = vector.broadcast %99 : vector<1x32xf32> to vector<16x32xf32>
    %121 = arith.addf %119, %120 : vector<16x32xf32>
    %c0_54 = arith.constant 0 : index
    %c0_55 = arith.constant 0 : index
    %c0_56 = arith.constant 0 : index
    %122 = vector.load %arg13[%c0_54, %c0_55, %c0_56] : memref<2x32x64xbf16, #tpu.memory_space<vmem>>, vector<1x32x64xbf16>
    %123 = vector.shape_cast %122 : vector<1x32x64xbf16> to vector<32x64xbf16>
    %124 = arith.truncf %121 : vector<16x32xf32> to vector<16x32xbf16>
    %cst_57 = arith.constant dense<0.000000e+00> : vector<16x64xf32>
    %125 = tpu.matmul %124, %123, %cst_57 {dimension_numbers = #tpu.dot_dimension_numbers<[1], [0], [0], [1], [0, 0, 1, 1], [], []>} : vector<16x32xbf16>, vector<32x64xbf16>, vector<16x64xf32> -> vector<16x64xf32>
    %c0_58 = arith.constant 0 : index
    %c0_59 = arith.constant 0 : index
    %c0_60 = arith.constant 0 : index
    %126 = vector.load %arg14[%c0_58, %c0_59, %c0_60] : memref<2x1x64xf32, #tpu.memory_space<vmem>>, vector<1x1x64xf32>
    %127 = vector.shape_cast %126 : vector<1x1x64xf32> to vector<1x64xf32>
    %128 = vector.broadcast %127 : vector<1x64xf32> to vector<16x64xf32>
    %129 = arith.addf %125, %128 : vector<16x64xf32>
    %cst_61 = arith.constant 5.000000e-01 : f32
    %130 = vector.broadcast %cst_61 : f32 to vector<16x64xf32>
    %131 = arith.mulf %130, %129 : vector<16x64xf32>
    %cst_62 = arith.constant 4.471500e-02 : f32
    %132 = vector.broadcast %cst_62 : f32 to vector<16x64xf32>
    %133 = arith.mulf %132, %129 : vector<16x64xf32>
    %134 = arith.mulf %133, %129 : vector<16x64xf32>
    %135 = arith.mulf %134, %129 : vector<16x64xf32>
    %136 = arith.addf %129, %135 : vector<16x64xf32>
    %cst_63 = arith.constant 0.797884583 : f32
    %137 = vector.broadcast %cst_63 : f32 to vector<16x64xf32>
    %138 = arith.mulf %137, %136 : vector<16x64xf32>
    %139 = math.tanh %138 : vector<16x64xf32>
    %cst_64 = arith.constant 1.000000e+00 : f32
    %140 = vector.broadcast %cst_64 : f32 to vector<16x64xf32>
    %141 = arith.addf %140, %139 : vector<16x64xf32>
    %142 = arith.mulf %131, %141 : vector<16x64xf32>
    %c0_65 = arith.constant 0 : index
    %c0_66 = arith.constant 0 : index
    %c0_67 = arith.constant 0 : index
    %143 = vector.load %arg15[%c0_65, %c0_66, %c0_67] : memref<2x64x32xbf16, #tpu.memory_space<vmem>>, vector<1x64x32xbf16>
    %144 = vector.shape_cast %143 : vector<1x64x32xbf16> to vector<64x32xbf16>
    %145 = arith.truncf %142 : vector<16x64xf32> to vector<16x64xbf16>
    %cst_68 = arith.constant dense<0.000000e+00> : vector<16x32xf32>
    %146 = tpu.matmul %145, %144, %cst_68 {dimension_numbers = #tpu.dot_dimension_numbers<[1], [0], [0], [1], [0, 0, 1, 1], [], []>} : vector<16x64xbf16>, vector<64x32xbf16>, vector<16x32xf32> -> vector<16x32xf32>
    %147 = arith.addf %95, %146 : vector<16x32xf32>
    %c0_69 = arith.constant 0 : index
    %c0_70 = arith.constant 0 : index
    %c0_71 = arith.constant 0 : index
    %148 = vector.load %arg16[%c0_69, %c0_70, %c0_71] : memref<2x1x32xf32, #tpu.memory_space<vmem>>, vector<1x1x32xf32>
    %149 = vector.shape_cast %148 : vector<1x1x32xf32> to vector<1x32xf32>
    %150 = vector.broadcast %149 : vector<1x32xf32> to vector<16x32xf32>
    %151 = arith.addf %147, %150 : vector<16x32xf32>
    %c1 = arith.constant 1 : index
    %c0_72 = arith.constant 0 : index
    %c0_73 = arith.constant 0 : index
    %152 = vector.load %arg5[%c1, %c0_72, %c0_73] : memref<2x1x32xf32, #tpu.memory_space<vmem>>, vector<1x1x32xf32>
    %153 = vector.shape_cast %152 : vector<1x1x32xf32> to vector<1x32xf32>
    %c1_74 = arith.constant 1 : index
    %c0_75 = arith.constant 0 : index
    %c0_76 = arith.constant 0 : index
    %154 = vector.load %arg6[%c1_74, %c0_75, %c0_76] : memref<2x1x32xf32, #tpu.memory_space<vmem>>, vector<1x1x32xf32>
    %155 = vector.shape_cast %154 : vector<1x1x32xf32> to vector<1x32xf32>
    %cst_77 = arith.constant dense<0.000000e+00> : vector<16xf32>
    %156 = vector.multi_reduction <add>, %151, %cst_77 [1] : vector<16x32xf32> to vector<16xf32>
    %157 = vector.shape_cast %156 : vector<16xf32> to vector<16x1xf32>
    %cst_78 = arith.constant 3.200000e+01 : f32
    %158 = vector.broadcast %cst_78 : f32 to vector<16x1xf32>
    %159 = arith.divf %157, %158 : vector<16x1xf32>
    %160 = vector.broadcast %159 : vector<16x1xf32> to vector<16x32xf32>
    %161 = arith.subf %151, %160 : vector<16x32xf32>
    %162 = arith.mulf %161, %161 : vector<16x32xf32>
    %cst_79 = arith.constant dense<0.000000e+00> : vector<16xf32>
    %163 = vector.multi_reduction <add>, %162, %cst_79 [1] : vector<16x32xf32> to vector<16xf32>
    %164 = vector.shape_cast %163 : vector<16xf32> to vector<16x1xf32>
    %cst_80 = arith.constant 3.200000e+01 : f32
    %165 = vector.broadcast %cst_80 : f32 to vector<16x1xf32>
    %166 = arith.divf %164, %165 : vector<16x1xf32>
    %167 = vector.broadcast %159 : vector<16x1xf32> to vector<16x32xf32>
    %168 = arith.subf %151, %167 : vector<16x32xf32>
    %cst_81 = arith.constant 9.99999997E-7 : f32
    %169 = vector.broadcast %cst_81 : f32 to vector<16x1xf32>
    %170 = arith.addf %166, %169 : vector<16x1xf32>
    %171 = math.rsqrt %170 : vector<16x1xf32>
    %172 = vector.broadcast %171 : vector<16x1xf32> to vector<16x32xf32>
    %173 = arith.mulf %168, %172 : vector<16x32xf32>
    %174 = vector.broadcast %153 : vector<1x32xf32> to vector<16x32xf32>
    %175 = arith.mulf %173, %174 : vector<16x32xf32>
    %176 = vector.broadcast %155 : vector<1x32xf32> to vector<16x32xf32>
    %177 = arith.addf %175, %176 : vector<16x32xf32>
    %c1_82 = arith.constant 1 : index
    %c0_83 = arith.constant 0 : index
    %c0_84 = arith.constant 0 : index
    %178 = vector.load %arg7[%c1_82, %c0_83, %c0_84] : memref<2x32x96xbf16, #tpu.memory_space<vmem>>, vector<1x32x96xbf16>
    %179 = vector.shape_cast %178 : vector<1x32x96xbf16> to vector<32x96xbf16>
    %180 = arith.truncf %177 : vector<16x32xf32> to vector<16x32xbf16>
    %cst_85 = arith.constant dense<0.000000e+00> : vector<16x96xf32>
    %181 = tpu.matmul %180, %179, %cst_85 {dimension_numbers = #tpu.dot_dimension_numbers<[1], [0], [0], [1], [0, 0, 1, 1], [], []>} : vector<16x32xbf16>, vector<32x96xbf16>, vector<16x96xf32> -> vector<16x96xf32>
    %c1_86 = arith.constant 1 : index
    %c0_87 = arith.constant 0 : index
    %c0_88 = arith.constant 0 : index
    %182 = vector.load %arg8[%c1_86, %c0_87, %c0_88] : memref<2x1x96xf32, #tpu.memory_space<vmem>>, vector<1x1x96xf32>
    %183 = vector.shape_cast %182 : vector<1x1x96xf32> to vector<1x96xf32>
    %184 = vector.broadcast %183 : vector<1x96xf32> to vector<16x96xf32>
    %185 = arith.addf %181, %184 : vector<16x96xf32>
    %186 = vector.extract_strided_slice %185 {offsets = [0, 0], sizes = [16, 16], strides = [1, 1]} : vector<16x96xf32> to vector<16x16xf32>
    %187 = vector.extract_strided_slice %185 {offsets = [0, 32], sizes = [16, 16], strides = [1, 1]} : vector<16x96xf32> to vector<16x16xf32>
    %188 = vector.extract_strided_slice %185 {offsets = [0, 64], sizes = [16, 16], strides = [1, 1]} : vector<16x96xf32> to vector<16x16xf32>
    %cst_89 = arith.constant 2.500000e-01 : f32
    %189 = vector.broadcast %cst_89 : f32 to vector<16x16xf32>
    %190 = arith.mulf %186, %189 : vector<16x16xf32>
    %191 = arith.truncf %190 : vector<16x16xf32> to vector<16x16xbf16>
    %192 = arith.truncf %187 : vector<16x16xf32> to vector<16x16xbf16>
    %cst_90 = arith.constant dense<0.000000e+00> : vector<16x16xf32>
    %193 = tpu.matmul %191, %192, %cst_90 {dimension_numbers = #tpu.dot_dimension_numbers<[1], [1], [0], [0], [0, 0, 1, 0], [], []>} : vector<16x16xbf16>, vector<16x16xbf16>, vector<16x16xf32> -> vector<16x16xf32>
    %cst_91 = arith.constant dense<0xFF800000> : vector<16xf32>
    %194 = vector.multi_reduction <maximumf>, %193, %cst_91 [1] : vector<16x16xf32> to vector<16xf32>
    %195 = vector.shape_cast %194 : vector<16xf32> to vector<16x1xf32>
    %196 = vector.broadcast %195 : vector<16x1xf32> to vector<16x16xf32>
    %197 = arith.subf %193, %196 : vector<16x16xf32>
    %198 = math.exp %197 : vector<16x16xf32>
    %cst_92 = arith.constant dense<0.000000e+00> : vector<16xf32>
    %199 = vector.multi_reduction <add>, %198, %cst_92 [1] : vector<16x16xf32> to vector<16xf32>
    %200 = vector.shape_cast %199 : vector<16xf32> to vector<16x1xf32>
    %201 = tpu.reciprocal %200 {approx = true} : vector<16x1xf32> -> vector<16x1xf32>
    %202 = vector.broadcast %201 : vector<16x1xf32> to vector<16x16xf32>
    %203 = arith.mulf %198, %202 : vector<16x16xf32>
    %204 = arith.truncf %203 : vector<16x16xf32> to vector<16x16xbf16>
    %205 = arith.truncf %188 : vector<16x16xf32> to vector<16x16xbf16>
    %cst_93 = arith.constant dense<0.000000e+00> : vector<16x16xf32>
    %206 = tpu.matmul %204, %205, %cst_93 {dimension_numbers = #tpu.dot_dimension_numbers<[1], [0], [0], [1], [0, 0, 1, 1], [], []>} : vector<16x16xbf16>, vector<16x16xbf16>, vector<16x16xf32> -> vector<16x16xf32>
    %207 = vector.extract_strided_slice %185 {offsets = [0, 16], sizes = [16, 16], strides = [1, 1]} : vector<16x96xf32> to vector<16x16xf32>
    %208 = vector.extract_strided_slice %185 {offsets = [0, 48], sizes = [16, 16], strides = [1, 1]} : vector<16x96xf32> to vector<16x16xf32>
    %209 = vector.extract_strided_slice %185 {offsets = [0, 80], sizes = [16, 16], strides = [1, 1]} : vector<16x96xf32> to vector<16x16xf32>
    %cst_94 = arith.constant 2.500000e-01 : f32
    %210 = vector.broadcast %cst_94 : f32 to vector<16x16xf32>
    %211 = arith.mulf %207, %210 : vector<16x16xf32>
    %212 = arith.truncf %211 : vector<16x16xf32> to vector<16x16xbf16>
    %213 = arith.truncf %208 : vector<16x16xf32> to vector<16x16xbf16>
    %cst_95 = arith.constant dense<0.000000e+00> : vector<16x16xf32>
    %214 = tpu.matmul %212, %213, %cst_95 {dimension_numbers = #tpu.dot_dimension_numbers<[1], [1], [0], [0], [0, 0, 1, 0], [], []>} : vector<16x16xbf16>, vector<16x16xbf16>, vector<16x16xf32> -> vector<16x16xf32>
    %cst_96 = arith.constant dense<0xFF800000> : vector<16xf32>
    %215 = vector.multi_reduction <maximumf>, %214, %cst_96 [1] : vector<16x16xf32> to vector<16xf32>
    %216 = vector.shape_cast %215 : vector<16xf32> to vector<16x1xf32>
    %217 = vector.broadcast %216 : vector<16x1xf32> to vector<16x16xf32>
    %218 = arith.subf %214, %217 : vector<16x16xf32>
    %219 = math.exp %218 : vector<16x16xf32>
    %cst_97 = arith.constant dense<0.000000e+00> : vector<16xf32>
    %220 = vector.multi_reduction <add>, %219, %cst_97 [1] : vector<16x16xf32> to vector<16xf32>
    %221 = vector.shape_cast %220 : vector<16xf32> to vector<16x1xf32>
    %222 = tpu.reciprocal %221 {approx = true} : vector<16x1xf32> -> vector<16x1xf32>
    %223 = vector.broadcast %222 : vector<16x1xf32> to vector<16x16xf32>
    %224 = arith.mulf %219, %223 : vector<16x16xf32>
    %225 = arith.truncf %224 : vector<16x16xf32> to vector<16x16xbf16>
    %226 = arith.truncf %209 : vector<16x16xf32> to vector<16x16xbf16>
    %cst_98 = arith.constant dense<0.000000e+00> : vector<16x16xf32>
    %227 = tpu.matmul %225, %226, %cst_98 {dimension_numbers = #tpu.dot_dimension_numbers<[1], [0], [0], [1], [0, 0, 1, 1], [], []>} : vector<16x16xbf16>, vector<16x16xbf16>, vector<16x16xf32> -> vector<16x16xf32>
    %228 = tpu.concatenate %206, %227 in 1 : vector<16x16xf32>, vector<16x16xf32> -> vector<16x32xf32>
    %c1_99 = arith.constant 1 : index
    %c0_100 = arith.constant 0 : index
    %c0_101 = arith.constant 0 : index
    %229 = vector.load %arg9[%c1_99, %c0_100, %c0_101] : memref<2x32x32xbf16, #tpu.memory_space<vmem>>, vector<1x32x32xbf16>
    %230 = vector.shape_cast %229 : vector<1x32x32xbf16> to vector<32x32xbf16>
    %231 = arith.truncf %228 : vector<16x32xf32> to vector<16x32xbf16>
    %cst_102 = arith.constant dense<0.000000e+00> : vector<16x32xf32>
    %232 = tpu.matmul %231, %230, %cst_102 {dimension_numbers = #tpu.dot_dimension_numbers<[1], [0], [0], [1], [0, 0, 1, 1], [], []>} : vector<16x32xbf16>, vector<32x32xbf16>, vector<16x32xf32> -> vector<16x32xf32>
    %233 = arith.addf %151, %232 : vector<16x32xf32>
    %c1_103 = arith.constant 1 : index
    %c0_104 = arith.constant 0 : index
    %c0_105 = arith.constant 0 : index
    %234 = vector.load %arg10[%c1_103, %c0_104, %c0_105] : memref<2x1x32xf32, #tpu.memory_space<vmem>>, vector<1x1x32xf32>
    %235 = vector.shape_cast %234 : vector<1x1x32xf32> to vector<1x32xf32>
    %236 = vector.broadcast %235 : vector<1x32xf32> to vector<16x32xf32>
    %237 = arith.addf %233, %236 : vector<16x32xf32>
    %c1_106 = arith.constant 1 : index
    %c0_107 = arith.constant 0 : index
    %c0_108 = arith.constant 0 : index
    %238 = vector.load %arg11[%c1_106, %c0_107, %c0_108] : memref<2x1x32xf32, #tpu.memory_space<vmem>>, vector<1x1x32xf32>
    %239 = vector.shape_cast %238 : vector<1x1x32xf32> to vector<1x32xf32>
    %c1_109 = arith.constant 1 : index
    %c0_110 = arith.constant 0 : index
    %c0_111 = arith.constant 0 : index
    %240 = vector.load %arg12[%c1_109, %c0_110, %c0_111] : memref<2x1x32xf32, #tpu.memory_space<vmem>>, vector<1x1x32xf32>
    %241 = vector.shape_cast %240 : vector<1x1x32xf32> to vector<1x32xf32>
    %cst_112 = arith.constant dense<0.000000e+00> : vector<16xf32>
    %242 = vector.multi_reduction <add>, %237, %cst_112 [1] : vector<16x32xf32> to vector<16xf32>
    %243 = vector.shape_cast %242 : vector<16xf32> to vector<16x1xf32>
    %cst_113 = arith.constant 3.200000e+01 : f32
    %244 = vector.broadcast %cst_113 : f32 to vector<16x1xf32>
    %245 = arith.divf %243, %244 : vector<16x1xf32>
    %246 = vector.broadcast %245 : vector<16x1xf32> to vector<16x32xf32>
    %247 = arith.subf %237, %246 : vector<16x32xf32>
    %248 = arith.mulf %247, %247 : vector<16x32xf32>
    %cst_114 = arith.constant dense<0.000000e+00> : vector<16xf32>
    %249 = vector.multi_reduction <add>, %248, %cst_114 [1] : vector<16x32xf32> to vector<16xf32>
    %250 = vector.shape_cast %249 : vector<16xf32> to vector<16x1xf32>
    %cst_115 = arith.constant 3.200000e+01 : f32
    %251 = vector.broadcast %cst_115 : f32 to vector<16x1xf32>
    %252 = arith.divf %250, %251 : vector<16x1xf32>
    %253 = vector.broadcast %245 : vector<16x1xf32> to vector<16x32xf32>
    %254 = arith.subf %237, %253 : vector<16x32xf32>
    %cst_116 = arith.constant 9.99999997E-7 : f32
    %255 = vector.broadcast %cst_116 : f32 to vector<16x1xf32>
    %256 = arith.addf %252, %255 : vector<16x1xf32>
    %257 = math.rsqrt %256 : vector<16x1xf32>
    %258 = vector.broadcast %257 : vector<16x1xf32> to vector<16x32xf32>
    %259 = arith.mulf %254, %258 : vector<16x32xf32>
    %260 = vector.broadcast %239 : vector<1x32xf32> to vector<16x32xf32>
    %261 = arith.mulf %259, %260 : vector<16x32xf32>
    %262 = vector.broadcast %241 : vector<1x32xf32> to vector<16x32xf32>
    %263 = arith.addf %261, %262 : vector<16x32xf32>
    %c1_117 = arith.constant 1 : index
    %c0_118 = arith.constant 0 : index
    %c0_119 = arith.constant 0 : index
    %264 = vector.load %arg13[%c1_117, %c0_118, %c0_119] : memref<2x32x64xbf16, #tpu.memory_space<vmem>>, vector<1x32x64xbf16>
    %265 = vector.shape_cast %264 : vector<1x32x64xbf16> to vector<32x64xbf16>
    %266 = arith.truncf %263 : vector<16x32xf32> to vector<16x32xbf16>
    %cst_120 = arith.constant dense<0.000000e+00> : vector<16x64xf32>
    %267 = tpu.matmul %266, %265, %cst_120 {dimension_numbers = #tpu.dot_dimension_numbers<[1], [0], [0], [1], [0, 0, 1, 1], [], []>} : vector<16x32xbf16>, vector<32x64xbf16>, vector<16x64xf32> -> vector<16x64xf32>
    %c1_121 = arith.constant 1 : index
    %c0_122 = arith.constant 0 : index
    %c0_123 = arith.constant 0 : index
    %268 = vector.load %arg14[%c1_121, %c0_122, %c0_123] : memref<2x1x64xf32, #tpu.memory_space<vmem>>, vector<1x1x64xf32>
    %269 = vector.shape_cast %268 : vector<1x1x64xf32> to vector<1x64xf32>
    %270 = vector.broadcast %269 : vector<1x64xf32> to vector<16x64xf32>
    %271 = arith.addf %267, %270 : vector<16x64xf32>
    %cst_124 = arith.constant 5.000000e-01 : f32
    %272 = vector.broadcast %cst_124 : f32 to vector<16x64xf32>
    %273 = arith.mulf %272, %271 : vector<16x64xf32>
    %cst_125 = arith.constant 4.471500e-02 : f32
    %274 = vector.broadcast %cst_125 : f32 to vector<16x64xf32>
    %275 = arith.mulf %274, %271 : vector<16x64xf32>
    %276 = arith.mulf %275, %271 : vector<16x64xf32>
    %277 = arith.mulf %276, %271 : vector<16x64xf32>
    %278 = arith.addf %271, %277 : vector<16x64xf32>
    %cst_126 = arith.constant 0.797884583 : f32
    %279 = vector.broadcast %cst_126 : f32 to vector<16x64xf32>
    %280 = arith.mulf %279, %278 : vector<16x64xf32>
    %281 = math.tanh %280 : vector<16x64xf32>
    %cst_127 = arith.constant 1.000000e+00 : f32
    %282 = vector.broadcast %cst_127 : f32 to vector<16x64xf32>
    %283 = arith.addf %282, %281 : vector<16x64xf32>
    %284 = arith.mulf %273, %283 : vector<16x64xf32>
    %c1_128 = arith.constant 1 : index
    %c0_129 = arith.constant 0 : index
    %c0_130 = arith.constant 0 : index
    %285 = vector.load %arg15[%c1_128, %c0_129, %c0_130] : memref<2x64x32xbf16, #tpu.memory_space<vmem>>, vector<1x64x32xbf16>
    %286 = vector.shape_cast %285 : vector<1x64x32xbf16> to vector<64x32xbf16>
    %287 = arith.truncf %284 : vector<16x64xf32> to vector<16x64xbf16>
    %cst_131 = arith.constant dense<0.000000e+00> : vector<16x32xf32>
    %288 = tpu.matmul %287, %286, %cst_131 {dimension_numbers = #tpu.dot_dimension_numbers<[1], [0], [0], [1], [0, 0, 1, 1], [], []>} : vector<16x64xbf16>, vector<64x32xbf16>, vector<16x32xf32> -> vector<16x32xf32>
    %289 = arith.addf %237, %288 : vector<16x32xf32>
    %c1_132 = arith.constant 1 : index
    %c0_133 = arith.constant 0 : index
    %c0_134 = arith.constant 0 : index
    %290 = vector.load %arg16[%c1_132, %c0_133, %c0_134] : memref<2x1x32xf32, #tpu.memory_space<vmem>>, vector<1x1x32xf32>
    %291 = vector.shape_cast %290 : vector<1x1x32xf32> to vector<1x32xf32>
    %292 = vector.broadcast %291 : vector<1x32xf32> to vector<16x32xf32>
    %293 = arith.addf %289, %292 : vector<16x32xf32>
    %c0_135 = arith.constant 0 : index
    %c0_136 = arith.constant 0 : index
    %294 = vector.load %arg17[%c0_135, %c0_136] : memref<32x32xbf16, #tpu.memory_space<vmem>>, vector<32x32xbf16>
    %295 = arith.truncf %293 : vector<16x32xf32> to vector<16x32xbf16>
    %cst_137 = arith.constant dense<0.000000e+00> : vector<16x32xf32>
    %296 = tpu.matmul %295, %294, %cst_137 {dimension_numbers = #tpu.dot_dimension_numbers<[1], [0], [0], [1], [0, 0, 1, 1], [], []>} : vector<16x32xbf16>, vector<32x32xbf16>, vector<16x32xf32> -> vector<16x32xf32>
    %c0_138 = arith.constant 0 : index
    %c0_139 = arith.constant 0 : index
    %297 = vector.load %arg18[%c0_138, %c0_139] : memref<1x32xf32, #tpu.memory_space<vmem>>, vector<1x32xf32>
    %298 = vector.broadcast %297 : vector<1x32xf32> to vector<16x32xf32>
    %299 = arith.addf %296, %298 : vector<16x32xf32>
    %c0_140 = arith.constant 0 : index
    %c0_141 = arith.constant 0 : index
    %300 = vector.load %arg19[%c0_140, %c0_141] : memref<1x32xf32, #tpu.memory_space<vmem>>, vector<1x32xf32>
    %c0_142 = arith.constant 0 : index
    %c0_143 = arith.constant 0 : index
    %301 = vector.load %arg20[%c0_142, %c0_143] : memref<1x32xf32, #tpu.memory_space<vmem>>, vector<1x32xf32>
    %cst_144 = arith.constant dense<0.000000e+00> : vector<16xf32>
    %302 = vector.multi_reduction <add>, %299, %cst_144 [1] : vector<16x32xf32> to vector<16xf32>
    %303 = vector.shape_cast %302 : vector<16xf32> to vector<16x1xf32>
    %cst_145 = arith.constant 3.200000e+01 : f32
    %304 = vector.broadcast %cst_145 : f32 to vector<16x1xf32>
    %305 = arith.divf %303, %304 : vector<16x1xf32>
    %306 = vector.broadcast %305 : vector<16x1xf32> to vector<16x32xf32>
    %307 = arith.subf %299, %306 : vector<16x32xf32>
    %308 = arith.mulf %307, %307 : vector<16x32xf32>
    %cst_146 = arith.constant dense<0.000000e+00> : vector<16xf32>
    %309 = vector.multi_reduction <add>, %308, %cst_146 [1] : vector<16x32xf32> to vector<16xf32>
    %310 = vector.shape_cast %309 : vector<16xf32> to vector<16x1xf32>
    %cst_147 = arith.constant 3.200000e+01 : f32
    %311 = vector.broadcast %cst_147 : f32 to vector<16x1xf32>
    %312 = arith.divf %310, %311 : vector<16x1xf32>
    %313 = vector.broadcast %305 : vector<16x1xf32> to vector<16x32xf32>
    %314 = arith.subf %299, %313 : vector<16x32xf32>
    %cst_148 = arith.constant 9.99999997E-7 : f32
    %315 = vector.broadcast %cst_148 : f32 to vector<16x1xf32>
    %316 = arith.addf %312, %315 : vector<16x1xf32>
    %317 = math.rsqrt %316 : vector<16x1xf32>
    %318 = vector.broadcast %317 : vector<16x1xf32> to vector<16x32xf32>
    %319 = arith.mulf %314, %318 : vector<16x32xf32>
    %320 = vector.broadcast %300 : vector<1x32xf32> to vector<16x32xf32>
    %321 = arith.mulf %319, %320 : vector<16x32xf32>
    %322 = vector.broadcast %301 : vector<1x32xf32> to vector<16x32xf32>
    %323 = arith.addf %321, %322 : vector<16x32xf32>
    %cst_149 = arith.constant 0.000000e+00 : f32
    %324 = vector.broadcast %cst_149 : f32 to vector<16x32xf32>
    %cst_150 = arith.constant 0.000000e+00 : f32
    %325 = vector.broadcast %cst_150 : f32 to vector<5x32xf32>
    %326 = vector.extract_strided_slice %323 {offsets = [0, 0], sizes = [11, 32], strides = [1, 1]} : vector<16x32xf32> to vector<11x32xf32>
    %327 = tpu.concatenate %325, %326 in 0 : vector<5x32xf32>, vector<11x32xf32> -> vector<16x32xf32>
    %c0_151 = arith.constant 0 : index
    %c0_152 = arith.constant 0 : index
    %c0_153 = arith.constant 0 : index
    %328 = vector.load %arg21[%c0_151, %c0_152, %c0_153] : memref<9x16x1xf32, #tpu.memory_space<vmem>>, vector<1x16x1xf32>
    %329 = vector.shape_cast %328 : vector<1x16x1xf32> to vector<16x1xf32>
    %330 = vector.broadcast %329 : vector<16x1xf32> to vector<16x32xf32>
    %331 = arith.mulf %327, %330 : vector<16x32xf32>
    %c0_154 = arith.constant 0 : index
    %c0_155 = arith.constant 0 : index
    %c0_156 = arith.constant 0 : index
    %332 = vector.load %arg22[%c0_154, %c0_155, %c0_156] : memref<9x32x32xbf16, #tpu.memory_space<vmem>>, vector<1x32x32xbf16>
    %333 = vector.shape_cast %332 : vector<1x32x32xbf16> to vector<32x32xbf16>
    %334 = arith.truncf %331 : vector<16x32xf32> to vector<16x32xbf16>
    %cst_157 = arith.constant dense<0.000000e+00> : vector<16x32xf32>
    %335 = tpu.matmul %334, %333, %cst_157 {dimension_numbers = #tpu.dot_dimension_numbers<[1], [0], [0], [1], [0, 0, 1, 1], [], []>} : vector<16x32xbf16>, vector<32x32xbf16>, vector<16x32xf32> -> vector<16x32xf32>
    %336 = arith.addf %324, %335 : vector<16x32xf32>
    %cst_158 = arith.constant 0.000000e+00 : f32
    %337 = vector.broadcast %cst_158 : f32 to vector<4x32xf32>
    %338 = vector.extract_strided_slice %323 {offsets = [0, 0], sizes = [12, 32], strides = [1, 1]} : vector<16x32xf32> to vector<12x32xf32>
    %339 = tpu.concatenate %337, %338 in 0 : vector<4x32xf32>, vector<12x32xf32> -> vector<16x32xf32>
    %c1_159 = arith.constant 1 : index
    %c0_160 = arith.constant 0 : index
    %c0_161 = arith.constant 0 : index
    %340 = vector.load %arg21[%c1_159, %c0_160, %c0_161] : memref<9x16x1xf32, #tpu.memory_space<vmem>>, vector<1x16x1xf32>
    %341 = vector.shape_cast %340 : vector<1x16x1xf32> to vector<16x1xf32>
    %342 = vector.broadcast %341 : vector<16x1xf32> to vector<16x32xf32>
    %343 = arith.mulf %339, %342 : vector<16x32xf32>
    %c1_162 = arith.constant 1 : index
    %c0_163 = arith.constant 0 : index
    %c0_164 = arith.constant 0 : index
    %344 = vector.load %arg22[%c1_162, %c0_163, %c0_164] : memref<9x32x32xbf16, #tpu.memory_space<vmem>>, vector<1x32x32xbf16>
    %345 = vector.shape_cast %344 : vector<1x32x32xbf16> to vector<32x32xbf16>
    %346 = arith.truncf %343 : vector<16x32xf32> to vector<16x32xbf16>
    %cst_165 = arith.constant dense<0.000000e+00> : vector<16x32xf32>
    %347 = tpu.matmul %346, %345, %cst_165 {dimension_numbers = #tpu.dot_dimension_numbers<[1], [0], [0], [1], [0, 0, 1, 1], [], []>} : vector<16x32xbf16>, vector<32x32xbf16>, vector<16x32xf32> -> vector<16x32xf32>
    %348 = arith.addf %336, %347 : vector<16x32xf32>
    %cst_166 = arith.constant 0.000000e+00 : f32
    %349 = vector.broadcast %cst_166 : f32 to vector<3x32xf32>
    %350 = vector.extract_strided_slice %323 {offsets = [0, 0], sizes = [13, 32], strides = [1, 1]} : vector<16x32xf32> to vector<13x32xf32>
    %351 = tpu.concatenate %349, %350 in 0 : vector<3x32xf32>, vector<13x32xf32> -> vector<16x32xf32>
    %c2 = arith.constant 2 : index
    %c0_167 = arith.constant 0 : index
    %c0_168 = arith.constant 0 : index
    %352 = vector.load %arg21[%c2, %c0_167, %c0_168] : memref<9x16x1xf32, #tpu.memory_space<vmem>>, vector<1x16x1xf32>
    %353 = vector.shape_cast %352 : vector<1x16x1xf32> to vector<16x1xf32>
    %354 = vector.broadcast %353 : vector<16x1xf32> to vector<16x32xf32>
    %355 = arith.mulf %351, %354 : vector<16x32xf32>
    %c2_169 = arith.constant 2 : index
    %c0_170 = arith.constant 0 : index
    %c0_171 = arith.constant 0 : index
    %356 = vector.load %arg22[%c2_169, %c0_170, %c0_171] : memref<9x32x32xbf16, #tpu.memory_space<vmem>>, vector<1x32x32xbf16>
    %357 = vector.shape_cast %356 : vector<1x32x32xbf16> to vector<32x32xbf16>
    %358 = arith.truncf %355 : vector<16x32xf32> to vector<16x32xbf16>
    %cst_172 = arith.constant dense<0.000000e+00> : vector<16x32xf32>
    %359 = tpu.matmul %358, %357, %cst_172 {dimension_numbers = #tpu.dot_dimension_numbers<[1], [0], [0], [1], [0, 0, 1, 1], [], []>} : vector<16x32xbf16>, vector<32x32xbf16>, vector<16x32xf32> -> vector<16x32xf32>
    %360 = arith.addf %348, %359 : vector<16x32xf32>
    %cst_173 = arith.constant 0.000000e+00 : f32
    %361 = vector.broadcast %cst_173 : f32 to vector<1x32xf32>
    %362 = vector.extract_strided_slice %323 {offsets = [0, 0], sizes = [15, 32], strides = [1, 1]} : vector<16x32xf32> to vector<15x32xf32>
    %363 = tpu.concatenate %361, %362 in 0 : vector<1x32xf32>, vector<15x32xf32> -> vector<16x32xf32>
    %c3 = arith.constant 3 : index
    %c0_174 = arith.constant 0 : index
    %c0_175 = arith.constant 0 : index
    %364 = vector.load %arg21[%c3, %c0_174, %c0_175] : memref<9x16x1xf32, #tpu.memory_space<vmem>>, vector<1x16x1xf32>
    %365 = vector.shape_cast %364 : vector<1x16x1xf32> to vector<16x1xf32>
    %366 = vector.broadcast %365 : vector<16x1xf32> to vector<16x32xf32>
    %367 = arith.mulf %363, %366 : vector<16x32xf32>
    %c3_176 = arith.constant 3 : index
    %c0_177 = arith.constant 0 : index
    %c0_178 = arith.constant 0 : index
    %368 = vector.load %arg22[%c3_176, %c0_177, %c0_178] : memref<9x32x32xbf16, #tpu.memory_space<vmem>>, vector<1x32x32xbf16>
    %369 = vector.shape_cast %368 : vector<1x32x32xbf16> to vector<32x32xbf16>
    %370 = arith.truncf %367 : vector<16x32xf32> to vector<16x32xbf16>
    %cst_179 = arith.constant dense<0.000000e+00> : vector<16x32xf32>
    %371 = tpu.matmul %370, %369, %cst_179 {dimension_numbers = #tpu.dot_dimension_numbers<[1], [0], [0], [1], [0, 0, 1, 1], [], []>} : vector<16x32xbf16>, vector<32x32xbf16>, vector<16x32xf32> -> vector<16x32xf32>
    %372 = arith.addf %360, %371 : vector<16x32xf32>
    %c4 = arith.constant 4 : index
    %c0_180 = arith.constant 0 : index
    %c0_181 = arith.constant 0 : index
    %373 = vector.load %arg21[%c4, %c0_180, %c0_181] : memref<9x16x1xf32, #tpu.memory_space<vmem>>, vector<1x16x1xf32>
    %374 = vector.shape_cast %373 : vector<1x16x1xf32> to vector<16x1xf32>
    %375 = vector.broadcast %374 : vector<16x1xf32> to vector<16x32xf32>
    %376 = arith.mulf %323, %375 : vector<16x32xf32>
    %c4_182 = arith.constant 4 : index
    %c0_183 = arith.constant 0 : index
    %c0_184 = arith.constant 0 : index
    %377 = vector.load %arg22[%c4_182, %c0_183, %c0_184] : memref<9x32x32xbf16, #tpu.memory_space<vmem>>, vector<1x32x32xbf16>
    %378 = vector.shape_cast %377 : vector<1x32x32xbf16> to vector<32x32xbf16>
    %379 = arith.truncf %376 : vector<16x32xf32> to vector<16x32xbf16>
    %cst_185 = arith.constant dense<0.000000e+00> : vector<16x32xf32>
    %380 = tpu.matmul %379, %378, %cst_185 {dimension_numbers = #tpu.dot_dimension_numbers<[1], [0], [0], [1], [0, 0, 1, 1], [], []>} : vector<16x32xbf16>, vector<32x32xbf16>, vector<16x32xf32> -> vector<16x32xf32>
    %381 = arith.addf %372, %380 : vector<16x32xf32>
    %cst_186 = arith.constant 0.000000e+00 : f32
    %382 = vector.broadcast %cst_186 : f32 to vector<1x32xf32>
    %383 = vector.extract_strided_slice %323 {offsets = [1, 0], sizes = [15, 32], strides = [1, 1]} : vector<16x32xf32> to vector<15x32xf32>
    %384 = tpu.concatenate %383, %382 in 0 : vector<15x32xf32>, vector<1x32xf32> -> vector<16x32xf32>
    %c5 = arith.constant 5 : index
    %c0_187 = arith.constant 0 : index
    %c0_188 = arith.constant 0 : index
    %385 = vector.load %arg21[%c5, %c0_187, %c0_188] : memref<9x16x1xf32, #tpu.memory_space<vmem>>, vector<1x16x1xf32>
    %386 = vector.shape_cast %385 : vector<1x16x1xf32> to vector<16x1xf32>
    %387 = vector.broadcast %386 : vector<16x1xf32> to vector<16x32xf32>
    %388 = arith.mulf %384, %387 : vector<16x32xf32>
    %c5_189 = arith.constant 5 : index
    %c0_190 = arith.constant 0 : index
    %c0_191 = arith.constant 0 : index
    %389 = vector.load %arg22[%c5_189, %c0_190, %c0_191] : memref<9x32x32xbf16, #tpu.memory_space<vmem>>, vector<1x32x32xbf16>
    %390 = vector.shape_cast %389 : vector<1x32x32xbf16> to vector<32x32xbf16>
    %391 = arith.truncf %388 : vector<16x32xf32> to vector<16x32xbf16>
    %cst_192 = arith.constant dense<0.000000e+00> : vector<16x32xf32>
    %392 = tpu.matmul %391, %390, %cst_192 {dimension_numbers = #tpu.dot_dimension_numbers<[1], [0], [0], [1], [0, 0, 1, 1], [], []>} : vector<16x32xbf16>, vector<32x32xbf16>, vector<16x32xf32> -> vector<16x32xf32>
    %393 = arith.addf %381, %392 : vector<16x32xf32>
    %cst_193 = arith.constant 0.000000e+00 : f32
    %394 = vector.broadcast %cst_193 : f32 to vector<3x32xf32>
    %395 = vector.extract_strided_slice %323 {offsets = [3, 0], sizes = [13, 32], strides = [1, 1]} : vector<16x32xf32> to vector<13x32xf32>
    %396 = tpu.concatenate %395, %394 in 0 : vector<13x32xf32>, vector<3x32xf32> -> vector<16x32xf32>
    %c6 = arith.constant 6 : index
    %c0_194 = arith.constant 0 : index
    %c0_195 = arith.constant 0 : index
    %397 = vector.load %arg21[%c6, %c0_194, %c0_195] : memref<9x16x1xf32, #tpu.memory_space<vmem>>, vector<1x16x1xf32>
    %398 = vector.shape_cast %397 : vector<1x16x1xf32> to vector<16x1xf32>
    %399 = vector.broadcast %398 : vector<16x1xf32> to vector<16x32xf32>
    %400 = arith.mulf %396, %399 : vector<16x32xf32>
    %c6_196 = arith.constant 6 : index
    %c0_197 = arith.constant 0 : index
    %c0_198 = arith.constant 0 : index
    %401 = vector.load %arg22[%c6_196, %c0_197, %c0_198] : memref<9x32x32xbf16, #tpu.memory_space<vmem>>, vector<1x32x32xbf16>
    %402 = vector.shape_cast %401 : vector<1x32x32xbf16> to vector<32x32xbf16>
    %403 = arith.truncf %400 : vector<16x32xf32> to vector<16x32xbf16>
    %cst_199 = arith.constant dense<0.000000e+00> : vector<16x32xf32>
    %404 = tpu.matmul %403, %402, %cst_199 {dimension_numbers = #tpu.dot_dimension_numbers<[1], [0], [0], [1], [0, 0, 1, 1], [], []>} : vector<16x32xbf16>, vector<32x32xbf16>, vector<16x32xf32> -> vector<16x32xf32>
    %405 = arith.addf %393, %404 : vector<16x32xf32>
    %cst_200 = arith.constant 0.000000e+00 : f32
    %406 = vector.broadcast %cst_200 : f32 to vector<4x32xf32>
    %407 = vector.extract_strided_slice %323 {offsets = [4, 0], sizes = [12, 32], strides = [1, 1]} : vector<16x32xf32> to vector<12x32xf32>
    %408 = tpu.concatenate %407, %406 in 0 : vector<12x32xf32>, vector<4x32xf32> -> vector<16x32xf32>
    %c7 = arith.constant 7 : index
    %c0_201 = arith.constant 0 : index
    %c0_202 = arith.constant 0 : index
    %409 = vector.load %arg21[%c7, %c0_201, %c0_202] : memref<9x16x1xf32, #tpu.memory_space<vmem>>, vector<1x16x1xf32>
    %410 = vector.shape_cast %409 : vector<1x16x1xf32> to vector<16x1xf32>
    %411 = vector.broadcast %410 : vector<16x1xf32> to vector<16x32xf32>
    %412 = arith.mulf %408, %411 : vector<16x32xf32>
    %c7_203 = arith.constant 7 : index
    %c0_204 = arith.constant 0 : index
    %c0_205 = arith.constant 0 : index
    %413 = vector.load %arg22[%c7_203, %c0_204, %c0_205] : memref<9x32x32xbf16, #tpu.memory_space<vmem>>, vector<1x32x32xbf16>
    %414 = vector.shape_cast %413 : vector<1x32x32xbf16> to vector<32x32xbf16>
    %415 = arith.truncf %412 : vector<16x32xf32> to vector<16x32xbf16>
    %cst_206 = arith.constant dense<0.000000e+00> : vector<16x32xf32>
    %416 = tpu.matmul %415, %414, %cst_206 {dimension_numbers = #tpu.dot_dimension_numbers<[1], [0], [0], [1], [0, 0, 1, 1], [], []>} : vector<16x32xbf16>, vector<32x32xbf16>, vector<16x32xf32> -> vector<16x32xf32>
    %417 = arith.addf %405, %416 : vector<16x32xf32>
    %cst_207 = arith.constant 0.000000e+00 : f32
    %418 = vector.broadcast %cst_207 : f32 to vector<5x32xf32>
    %419 = vector.extract_strided_slice %323 {offsets = [5, 0], sizes = [11, 32], strides = [1, 1]} : vector<16x32xf32> to vector<11x32xf32>
    %420 = tpu.concatenate %419, %418 in 0 : vector<11x32xf32>, vector<5x32xf32> -> vector<16x32xf32>
    %c8 = arith.constant 8 : index
    %c0_208 = arith.constant 0 : index
    %c0_209 = arith.constant 0 : index
    %421 = vector.load %arg21[%c8, %c0_208, %c0_209] : memref<9x16x1xf32, #tpu.memory_space<vmem>>, vector<1x16x1xf32>
    %422 = vector.shape_cast %421 : vector<1x16x1xf32> to vector<16x1xf32>
    %423 = vector.broadcast %422 : vector<16x1xf32> to vector<16x32xf32>
    %424 = arith.mulf %420, %423 : vector<16x32xf32>
    %c8_210 = arith.constant 8 : index
    %c0_211 = arith.constant 0 : index
    %c0_212 = arith.constant 0 : index
    %425 = vector.load %arg22[%c8_210, %c0_211, %c0_212] : memref<9x32x32xbf16, #tpu.memory_space<vmem>>, vector<1x32x32xbf16>
    %426 = vector.shape_cast %425 : vector<1x32x32xbf16> to vector<32x32xbf16>
    %427 = arith.truncf %424 : vector<16x32xf32> to vector<16x32xbf16>
    %cst_213 = arith.constant dense<0.000000e+00> : vector<16x32xf32>
    %428 = tpu.matmul %427, %426, %cst_213 {dimension_numbers = #tpu.dot_dimension_numbers<[1], [0], [0], [1], [0, 0, 1, 1], [], []>} : vector<16x32xbf16>, vector<32x32xbf16>, vector<16x32xf32> -> vector<16x32xf32>
    %429 = arith.addf %417, %428 : vector<16x32xf32>
    %c0_214 = arith.constant 0 : index
    %c0_215 = arith.constant 0 : index
    %430 = vector.load %arg23[%c0_214, %c0_215] : memref<1x32xf32, #tpu.memory_space<vmem>>, vector<1x32xf32>
    %431 = vector.broadcast %430 : vector<1x32xf32> to vector<16x32xf32>
    %432 = arith.addf %429, %431 : vector<16x32xf32>
    %c0_216 = arith.constant 0 : index
    %c0_217 = arith.constant 0 : index
    %433 = vector.load %arg24[%c0_216, %c0_217] : memref<1x32xf32, #tpu.memory_space<vmem>>, vector<1x32xf32>
    %c0_218 = arith.constant 0 : index
    %c0_219 = arith.constant 0 : index
    %434 = vector.load %arg25[%c0_218, %c0_219] : memref<1x32xf32, #tpu.memory_space<vmem>>, vector<1x32xf32>
    %cst_220 = arith.constant dense<0.000000e+00> : vector<16xf32>
    %435 = vector.multi_reduction <add>, %432, %cst_220 [1] : vector<16x32xf32> to vector<16xf32>
    %436 = vector.shape_cast %435 : vector<16xf32> to vector<16x1xf32>
    %cst_221 = arith.constant 3.200000e+01 : f32
    %437 = vector.broadcast %cst_221 : f32 to vector<16x1xf32>
    %438 = arith.divf %436, %437 : vector<16x1xf32>
    %439 = vector.broadcast %438 : vector<16x1xf32> to vector<16x32xf32>
    %440 = arith.subf %432, %439 : vector<16x32xf32>
    %441 = arith.mulf %440, %440 : vector<16x32xf32>
    %cst_222 = arith.constant dense<0.000000e+00> : vector<16xf32>
    %442 = vector.multi_reduction <add>, %441, %cst_222 [1] : vector<16x32xf32> to vector<16xf32>
    %443 = vector.shape_cast %442 : vector<16xf32> to vector<16x1xf32>
    %cst_223 = arith.constant 3.200000e+01 : f32
    %444 = vector.broadcast %cst_223 : f32 to vector<16x1xf32>
    %445 = arith.divf %443, %444 : vector<16x1xf32>
    %446 = vector.broadcast %438 : vector<16x1xf32> to vector<16x32xf32>
    %447 = arith.subf %432, %446 : vector<16x32xf32>
    %cst_224 = arith.constant 9.99999997E-7 : f32
    %448 = vector.broadcast %cst_224 : f32 to vector<16x1xf32>
    %449 = arith.addf %445, %448 : vector<16x1xf32>
    %450 = math.rsqrt %449 : vector<16x1xf32>
    %451 = vector.broadcast %450 : vector<16x1xf32> to vector<16x32xf32>
    %452 = arith.mulf %447, %451 : vector<16x32xf32>
    %453 = vector.broadcast %433 : vector<1x32xf32> to vector<16x32xf32>
    %454 = arith.mulf %452, %453 : vector<16x32xf32>
    %455 = vector.broadcast %434 : vector<1x32xf32> to vector<16x32xf32>
    %456 = arith.addf %454, %455 : vector<16x32xf32>
    %c0_225 = arith.constant 0 : index
    %c0_226 = arith.constant 0 : index
    %c0_227 = arith.constant 0 : index
    %457 = vector.load %arg26[%c0_225, %c0_226, %c0_227] : memref<1x16x32xf32, #tpu.memory_space<vmem>>, vector<1x16x32xf32>
    %458 = vector.shape_cast %457 : vector<1x16x32xf32> to vector<16x32xf32>
    %459 = vector.shape_cast %456 : vector<16x32xf32> to vector<1x16x32xf32>
    tpu.vector_store %arg26[%c0_225, %c0_226, %c0_227], %459 {strides = array<i32>} : memref<1x16x32xf32, #tpu.memory_space<vmem>>, vector<1x16x32xf32>,
    return
  }
  func.func @transform_0(%arg0: i32) -> (i32, i32, i32) {
    %c0_i32 = arith.constant 0 : i32
    %c0_i32_0 = arith.constant 0 : i32
    %c0_i32_1 = arith.constant 0 : i32
    return %arg0, %c0_i32, %c0_i32_0 : i32, i32, i32
  }
  func.func @transform_1(%arg0: i32) -> (i32, i32) {
    %c0_i32 = arith.constant 0 : i32
    %c0_i32_0 = arith.constant 0 : i32
    %c0_i32_1 = arith.constant 0 : i32
    return %c0_i32, %c0_i32_0 : i32, i32
  }
  func.func @transform_2(%arg0: i32) -> (i32, i32) {
    %c0_i32 = arith.constant 0 : i32
    %c0_i32_0 = arith.constant 0 : i32
    %c0_i32_1 = arith.constant 0 : i32
    return %c0_i32, %c0_i32_0 : i32, i32
  }
  func.func @transform_3(%arg0: i32) -> (i32, i32) {
    %c0_i32 = arith.constant 0 : i32
    %c0_i32_0 = arith.constant 0 : i32
    %c0_i32_1 = arith.constant 0 : i32
    return %c0_i32, %c0_i32_0 : i32, i32
  }
  func.func @transform_4(%arg0: i32) -> (i32, i32, i32) {
    %c0_i32 = arith.constant 0 : i32
    %c0_i32_0 = arith.constant 0 : i32
    %c0_i32_1 = arith.constant 0 : i32
    %c0_i32_2 = arith.constant 0 : i32
    return %c0_i32, %c0_i32_0, %c0_i32_1 : i32, i32, i32
  }
  func.func @transform_5(%arg0: i32) -> (i32, i32, i32) {
    %c0_i32 = arith.constant 0 : i32
    %c0_i32_0 = arith.constant 0 : i32
    %c0_i32_1 = arith.constant 0 : i32
    %c0_i32_2 = arith.constant 0 : i32
    return %c0_i32, %c0_i32_0, %c0_i32_1 : i32, i32, i32
  }
  func.func @transform_6(%arg0: i32) -> (i32, i32, i32) {
    %c0_i32 = arith.constant 0 : i32
    %c0_i32_0 = arith.constant 0 : i32
    %c0_i32_1 = arith.constant 0 : i32
    %c0_i32_2 = arith.constant 0 : i32
    return %c0_i32, %c0_i32_0, %c0_i32_1 : i32, i32, i32
  }
  func.func @transform_7(%arg0: i32) -> (i32, i32, i32) {
    %c0_i32 = arith.constant 0 : i32
    %c0_i32_0 = arith.constant 0 : i32
    %c0_i32_1 = arith.constant 0 : i32
    %c0_i32_2 = arith.constant 0 : i32
    return %c0_i32, %c0_i32_0, %c0_i32_1 : i32, i32, i32
  }
  func.func @transform_8(%arg0: i32) -> (i32, i32, i32) {
    %c0_i32 = arith.constant 0 : i32
    %c0_i32_0 = arith.constant 0 : i32
    %c0_i32_1 = arith.constant 0 : i32
    %c0_i32_2 = arith.constant 0 : i32
    return %c0_i32, %c0_i32_0, %c0_i32_1 : i32, i32, i32
  }
  func.func @transform_9(%arg0: i32) -> (i32, i32, i32) {
    %c0_i32 = arith.constant 0 : i32
    %c0_i32_0 = arith.constant 0 : i32
    %c0_i32_1 = arith.constant 0 : i32
    %c0_i32_2 = arith.constant 0 : i32
    return %c0_i32, %c0_i32_0, %c0_i32_1 : i32, i32, i32
  }
  func.func @transform_10(%arg0: i32) -> (i32, i32, i32) {
    %c0_i32 = arith.constant 0 : i32
    %c0_i32_0 = arith.constant 0 : i32
    %c0_i32_1 = arith.constant 0 : i32
    %c0_i32_2 = arith.constant 0 : i32
    return %c0_i32, %c0_i32_0, %c0_i32_1 : i32, i32, i32
  }
  func.func @transform_11(%arg0: i32) -> (i32, i32, i32) {
    %c0_i32 = arith.constant 0 : i32
    %c0_i32_0 = arith.constant 0 : i32
    %c0_i32_1 = arith.constant 0 : i32
    %c0_i32_2 = arith.constant 0 : i32
    return %c0_i32, %c0_i32_0, %c0_i32_1 : i32, i32, i32
  }
  func.func @transform_12(%arg0: i32) -> (i32, i32, i32) {
    %c0_i32 = arith.constant 0 : i32
    %c0_i32_0 = arith.constant 0 : i32
    %c0_i32_1 = arith.constant 0 : i32
    %c0_i32_2 = arith.constant 0 : i32
    return %c0_i32, %c0_i32_0, %c0_i32_1 : i32, i32, i32
  }
  func.func @transform_13(%arg0: i32) -> (i32, i32, i32) {
    %c0_i32 = arith.constant 0 : i32
    %c0_i32_0 = arith.constant 0 : i32
    %c0_i32_1 = arith.constant 0 : i32
    %c0_i32_2 = arith.constant 0 : i32
    return %c0_i32, %c0_i32_0, %c0_i32_1 : i32, i32, i32
  }
  func.func @transform_14(%arg0: i32) -> (i32, i32, i32) {
    %c0_i32 = arith.constant 0 : i32
    %c0_i32_0 = arith.constant 0 : i32
    %c0_i32_1 = arith.constant 0 : i32
    %c0_i32_2 = arith.constant 0 : i32
    return %c0_i32, %c0_i32_0, %c0_i32_1 : i32, i32, i32
  }
  func.func @transform_15(%arg0: i32) -> (i32, i32, i32) {
    %c0_i32 = arith.constant 0 : i32
    %c0_i32_0 = arith.constant 0 : i32
    %c0_i32_1 = arith.constant 0 : i32
    %c0_i32_2 = arith.constant 0 : i32
    return %c0_i32, %c0_i32_0, %c0_i32_1 : i32, i32, i32
  }
  func.func @transform_16(%arg0: i32) -> (i32, i32) {
    %c0_i32 = arith.constant 0 : i32
    %c0_i32_0 = arith.constant 0 : i32
    %c0_i32_1 = arith.constant 0 : i32
    return %c0_i32, %c0_i32_0 : i32, i32
  }
  func.func @transform_17(%arg0: i32) -> (i32, i32) {
    %c0_i32 = arith.constant 0 : i32
    %c0_i32_0 = arith.constant 0 : i32
    %c0_i32_1 = arith.constant 0 : i32
    return %c0_i32, %c0_i32_0 : i32, i32
  }
  func.func @transform_18(%arg0: i32) -> (i32, i32) {
    %c0_i32 = arith.constant 0 : i32
    %c0_i32_0 = arith.constant 0 : i32
    %c0_i32_1 = arith.constant 0 : i32
    return %c0_i32, %c0_i32_0 : i32, i32
  }
  func.func @transform_19(%arg0: i32) -> (i32, i32) {
    %c0_i32 = arith.constant 0 : i32
    %c0_i32_0 = arith.constant 0 : i32
    %c0_i32_1 = arith.constant 0 : i32
    return %c0_i32, %c0_i32_0 : i32, i32
  }
  func.func @transform_20(%arg0: i32) -> (i32, i32, i32) {
    %c0_i32 = arith.constant 0 : i32
    %c0_i32_0 = arith.constant 0 : i32
    %c0_i32_1 = arith.constant 0 : i32
    %c0_i32_2 = arith.constant 0 : i32
    return %c0_i32, %c0_i32_0, %c0_i32_1 : i32, i32, i32
  }
  func.func @transform_21(%arg0: i32) -> (i32, i32, i32) {
    %c0_i32 = arith.constant 0 : i32
    %c0_i32_0 = arith.constant 0 : i32
    %c0_i32_1 = arith.constant 0 : i32
    %c0_i32_2 = arith.constant 0 : i32
    return %c0_i32, %c0_i32_0, %c0_i32_1 : i32, i32, i32
  }
  func.func @transform_22(%arg0: i32) -> (i32, i32) {
    %c0_i32 = arith.constant 0 : i32
    %c0_i32_0 = arith.constant 0 : i32
    %c0_i32_1 = arith.constant 0 : i32
    return %c0_i32, %c0_i32_0 : i32, i32
  }
  func.func @transform_23(%arg0: i32) -> (i32, i32) {
    %c0_i32 = arith.constant 0 : i32
    %c0_i32_0 = arith.constant 0 : i32
    %c0_i32_1 = arith.constant 0 : i32
    return %c0_i32, %c0_i32_0 : i32, i32
  }
  func.func @transform_24(%arg0: i32) -> (i32, i32) {
    %c0_i32 = arith.constant 0 : i32
    %c0_i32_0 = arith.constant 0 : i32
    %c0_i32_1 = arith.constant 0 : i32
    return %c0_i32, %c0_i32_0 : i32, i32
  }
  func.func @transform_25(%arg0: i32) -> (i32, i32, i32) {
    %c0_i32 = arith.constant 0 : i32
    %c0_i32_0 = arith.constant 0 : i32
    %c0_i32_1 = arith.constant 0 : i32
    return %arg0, %c0_i32, %c0_i32_0 : i32, i32, i32
  }
}

module attributes {stable_mosaic.version = 11 : i64} {
  func.func @_decoder_kernel(%arg0: i32, %arg1: memref<1x16x32xf32, #tpu.memory_space<vmem>>, %arg2: memref<16x32xf32, #tpu.memory_space<vmem>>, %arg3: memref<4x32xf32, #tpu.memory_space<vmem>>, %arg4: memref<32x32xbf16, #tpu.memory_space<vmem>>, %arg5: memref<1x32xf32, #tpu.memory_space<vmem>>, %arg6: memref<32x32xbf16, #tpu.memory_space<vmem>>, %arg7: memref<1x32xf32, #tpu.memory_space<vmem>>, %arg8: memref<32x32xbf16, #tpu.memory_space<vmem>>, %arg9: memref<1x32xf32, #tpu.memory_space<vmem>>, %arg10: memref<32x32xbf16, #tpu.memory_space<vmem>>, %arg11: memref<1x32xf32, #tpu.memory_space<vmem>>, %arg12: memref<1x32xf32, #tpu.memory_space<vmem>>, %arg13: memref<1x32xf32, #tpu.memory_space<vmem>>, %arg14: memref<32x64xbf16, #tpu.memory_space<vmem>>, %arg15: memref<1x64xf32, #tpu.memory_space<vmem>>, %arg16: memref<64x32xbf16, #tpu.memory_space<vmem>>, %arg17: memref<1x32xf32, #tpu.memory_space<vmem>>, %arg18: memref<32x128xbf16, #tpu.memory_space<vmem>>, %arg19: memref<1x128xf32, #tpu.memory_space<vmem>>, %arg20: memref<32x8xbf16, #tpu.memory_space<vmem>>, %arg21: memref<1x8xf32, #tpu.memory_space<vmem>>, %arg22: memref<1x4x8xf32, #tpu.memory_space<vmem>>, %arg23: memref<1x16x128xf32, #tpu.memory_space<vmem>>) attributes {dimension_semantics = [#tpu.dimension_semantics<parallel>], iteration_bounds = array<i64: 2>, scalar_prefetch = 0 : i64, scratch_operands = 0 : i64, tpu.core_type = #tpu.core_type<tc>, window_params = [{transform_indices = @transform_0, window_bounds = array<i64: 1, 16, 32>}, {pipeline_mode = #tpu.pipeline_mode<synchronous>, transform_indices = @transform_1, window_bounds = array<i64: 16, 32>}, {pipeline_mode = #tpu.pipeline_mode<synchronous>, transform_indices = @transform_2, window_bounds = array<i64: 4, 32>}, {pipeline_mode = #tpu.pipeline_mode<synchronous>, transform_indices = @transform_3, window_bounds = array<i64: 32, 32>}, {pipeline_mode = #tpu.pipeline_mode<synchronous>, transform_indices = @transform_4, window_bounds = array<i64: 1, 32>}, {pipeline_mode = #tpu.pipeline_mode<synchronous>, transform_indices = @transform_5, window_bounds = array<i64: 32, 32>}, {pipeline_mode = #tpu.pipeline_mode<synchronous>, transform_indices = @transform_6, window_bounds = array<i64: 1, 32>}, {pipeline_mode = #tpu.pipeline_mode<synchronous>, transform_indices = @transform_7, window_bounds = array<i64: 32, 32>}, {pipeline_mode = #tpu.pipeline_mode<synchronous>, transform_indices = @transform_8, window_bounds = array<i64: 1, 32>}, {pipeline_mode = #tpu.pipeline_mode<synchronous>, transform_indices = @transform_9, window_bounds = array<i64: 32, 32>}, {pipeline_mode = #tpu.pipeline_mode<synchronous>, transform_indices = @transform_10, window_bounds = array<i64: 1, 32>}, {pipeline_mode = #tpu.pipeline_mode<synchronous>, transform_indices = @transform_11, window_bounds = array<i64: 1, 32>}, {pipeline_mode = #tpu.pipeline_mode<synchronous>, transform_indices = @transform_12, window_bounds = array<i64: 1, 32>}, {pipeline_mode = #tpu.pipeline_mode<synchronous>, transform_indices = @transform_13, window_bounds = array<i64: 32, 64>}, {pipeline_mode = #tpu.pipeline_mode<synchronous>, transform_indices = @transform_14, window_bounds = array<i64: 1, 64>}, {pipeline_mode = #tpu.pipeline_mode<synchronous>, transform_indices = @transform_15, window_bounds = array<i64: 64, 32>}, {pipeline_mode = #tpu.pipeline_mode<synchronous>, transform_indices = @transform_16, window_bounds = array<i64: 1, 32>}, {pipeline_mode = #tpu.pipeline_mode<synchronous>, transform_indices = @transform_17, window_bounds = array<i64: 32, 128>}, {pipeline_mode = #tpu.pipeline_mode<synchronous>, transform_indices = @transform_18, window_bounds = array<i64: 1, 128>}, {pipeline_mode = #tpu.pipeline_mode<synchronous>, transform_indices = @transform_19, window_bounds = array<i64: 32, 8>}, {pipeline_mode = #tpu.pipeline_mode<synchronous>, transform_indices = @transform_20, window_bounds = array<i64: 1, 8>}, {transform_indices = @transform_21, window_bounds = array<i64: 1, 4, 8>}, {transform_indices = @transform_22, window_bounds = array<i64: 1, 16, 128>}]} {
    %c0 = arith.constant 0 : index
    %c0_0 = arith.constant 0 : index
    %c0_1 = arith.constant 0 : index
    %0 = vector.load %arg1[%c0, %c0_0, %c0_1] : memref<1x16x32xf32, #tpu.memory_space<vmem>>, vector<1x16x32xf32>
    %1 = vector.shape_cast %0 : vector<1x16x32xf32> to vector<16x32xf32>
    %c0_2 = arith.constant 0 : index
    %c0_3 = arith.constant 0 : index
    %2 = vector.load %arg3[%c0_2, %c0_3] : memref<4x32xf32, #tpu.memory_space<vmem>>, vector<4x32xf32>
    %c0_4 = arith.constant 0 : index
    %c0_5 = arith.constant 0 : index
    %3 = vector.load %arg2[%c0_4, %c0_5] : memref<16x32xf32, #tpu.memory_space<vmem>>, vector<16x32xf32>
    %4 = arith.addf %1, %3 : vector<16x32xf32>
    %c0_6 = arith.constant 0 : index
    %c0_7 = arith.constant 0 : index
    %5 = vector.load %arg4[%c0_6, %c0_7] : memref<32x32xbf16, #tpu.memory_space<vmem>>, vector<32x32xbf16>
    %6 = arith.truncf %2 : vector<4x32xf32> to vector<4x32xbf16>
    %cst = arith.constant dense<0.000000e+00> : vector<4x32xf32>
    %7 = tpu.matmul %6, %5, %cst {dimension_numbers = #tpu.dot_dimension_numbers<[1], [0], [0], [1], [0, 0, 1, 1], [], []>} : vector<4x32xbf16>, vector<32x32xbf16>, vector<4x32xf32> -> vector<4x32xf32>
    %c0_8 = arith.constant 0 : index
    %c0_9 = arith.constant 0 : index
    %8 = vector.load %arg5[%c0_8, %c0_9] : memref<1x32xf32, #tpu.memory_space<vmem>>, vector<1x32xf32>
    %9 = vector.broadcast %8 : vector<1x32xf32> to vector<4x32xf32>
    %10 = arith.addf %7, %9 : vector<4x32xf32>
    %c0_10 = arith.constant 0 : index
    %c0_11 = arith.constant 0 : index
    %11 = vector.load %arg6[%c0_10, %c0_11] : memref<32x32xbf16, #tpu.memory_space<vmem>>, vector<32x32xbf16>
    %12 = arith.truncf %4 : vector<16x32xf32> to vector<16x32xbf16>
    %cst_12 = arith.constant dense<0.000000e+00> : vector<16x32xf32>
    %13 = tpu.matmul %12, %11, %cst_12 {dimension_numbers = #tpu.dot_dimension_numbers<[1], [0], [0], [1], [0, 0, 1, 1], [], []>} : vector<16x32xbf16>, vector<32x32xbf16>, vector<16x32xf32> -> vector<16x32xf32>
    %c0_13 = arith.constant 0 : index
    %c0_14 = arith.constant 0 : index
    %14 = vector.load %arg7[%c0_13, %c0_14] : memref<1x32xf32, #tpu.memory_space<vmem>>, vector<1x32xf32>
    %15 = vector.broadcast %14 : vector<1x32xf32> to vector<16x32xf32>
    %16 = arith.addf %13, %15 : vector<16x32xf32>
    %c0_15 = arith.constant 0 : index
    %c0_16 = arith.constant 0 : index
    %17 = vector.load %arg8[%c0_15, %c0_16] : memref<32x32xbf16, #tpu.memory_space<vmem>>, vector<32x32xbf16>
    %18 = arith.truncf %1 : vector<16x32xf32> to vector<16x32xbf16>
    %cst_17 = arith.constant dense<0.000000e+00> : vector<16x32xf32>
    %19 = tpu.matmul %18, %17, %cst_17 {dimension_numbers = #tpu.dot_dimension_numbers<[1], [0], [0], [1], [0, 0, 1, 1], [], []>} : vector<16x32xbf16>, vector<32x32xbf16>, vector<16x32xf32> -> vector<16x32xf32>
    %c0_18 = arith.constant 0 : index
    %c0_19 = arith.constant 0 : index
    %20 = vector.load %arg9[%c0_18, %c0_19] : memref<1x32xf32, #tpu.memory_space<vmem>>, vector<1x32xf32>
    %21 = vector.broadcast %20 : vector<1x32xf32> to vector<16x32xf32>
    %22 = arith.addf %19, %21 : vector<16x32xf32>
    %23 = vector.extract_strided_slice %10 {offsets = [0, 0], sizes = [4, 16], strides = [1, 1]} : vector<4x32xf32> to vector<4x16xf32>
    %cst_20 = arith.constant 2.500000e-01 : f32
    %24 = vector.broadcast %cst_20 : f32 to vector<4x16xf32>
    %25 = arith.mulf %23, %24 : vector<4x16xf32>
    %26 = vector.extract_strided_slice %16 {offsets = [0, 0], sizes = [16, 16], strides = [1, 1]} : vector<16x32xf32> to vector<16x16xf32>
    %27 = arith.truncf %25 : vector<4x16xf32> to vector<4x16xbf16>
    %28 = arith.truncf %26 : vector<16x16xf32> to vector<16x16xbf16>
    %cst_21 = arith.constant dense<0.000000e+00> : vector<4x16xf32>
    %29 = tpu.matmul %27, %28, %cst_21 {dimension_numbers = #tpu.dot_dimension_numbers<[1], [1], [0], [0], [0, 0, 1, 0], [], []>} : vector<4x16xbf16>, vector<16x16xbf16>, vector<4x16xf32> -> vector<4x16xf32>
    %cst_22 = arith.constant dense<0xFF800000> : vector<4xf32>
    %30 = vector.multi_reduction <maximumf>, %29, %cst_22 [1] : vector<4x16xf32> to vector<4xf32>
    %31 = vector.shape_cast %30 : vector<4xf32> to vector<4x1xf32>
    %32 = vector.broadcast %31 : vector<4x1xf32> to vector<4x16xf32>
    %33 = arith.subf %29, %32 : vector<4x16xf32>
    %34 = math.exp %33 : vector<4x16xf32>
    %cst_23 = arith.constant dense<0.000000e+00> : vector<4xf32>
    %35 = vector.multi_reduction <add>, %34, %cst_23 [1] : vector<4x16xf32> to vector<4xf32>
    %36 = vector.shape_cast %35 : vector<4xf32> to vector<4x1xf32>
    %37 = tpu.reciprocal %36 {approx = true} : vector<4x1xf32> -> vector<4x1xf32>
    %38 = vector.broadcast %37 : vector<4x1xf32> to vector<4x16xf32>
    %39 = arith.mulf %34, %38 : vector<4x16xf32>
    %40 = vector.extract_strided_slice %22 {offsets = [0, 0], sizes = [16, 16], strides = [1, 1]} : vector<16x32xf32> to vector<16x16xf32>
    %41 = arith.truncf %39 : vector<4x16xf32> to vector<4x16xbf16>
    %42 = arith.truncf %40 : vector<16x16xf32> to vector<16x16xbf16>
    %cst_24 = arith.constant dense<0.000000e+00> : vector<4x16xf32>
    %43 = tpu.matmul %41, %42, %cst_24 {dimension_numbers = #tpu.dot_dimension_numbers<[1], [0], [0], [1], [0, 0, 1, 1], [], []>} : vector<4x16xbf16>, vector<16x16xbf16>, vector<4x16xf32> -> vector<4x16xf32>
    %44 = vector.extract_strided_slice %10 {offsets = [0, 16], sizes = [4, 16], strides = [1, 1]} : vector<4x32xf32> to vector<4x16xf32>
    %cst_25 = arith.constant 2.500000e-01 : f32
    %45 = vector.broadcast %cst_25 : f32 to vector<4x16xf32>
    %46 = arith.mulf %44, %45 : vector<4x16xf32>
    %47 = vector.extract_strided_slice %16 {offsets = [0, 16], sizes = [16, 16], strides = [1, 1]} : vector<16x32xf32> to vector<16x16xf32>
    %48 = arith.truncf %46 : vector<4x16xf32> to vector<4x16xbf16>
    %49 = arith.truncf %47 : vector<16x16xf32> to vector<16x16xbf16>
    %cst_26 = arith.constant dense<0.000000e+00> : vector<4x16xf32>
    %50 = tpu.matmul %48, %49, %cst_26 {dimension_numbers = #tpu.dot_dimension_numbers<[1], [1], [0], [0], [0, 0, 1, 0], [], []>} : vector<4x16xbf16>, vector<16x16xbf16>, vector<4x16xf32> -> vector<4x16xf32>
    %cst_27 = arith.constant dense<0xFF800000> : vector<4xf32>
    %51 = vector.multi_reduction <maximumf>, %50, %cst_27 [1] : vector<4x16xf32> to vector<4xf32>
    %52 = vector.shape_cast %51 : vector<4xf32> to vector<4x1xf32>
    %53 = vector.broadcast %52 : vector<4x1xf32> to vector<4x16xf32>
    %54 = arith.subf %50, %53 : vector<4x16xf32>
    %55 = math.exp %54 : vector<4x16xf32>
    %cst_28 = arith.constant dense<0.000000e+00> : vector<4xf32>
    %56 = vector.multi_reduction <add>, %55, %cst_28 [1] : vector<4x16xf32> to vector<4xf32>
    %57 = vector.shape_cast %56 : vector<4xf32> to vector<4x1xf32>
    %58 = tpu.reciprocal %57 {approx = true} : vector<4x1xf32> -> vector<4x1xf32>
    %59 = vector.broadcast %58 : vector<4x1xf32> to vector<4x16xf32>
    %60 = arith.mulf %55, %59 : vector<4x16xf32>
    %61 = vector.extract_strided_slice %22 {offsets = [0, 16], sizes = [16, 16], strides = [1, 1]} : vector<16x32xf32> to vector<16x16xf32>
    %62 = arith.truncf %60 : vector<4x16xf32> to vector<4x16xbf16>
    %63 = arith.truncf %61 : vector<16x16xf32> to vector<16x16xbf16>
    %cst_29 = arith.constant dense<0.000000e+00> : vector<4x16xf32>
    %64 = tpu.matmul %62, %63, %cst_29 {dimension_numbers = #tpu.dot_dimension_numbers<[1], [0], [0], [1], [0, 0, 1, 1], [], []>} : vector<4x16xbf16>, vector<16x16xbf16>, vector<4x16xf32> -> vector<4x16xf32>
    %65 = tpu.concatenate %43, %64 in 1 : vector<4x16xf32>, vector<4x16xf32> -> vector<4x32xf32>
    %c0_30 = arith.constant 0 : index
    %c0_31 = arith.constant 0 : index
    %66 = vector.load %arg10[%c0_30, %c0_31] : memref<32x32xbf16, #tpu.memory_space<vmem>>, vector<32x32xbf16>
    %67 = arith.truncf %65 : vector<4x32xf32> to vector<4x32xbf16>
    %cst_32 = arith.constant dense<0.000000e+00> : vector<4x32xf32>
    %68 = tpu.matmul %67, %66, %cst_32 {dimension_numbers = #tpu.dot_dimension_numbers<[1], [0], [0], [1], [0, 0, 1, 1], [], []>} : vector<4x32xbf16>, vector<32x32xbf16>, vector<4x32xf32> -> vector<4x32xf32>
    %c0_33 = arith.constant 0 : index
    %c0_34 = arith.constant 0 : index
    %69 = vector.load %arg11[%c0_33, %c0_34] : memref<1x32xf32, #tpu.memory_space<vmem>>, vector<1x32xf32>
    %70 = vector.broadcast %69 : vector<1x32xf32> to vector<4x32xf32>
    %71 = arith.addf %68, %70 : vector<4x32xf32>
    %72 = arith.addf %2, %71 : vector<4x32xf32>
    %c0_35 = arith.constant 0 : index
    %c0_36 = arith.constant 0 : index
    %73 = vector.load %arg12[%c0_35, %c0_36] : memref<1x32xf32, #tpu.memory_space<vmem>>, vector<1x32xf32>
    %c0_37 = arith.constant 0 : index
    %c0_38 = arith.constant 0 : index
    %74 = vector.load %arg13[%c0_37, %c0_38] : memref<1x32xf32, #tpu.memory_space<vmem>>, vector<1x32xf32>
    %cst_39 = arith.constant dense<0.000000e+00> : vector<4xf32>
    %75 = vector.multi_reduction <add>, %72, %cst_39 [1] : vector<4x32xf32> to vector<4xf32>
    %76 = vector.shape_cast %75 : vector<4xf32> to vector<4x1xf32>
    %cst_40 = arith.constant 3.200000e+01 : f32
    %77 = vector.broadcast %cst_40 : f32 to vector<4x1xf32>
    %78 = arith.divf %76, %77 : vector<4x1xf32>
    %79 = vector.broadcast %78 : vector<4x1xf32> to vector<4x32xf32>
    %80 = arith.subf %72, %79 : vector<4x32xf32>
    %81 = arith.mulf %80, %80 : vector<4x32xf32>
    %cst_41 = arith.constant dense<0.000000e+00> : vector<4xf32>
    %82 = vector.multi_reduction <add>, %81, %cst_41 [1] : vector<4x32xf32> to vector<4xf32>
    %83 = vector.shape_cast %82 : vector<4xf32> to vector<4x1xf32>
    %cst_42 = arith.constant 3.200000e+01 : f32
    %84 = vector.broadcast %cst_42 : f32 to vector<4x1xf32>
    %85 = arith.divf %83, %84 : vector<4x1xf32>
    %86 = vector.broadcast %78 : vector<4x1xf32> to vector<4x32xf32>
    %87 = arith.subf %72, %86 : vector<4x32xf32>
    %cst_43 = arith.constant 9.99999997E-7 : f32
    %88 = vector.broadcast %cst_43 : f32 to vector<4x1xf32>
    %89 = arith.addf %85, %88 : vector<4x1xf32>
    %90 = math.rsqrt %89 : vector<4x1xf32>
    %91 = vector.broadcast %90 : vector<4x1xf32> to vector<4x32xf32>
    %92 = arith.mulf %87, %91 : vector<4x32xf32>
    %93 = vector.broadcast %73 : vector<1x32xf32> to vector<4x32xf32>
    %94 = arith.mulf %92, %93 : vector<4x32xf32>
    %95 = vector.broadcast %74 : vector<1x32xf32> to vector<4x32xf32>
    %96 = arith.addf %94, %95 : vector<4x32xf32>
    %c0_44 = arith.constant 0 : index
    %c0_45 = arith.constant 0 : index
    %97 = vector.load %arg14[%c0_44, %c0_45] : memref<32x64xbf16, #tpu.memory_space<vmem>>, vector<32x64xbf16>
    %98 = arith.truncf %96 : vector<4x32xf32> to vector<4x32xbf16>
    %cst_46 = arith.constant dense<0.000000e+00> : vector<4x64xf32>
    %99 = tpu.matmul %98, %97, %cst_46 {dimension_numbers = #tpu.dot_dimension_numbers<[1], [0], [0], [1], [0, 0, 1, 1], [], []>} : vector<4x32xbf16>, vector<32x64xbf16>, vector<4x64xf32> -> vector<4x64xf32>
    %c0_47 = arith.constant 0 : index
    %c0_48 = arith.constant 0 : index
    %100 = vector.load %arg15[%c0_47, %c0_48] : memref<1x64xf32, #tpu.memory_space<vmem>>, vector<1x64xf32>
    %101 = vector.broadcast %100 : vector<1x64xf32> to vector<4x64xf32>
    %102 = arith.addf %99, %101 : vector<4x64xf32>
    %cst_49 = arith.constant 5.000000e-01 : f32
    %103 = vector.broadcast %cst_49 : f32 to vector<4x64xf32>
    %104 = arith.mulf %103, %102 : vector<4x64xf32>
    %cst_50 = arith.constant 4.471500e-02 : f32
    %105 = vector.broadcast %cst_50 : f32 to vector<4x64xf32>
    %106 = arith.mulf %105, %102 : vector<4x64xf32>
    %107 = arith.mulf %106, %102 : vector<4x64xf32>
    %108 = arith.mulf %107, %102 : vector<4x64xf32>
    %109 = arith.addf %102, %108 : vector<4x64xf32>
    %cst_51 = arith.constant 0.797884583 : f32
    %110 = vector.broadcast %cst_51 : f32 to vector<4x64xf32>
    %111 = arith.mulf %110, %109 : vector<4x64xf32>
    %112 = math.tanh %111 : vector<4x64xf32>
    %cst_52 = arith.constant 1.000000e+00 : f32
    %113 = vector.broadcast %cst_52 : f32 to vector<4x64xf32>
    %114 = arith.addf %113, %112 : vector<4x64xf32>
    %115 = arith.mulf %104, %114 : vector<4x64xf32>
    %c0_53 = arith.constant 0 : index
    %c0_54 = arith.constant 0 : index
    %116 = vector.load %arg16[%c0_53, %c0_54] : memref<64x32xbf16, #tpu.memory_space<vmem>>, vector<64x32xbf16>
    %117 = arith.truncf %115 : vector<4x64xf32> to vector<4x64xbf16>
    %cst_55 = arith.constant dense<0.000000e+00> : vector<4x32xf32>
    %118 = tpu.matmul %117, %116, %cst_55 {dimension_numbers = #tpu.dot_dimension_numbers<[1], [0], [0], [1], [0, 0, 1, 1], [], []>} : vector<4x64xbf16>, vector<64x32xbf16>, vector<4x32xf32> -> vector<4x32xf32>
    %c0_56 = arith.constant 0 : index
    %c0_57 = arith.constant 0 : index
    %119 = vector.load %arg17[%c0_56, %c0_57] : memref<1x32xf32, #tpu.memory_space<vmem>>, vector<1x32xf32>
    %120 = vector.broadcast %119 : vector<1x32xf32> to vector<4x32xf32>
    %121 = arith.addf %118, %120 : vector<4x32xf32>
    %122 = arith.addf %72, %121 : vector<4x32xf32>
    %c0_58 = arith.constant 0 : index
    %c0_59 = arith.constant 0 : index
    %123 = vector.load %arg20[%c0_58, %c0_59] : memref<32x8xbf16, #tpu.memory_space<vmem>>, vector<32x8xbf16>
    %124 = arith.truncf %122 : vector<4x32xf32> to vector<4x32xbf16>
    %cst_60 = arith.constant dense<0.000000e+00> : vector<4x8xf32>
    %125 = tpu.matmul %124, %123, %cst_60 {dimension_numbers = #tpu.dot_dimension_numbers<[1], [0], [0], [1], [0, 0, 1, 1], [], []>} : vector<4x32xbf16>, vector<32x8xbf16>, vector<4x8xf32> -> vector<4x8xf32>
    %c0_61 = arith.constant 0 : index
    %c0_62 = arith.constant 0 : index
    %126 = vector.load %arg21[%c0_61, %c0_62] : memref<1x8xf32, #tpu.memory_space<vmem>>, vector<1x8xf32>
    %127 = vector.broadcast %126 : vector<1x8xf32> to vector<4x8xf32>
    %128 = arith.addf %125, %127 : vector<4x8xf32>
    %c0_63 = arith.constant 0 : index
    %c0_64 = arith.constant 0 : index
    %c0_65 = arith.constant 0 : index
    %129 = vector.load %arg22[%c0_63, %c0_64, %c0_65] : memref<1x4x8xf32, #tpu.memory_space<vmem>>, vector<1x4x8xf32>
    %130 = vector.shape_cast %129 : vector<1x4x8xf32> to vector<4x8xf32>
    %131 = vector.shape_cast %128 : vector<4x8xf32> to vector<1x4x8xf32>
    tpu.vector_store %arg22[%c0_63, %c0_64, %c0_65], %131 {strides = array<i32>} : memref<1x4x8xf32, #tpu.memory_space<vmem>>, vector<1x4x8xf32>,
    %c0_66 = arith.constant 0 : index
    %c0_67 = arith.constant 0 : index
    %132 = vector.load %arg18[%c0_66, %c0_67] : memref<32x128xbf16, #tpu.memory_space<vmem>>, vector<32x128xbf16>
    %133 = arith.truncf %1 : vector<16x32xf32> to vector<16x32xbf16>
    %cst_68 = arith.constant dense<0.000000e+00> : vector<16x128xf32>
    %134 = tpu.matmul %133, %132, %cst_68 {dimension_numbers = #tpu.dot_dimension_numbers<[1], [0], [0], [1], [0, 0, 1, 1], [], []>} : vector<16x32xbf16>, vector<32x128xbf16>, vector<16x128xf32> -> vector<16x128xf32>
    %c0_69 = arith.constant 0 : index
    %c0_70 = arith.constant 0 : index
    %135 = vector.load %arg19[%c0_69, %c0_70] : memref<1x128xf32, #tpu.memory_space<vmem>>, vector<1x128xf32>
    %136 = vector.broadcast %135 : vector<1x128xf32> to vector<16x128xf32>
    %137 = arith.addf %134, %136 : vector<16x128xf32>
    %cst_71 = arith.constant 5.000000e-01 : f32
    %138 = vector.broadcast %cst_71 : f32 to vector<16x128xf32>
    %139 = arith.mulf %138, %137 : vector<16x128xf32>
    %cst_72 = arith.constant 4.471500e-02 : f32
    %140 = vector.broadcast %cst_72 : f32 to vector<16x128xf32>
    %141 = arith.mulf %140, %137 : vector<16x128xf32>
    %142 = arith.mulf %141, %137 : vector<16x128xf32>
    %143 = arith.mulf %142, %137 : vector<16x128xf32>
    %144 = arith.addf %137, %143 : vector<16x128xf32>
    %cst_73 = arith.constant 0.797884583 : f32
    %145 = vector.broadcast %cst_73 : f32 to vector<16x128xf32>
    %146 = arith.mulf %145, %144 : vector<16x128xf32>
    %147 = math.tanh %146 : vector<16x128xf32>
    %cst_74 = arith.constant 1.000000e+00 : f32
    %148 = vector.broadcast %cst_74 : f32 to vector<16x128xf32>
    %149 = arith.addf %148, %147 : vector<16x128xf32>
    %150 = arith.mulf %139, %149 : vector<16x128xf32>
    %c0_75 = arith.constant 0 : index
    %c0_76 = arith.constant 0 : index
    %c0_77 = arith.constant 0 : index
    %151 = vector.load %arg23[%c0_75, %c0_76, %c0_77] : memref<1x16x128xf32, #tpu.memory_space<vmem>>, vector<1x16x128xf32>
    %152 = vector.shape_cast %151 : vector<1x16x128xf32> to vector<16x128xf32>
    %153 = vector.shape_cast %150 : vector<16x128xf32> to vector<1x16x128xf32>
    tpu.vector_store %arg23[%c0_75, %c0_76, %c0_77], %153 {strides = array<i32>} : memref<1x16x128xf32, #tpu.memory_space<vmem>>, vector<1x16x128xf32>,
    return
  }
  func.func @transform_0(%arg0: i32) -> (i32, i32, i32) {
    %c0_i32 = arith.constant 0 : i32
    %c0_i32_0 = arith.constant 0 : i32
    %c0_i32_1 = arith.constant 0 : i32
    return %arg0, %c0_i32, %c0_i32_0 : i32, i32, i32
  }
  func.func @transform_1(%arg0: i32) -> (i32, i32) {
    %c0_i32 = arith.constant 0 : i32
    %c0_i32_0 = arith.constant 0 : i32
    %c0_i32_1 = arith.constant 0 : i32
    return %c0_i32, %c0_i32_0 : i32, i32
  }
  func.func @transform_2(%arg0: i32) -> (i32, i32) {
    %c0_i32 = arith.constant 0 : i32
    %c0_i32_0 = arith.constant 0 : i32
    %c0_i32_1 = arith.constant 0 : i32
    return %c0_i32, %c0_i32_0 : i32, i32
  }
  func.func @transform_3(%arg0: i32) -> (i32, i32) {
    %c0_i32 = arith.constant 0 : i32
    %c0_i32_0 = arith.constant 0 : i32
    %c0_i32_1 = arith.constant 0 : i32
    return %c0_i32, %c0_i32_0 : i32, i32
  }
  func.func @transform_4(%arg0: i32) -> (i32, i32) {
    %c0_i32 = arith.constant 0 : i32
    %c0_i32_0 = arith.constant 0 : i32
    %c0_i32_1 = arith.constant 0 : i32
    return %c0_i32, %c0_i32_0 : i32, i32
  }
  func.func @transform_5(%arg0: i32) -> (i32, i32) {
    %c0_i32 = arith.constant 0 : i32
    %c0_i32_0 = arith.constant 0 : i32
    %c0_i32_1 = arith.constant 0 : i32
    return %c0_i32, %c0_i32_0 : i32, i32
  }
  func.func @transform_6(%arg0: i32) -> (i32, i32) {
    %c0_i32 = arith.constant 0 : i32
    %c0_i32_0 = arith.constant 0 : i32
    %c0_i32_1 = arith.constant 0 : i32
    return %c0_i32, %c0_i32_0 : i32, i32
  }
  func.func @transform_7(%arg0: i32) -> (i32, i32) {
    %c0_i32 = arith.constant 0 : i32
    %c0_i32_0 = arith.constant 0 : i32
    %c0_i32_1 = arith.constant 0 : i32
    return %c0_i32, %c0_i32_0 : i32, i32
  }
  func.func @transform_8(%arg0: i32) -> (i32, i32) {
    %c0_i32 = arith.constant 0 : i32
    %c0_i32_0 = arith.constant 0 : i32
    %c0_i32_1 = arith.constant 0 : i32
    return %c0_i32, %c0_i32_0 : i32, i32
  }
  func.func @transform_9(%arg0: i32) -> (i32, i32) {
    %c0_i32 = arith.constant 0 : i32
    %c0_i32_0 = arith.constant 0 : i32
    %c0_i32_1 = arith.constant 0 : i32
    return %c0_i32, %c0_i32_0 : i32, i32
  }
  func.func @transform_10(%arg0: i32) -> (i32, i32) {
    %c0_i32 = arith.constant 0 : i32
    %c0_i32_0 = arith.constant 0 : i32
    %c0_i32_1 = arith.constant 0 : i32
    return %c0_i32, %c0_i32_0 : i32, i32
  }
  func.func @transform_11(%arg0: i32) -> (i32, i32) {
    %c0_i32 = arith.constant 0 : i32
    %c0_i32_0 = arith.constant 0 : i32
    %c0_i32_1 = arith.constant 0 : i32
    return %c0_i32, %c0_i32_0 : i32, i32
  }
  func.func @transform_12(%arg0: i32) -> (i32, i32) {
    %c0_i32 = arith.constant 0 : i32
    %c0_i32_0 = arith.constant 0 : i32
    %c0_i32_1 = arith.constant 0 : i32
    return %c0_i32, %c0_i32_0 : i32, i32
  }
  func.func @transform_13(%arg0: i32) -> (i32, i32) {
    %c0_i32 = arith.constant 0 : i32
    %c0_i32_0 = arith.constant 0 : i32
    %c0_i32_1 = arith.constant 0 : i32
    return %c0_i32, %c0_i32_0 : i32, i32
  }
  func.func @transform_14(%arg0: i32) -> (i32, i32) {
    %c0_i32 = arith.constant 0 : i32
    %c0_i32_0 = arith.constant 0 : i32
    %c0_i32_1 = arith.constant 0 : i32
    return %c0_i32, %c0_i32_0 : i32, i32
  }
  func.func @transform_15(%arg0: i32) -> (i32, i32) {
    %c0_i32 = arith.constant 0 : i32
    %c0_i32_0 = arith.constant 0 : i32
    %c0_i32_1 = arith.constant 0 : i32
    return %c0_i32, %c0_i32_0 : i32, i32
  }
  func.func @transform_16(%arg0: i32) -> (i32, i32) {
    %c0_i32 = arith.constant 0 : i32
    %c0_i32_0 = arith.constant 0 : i32
    %c0_i32_1 = arith.constant 0 : i32
    return %c0_i32, %c0_i32_0 : i32, i32
  }
  func.func @transform_17(%arg0: i32) -> (i32, i32) {
    %c0_i32 = arith.constant 0 : i32
    %c0_i32_0 = arith.constant 0 : i32
    %c0_i32_1 = arith.constant 0 : i32
    return %c0_i32, %c0_i32_0 : i32, i32
  }
  func.func @transform_18(%arg0: i32) -> (i32, i32) {
    %c0_i32 = arith.constant 0 : i32
    %c0_i32_0 = arith.constant 0 : i32
    %c0_i32_1 = arith.constant 0 : i32
    return %c0_i32, %c0_i32_0 : i32, i32
  }
  func.func @transform_19(%arg0: i32) -> (i32, i32) {
    %c0_i32 = arith.constant 0 : i32
    %c0_i32_0 = arith.constant 0 : i32
    %c0_i32_1 = arith.constant 0 : i32
    return %c0_i32, %c0_i32_0 : i32, i32
  }
  func.func @transform_20(%arg0: i32) -> (i32, i32) {
    %c0_i32 = arith.constant 0 : i32
    %c0_i32_0 = arith.constant 0 : i32
    %c0_i32_1 = arith.constant 0 : i32
    return %c0_i32, %c0_i32_0 : i32, i32
  }
  func.func @transform_21(%arg0: i32) -> (i32, i32, i32) {
    %c0_i32 = arith.constant 0 : i32
    %c0_i32_0 = arith.constant 0 : i32
    %c0_i32_1 = arith.constant 0 : i32
    return %arg0, %c0_i32, %c0_i32_0 : i32, i32, i32
  }
  func.func @transform_22(%arg0: i32) -> (i32, i32, i32) {
    %c0_i32 = arith.constant 0 : i32
    %c0_i32_0 = arith.constant 0 : i32
    %c0_i32_1 = arith.constant 0 : i32
    return %arg0, %c0_i32, %c0_i32_0 : i32, i32, i32
  }
}

module attributes {stable_mosaic.version = 11 : i64} {
  func.func @_upsample_softmax_kernel(%arg0: i32, %arg1: memref<64xf32, #tpu.memory_space<smem>>, %arg2: memref<1x8x16x16xf32, #tpu.memory_space<vmem>>, %arg3: memref<64x16xf32, #tpu.memory_space<vmem>>, %arg4: memref<16x64xf32, #tpu.memory_space<vmem>>, %arg5: memref<1x64x256xf32, #tpu.memory_space<vmem>>) attributes {dimension_semantics = [#tpu.dimension_semantics<parallel>], iteration_bounds = array<i64: 2>, scalar_prefetch = 0 : i64, scratch_operands = 0 : i64, tpu.core_type = #tpu.core_type<tc>, window_params = [{transform_indices = @transform_0, window_bounds = array<i64: 64>}, {transform_indices = @transform_1, window_bounds = array<i64: 1, 8, 16, 16>}, {pipeline_mode = #tpu.pipeline_mode<synchronous>, transform_indices = @transform_2, window_bounds = array<i64: 64, 16>}, {pipeline_mode = #tpu.pipeline_mode<synchronous>, transform_indices = @transform_3, window_bounds = array<i64: 16, 64>}, {transform_indices = @transform_4, window_bounds = array<i64: 1, 64, 256>}]} {
    %c0 = arith.constant 0 : index
    %c0_0 = arith.constant 0 : index
    %0 = vector.load %arg3[%c0, %c0_0] : memref<64x16xf32, #tpu.memory_space<vmem>>, vector<64x16xf32>
    %c0_1 = arith.constant 0 : index
    %c0_2 = arith.constant 0 : index
    %1 = vector.load %arg4[%c0_1, %c0_2] : memref<16x64xf32, #tpu.memory_space<vmem>>, vector<16x64xf32>
    %c4_i32 = arith.constant 4 : i32
    %2 = arith.muli %arg0, %c4_i32 : i32
    %c8_i32 = arith.constant 8 : i32
    %3 = arith.muli %2, %c8_i32 : i32
    %cst = arith.constant 0.000000e+00 : f32
    %4 = vector.broadcast %cst : f32 to vector<16x16xf32>
    %c0_i32 = arith.constant 0 : i32
    %5 = arith.addi %3, %c0_i32 : i32
    %c0_i32_3 = arith.constant 0 : i32
    %6 = arith.addi %5, %c0_i32_3 : i32
    %7 = arith.index_cast %6 : i32 to index
    %8 = memref.load %arg1[%7] : memref<64xf32, #tpu.memory_space<smem>>
    %c0_4 = arith.constant 0 : index
    %c0_5 = arith.constant 0 : index
    %c0_6 = arith.constant 0 : index
    %c0_7 = arith.constant 0 : index
    %9 = vector.load %arg2[%c0_4, %c0_5, %c0_6, %c0_7] : memref<1x8x16x16xf32, #tpu.memory_space<vmem>>, vector<1x1x16x16xf32>
    %10 = vector.shape_cast %9 : vector<1x1x16x16xf32> to vector<16x16xf32>
    %11 = vector.broadcast %8 : f32 to vector<16x16xf32>
    %12 = arith.mulf %11, %10 : vector<16x16xf32>
    %13 = arith.addf %4, %12 : vector<16x16xf32>
    %c0_i32_8 = arith.constant 0 : i32
    %14 = arith.addi %3, %c0_i32_8 : i32
    %c1_i32 = arith.constant 1 : i32
    %15 = arith.addi %14, %c1_i32 : i32
    %16 = arith.index_cast %15 : i32 to index
    %17 = memref.load %arg1[%16] : memref<64xf32, #tpu.memory_space<smem>>
    %c0_9 = arith.constant 0 : index
    %c1 = arith.constant 1 : index
    %c0_10 = arith.constant 0 : index
    %c0_11 = arith.constant 0 : index
    %18 = vector.load %arg2[%c0_9, %c1, %c0_10, %c0_11] : memref<1x8x16x16xf32, #tpu.memory_space<vmem>>, vector<1x1x16x16xf32>
    %19 = vector.shape_cast %18 : vector<1x1x16x16xf32> to vector<16x16xf32>
    %20 = vector.broadcast %17 : f32 to vector<16x16xf32>
    %21 = arith.mulf %20, %19 : vector<16x16xf32>
    %22 = arith.addf %13, %21 : vector<16x16xf32>
    %c0_i32_12 = arith.constant 0 : i32
    %23 = arith.addi %3, %c0_i32_12 : i32
    %c2_i32 = arith.constant 2 : i32
    %24 = arith.addi %23, %c2_i32 : i32
    %25 = arith.index_cast %24 : i32 to index
    %26 = memref.load %arg1[%25] : memref<64xf32, #tpu.memory_space<smem>>
    %c0_13 = arith.constant 0 : index
    %c2 = arith.constant 2 : index
    %c0_14 = arith.constant 0 : index
    %c0_15 = arith.constant 0 : index
    %27 = vector.load %arg2[%c0_13, %c2, %c0_14, %c0_15] : memref<1x8x16x16xf32, #tpu.memory_space<vmem>>, vector<1x1x16x16xf32>
    %28 = vector.shape_cast %27 : vector<1x1x16x16xf32> to vector<16x16xf32>
    %29 = vector.broadcast %26 : f32 to vector<16x16xf32>
    %30 = arith.mulf %29, %28 : vector<16x16xf32>
    %31 = arith.addf %22, %30 : vector<16x16xf32>
    %c0_i32_16 = arith.constant 0 : i32
    %32 = arith.addi %3, %c0_i32_16 : i32
    %c3_i32 = arith.constant 3 : i32
    %33 = arith.addi %32, %c3_i32 : i32
    %34 = arith.index_cast %33 : i32 to index
    %35 = memref.load %arg1[%34] : memref<64xf32, #tpu.memory_space<smem>>
    %c0_17 = arith.constant 0 : index
    %c3 = arith.constant 3 : index
    %c0_18 = arith.constant 0 : index
    %c0_19 = arith.constant 0 : index
    %36 = vector.load %arg2[%c0_17, %c3, %c0_18, %c0_19] : memref<1x8x16x16xf32, #tpu.memory_space<vmem>>, vector<1x1x16x16xf32>
    %37 = vector.shape_cast %36 : vector<1x1x16x16xf32> to vector<16x16xf32>
    %38 = vector.broadcast %35 : f32 to vector<16x16xf32>
    %39 = arith.mulf %38, %37 : vector<16x16xf32>
    %40 = arith.addf %31, %39 : vector<16x16xf32>
    %c0_i32_20 = arith.constant 0 : i32
    %41 = arith.addi %3, %c0_i32_20 : i32
    %c4_i32_21 = arith.constant 4 : i32
    %42 = arith.addi %41, %c4_i32_21 : i32
    %43 = arith.index_cast %42 : i32 to index
    %44 = memref.load %arg1[%43] : memref<64xf32, #tpu.memory_space<smem>>
    %c0_22 = arith.constant 0 : index
    %c4 = arith.constant 4 : index
    %c0_23 = arith.constant 0 : index
    %c0_24 = arith.constant 0 : index
    %45 = vector.load %arg2[%c0_22, %c4, %c0_23, %c0_24] : memref<1x8x16x16xf32, #tpu.memory_space<vmem>>, vector<1x1x16x16xf32>
    %46 = vector.shape_cast %45 : vector<1x1x16x16xf32> to vector<16x16xf32>
    %47 = vector.broadcast %44 : f32 to vector<16x16xf32>
    %48 = arith.mulf %47, %46 : vector<16x16xf32>
    %49 = arith.addf %40, %48 : vector<16x16xf32>
    %c0_i32_25 = arith.constant 0 : i32
    %50 = arith.addi %3, %c0_i32_25 : i32
    %c5_i32 = arith.constant 5 : i32
    %51 = arith.addi %50, %c5_i32 : i32
    %52 = arith.index_cast %51 : i32 to index
    %53 = memref.load %arg1[%52] : memref<64xf32, #tpu.memory_space<smem>>
    %c0_26 = arith.constant 0 : index
    %c5 = arith.constant 5 : index
    %c0_27 = arith.constant 0 : index
    %c0_28 = arith.constant 0 : index
    %54 = vector.load %arg2[%c0_26, %c5, %c0_27, %c0_28] : memref<1x8x16x16xf32, #tpu.memory_space<vmem>>, vector<1x1x16x16xf32>
    %55 = vector.shape_cast %54 : vector<1x1x16x16xf32> to vector<16x16xf32>
    %56 = vector.broadcast %53 : f32 to vector<16x16xf32>
    %57 = arith.mulf %56, %55 : vector<16x16xf32>
    %58 = arith.addf %49, %57 : vector<16x16xf32>
    %c0_i32_29 = arith.constant 0 : i32
    %59 = arith.addi %3, %c0_i32_29 : i32
    %c6_i32 = arith.constant 6 : i32
    %60 = arith.addi %59, %c6_i32 : i32
    %61 = arith.index_cast %60 : i32 to index
    %62 = memref.load %arg1[%61] : memref<64xf32, #tpu.memory_space<smem>>
    %c0_30 = arith.constant 0 : index
    %c6 = arith.constant 6 : index
    %c0_31 = arith.constant 0 : index
    %c0_32 = arith.constant 0 : index
    %63 = vector.load %arg2[%c0_30, %c6, %c0_31, %c0_32] : memref<1x8x16x16xf32, #tpu.memory_space<vmem>>, vector<1x1x16x16xf32>
    %64 = vector.shape_cast %63 : vector<1x1x16x16xf32> to vector<16x16xf32>
    %65 = vector.broadcast %62 : f32 to vector<16x16xf32>
    %66 = arith.mulf %65, %64 : vector<16x16xf32>
    %67 = arith.addf %58, %66 : vector<16x16xf32>
    %c0_i32_33 = arith.constant 0 : i32
    %68 = arith.addi %3, %c0_i32_33 : i32
    %c7_i32 = arith.constant 7 : i32
    %69 = arith.addi %68, %c7_i32 : i32
    %70 = arith.index_cast %69 : i32 to index
    %71 = memref.load %arg1[%70] : memref<64xf32, #tpu.memory_space<smem>>
    %c0_34 = arith.constant 0 : index
    %c7 = arith.constant 7 : index
    %c0_35 = arith.constant 0 : index
    %c0_36 = arith.constant 0 : index
    %72 = vector.load %arg2[%c0_34, %c7, %c0_35, %c0_36] : memref<1x8x16x16xf32, #tpu.memory_space<vmem>>, vector<1x1x16x16xf32>
    %73 = vector.shape_cast %72 : vector<1x1x16x16xf32> to vector<16x16xf32>
    %74 = vector.broadcast %71 : f32 to vector<16x16xf32>
    %75 = arith.mulf %74, %73 : vector<16x16xf32>
    %76 = arith.addf %67, %75 : vector<16x16xf32>
    %cst_37 = arith.constant dense<0.000000e+00> : vector<64x16xf32>
    %77 = tpu.matmul %0, %76, %cst_37 {dimension_numbers = #tpu.dot_dimension_numbers<[1], [0], [0], [1], [0, 0, 1, 1], [], []>} : vector<64x16xf32>, vector<16x16xf32>, vector<64x16xf32> -> vector<64x16xf32>
    %cst_38 = arith.constant dense<0.000000e+00> : vector<64x64xf32>
    %78 = tpu.matmul %77, %1, %cst_38 {dimension_numbers = #tpu.dot_dimension_numbers<[1], [0], [0], [1], [0, 0, 1, 1], [], []>} : vector<64x16xf32>, vector<16x64xf32>, vector<64x64xf32> -> vector<64x64xf32>
    %cst_39 = arith.constant 0.000000e+00 : f32
    %79 = vector.broadcast %cst_39 : f32 to vector<16x16xf32>
    %c8_i32_40 = arith.constant 8 : i32
    %80 = arith.addi %3, %c8_i32_40 : i32
    %c0_i32_41 = arith.constant 0 : i32
    %81 = arith.addi %80, %c0_i32_41 : i32
    %82 = arith.index_cast %81 : i32 to index
    %83 = memref.load %arg1[%82] : memref<64xf32, #tpu.memory_space<smem>>
    %c0_42 = arith.constant 0 : index
    %c0_43 = arith.constant 0 : index
    %c0_44 = arith.constant 0 : index
    %c0_45 = arith.constant 0 : index
    %84 = vector.load %arg2[%c0_42, %c0_43, %c0_44, %c0_45] : memref<1x8x16x16xf32, #tpu.memory_space<vmem>>, vector<1x1x16x16xf32>
    %85 = vector.shape_cast %84 : vector<1x1x16x16xf32> to vector<16x16xf32>
    %86 = vector.broadcast %83 : f32 to vector<16x16xf32>
    %87 = arith.mulf %86, %85 : vector<16x16xf32>
    %88 = arith.addf %79, %87 : vector<16x16xf32>
    %c8_i32_46 = arith.constant 8 : i32
    %89 = arith.addi %3, %c8_i32_46 : i32
    %c1_i32_47 = arith.constant 1 : i32
    %90 = arith.addi %89, %c1_i32_47 : i32
    %91 = arith.index_cast %90 : i32 to index
    %92 = memref.load %arg1[%91] : memref<64xf32, #tpu.memory_space<smem>>
    %c0_48 = arith.constant 0 : index
    %c1_49 = arith.constant 1 : index
    %c0_50 = arith.constant 0 : index
    %c0_51 = arith.constant 0 : index
    %93 = vector.load %arg2[%c0_48, %c1_49, %c0_50, %c0_51] : memref<1x8x16x16xf32, #tpu.memory_space<vmem>>, vector<1x1x16x16xf32>
    %94 = vector.shape_cast %93 : vector<1x1x16x16xf32> to vector<16x16xf32>
    %95 = vector.broadcast %92 : f32 to vector<16x16xf32>
    %96 = arith.mulf %95, %94 : vector<16x16xf32>
    %97 = arith.addf %88, %96 : vector<16x16xf32>
    %c8_i32_52 = arith.constant 8 : i32
    %98 = arith.addi %3, %c8_i32_52 : i32
    %c2_i32_53 = arith.constant 2 : i32
    %99 = arith.addi %98, %c2_i32_53 : i32
    %100 = arith.index_cast %99 : i32 to index
    %101 = memref.load %arg1[%100] : memref<64xf32, #tpu.memory_space<smem>>
    %c0_54 = arith.constant 0 : index
    %c2_55 = arith.constant 2 : index
    %c0_56 = arith.constant 0 : index
    %c0_57 = arith.constant 0 : index
    %102 = vector.load %arg2[%c0_54, %c2_55, %c0_56, %c0_57] : memref<1x8x16x16xf32, #tpu.memory_space<vmem>>, vector<1x1x16x16xf32>
    %103 = vector.shape_cast %102 : vector<1x1x16x16xf32> to vector<16x16xf32>
    %104 = vector.broadcast %101 : f32 to vector<16x16xf32>
    %105 = arith.mulf %104, %103 : vector<16x16xf32>
    %106 = arith.addf %97, %105 : vector<16x16xf32>
    %c8_i32_58 = arith.constant 8 : i32
    %107 = arith.addi %3, %c8_i32_58 : i32
    %c3_i32_59 = arith.constant 3 : i32
    %108 = arith.addi %107, %c3_i32_59 : i32
    %109 = arith.index_cast %108 : i32 to index
    %110 = memref.load %arg1[%109] : memref<64xf32, #tpu.memory_space<smem>>
    %c0_60 = arith.constant 0 : index
    %c3_61 = arith.constant 3 : index
    %c0_62 = arith.constant 0 : index
    %c0_63 = arith.constant 0 : index
    %111 = vector.load %arg2[%c0_60, %c3_61, %c0_62, %c0_63] : memref<1x8x16x16xf32, #tpu.memory_space<vmem>>, vector<1x1x16x16xf32>
    %112 = vector.shape_cast %111 : vector<1x1x16x16xf32> to vector<16x16xf32>
    %113 = vector.broadcast %110 : f32 to vector<16x16xf32>
    %114 = arith.mulf %113, %112 : vector<16x16xf32>
    %115 = arith.addf %106, %114 : vector<16x16xf32>
    %c8_i32_64 = arith.constant 8 : i32
    %116 = arith.addi %3, %c8_i32_64 : i32
    %c4_i32_65 = arith.constant 4 : i32
    %117 = arith.addi %116, %c4_i32_65 : i32
    %118 = arith.index_cast %117 : i32 to index
    %119 = memref.load %arg1[%118] : memref<64xf32, #tpu.memory_space<smem>>
    %c0_66 = arith.constant 0 : index
    %c4_67 = arith.constant 4 : index
    %c0_68 = arith.constant 0 : index
    %c0_69 = arith.constant 0 : index
    %120 = vector.load %arg2[%c0_66, %c4_67, %c0_68, %c0_69] : memref<1x8x16x16xf32, #tpu.memory_space<vmem>>, vector<1x1x16x16xf32>
    %121 = vector.shape_cast %120 : vector<1x1x16x16xf32> to vector<16x16xf32>
    %122 = vector.broadcast %119 : f32 to vector<16x16xf32>
    %123 = arith.mulf %122, %121 : vector<16x16xf32>
    %124 = arith.addf %115, %123 : vector<16x16xf32>
    %c8_i32_70 = arith.constant 8 : i32
    %125 = arith.addi %3, %c8_i32_70 : i32
    %c5_i32_71 = arith.constant 5 : i32
    %126 = arith.addi %125, %c5_i32_71 : i32
    %127 = arith.index_cast %126 : i32 to index
    %128 = memref.load %arg1[%127] : memref<64xf32, #tpu.memory_space<smem>>
    %c0_72 = arith.constant 0 : index
    %c5_73 = arith.constant 5 : index
    %c0_74 = arith.constant 0 : index
    %c0_75 = arith.constant 0 : index
    %129 = vector.load %arg2[%c0_72, %c5_73, %c0_74, %c0_75] : memref<1x8x16x16xf32, #tpu.memory_space<vmem>>, vector<1x1x16x16xf32>
    %130 = vector.shape_cast %129 : vector<1x1x16x16xf32> to vector<16x16xf32>
    %131 = vector.broadcast %128 : f32 to vector<16x16xf32>
    %132 = arith.mulf %131, %130 : vector<16x16xf32>
    %133 = arith.addf %124, %132 : vector<16x16xf32>
    %c8_i32_76 = arith.constant 8 : i32
    %134 = arith.addi %3, %c8_i32_76 : i32
    %c6_i32_77 = arith.constant 6 : i32
    %135 = arith.addi %134, %c6_i32_77 : i32
    %136 = arith.index_cast %135 : i32 to index
    %137 = memref.load %arg1[%136] : memref<64xf32, #tpu.memory_space<smem>>
    %c0_78 = arith.constant 0 : index
    %c6_79 = arith.constant 6 : index
    %c0_80 = arith.constant 0 : index
    %c0_81 = arith.constant 0 : index
    %138 = vector.load %arg2[%c0_78, %c6_79, %c0_80, %c0_81] : memref<1x8x16x16xf32, #tpu.memory_space<vmem>>, vector<1x1x16x16xf32>
    %139 = vector.shape_cast %138 : vector<1x1x16x16xf32> to vector<16x16xf32>
    %140 = vector.broadcast %137 : f32 to vector<16x16xf32>
    %141 = arith.mulf %140, %139 : vector<16x16xf32>
    %142 = arith.addf %133, %141 : vector<16x16xf32>
    %c8_i32_82 = arith.constant 8 : i32
    %143 = arith.addi %3, %c8_i32_82 : i32
    %c7_i32_83 = arith.constant 7 : i32
    %144 = arith.addi %143, %c7_i32_83 : i32
    %145 = arith.index_cast %144 : i32 to index
    %146 = memref.load %arg1[%145] : memref<64xf32, #tpu.memory_space<smem>>
    %c0_84 = arith.constant 0 : index
    %c7_85 = arith.constant 7 : index
    %c0_86 = arith.constant 0 : index
    %c0_87 = arith.constant 0 : index
    %147 = vector.load %arg2[%c0_84, %c7_85, %c0_86, %c0_87] : memref<1x8x16x16xf32, #tpu.memory_space<vmem>>, vector<1x1x16x16xf32>
    %148 = vector.shape_cast %147 : vector<1x1x16x16xf32> to vector<16x16xf32>
    %149 = vector.broadcast %146 : f32 to vector<16x16xf32>
    %150 = arith.mulf %149, %148 : vector<16x16xf32>
    %151 = arith.addf %142, %150 : vector<16x16xf32>
    %cst_88 = arith.constant dense<0.000000e+00> : vector<64x16xf32>
    %152 = tpu.matmul %0, %151, %cst_88 {dimension_numbers = #tpu.dot_dimension_numbers<[1], [0], [0], [1], [0, 0, 1, 1], [], []>} : vector<64x16xf32>, vector<16x16xf32>, vector<64x16xf32> -> vector<64x16xf32>
    %cst_89 = arith.constant dense<0.000000e+00> : vector<64x64xf32>
    %153 = tpu.matmul %152, %1, %cst_89 {dimension_numbers = #tpu.dot_dimension_numbers<[1], [0], [0], [1], [0, 0, 1, 1], [], []>} : vector<64x16xf32>, vector<16x64xf32>, vector<64x64xf32> -> vector<64x64xf32>
    %cst_90 = arith.constant 0.000000e+00 : f32
    %154 = vector.broadcast %cst_90 : f32 to vector<16x16xf32>
    %c16_i32 = arith.constant 16 : i32
    %155 = arith.addi %3, %c16_i32 : i32
    %c0_i32_91 = arith.constant 0 : i32
    %156 = arith.addi %155, %c0_i32_91 : i32
    %157 = arith.index_cast %156 : i32 to index
    %158 = memref.load %arg1[%157] : memref<64xf32, #tpu.memory_space<smem>>
    %c0_92 = arith.constant 0 : index
    %c0_93 = arith.constant 0 : index
    %c0_94 = arith.constant 0 : index
    %c0_95 = arith.constant 0 : index
    %159 = vector.load %arg2[%c0_92, %c0_93, %c0_94, %c0_95] : memref<1x8x16x16xf32, #tpu.memory_space<vmem>>, vector<1x1x16x16xf32>
    %160 = vector.shape_cast %159 : vector<1x1x16x16xf32> to vector<16x16xf32>
    %161 = vector.broadcast %158 : f32 to vector<16x16xf32>
    %162 = arith.mulf %161, %160 : vector<16x16xf32>
    %163 = arith.addf %154, %162 : vector<16x16xf32>
    %c16_i32_96 = arith.constant 16 : i32
    %164 = arith.addi %3, %c16_i32_96 : i32
    %c1_i32_97 = arith.constant 1 : i32
    %165 = arith.addi %164, %c1_i32_97 : i32
    %166 = arith.index_cast %165 : i32 to index
    %167 = memref.load %arg1[%166] : memref<64xf32, #tpu.memory_space<smem>>
    %c0_98 = arith.constant 0 : index
    %c1_99 = arith.constant 1 : index
    %c0_100 = arith.constant 0 : index
    %c0_101 = arith.constant 0 : index
    %168 = vector.load %arg2[%c0_98, %c1_99, %c0_100, %c0_101] : memref<1x8x16x16xf32, #tpu.memory_space<vmem>>, vector<1x1x16x16xf32>
    %169 = vector.shape_cast %168 : vector<1x1x16x16xf32> to vector<16x16xf32>
    %170 = vector.broadcast %167 : f32 to vector<16x16xf32>
    %171 = arith.mulf %170, %169 : vector<16x16xf32>
    %172 = arith.addf %163, %171 : vector<16x16xf32>
    %c16_i32_102 = arith.constant 16 : i32
    %173 = arith.addi %3, %c16_i32_102 : i32
    %c2_i32_103 = arith.constant 2 : i32
    %174 = arith.addi %173, %c2_i32_103 : i32
    %175 = arith.index_cast %174 : i32 to index
    %176 = memref.load %arg1[%175] : memref<64xf32, #tpu.memory_space<smem>>
    %c0_104 = arith.constant 0 : index
    %c2_105 = arith.constant 2 : index
    %c0_106 = arith.constant 0 : index
    %c0_107 = arith.constant 0 : index
    %177 = vector.load %arg2[%c0_104, %c2_105, %c0_106, %c0_107] : memref<1x8x16x16xf32, #tpu.memory_space<vmem>>, vector<1x1x16x16xf32>
    %178 = vector.shape_cast %177 : vector<1x1x16x16xf32> to vector<16x16xf32>
    %179 = vector.broadcast %176 : f32 to vector<16x16xf32>
    %180 = arith.mulf %179, %178 : vector<16x16xf32>
    %181 = arith.addf %172, %180 : vector<16x16xf32>
    %c16_i32_108 = arith.constant 16 : i32
    %182 = arith.addi %3, %c16_i32_108 : i32
    %c3_i32_109 = arith.constant 3 : i32
    %183 = arith.addi %182, %c3_i32_109 : i32
    %184 = arith.index_cast %183 : i32 to index
    %185 = memref.load %arg1[%184] : memref<64xf32, #tpu.memory_space<smem>>
    %c0_110 = arith.constant 0 : index
    %c3_111 = arith.constant 3 : index
    %c0_112 = arith.constant 0 : index
    %c0_113 = arith.constant 0 : index
    %186 = vector.load %arg2[%c0_110, %c3_111, %c0_112, %c0_113] : memref<1x8x16x16xf32, #tpu.memory_space<vmem>>, vector<1x1x16x16xf32>
    %187 = vector.shape_cast %186 : vector<1x1x16x16xf32> to vector<16x16xf32>
    %188 = vector.broadcast %185 : f32 to vector<16x16xf32>
    %189 = arith.mulf %188, %187 : vector<16x16xf32>
    %190 = arith.addf %181, %189 : vector<16x16xf32>
    %c16_i32_114 = arith.constant 16 : i32
    %191 = arith.addi %3, %c16_i32_114 : i32
    %c4_i32_115 = arith.constant 4 : i32
    %192 = arith.addi %191, %c4_i32_115 : i32
    %193 = arith.index_cast %192 : i32 to index
    %194 = memref.load %arg1[%193] : memref<64xf32, #tpu.memory_space<smem>>
    %c0_116 = arith.constant 0 : index
    %c4_117 = arith.constant 4 : index
    %c0_118 = arith.constant 0 : index
    %c0_119 = arith.constant 0 : index
    %195 = vector.load %arg2[%c0_116, %c4_117, %c0_118, %c0_119] : memref<1x8x16x16xf32, #tpu.memory_space<vmem>>, vector<1x1x16x16xf32>
    %196 = vector.shape_cast %195 : vector<1x1x16x16xf32> to vector<16x16xf32>
    %197 = vector.broadcast %194 : f32 to vector<16x16xf32>
    %198 = arith.mulf %197, %196 : vector<16x16xf32>
    %199 = arith.addf %190, %198 : vector<16x16xf32>
    %c16_i32_120 = arith.constant 16 : i32
    %200 = arith.addi %3, %c16_i32_120 : i32
    %c5_i32_121 = arith.constant 5 : i32
    %201 = arith.addi %200, %c5_i32_121 : i32
    %202 = arith.index_cast %201 : i32 to index
    %203 = memref.load %arg1[%202] : memref<64xf32, #tpu.memory_space<smem>>
    %c0_122 = arith.constant 0 : index
    %c5_123 = arith.constant 5 : index
    %c0_124 = arith.constant 0 : index
    %c0_125 = arith.constant 0 : index
    %204 = vector.load %arg2[%c0_122, %c5_123, %c0_124, %c0_125] : memref<1x8x16x16xf32, #tpu.memory_space<vmem>>, vector<1x1x16x16xf32>
    %205 = vector.shape_cast %204 : vector<1x1x16x16xf32> to vector<16x16xf32>
    %206 = vector.broadcast %203 : f32 to vector<16x16xf32>
    %207 = arith.mulf %206, %205 : vector<16x16xf32>
    %208 = arith.addf %199, %207 : vector<16x16xf32>
    %c16_i32_126 = arith.constant 16 : i32
    %209 = arith.addi %3, %c16_i32_126 : i32
    %c6_i32_127 = arith.constant 6 : i32
    %210 = arith.addi %209, %c6_i32_127 : i32
    %211 = arith.index_cast %210 : i32 to index
    %212 = memref.load %arg1[%211] : memref<64xf32, #tpu.memory_space<smem>>
    %c0_128 = arith.constant 0 : index
    %c6_129 = arith.constant 6 : index
    %c0_130 = arith.constant 0 : index
    %c0_131 = arith.constant 0 : index
    %213 = vector.load %arg2[%c0_128, %c6_129, %c0_130, %c0_131] : memref<1x8x16x16xf32, #tpu.memory_space<vmem>>, vector<1x1x16x16xf32>
    %214 = vector.shape_cast %213 : vector<1x1x16x16xf32> to vector<16x16xf32>
    %215 = vector.broadcast %212 : f32 to vector<16x16xf32>
    %216 = arith.mulf %215, %214 : vector<16x16xf32>
    %217 = arith.addf %208, %216 : vector<16x16xf32>
    %c16_i32_132 = arith.constant 16 : i32
    %218 = arith.addi %3, %c16_i32_132 : i32
    %c7_i32_133 = arith.constant 7 : i32
    %219 = arith.addi %218, %c7_i32_133 : i32
    %220 = arith.index_cast %219 : i32 to index
    %221 = memref.load %arg1[%220] : memref<64xf32, #tpu.memory_space<smem>>
    %c0_134 = arith.constant 0 : index
    %c7_135 = arith.constant 7 : index
    %c0_136 = arith.constant 0 : index
    %c0_137 = arith.constant 0 : index
    %222 = vector.load %arg2[%c0_134, %c7_135, %c0_136, %c0_137] : memref<1x8x16x16xf32, #tpu.memory_space<vmem>>, vector<1x1x16x16xf32>
    %223 = vector.shape_cast %222 : vector<1x1x16x16xf32> to vector<16x16xf32>
    %224 = vector.broadcast %221 : f32 to vector<16x16xf32>
    %225 = arith.mulf %224, %223 : vector<16x16xf32>
    %226 = arith.addf %217, %225 : vector<16x16xf32>
    %cst_138 = arith.constant dense<0.000000e+00> : vector<64x16xf32>
    %227 = tpu.matmul %0, %226, %cst_138 {dimension_numbers = #tpu.dot_dimension_numbers<[1], [0], [0], [1], [0, 0, 1, 1], [], []>} : vector<64x16xf32>, vector<16x16xf32>, vector<64x16xf32> -> vector<64x16xf32>
    %cst_139 = arith.constant dense<0.000000e+00> : vector<64x64xf32>
    %228 = tpu.matmul %227, %1, %cst_139 {dimension_numbers = #tpu.dot_dimension_numbers<[1], [0], [0], [1], [0, 0, 1, 1], [], []>} : vector<64x16xf32>, vector<16x64xf32>, vector<64x64xf32> -> vector<64x64xf32>
    %cst_140 = arith.constant 0.000000e+00 : f32
    %229 = vector.broadcast %cst_140 : f32 to vector<16x16xf32>
    %c24_i32 = arith.constant 24 : i32
    %230 = arith.addi %3, %c24_i32 : i32
    %c0_i32_141 = arith.constant 0 : i32
    %231 = arith.addi %230, %c0_i32_141 : i32
    %232 = arith.index_cast %231 : i32 to index
    %233 = memref.load %arg1[%232] : memref<64xf32, #tpu.memory_space<smem>>
    %c0_142 = arith.constant 0 : index
    %c0_143 = arith.constant 0 : index
    %c0_144 = arith.constant 0 : index
    %c0_145 = arith.constant 0 : index
    %234 = vector.load %arg2[%c0_142, %c0_143, %c0_144, %c0_145] : memref<1x8x16x16xf32, #tpu.memory_space<vmem>>, vector<1x1x16x16xf32>
    %235 = vector.shape_cast %234 : vector<1x1x16x16xf32> to vector<16x16xf32>
    %236 = vector.broadcast %233 : f32 to vector<16x16xf32>
    %237 = arith.mulf %236, %235 : vector<16x16xf32>
    %238 = arith.addf %229, %237 : vector<16x16xf32>
    %c24_i32_146 = arith.constant 24 : i32
    %239 = arith.addi %3, %c24_i32_146 : i32
    %c1_i32_147 = arith.constant 1 : i32
    %240 = arith.addi %239, %c1_i32_147 : i32
    %241 = arith.index_cast %240 : i32 to index
    %242 = memref.load %arg1[%241] : memref<64xf32, #tpu.memory_space<smem>>
    %c0_148 = arith.constant 0 : index
    %c1_149 = arith.constant 1 : index
    %c0_150 = arith.constant 0 : index
    %c0_151 = arith.constant 0 : index
    %243 = vector.load %arg2[%c0_148, %c1_149, %c0_150, %c0_151] : memref<1x8x16x16xf32, #tpu.memory_space<vmem>>, vector<1x1x16x16xf32>
    %244 = vector.shape_cast %243 : vector<1x1x16x16xf32> to vector<16x16xf32>
    %245 = vector.broadcast %242 : f32 to vector<16x16xf32>
    %246 = arith.mulf %245, %244 : vector<16x16xf32>
    %247 = arith.addf %238, %246 : vector<16x16xf32>
    %c24_i32_152 = arith.constant 24 : i32
    %248 = arith.addi %3, %c24_i32_152 : i32
    %c2_i32_153 = arith.constant 2 : i32
    %249 = arith.addi %248, %c2_i32_153 : i32
    %250 = arith.index_cast %249 : i32 to index
    %251 = memref.load %arg1[%250] : memref<64xf32, #tpu.memory_space<smem>>
    %c0_154 = arith.constant 0 : index
    %c2_155 = arith.constant 2 : index
    %c0_156 = arith.constant 0 : index
    %c0_157 = arith.constant 0 : index
    %252 = vector.load %arg2[%c0_154, %c2_155, %c0_156, %c0_157] : memref<1x8x16x16xf32, #tpu.memory_space<vmem>>, vector<1x1x16x16xf32>
    %253 = vector.shape_cast %252 : vector<1x1x16x16xf32> to vector<16x16xf32>
    %254 = vector.broadcast %251 : f32 to vector<16x16xf32>
    %255 = arith.mulf %254, %253 : vector<16x16xf32>
    %256 = arith.addf %247, %255 : vector<16x16xf32>
    %c24_i32_158 = arith.constant 24 : i32
    %257 = arith.addi %3, %c24_i32_158 : i32
    %c3_i32_159 = arith.constant 3 : i32
    %258 = arith.addi %257, %c3_i32_159 : i32
    %259 = arith.index_cast %258 : i32 to index
    %260 = memref.load %arg1[%259] : memref<64xf32, #tpu.memory_space<smem>>
    %c0_160 = arith.constant 0 : index
    %c3_161 = arith.constant 3 : index
    %c0_162 = arith.constant 0 : index
    %c0_163 = arith.constant 0 : index
    %261 = vector.load %arg2[%c0_160, %c3_161, %c0_162, %c0_163] : memref<1x8x16x16xf32, #tpu.memory_space<vmem>>, vector<1x1x16x16xf32>
    %262 = vector.shape_cast %261 : vector<1x1x16x16xf32> to vector<16x16xf32>
    %263 = vector.broadcast %260 : f32 to vector<16x16xf32>
    %264 = arith.mulf %263, %262 : vector<16x16xf32>
    %265 = arith.addf %256, %264 : vector<16x16xf32>
    %c24_i32_164 = arith.constant 24 : i32
    %266 = arith.addi %3, %c24_i32_164 : i32
    %c4_i32_165 = arith.constant 4 : i32
    %267 = arith.addi %266, %c4_i32_165 : i32
    %268 = arith.index_cast %267 : i32 to index
    %269 = memref.load %arg1[%268] : memref<64xf32, #tpu.memory_space<smem>>
    %c0_166 = arith.constant 0 : index
    %c4_167 = arith.constant 4 : index
    %c0_168 = arith.constant 0 : index
    %c0_169 = arith.constant 0 : index
    %270 = vector.load %arg2[%c0_166, %c4_167, %c0_168, %c0_169] : memref<1x8x16x16xf32, #tpu.memory_space<vmem>>, vector<1x1x16x16xf32>
    %271 = vector.shape_cast %270 : vector<1x1x16x16xf32> to vector<16x16xf32>
    %272 = vector.broadcast %269 : f32 to vector<16x16xf32>
    %273 = arith.mulf %272, %271 : vector<16x16xf32>
    %274 = arith.addf %265, %273 : vector<16x16xf32>
    %c24_i32_170 = arith.constant 24 : i32
    %275 = arith.addi %3, %c24_i32_170 : i32
    %c5_i32_171 = arith.constant 5 : i32
    %276 = arith.addi %275, %c5_i32_171 : i32
    %277 = arith.index_cast %276 : i32 to index
    %278 = memref.load %arg1[%277] : memref<64xf32, #tpu.memory_space<smem>>
    %c0_172 = arith.constant 0 : index
    %c5_173 = arith.constant 5 : index
    %c0_174 = arith.constant 0 : index
    %c0_175 = arith.constant 0 : index
    %279 = vector.load %arg2[%c0_172, %c5_173, %c0_174, %c0_175] : memref<1x8x16x16xf32, #tpu.memory_space<vmem>>, vector<1x1x16x16xf32>
    %280 = vector.shape_cast %279 : vector<1x1x16x16xf32> to vector<16x16xf32>
    %281 = vector.broadcast %278 : f32 to vector<16x16xf32>
    %282 = arith.mulf %281, %280 : vector<16x16xf32>
    %283 = arith.addf %274, %282 : vector<16x16xf32>
    %c24_i32_176 = arith.constant 24 : i32
    %284 = arith.addi %3, %c24_i32_176 : i32
    %c6_i32_177 = arith.constant 6 : i32
    %285 = arith.addi %284, %c6_i32_177 : i32
    %286 = arith.index_cast %285 : i32 to index
    %287 = memref.load %arg1[%286] : memref<64xf32, #tpu.memory_space<smem>>
    %c0_178 = arith.constant 0 : index
    %c6_179 = arith.constant 6 : index
    %c0_180 = arith.constant 0 : index
    %c0_181 = arith.constant 0 : index
    %288 = vector.load %arg2[%c0_178, %c6_179, %c0_180, %c0_181] : memref<1x8x16x16xf32, #tpu.memory_space<vmem>>, vector<1x1x16x16xf32>
    %289 = vector.shape_cast %288 : vector<1x1x16x16xf32> to vector<16x16xf32>
    %290 = vector.broadcast %287 : f32 to vector<16x16xf32>
    %291 = arith.mulf %290, %289 : vector<16x16xf32>
    %292 = arith.addf %283, %291 : vector<16x16xf32>
    %c24_i32_182 = arith.constant 24 : i32
    %293 = arith.addi %3, %c24_i32_182 : i32
    %c7_i32_183 = arith.constant 7 : i32
    %294 = arith.addi %293, %c7_i32_183 : i32
    %295 = arith.index_cast %294 : i32 to index
    %296 = memref.load %arg1[%295] : memref<64xf32, #tpu.memory_space<smem>>
    %c0_184 = arith.constant 0 : index
    %c7_185 = arith.constant 7 : index
    %c0_186 = arith.constant 0 : index
    %c0_187 = arith.constant 0 : index
    %297 = vector.load %arg2[%c0_184, %c7_185, %c0_186, %c0_187] : memref<1x8x16x16xf32, #tpu.memory_space<vmem>>, vector<1x1x16x16xf32>
    %298 = vector.shape_cast %297 : vector<1x1x16x16xf32> to vector<16x16xf32>
    %299 = vector.broadcast %296 : f32 to vector<16x16xf32>
    %300 = arith.mulf %299, %298 : vector<16x16xf32>
    %301 = arith.addf %292, %300 : vector<16x16xf32>
    %cst_188 = arith.constant dense<0.000000e+00> : vector<64x16xf32>
    %302 = tpu.matmul %0, %301, %cst_188 {dimension_numbers = #tpu.dot_dimension_numbers<[1], [0], [0], [1], [0, 0, 1, 1], [], []>} : vector<64x16xf32>, vector<16x16xf32>, vector<64x16xf32> -> vector<64x16xf32>
    %cst_189 = arith.constant dense<0.000000e+00> : vector<64x64xf32>
    %303 = tpu.matmul %302, %1, %cst_189 {dimension_numbers = #tpu.dot_dimension_numbers<[1], [0], [0], [1], [0, 0, 1, 1], [], []>} : vector<64x16xf32>, vector<16x64xf32>, vector<64x64xf32> -> vector<64x64xf32>
    %304 = arith.maximumf %78, %153 : vector<64x64xf32>
    %305 = arith.maximumf %304, %228 : vector<64x64xf32>
    %306 = arith.maximumf %305, %303 : vector<64x64xf32>
    %307 = arith.subf %78, %306 : vector<64x64xf32>
    %308 = math.exp %307 : vector<64x64xf32>
    %309 = arith.subf %153, %306 : vector<64x64xf32>
    %310 = math.exp %309 : vector<64x64xf32>
    %311 = arith.subf %228, %306 : vector<64x64xf32>
    %312 = math.exp %311 : vector<64x64xf32>
    %313 = arith.subf %303, %306 : vector<64x64xf32>
    %314 = math.exp %313 : vector<64x64xf32>
    %315 = arith.addf %308, %310 : vector<64x64xf32>
    %316 = arith.addf %315, %312 : vector<64x64xf32>
    %317 = arith.addf %316, %314 : vector<64x64xf32>
    %318 = tpu.reciprocal %317 {approx = true} : vector<64x64xf32> -> vector<64x64xf32>
    %319 = arith.mulf %308, %318 : vector<64x64xf32>
    %320 = arith.mulf %310, %318 : vector<64x64xf32>
    %321 = arith.mulf %312, %318 : vector<64x64xf32>
    %322 = arith.mulf %314, %318 : vector<64x64xf32>
    %323 = tpu.concatenate %319, %320, %321, %322 in 1 : vector<64x64xf32>, vector<64x64xf32>, vector<64x64xf32>, vector<64x64xf32> -> vector<64x256xf32>
    %c0_190 = arith.constant 0 : index
    %c0_191 = arith.constant 0 : index
    %c0_192 = arith.constant 0 : index
    %324 = vector.load %arg5[%c0_190, %c0_191, %c0_192] : memref<1x64x256xf32, #tpu.memory_space<vmem>>, vector<1x64x256xf32>
    %325 = vector.shape_cast %324 : vector<1x64x256xf32> to vector<64x256xf32>
    %326 = vector.shape_cast %323 : vector<64x256xf32> to vector<1x64x256xf32>
    tpu.vector_store %arg5[%c0_190, %c0_191, %c0_192], %326 {strides = array<i32>} : memref<1x64x256xf32, #tpu.memory_space<vmem>>, vector<1x64x256xf32>,
    return
  }
  func.func @transform_0(%arg0: i32) -> i32 {
    %c0_i32 = arith.constant 0 : i32
    %c0_i32_0 = arith.constant 0 : i32
    return %c0_i32 : i32
  }
  func.func @transform_1(%arg0: i32) -> (i32, i32, i32, i32) {
    %c0_i32 = arith.constant 0 : i32
    %c0_i32_0 = arith.constant 0 : i32
    %c0_i32_1 = arith.constant 0 : i32
    %c0_i32_2 = arith.constant 0 : i32
    return %arg0, %c0_i32, %c0_i32_0, %c0_i32_1 : i32, i32, i32, i32
  }
  func.func @transform_2(%arg0: i32) -> (i32, i32) {
    %c0_i32 = arith.constant 0 : i32
    %c0_i32_0 = arith.constant 0 : i32
    %c0_i32_1 = arith.constant 0 : i32
    return %c0_i32, %c0_i32_0 : i32, i32
  }
  func.func @transform_3(%arg0: i32) -> (i32, i32) {
    %c0_i32 = arith.constant 0 : i32
    %c0_i32_0 = arith.constant 0 : i32
    %c0_i32_1 = arith.constant 0 : i32
    return %c0_i32, %c0_i32_0 : i32, i32
  }
  func.func @transform_4(%arg0: i32) -> (i32, i32, i32) {
    %c0_i32 = arith.constant 0 : i32
    %c0_i32_0 = arith.constant 0 : i32
    %c0_i32_1 = arith.constant 0 : i32
    return %arg0, %c0_i32, %c0_i32_0 : i32, i32, i32
  }
}

</mosaic_0001>

<llo_original>
// kernel: tile.0
$region0: #{tile.0}
  %s0 = inlined_call_operand.vmem [shape: f32[2,3], index: 0, kind: input, shape index: {}]
  %s1 = inlined_call_operand.vmem [shape: f32[6,1], index: 1, kind: output, shape index: {}]
  $region1: #{tile.0} parent=0
    #allocation0 [shape = 'u8[4096]{0}', space=vmem, size = 0x1000, scoped, tag = 'scoped mem for input reshape']
    %s3 = sshllo.u32 0, 2
    %v4 = vld [vmem:[%s0] sm:%s3]
    %5 = vst [vmem:[#allocation0] sm:%s3] %v4
    %v6 = vld [vmem:[#allocation0] sm:$0x3]
    %vm7 = vcmask 7168
    %8 = vst.msk [vmem:[%s1] ss:$3 sm:$0x3] %vm7, %v6
    %v9 = vld [vmem:[#allocation0] sm:$0x3]
    %10 = vrot.lane.b32.xlu0 %v9, 127
    %v11 = vpop.permute.xlu0 %10
    %vm12 = vcmask 7168
    %s13 = scalar_lea.vmem %s1, 1
    %14 = vst.msk [vmem:[%s13] ss:$3 sm:$0x3] %vm12, %v11
    %v15 = vld [vmem:[#allocation0] sm:$0x3]
    %16 = vrot.lane.b32.xlu0 %v15, 126
    %v17 = vpop.permute.xlu0 %16
    %vm18 = vcmask 7168
    %s19 = scalar_lea.vmem %s1, 2
    %20 = vst.msk [vmem:[%s19] ss:$3 sm:$0x3] %vm18, %v17

// kernel: tile.21
$region0: #{tile.21}
  #allocation0 [shape = 's32[1]{0}', space=sflag, size = 0x4, scoped, tag = 'scoped memory for tile.21']
  %s0 = inlined_call_operand.vmem [shape: f32[3], index: 0, kind: input, shape index: {}]
  %s1 = inlined_call_operand.vmem [shape: f32[2,3], index: 1, kind: output, shape index: {}]
  // Predicated region
  $region2: #{tile.21} parent=0 // pred_check
    _
  $region3: #{tile.21} parent=0 // pred_check_branch
    %3 = sbr.rel (0) target = $region5
  $region4: #{tile.21} parent=0 // pred_region
    _
  $region5: #{tile.21} parent=0 // pred_fallthru
    _
  %v4 = vld [vmem:[%s0] ss:$0 sm:$0xff]
  %5 = vst [vmem:[%s1] sm:$0x3] %v4

// kernel: sam_forward.4
$region0: #{sam_forward.4}
  #allocation0 [shape = 'u32[]', space=smem, size = 0x4, offset = 0x4, fixed_abs, tag = 'smem constant byte address 0x4 - core index']
  #allocation1 [shape = 'u32[144,128]{1,0:T(1,128)}', space=vmem, size = 0x12000, scoped, tag = 'internal scratch']
  %s0 = inlined_call_operand.vmem [shape: f32[6,2560], index: 0, kind: input, shape index: {}]
  %s1 = inlined_call_operand.vmem [shape: f32[6,1], index: 1, kind: input, shape index: {}]
  %s2 = inlined_call_operand.vmem [shape: f32[6,1], index: 2, kind: input, shape index: {}]
  %s3 = inlined_call_operand.vmem [shape: f32[6,2560], index: 3, kind: output, shape index: {}]
  %s4 = sld [smem:[#allocation0]]
  $region22: #{sam_forward.4} parent=0
    _
  %s6 = ssub.s32 1, %s4
  %s7 = scalar_select 0, %s6, %s4
  // Predicated region
  $region2: #{sam_forward.4} parent=0 // pred_check
    _
  $region3: #{sam_forward.4} parent=0 // pred_check_branch
    %9 = sbr.rel (0) target = $region5
  $region4: #{sam_forward.4} parent=0 // pred_region
    _
  $region5: #{sam_forward.4} parent=0 // pred_fallthru
    _
  // Predicated region
  $region6: #{sam_forward.4} parent=0 // pred_check
    _
  $region7: #{sam_forward.4} parent=0 // pred_check_branch
    %11 = sbr.rel (0) target = $region9
  $region8: #{sam_forward.4} parent=0 // pred_region
    _
  $region9: #{sam_forward.4} parent=0 // pred_fallthru
    _
  // Predicated region
  $region10: #{sam_forward.4} parent=0 // pred_check
    _
  $region11: #{sam_forward.4} parent=0 // pred_check_branch
    %13 = sbr.rel (0) target = $region13
  $region12: #{sam_forward.4} parent=0 // pred_region
    _
  $region13: #{sam_forward.4} parent=0 // pred_fallthru
    _
  %v14 = vld [vmem:[%s0] sm:$0x3f]
  %v15 = vld [vmem:[%s0 + $0x8] sm:$0x3f]
  %v16 = vld [vmem:[%s0 + $0x10] sm:$0x3f]
  %v17 = vld [vmem:[%s0 + $0x18] sm:$0x3f]
  %v18 = vld [vmem:[%s0 + $0x20] sm:$0x3f]
  %v19 = vld [vmem:[%s0 + $0x28] sm:$0x3f]
  %v20 = vld [vmem:[%s0 + $0x30] sm:$0x3f]
  %v21 = vld [vmem:[%s0 + $0x38] sm:$0x3f]
  %v22 = vld [vmem:[%s0 + $0x40] sm:$0x3f]
  %v23 = vld [vmem:[%s0 + $0x48] sm:$0x3f]
  %v24 = vld [vmem:[%s0 + $0x50] sm:$0x3f]
  %v25 = vld [vmem:[%s0 + $0x58] sm:$0x3f]
  %v26 = vld [vmem:[%s0 + $0x60] sm:$0x3f]
  %v27 = vld [vmem:[%s0 + $0x68] sm:$0x3f]
  %v28 = vld [vmem:[%s0 + $0x70] sm:$0x3f]
  %v29 = vld [vmem:[%s0 + $0x78] sm:$0x3f]
  %v30 = vld [vmem:[%s0 + $0x80] sm:$0x3f]
  %v31 = vld [vmem:[%s0 + $0x88] sm:$0x3f]
  %v32 = vld [vmem:[%s0 + $0x90] sm:$0x3f]
  %v33 = vld [vmem:[%s0 + $0x98] sm:$0x3f]
  %v34 = vld [vmem:[%s1] sm:$0x3f]
  %36 = vset.pattern.permute.xlu0 0
  %37 = vperm.xlu0 %36, %v34
  %v38 = vpop.permute.xlu0 %37
  %v40 = vmul.f32 %v14, %v38
  %v41 = vmul.f32 %v15, %v38
  %v42 = vmul.f32 %v16, %v38
  %v43 = vmul.f32 %v17, %v38
  %v44 = vmul.f32 %v18, %v38
  %v45 = vmul.f32 %v19, %v38
  %v46 = vmul.f32 %v20, %v38
  %v47 = vmul.f32 %v21, %v38
  %v48 = vmul.f32 %v22, %v38
  %v49 = vmul.f32 %v23, %v38
  %v50 = vmul.f32 %v24, %v38
  %v51 = vmul.f32 %v25, %v38
  %v52 = vmul.f32 %v26, %v38
  %v53 = vmul.f32 %v27, %v38
  %v54 = vmul.f32 %v28, %v38
  %v55 = vmul.f32 %v29, %v38
  %v56 = vmul.f32 %v30, %v38
  %v57 = vmul.f32 %v31, %v38
  %v58 = vmul.f32 %v32, %v38
  %v59 = vmul.f32 %v33, %v38
  %v60 = vld [vmem:[%s2] sm:$0x3f]
  %62 = vset.pattern.permute.xlu0 0
  %63 = vperm.xlu0 %62, %v60
  %v64 = vpop.permute.xlu0 %63
  %v66 = vadd.f32 %v40, %v64
  %v67 = vadd.f32 %v41, %v64
  %v68 = vadd.f32 %v42, %v64
  %v69 = vadd.f32 %v43, %v64
  %v70 = vadd.f32 %v44, %v64
  %v71 = vadd.f32 %v45, %v64
  %v72 = vadd.f32 %v46, %v64
  %v73 = vadd.f32 %v47, %v64
  %v74 = vadd.f32 %v48, %v64
  %v75 = vadd.f32 %v49, %v64
  %v76 = vadd.f32 %v50, %v64
  %v77 = vadd.f32 %v51, %v64
  %v78 = vadd.f32 %v52, %v64
  %v79 = vadd.f32 %v53, %v64
  %v80 = vadd.f32 %v54, %v64
  %v81 = vadd.f32 %v55, %v64
  %v82 = vadd.f32 %v56, %v64
  %v83 = vadd.f32 %v57, %v64
  %v84 = vadd.f32 %v58, %v64
  %v85 = vadd.f32 %v59, %v64
  %86 = vst [vmem:[%s3] sm:$0x3f] %v66
  %87 = vst [vmem:[%s3 + $0x8] sm:$0x3f] %v67
  %88 = vst [vmem:[%s3 + $0x10] sm:$0x3f] %v68
  %89 = vst [vmem:[%s3 + $0x18] sm:$0x3f] %v69
  %90 = vst [vmem:[%s3 + $0x20] sm:$0x3f] %v70
  %91 = vst [vmem:[%s3 + $0x28] sm:$0x3f] %v71
  %92 = vst [vmem:[%s3 + $0x30] sm:$0x3f] %v72
  %93 = vst [vmem:[%s3 + $0x38] sm:$0x3f] %v73
  %94 = vst [vmem:[%s3 + $0x40] sm:$0x3f] %v74
  %95 = vst [vmem:[%s3 + $0x48] sm:$0x3f] %v75
  %96 = vst [vmem:[%s3 + $0x50] sm:$0x3f] %v76
  %97 = vst [vmem:[%s3 + $0x58] sm:$0x3f] %v77
  %98 = vst [vmem:[%s3 + $0x60] sm:$0x3f] %v78
  %99 = vst [vmem:[%s3 + $0x68] sm:$0x3f] %v79
  %100 = vst [vmem:[%s3 + $0x70] sm:$0x3f] %v80
  %101 = vst [vmem:[%s3 + $0x78] sm:$0x3f] %v81
  %102 = vst [vmem:[%s3 + $0x80] sm:$0x3f] %v82
  %103 = vst [vmem:[%s3 + $0x88] sm:$0x3f] %v83
  %104 = vst [vmem:[%s3 + $0x90] sm:$0x3f] %v84
  %105 = vst [vmem:[%s3 + $0x98] sm:$0x3f] %v85
  // Predicated region
  $region14: #{sam_forward.4} parent=0 // pred_check
    _
  $region15: #{sam_forward.4} parent=0 // pred_check_branch
    %107 = sbr.rel (0) target = $region17
  $region16: #{sam_forward.4} parent=0 // pred_region
    _
  $region17: #{sam_forward.4} parent=0 // pred_fallthru
    _
  // Predicated region
  $region18: #{sam_forward.4} parent=0 // pred_check
    _
  $region19: #{sam_forward.4} parent=0 // pred_check_branch
    %109 = sbr.rel (0) target = $region21
  $region20: #{sam_forward.4} parent=0 // pred_region
    _
  $region21: #{sam_forward.4} parent=0 // pred_fallthru
    _

// kernel: sam_forward.6
$region0: #{sam_forward.6}
  #allocation0 [shape = 'u32[]', space=smem, size = 0x4, offset = 0x4, fixed_abs, tag = 'smem constant byte address 0x4 - core index']
  #allocation1 [shape = 'u32[144,128]{1,0:T(1,128)}', space=vmem, size = 0x12000, scoped, tag = 'internal scratch']
  %s0 = inlined_call_operand.vmem [shape: f32[2,16,32], index: 0, kind: input, shape index: {}]
  %s1 = inlined_call_operand.vmem [shape: f32[16,32], index: 1, kind: input, shape index: {}]
  %s2 = inlined_call_operand.vmem [shape: f32[4,32], index: 2, kind: input, shape index: {}]
  %s3 = inlined_call_operand.vmem [shape: bf16[32,32], index: 3, kind: input, shape index: {}]
  %s4 = inlined_call_operand.vmem [shape: f32[1,32], index: 4, kind: input, shape index: {}]
  %s5 = inlined_call_operand.vmem [shape: bf16[32,32], index: 5, kind: input, shape index: {}]
  %s6 = inlined_call_operand.vmem [shape: f32[1,32], index: 6, kind: input, shape index: {}]
  %s7 = inlined_call_operand.vmem [shape: bf16[32,32], index: 7, kind: input, shape index: {}]
  %s8 = inlined_call_operand.vmem [shape: f32[1,32], index: 8, kind: input, shape index: {}]
  %s9 = inlined_call_operand.vmem [shape: bf16[32,32], index: 9, kind: input, shape index: {}]
  %s10 = inlined_call_operand.vmem [shape: f32[1,32], index: 10, kind: input, shape index: {}]
  %s11 = inlined_call_operand.vmem [shape: f32[1,32], index: 11, kind: input, shape index: {}]
  %s12 = inlined_call_operand.vmem [shape: f32[1,32], index: 12, kind: input, shape index: {}]
  %s13 = inlined_call_operand.vmem [shape: bf16[32,64], index: 13, kind: input, shape index: {}]
  %s14 = inlined_call_operand.vmem [shape: f32[1,64], index: 14, kind: input, shape index: {}]
  %s15 = inlined_call_operand.vmem [shape: bf16[64,32], index: 15, kind: input, shape index: {}]
  %s16 = inlined_call_operand.vmem [shape: f32[1,32], index: 16, kind: input, shape index: {}]
  %s17 = inlined_call_operand.vmem [shape: bf16[32,128], index: 17, kind: input, shape index: {}]
  %s18 = inlined_call_operand.vmem [shape: f32[1,128], index: 18, kind: input, shape index: {}]
  %s19 = inlined_call_operand.vmem [shape: bf16[32,8], index: 19, kind: input, shape index: {}]
  %s20 = inlined_call_operand.vmem [shape: f32[1,8], index: 20, kind: input, shape index: {}]
  %s21 = inlined_call_operand.vmem [shape: f32[2,4,8], index: 21, kind: output, shape index: {0}]
  %s22 = inlined_call_operand.vmem [shape: f32[2,16,128], index: 22, kind: output, shape index: {1}]
  %23 = xla_tuple %s21, %s22
  %s24 = sld [smem:[#allocation0]]
  $region125: #{sam_forward.6} parent=0
    _
  %s26 = ssub.s32 1, %s24
  %s27 = scalar_select 0, %s26, %s24
  loop: start=0, step=1, limit=4
  $region2: #{sam_forward.6} parent=0 // loop_pre_header
    _
  $region3: #{sam_forward.6} parent=0 // loop_header
    %s29 = sphi 0, %s33
    %p30 = scmp.ge.s32.totalorder %s29, 4
    %s39 = sphi 0, %s41
    %s42 = sphi 0, %s39
    %s43 = sphi 0, %s42
    %s59 = sphi 0, %s43
    %s63 = sphi 0, %s63
    %s65 = sphi 0, %s63
    %s66 = sphi 0, %s65
    %s80 = sphi 0, %s66
    %s84 = sphi 0, %s84
    %s86 = sphi 0, %s84
    %s87 = sphi 0, %s86
    %s101 = sphi 0, %s87
    %s105 = sphi 0, %s105
    %s107 = sphi 0, %s105
    %s108 = sphi 0, %s107
    %s122 = sphi 0, %s108
    %s126 = sphi 0, %s126
    %s128 = sphi 0, %s126
    %s129 = sphi 0, %s128
    %s143 = sphi 0, %s129
    %s147 = sphi 0, %s147
    %s149 = sphi 0, %s147
    %s150 = sphi 0, %s149
    %s164 = sphi 0, %s150
    %s168 = sphi 0, %s168
    %s170 = sphi 0, %s168
    %s171 = sphi 0, %s170
    %s185 = sphi 0, %s171
    %s189 = sphi 0, %s189
    %s191 = sphi 0, %s189
    %s192 = sphi 0, %s191
    %s206 = sphi 0, %s192
    %s210 = sphi 0, %s210
    %s212 = sphi 0, %s210
    %s213 = sphi 0, %s212
    %s227 = sphi 0, %s213
    %s231 = sphi 0, %s231
    %s233 = sphi 0, %s231
    %s234 = sphi 0, %s233
    %s248 = sphi 0, %s234
    %s252 = sphi 0, %s252
    %s254 = sphi 0, %s252
    %s255 = sphi 0, %s254
    %s269 = sphi 0, %s255
    %s273 = sphi 0, %s273
    %s275 = sphi 0, %s273
    %s276 = sphi 0, %s275
    %s290 = sphi 0, %s276
    %s294 = sphi 0, %s294
    %s296 = sphi 0, %s294
    %s297 = sphi 0, %s296
    %s311 = sphi 0, %s297
    %s315 = sphi 0, %s315
    %s317 = sphi 0, %s315
    %s318 = sphi 0, %s317
    %s332 = sphi 0, %s318
    %s336 = sphi 0, %s336
    %s338 = sphi 0, %s336
    %s339 = sphi 0, %s338
    %s353 = sphi 0, %s339
    %s357 = sphi 0, %s357
    %s359 = sphi 0, %s357
    %s360 = sphi 0, %s359
    %s374 = sphi 0, %s360
    %s378 = sphi 0, %s378
    %s380 = sphi 0, %s378
    %s381 = sphi 0, %s380
    %s395 = sphi 0, %s381
    %s399 = sphi 0, %s399
    %s401 = sphi 0, %s399
    %s402 = sphi 0, %s401
    %s416 = sphi 0, %s402
    %s420 = sphi 0, %s420
    %s422 = sphi 0, %s420
    %s423 = sphi 0, %s422
    %s437 = sphi 0, %s423
    %s441 = sphi 0, %s441
    %s443 = sphi 0, %s441
    %s444 = sphi 0, %s443
    %s458 = sphi 0, %s444
    %s462 = sphi 0, %s462
    %s464 = sphi 0, %s462
    %s465 = sphi 0, %s464
    %s479 = sphi 0, %s465
    %s485 = sphi 0, %s487
    %s488 = sphi 0, %s485
    %s489 = sphi 0, %s488
    %s505 = sphi 0, %s489
    %s511 = sphi 0, %s513
    %s514 = sphi 0, %s511
    %s515 = sphi 0, %s514
    %s531 = sphi 0, %s515
  $region4: #{sam_forward.6} parent=0 // loop_header_branch
    %32 = sbr.rel (%p30) target = $region8
  $region5: #{sam_forward.6} parent=0 // loop_body
    %s34 = ssub.s32 %s29, 1
    %s35 = ssub.s32 %s29, 2
    %s36 = sadd.s32 %s29, 1
    %s37 = ssub.s32 %s29, %s36
    %p38 = scmp.eq.s32.totalorder %s37, 0
    %s40 = sadd.s32 %s39, 1
    %s41 = scalar_select %p38, %s39, %s40
    %p44 = pneg %p38
    %p45 = scmp.eq.s32.totalorder %s29, 1
    %p46 = por %p44, %p45
    %p47 = scmp.ne.s32.totalorder %s39, %s42
    %p48 = scmp.eq.s32.totalorder %s29, 0
    %p49 = por %p47, %p48
    %p50 = scmp.ne.s32.totalorder %s39, %s42
    %p51 = scmp.eq.s32.totalorder %s34, 1
    %p52 = por %p50, %p51
    %p53 = scmp.ne.s32.totalorder %s42, %s43
    %p54 = scmp.eq.s32.totalorder %s34, 0
    %p55 = por %p53, %p54
    %p56 = scmp.ne.s32.totalorder %s42, %s43
    %p57 = scmp.eq.s32.totalorder %s35, 1
    %p58 = por %p56, %p57
    %p60 = scmp.ne.s32.totalorder %s43, %s59
    %p61 = scmp.eq.s32.totalorder %s35, 0
    %p62 = por %p60, %p61
    %s64 = sadd.s32 %s63, 1
    %p67 = scmp.eq.s32.totalorder %s29, 1
    %p68 = scmp.ne.s32.totalorder %s63, %s65
    %p69 = scmp.eq.s32.totalorder %s29, 0
    %p70 = por %p68, %p69
    %p71 = scmp.ne.s32.totalorder %s63, %s65
    %p72 = scmp.eq.s32.totalorder %s34, 1
    %p73 = por %p71, %p72
    %p74 = scmp.ne.s32.totalorder %s65, %s66
    %p75 = scmp.eq.s32.totalorder %s34, 0
    %p76 = por %p74, %p75
    %p77 = scmp.ne.s32.totalorder %s65, %s66
    %p78 = scmp.eq.s32.totalorder %s35, 1
    %p79 = por %p77, %p78
    %p81 = scmp.ne.s32.totalorder %s66, %s80
    %p82 = scmp.eq.s32.totalorder %s35, 0
    %p83 = por %p81, %p82
    %s85 = sadd.s32 %s84, 1
    %p88 = scmp.eq.s32.totalorder %s29, 1
    %p89 = scmp.ne.s32.totalorder %s84, %s86
    %p90 = scmp.eq.s32.totalorder %s29, 0
    %p91 = por %p89, %p90
    %p92 = scmp.ne.s32.totalorder %s84, %s86
    %p93 = scmp.eq.s32.totalorder %s34, 1
    %p94 = por %p92, %p93
    %p95 = scmp.ne.s32.totalorder %s86, %s87
    %p96 = scmp.eq.s32.totalorder %s34, 0
    %p97 = por %p95, %p96
    %p98 = scmp.ne.s32.totalorder %s86, %s87
    %p99 = scmp.eq.s32.totalorder %s35, 1
    %p100 = por %p98, %p99
    %p102 = scmp.ne.s32.totalorder %s87, %s101
    %p103 = scmp.eq.s32.totalorder %s35, 0
    %p104 = por %p102, %p103
    %s106 = sadd.s32 %s105, 1
    %p109 = scmp.eq.s32.totalorder %s29, 1
    %p110 = scmp.ne.s32.totalorder %s105, %s107
    %p111 = scmp.eq.s32.totalorder %s29, 0
    %p112 = por %p110, %p111
    %p113 = scmp.ne.s32.totalorder %s105, %s107
    %p114 = scmp.eq.s32.totalorder %s34, 1
    %p115 = por %p113, %p114
    %p116 = scmp.ne.s32.totalorder %s107, %s108
    %p117 = scmp.eq.s32.totalorder %s34, 0
    %p118 = por %p116, %p117
    %p119 = scmp.ne.s32.totalorder %s107, %s108
    %p120 = scmp.eq.s32.totalorder %s35, 1
    %p121 = por %p119, %p120
    %p123 = scmp.ne.s32.totalorder %s108, %s122
    %p124 = scmp.eq.s32.totalorder %s35, 0
    %p125 = por %p123, %p124
    %s127 = sadd.s32 %s126, 1
    %p130 = scmp.eq.s32.totalorder %s29, 1
    %p131 = scmp.ne.s32.totalorder %s126, %s128
    %p132 = scmp.eq.s32.totalorder %s29, 0
    %p133 = por %p131, %p132
    %p134 = scmp.ne.s32.totalorder %s126, %s128
    %p135 = scmp.eq.s32.totalorder %s34, 1
    %p136 = por %p134, %p135
    %p137 = scmp.ne.s32.totalorder %s128, %s129
    %p138 = scmp.eq.s32.totalorder %s34, 0
    %p139 = por %p137, %p138
    %p140 = scmp.ne.s32.totalorder %s128, %s129
    %p141 = scmp.eq.s32.totalorder %s35, 1
    %p142 = por %p140, %p141
    %p144 = scmp.ne.s32.totalorder %s129, %s143
    %p145 = scmp.eq.s32.totalorder %s35, 0
    %p146 = por %p144, %p145
    %s148 = sadd.s32 %s147, 1
    %p151 = scmp.eq.s32.totalorder %s29, 1
    %p152 = scmp.ne.s32.totalorder %s147, %s149
    %p153 = scmp.eq.s32.totalorder %s29, 0
    %p154 = por %p152, %p153
    %p155 = scmp.ne.s32.totalorder %s147, %s149
    %p156 = scmp.eq.s32.totalorder %s34, 1
    %p157 = por %p155, %p156
    %p158 = scmp.ne.s32.totalorder %s149, %s150
    %p159 = scmp.eq.s32.totalorder %s34, 0
    %p160 = por %p158, %p159
    %p161 = scmp.ne.s32.totalorder %s149, %s150
    %p162 = scmp.eq.s32.totalorder %s35, 1
    %p163 = por %p161, %p162
    %p165 = scmp.ne.s32.totalorder %s150, %s164
    %p166 = scmp.eq.s32.totalorder %s35, 0
    %p167 = por %p165, %p166
    %s169 = sadd.s32 %s168, 1
    %p172 = scmp.eq.s32.totalorder %s29, 1
    %p173 = scmp.ne.s32.totalorder %s168, %s170
    %p174 = scmp.eq.s32.totalorder %s29, 0
    %p175 = por %p173, %p174
    %p176 = scmp.ne.s32.totalorder %s168, %s170
    %p177 = scmp.eq.s32.totalorder %s34, 1
    %p178 = por %p176, %p177
    %p179 = scmp.ne.s32.totalorder %s170, %s171
    %p180 = scmp.eq.s32.totalorder %s34, 0
    %p181 = por %p179, %p180
    %p182 = scmp.ne.s32.totalorder %s170, %s171
    %p183 = scmp.eq.s32.totalorder %s35, 1
    %p184 = por %p182, %p183
    %p186 = scmp.ne.s32.totalorder %s171, %s185
    %p187 = scmp.eq.s32.totalorder %s35, 0
    %p188 = por %p186, %p187
    %s190 = sadd.s32 %s189, 1
    %p193 = scmp.eq.s32.totalorder %s29, 1
    %p194 = scmp.ne.s32.totalorder %s189, %s191
    %p195 = scmp.eq.s32.totalorder %s29, 0
    %p196 = por %p194, %p195
    %p197 = scmp.ne.s32.totalorder %s189, %s191
    %p198 = scmp.eq.s32.totalorder %s34, 1
    %p199 = por %p197, %p198
    %p200 = scmp.ne.s32.totalorder %s191, %s192
    %p201 = scmp.eq.s32.totalorder %s34, 0
    %p202 = por %p200, %p201
    %p203 = scmp.ne.s32.totalorder %s191, %s192
    %p204 = scmp.eq.s32.totalorder %s35, 1
    %p205 = por %p203, %p204
    %p207 = scmp.ne.s32.totalorder %s192, %s206
    %p208 = scmp.eq.s32.totalorder %s35, 0
    %p209 = por %p207, %p208
    %s211 = sadd.s32 %s210, 1
    %p214 = scmp.eq.s32.totalorder %s29, 1
    %p215 = scmp.ne.s32.totalorder %s210, %s212
    %p216 = scmp.eq.s32.totalorder %s29, 0
    %p217 = por %p215, %p216
    %p218 = scmp.ne.s32.totalorder %s210, %s212
    %p219 = scmp.eq.s32.totalorder %s34, 1
    %p220 = por %p218, %p219
    %p221 = scmp.ne.s32.totalorder %s212, %s213
    %p222 = scmp.eq.s32.totalorder %s34, 0
    %p223 = por %p221, %p222
    %p224 = scmp.ne.s32.totalorder %s212, %s213
    %p225 = scmp.eq.s32.totalorder %s35, 1
    %p226 = por %p224, %p225
    %p228 = scmp.ne.s32.totalorder %s213, %s227
    %p229 = scmp.eq.s32.totalorder %s35, 0
    %p230 = por %p228, %p229
    %s232 = sadd.s32 %s231, 1
    %p235 = scmp.eq.s32.totalorder %s29, 1
    %p236 = scmp.ne.s32.totalorder %s231, %s233
    %p237 = scmp.eq.s32.totalorder %s29, 0
    %p238 = por %p236, %p237
    %p239 = scmp.ne.s32.totalorder %s231, %s233
    %p240 = scmp.eq.s32.totalorder %s34, 1
    %p241 = por %p239, %p240
    %p242 = scmp.ne.s32.totalorder %s233, %s234
    %p243 = scmp.eq.s32.totalorder %s34, 0
    %p244 = por %p242, %p243
    %p245 = scmp.ne.s32.totalorder %s233, %s234
    %p246 = scmp.eq.s32.totalorder %s35, 1
    %p247 = por %p245, %p246
    %p249 = scmp.ne.s32.totalorder %s234, %s248
    %p250 = scmp.eq.s32.totalorder %s35, 0
    %p251 = por %p249, %p250
    %s253 = sadd.s32 %s252, 1
    %p256 = scmp.eq.s32.totalorder %s29, 1
    %p257 = scmp.ne.s32.totalorder %s252, %s254
    %p258 = scmp.eq.s32.totalorder %s29, 0
    %p259 = por %p257, %p258
    %p260 = scmp.ne.s32.totalorder %s252, %s254
    %p261 = scmp.eq.s32.totalorder %s34, 1
    %p262 = por %p260, %p261
    %p263 = scmp.ne.s32.totalorder %s254, %s255
    %p264 = scmp.eq.s32.totalorder %s34, 0
    %p265 = por %p263, %p264
    %p266 = scmp.ne.s32.totalorder %s254, %s255
    %p267 = scmp.eq.s32.totalorder %s35, 1
    %p268 = por %p266, %p267
    %p270 = scmp.ne.s32.totalorder %s255, %s269
    %p271 = scmp.eq.s32.totalorder %s35, 0
    %p272 = por %p270, %p271
    %s274 = sadd.s32 %s273, 1
    %p277 = scmp.eq.s32.totalorder %s29, 1
    %p278 = scmp.ne.s32.totalorder %s273, %s275
    %p279 = scmp.eq.s32.totalorder %s29, 0
    %p280 = por %p278, %p279
    %p281 = scmp.ne.s32.totalorder %s273, %s275
    %p282 = scmp.eq.s32.totalorder %s34, 1
    %p283 = por %p281, %p282
    %p284 = scmp.ne.s32.totalorder %s275, %s276
    %p285 = scmp.eq.s32.totalorder %s34, 0
    %p286 = por %p284, %p285
    %p287 = scmp.ne.s32.totalorder %s275, %s276
    %p288 = scmp.eq.s32.totalorder %s35, 1
    %p289 = por %p287, %p288
    %p291 = scmp.ne.s32.totalorder %s276, %s290
    %p292 = scmp.eq.s32.totalorder %s35, 0
    %p293 = por %p291, %p292
    %s295 = sadd.s32 %s294, 1
    %p298 = scmp.eq.s32.totalorder %s29, 1
    %p299 = scmp.ne.s32.totalorder %s294, %s296
    %p300 = scmp.eq.s32.totalorder %s29, 0
    %p301 = por %p299, %p300
    %p302 = scmp.ne.s32.totalorder %s294, %s296
    %p303 = scmp.eq.s32.totalorder %s34, 1
    %p304 = por %p302, %p303
    %p305 = scmp.ne.s32.totalorder %s296, %s297
    %p306 = scmp.eq.s32.totalorder %s34, 0
    %p307 = por %p305, %p306
    %p308 = scmp.ne.s32.totalorder %s296, %s297
    %p309 = scmp.eq.s32.totalorder %s35, 1
    %p310 = por %p308, %p309
    %p312 = scmp.ne.s32.totalorder %s297, %s311
    %p313 = scmp.eq.s32.totalorder %s35, 0
    %p314 = por %p312, %p313
    %s316 = sadd.s32 %s315, 1
    %p319 = scmp.eq.s32.totalorder %s29, 1
    %p320 = scmp.ne.s32.totalorder %s315, %s317
    %p321 = scmp.eq.s32.totalorder %s29, 0
    %p322 = por %p320, %p321
    %p323 = scmp.ne.s32.totalorder %s315, %s317
    %p324 = scmp.eq.s32.totalorder %s34, 1
    %p325 = por %p323, %p324
    %p326 = scmp.ne.s32.totalorder %s317, %s318
    %p327 = scmp.eq.s32.totalorder %s34, 0
    %p328 = por %p326, %p327
    %p329 = scmp.ne.s32.totalorder %s317, %s318
    %p330 = scmp.eq.s32.totalorder %s35, 1
    %p331 = por %p329, %p330
    %p333 = scmp.ne.s32.totalorder %s318, %s332
    %p334 = scmp.eq.s32.totalorder %s35, 0
    %p335 = por %p333, %p334
    %s337 = sadd.s32 %s336, 1
    %p340 = scmp.eq.s32.totalorder %s29, 1
    %p341 = scmp.ne.s32.totalorder %s336, %s338
    %p342 = scmp.eq.s32.totalorder %s29, 0
    %p343 = por %p341, %p342
    %p344 = scmp.ne.s32.totalorder %s336, %s338
    %p345 = scmp.eq.s32.totalorder %s34, 1
    %p346 = por %p344, %p345
    %p347 = scmp.ne.s32.totalorder %s338, %s339
    %p348 = scmp.eq.s32.totalorder %s34, 0
    %p349 = por %p347, %p348
    %p350 = scmp.ne.s32.totalorder %s338, %s339
    %p351 = scmp.eq.s32.totalorder %s35, 1
    %p352 = por %p350, %p351
    %p354 = scmp.ne.s32.totalorder %s339, %s353
    %p355 = scmp.eq.s32.totalorder %s35, 0
    %p356 = por %p354, %p355
    %s358 = sadd.s32 %s357, 1
    %p361 = scmp.eq.s32.totalorder %s29, 1
    %p362 = scmp.ne.s32.totalorder %s357, %s359
    %p363 = scmp.eq.s32.totalorder %s29, 0
    %p364 = por %p362, %p363
    %p365 = scmp.ne.s32.totalorder %s357, %s359
    %p366 = scmp.eq.s32.totalorder %s34, 1
    %p367 = por %p365, %p366
    %p368 = scmp.ne.s32.totalorder %s359, %s360
    %p369 = scmp.eq.s32.totalorder %s34, 0
    %p370 = por %p368, %p369
    %p371 = scmp.ne.s32.totalorder %s359, %s360
    %p372 = scmp.eq.s32.totalorder %s35, 1
    %p373 = por %p371, %p372
    %p375 = scmp.ne.s32.totalorder %s360, %s374
    %p376 = scmp.eq.s32.totalorder %s35, 0
    %p377 = por %p375, %p376
    %s379 = sadd.s32 %s378, 1
    %p382 = scmp.eq.s32.totalorder %s29, 1
    %p383 = scmp.ne.s32.totalorder %s378, %s380
    %p384 = scmp.eq.s32.totalorder %s29, 0
    %p385 = por %p383, %p384
    %p386 = scmp.ne.s32.totalorder %s378, %s380
    %p387 = scmp.eq.s32.totalorder %s34, 1
    %p388 = por %p386, %p387
    %p389 = scmp.ne.s32.totalorder %s380, %s381
    %p390 = scmp.eq.s32.totalorder %s34, 0
    %p391 = por %p389, %p390
    %p392 = scmp.ne.s32.totalorder %s380, %s381
    %p393 = scmp.eq.s32.totalorder %s35, 1
    %p394 = por %p392, %p393
    %p396 = scmp.ne.s32.totalorder %s381, %s395
    %p397 = scmp.eq.s32.totalorder %s35, 0
    %p398 = por %p396, %p397
    %s400 = sadd.s32 %s399, 1
    %p403 = scmp.eq.s32.totalorder %s29, 1
    %p404 = scmp.ne.s32.totalorder %s399, %s401
    %p405 = scmp.eq.s32.totalorder %s29, 0
    %p406 = por %p404, %p405
    %p407 = scmp.ne.s32.totalorder %s399, %s401
    %p408 = scmp.eq.s32.totalorder %s34, 1
    %p409 = por %p407, %p408
    %p410 = scmp.ne.s32.totalorder %s401, %s402
    %p411 = scmp.eq.s32.totalorder %s34, 0
    %p412 = por %p410, %p411
    %p413 = scmp.ne.s32.totalorder %s401, %s402
    %p414 = scmp.eq.s32.totalorder %s35, 1
    %p415 = por %p413, %p414
    %p417 = scmp.ne.s32.totalorder %s402, %s416
    %p418 = scmp.eq.s32.totalorder %s35, 0
    %p419 = por %p417, %p418
    %s421 = sadd.s32 %s420, 1
    %p424 = scmp.eq.s32.totalorder %s29, 1
    %p425 = scmp.ne.s32.totalorder %s420, %s422
    %p426 = scmp.eq.s32.totalorder %s29, 0
    %p427 = por %p425, %p426
    %p428 = scmp.ne.s32.totalorder %s420, %s422
    %p429 = scmp.eq.s32.totalorder %s34, 1
    %p430 = por %p428, %p429
    %p431 = scmp.ne.s32.totalorder %s422, %s423
    %p432 = scmp.eq.s32.totalorder %s34, 0
    %p433 = por %p431, %p432
    %p434 = scmp.ne.s32.totalorder %s422, %s423
    %p435 = scmp.eq.s32.totalorder %s35, 1
    %p436 = por %p434, %p435
    %p438 = scmp.ne.s32.totalorder %s423, %s437
    %p439 = scmp.eq.s32.totalorder %s35, 0
    %p440 = por %p438, %p439
    %s442 = sadd.s32 %s441, 1
    %p445 = scmp.eq.s32.totalorder %s29, 1
    %p446 = scmp.ne.s32.totalorder %s441, %s443
    %p447 = scmp.eq.s32.totalorder %s29, 0
    %p448 = por %p446, %p447
    %p449 = scmp.ne.s32.totalorder %s441, %s443
    %p450 = scmp.eq.s32.totalorder %s34, 1
    %p451 = por %p449, %p450
    %p452 = scmp.ne.s32.totalorder %s443, %s444
    %p453 = scmp.eq.s32.totalorder %s34, 0
    %p454 = por %p452, %p453
    %p455 = scmp.ne.s32.totalorder %s443, %s444
    %p456 = scmp.eq.s32.totalorder %s35, 1
    %p457 = por %p455, %p456
    %p459 = scmp.ne.s32.totalorder %s444, %s458
    %p460 = scmp.eq.s32.totalorder %s35, 0
    %p461 = por %p459, %p460
    %s463 = sadd.s32 %s462, 1
    %p466 = scmp.eq.s32.totalorder %s29, 1
    %p467 = scmp.ne.s32.totalorder %s462, %s464
    %p468 = scmp.eq.s32.totalorder %s29, 0
    %p469 = por %p467, %p468
    %p470 = scmp.ne.s32.totalorder %s462, %s464
    %p471 = scmp.eq.s32.totalorder %s34, 1
    %p472 = por %p470, %p471
    %p473 = scmp.ne.s32.totalorder %s464, %s465
    %p474 = scmp.eq.s32.totalorder %s34, 0
    %p475 = por %p473, %p474
    %p476 = scmp.ne.s32.totalorder %s464, %s465
    %p477 = scmp.eq.s32.totalorder %s35, 1
    %p478 = por %p476, %p477
    %p480 = scmp.ne.s32.totalorder %s465, %s479
    %p481 = scmp.eq.s32.totalorder %s35, 0
    %p482 = por %p480, %p481
    %s483 = ssub.s32 %s29, %s36
    %p484 = scmp.eq.s32.totalorder %s483, 0
    %s486 = sadd.s32 %s485, 1
    %s487 = scalar_select %p484, %s485, %s486
    %p490 = pneg %p484
    %p491 = scmp.eq.s32.totalorder %s29, 1
    %p492 = por %p490, %p491
    %p493 = scmp.ne.s32.totalorder %s485, %s488
    %p494 = scmp.eq.s32.totalorder %s29, 0
    %p495 = por %p493, %p494
    %p496 = scmp.ne.s32.totalorder %s485, %s488
    %p497 = scmp.eq.s32.totalorder %s34, 1
    %p498 = por %p496, %p497
    %p499 = scmp.ne.s32.totalorder %s488, %s489
    %p500 = scmp.eq.s32.totalorder %s34, 0
    %p501 = por %p499, %p500
    %p502 = scmp.ne.s32.totalorder %s488, %s489
    %p503 = scmp.eq.s32.totalorder %s35, 1
    %p504 = por %p502, %p503
    %p506 = scmp.ne.s32.totalorder %s489, %s505
    %p507 = scmp.eq.s32.totalorder %s35, 0
    %p508 = por %p506, %p507
    %s509 = ssub.s32 %s29, %s36
    %p510 = scmp.eq.s32.totalorder %s509, 0
    %s512 = sadd.s32 %s511, 1
    %s513 = scalar_select %p510, %s511, %s512
    %p516 = pneg %p510
    %p517 = scmp.eq.s32.totalorder %s29, 1
    %p518 = por %p516, %p517
    %p519 = scmp.ne.s32.totalorder %s511, %s514
    %p520 = scmp.eq.s32.totalorder %s29, 0
    %p521 = por %p519, %p520
    %p522 = scmp.ne.s32.totalorder %s511, %s514
    %p523 = scmp.eq.s32.totalorder %s34, 1
    %p524 = por %p522, %p523
    %p525 = scmp.ne.s32.totalorder %s514, %s515
    %p526 = scmp.eq.s32.totalorder %s34, 0
    %p527 = por %p525, %p526
    %p528 = scmp.ne.s32.totalorder %s514, %s515
    %p529 = scmp.eq.s32.totalorder %s35, 1
    %p530 = por %p528, %p529
    %p532 = scmp.ne.s32.totalorder %s515, %s531
    %p533 = scmp.eq.s32.totalorder %s35, 0
    %p534 = por %p532, %p533
    %p535 = scmp.le.s32.totalorder 1, %s29
    %p536 = scmp.lt.s32.totalorder %s29, 3
    %p537 = pnand %p535, %p536
    %p538 = pneg %p537
    // Predicated region
    $region9: #{sam_forward.6} parent=5 // pred_check
      _
    $region10: #{sam_forward.6} parent=5 // pred_check_branch
      %540 = sbr.rel (%p537) target = $region12
    $region11: #{sam_forward.6} parent=5 // pred_region
      %s541 = ssub.s32 %s29, 1
      // Predicated region
      $region13: #{sam_forward.6} parent=11 // pred_check
        %p542 = pneg %p76
      $region14: #{sam_forward.6} parent=11 // pred_check_branch
        %544 = sbr.rel (%p542) target = $region16
      $region15: #{sam_forward.6} parent=11 // pred_region
        _
      $region16: #{sam_forward.6} parent=11 // pred_fallthru
        _
      // Predicated region
      $region17: #{sam_forward.6} parent=11 // pred_check
        %p545 = pneg %p97
      $region18: #{sam_forward.6} parent=11 // pred_check_branch
        %547 = sbr.rel (%p545) target = $region20
      $region19: #{sam_forward.6} parent=11 // pred_region
        _
      $region20: #{sam_forward.6} parent=11 // pred_fallthru
        _
      // Predicated region
      $region21: #{sam_forward.6} parent=11 // pred_check
        %p548 = pneg %p118
      $region22: #{sam_forward.6} parent=11 // pred_check_branch
        %550 = sbr.rel (%p548) target = $region24
      $region23: #{sam_forward.6} parent=11 // pred_region
        _
      $region24: #{sam_forward.6} parent=11 // pred_fallthru
        _
      // Predicated region
      $region25: #{sam_forward.6} parent=11 // pred_check
        %p551 = pneg %p139
      $region26: #{sam_forward.6} parent=11 // pred_check_branch
        %553 = sbr.rel (%p551) target = $region28
      $region27: #{sam_forward.6} parent=11 // pred_region
        _
      $region28: #{sam_forward.6} parent=11 // pred_fallthru
        _
      // Predicated region
      $region29: #{sam_forward.6} parent=11 // pred_check
        %p554 = pneg %p160
      $region30: #{sam_forward.6} parent=11 // pred_check_branch
        %556 = sbr.rel (%p554) target = $region32
      $region31: #{sam_forward.6} parent=11 // pred_region
        _
      $region32: #{sam_forward.6} parent=11 // pred_fallthru
        _
      // Predicated region
      $region33: #{sam_forward.6} parent=11 // pred_check
        %p557 = pneg %p181
      $region34: #{sam_forward.6} parent=11 // pred_check_branch
        %559 = sbr.rel (%p557) target = $region36
      $region35: #{sam_forward.6} parent=11 // pred_region
        _
      $region36: #{sam_forward.6} parent=11 // pred_fallthru
        _
      // Predicated region
      $region37: #{sam_forward.6} parent=11 // pred_check
        %p560 = pneg %p202
      $region38: #{sam_forward.6} parent=11 // pred_check_branch
        %562 = sbr.rel (%p560) target = $region40
      $region39: #{sam_forward.6} parent=11 // pred_region
        _
      $region40: #{sam_forward.6} parent=11 // pred_fallthru
        _
      // Predicated region
      $region41: #{sam_forward.6} parent=11 // pred_check
        %p563 = pneg %p223
      $region42: #{sam_forward.6} parent=11 // pred_check_branch
        %565 = sbr.rel (%p563) target = $region44
      $region43: #{sam_forward.6} parent=11 // pred_region
        _
      $region44: #{sam_forward.6} parent=11 // pred_fallthru
        _
      // Predicated region
      $region45: #{sam_forward.6} parent=11 // pred_check
        %p566 = pneg %p244
      $region46: #{sam_forward.6} parent=11 // pred_check_branch
        %568 = sbr.rel (%p566) target = $region48
      $region47: #{sam_forward.6} parent=11 // pred_region
        _
      $region48: #{sam_forward.6} parent=11 // pred_fallthru
        _
      // Predicated region
      $region49: #{sam_forward.6} parent=11 // pred_check
        %p569 = pneg %p265
      $region50: #{sam_forward.6} parent=11 // pred_check_branch
        %571 = sbr.rel (%p569) target = $region52
      $region51: #{sam_forward.6} parent=11 // pred_region
        _
      $region52: #{sam_forward.6} parent=11 // pred_fallthru
        _
      // Predicated region
      $region53: #{sam_forward.6} parent=11 // pred_check
        %p572 = pneg %p286
      $region54: #{sam_forward.6} parent=11 // pred_check_branch
        %574 = sbr.rel (%p572) target = $region56
      $region55: #{sam_forward.6} parent=11 // pred_region
        _
      $region56: #{sam_forward.6} parent=11 // pred_fallthru
        _
      // Predicated region
      $region57: #{sam_forward.6} parent=11 // pred_check
        %p575 = pneg %p307
      $region58: #{sam_forward.6} parent=11 // pred_check_branch
        %577 = sbr.rel (%p575) target = $region60
      $region59: #{sam_forward.6} parent=11 // pred_region
        _
      $region60: #{sam_forward.6} parent=11 // pred_fallthru
        _
      // Predicated region
      $region61: #{sam_forward.6} parent=11 // pred_check
        %p578 = pneg %p328
      $region62: #{sam_forward.6} parent=11 // pred_check_branch
        %580 = sbr.rel (%p578) target = $region64
      $region63: #{sam_forward.6} parent=11 // pred_region
        _
      $region64: #{sam_forward.6} parent=11 // pred_fallthru
        _
      // Predicated region
      $region65: #{sam_forward.6} parent=11 // pred_check
        %p581 = pneg %p349
      $region66: #{sam_forward.6} parent=11 // pred_check_branch
        %583 = sbr.rel (%p581) target = $region68
      $region67: #{sam_forward.6} parent=11 // pred_region
        _
      $region68: #{sam_forward.6} parent=11 // pred_fallthru
        _
      // Predicated region
      $region69: #{sam_forward.6} parent=11 // pred_check
        %p584 = pneg %p370
      $region70: #{sam_forward.6} parent=11 // pred_check_branch
        %586 = sbr.rel (%p584) target = $region72
      $region71: #{sam_forward.6} parent=11 // pred_region
        _
      $region72: #{sam_forward.6} parent=11 // pred_fallthru
        _
      // Predicated region
      $region73: #{sam_forward.6} parent=11 // pred_check
        %p587 = pneg %p391
      $region74: #{sam_forward.6} parent=11 // pred_check_branch
        %589 = sbr.rel (%p587) target = $region76
      $region75: #{sam_forward.6} parent=11 // pred_region
        _
      $region76: #{sam_forward.6} parent=11 // pred_fallthru
        _
      // Predicated region
      $region77: #{sam_forward.6} parent=11 // pred_check
        %p590 = pneg %p412
      $region78: #{sam_forward.6} parent=11 // pred_check_branch
        %592 = sbr.rel (%p590) target = $region80
      $region79: #{sam_forward.6} parent=11 // pred_region
        _
      $region80: #{sam_forward.6} parent=11 // pred_fallthru
        _
      // Predicated region
      $region81: #{sam_forward.6} parent=11 // pred_check
        %p593 = pneg %p433
      $region82: #{sam_forward.6} parent=11 // pred_check_branch
        %595 = sbr.rel (%p593) target = $region84
      $region83: #{sam_forward.6} parent=11 // pred_region
        _
      $region84: #{sam_forward.6} parent=11 // pred_fallthru
        _
      // Predicated region
      $region85: #{sam_forward.6} parent=11 // pred_check
        %p596 = pneg %p454
      $region86: #{sam_forward.6} parent=11 // pred_check_branch
        %598 = sbr.rel (%p596) target = $region88
      $region87: #{sam_forward.6} parent=11 // pred_region
        _
      $region88: #{sam_forward.6} parent=11 // pred_fallthru
        _
      // Predicated region
      $region89: #{sam_forward.6} parent=11 // pred_check
        %p599 = pneg %p475
      $region90: #{sam_forward.6} parent=11 // pred_check_branch
        %601 = sbr.rel (%p599) target = $region92
      $region91: #{sam_forward.6} parent=11 // pred_region
        _
      $region92: #{sam_forward.6} parent=11 // pred_fallthru
        _
    $region12: #{sam_forward.6} parent=5 // pred_fallthru
      _
    %p602 = scmp.lt.s32.totalorder %s29, 2
    // Predicated region
    $region93: #{sam_forward.6} parent=5 // pred_check
      %p603 = pneg %p602
    $region94: #{sam_forward.6} parent=5 // pred_check_branch
      %605 = sbr.rel (%p603) target = $region96
    $region95: #{sam_forward.6} parent=5 // pred_region
      // Predicated region
      $region97: #{sam_forward.6} parent=95 // pred_check
        %p606 = pneg %p49
      $region98: #{sam_forward.6} parent=95 // pred_check_branch
        %608 = sbr.rel (%p606) target = $region100
      $region99: #{sam_forward.6} parent=95 // pred_region
        %p609 = scmp.lt.s32.totalorder %s29, 1
        %s610 = scalar_select %p609, %s29, 1
        %s611 = smul.addr %s610, 2
        %s612 = smul.addr %s611, 8
        %s613 = scalar_lea.vmem %s0, %s612
      $region100: #{sam_forward.6} parent=95 // pred_fallthru
        _
    $region96: #{sam_forward.6} parent=5 // pred_fallthru
      _
    %p614 = scmp.le.s32.totalorder 1, %s29
    %p615 = scmp.lt.s32.totalorder %s29, 3
    %p616 = pnand %p614, %p615
    %p617 = pneg %p616
    // Predicated region
    $region101: #{sam_forward.6} parent=5 // pred_check
      _
    $region102: #{sam_forward.6} parent=5 // pred_check_branch
      %619 = sbr.rel (%p616) target = $region104
    $region103: #{sam_forward.6} parent=5 // pred_region
      %s620 = ssub.s32 %s29, 1
      %p621 = scmp.lt.s32.totalorder %s34, 1
      %s622 = scalar_select %p621, %s34, 1
      %s623 = smul.addr %s622, 2
      %s624 = smul.addr %s623, 8
      %s625 = scalar_lea.vmem %s0, %s624
      %p626 = pneg %p55
      %p627 = pneg %p52
      %p628 = pneg %p76
      %p629 = pneg %p73
      %p630 = pneg %p97
      %p631 = pneg %p94
      %p632 = pneg %p118
      %p633 = pneg %p115
      %p634 = pneg %p139
      %p635 = pneg %p136
      %p636 = pneg %p160
      %p637 = pneg %p157
      %p638 = pneg %p181
      %p639 = pneg %p178
      %p640 = pneg %p202
      %p641 = pneg %p199
      %p642 = pneg %p223
      %p643 = pneg %p220
      %p644 = pneg %p244
      %p645 = pneg %p241
      %p646 = pneg %p265
      %p647 = pneg %p262
      %p648 = pneg %p286
      %p649 = pneg %p283
      %p650 = pneg %p307
      %p651 = pneg %p304
      %p652 = pneg %p328
      %p653 = pneg %p325
      %p654 = pneg %p349
      %p655 = pneg %p346
      %p656 = pneg %p370
      %p657 = pneg %p367
      %p658 = pneg %p391
      %p659 = pneg %p388
      %p660 = pneg %p412
      %p661 = pneg %p409
      %p662 = pneg %p433
      %p663 = pneg %p430
      %p664 = pneg %p454
      %p665 = pneg %p451
      %p666 = pneg %p475
      %p667 = pneg %p472
      %p668 = pneg %p501
      %p669 = pneg %p498
      %p670 = scmp.lt.s32.totalorder %s34, 1
      %s671 = scalar_select %p670, %s34, 1
      %s672 = smul.addr %s671, 4
      %s673 = scalar_lea.vmem %s21, %s672
      %p674 = pneg %p527
      %p675 = pneg %p524
      %p676 = scmp.lt.s32.totalorder %s34, 1
      %s677 = scalar_select %p676, %s34, 1
      %s678 = smul.addr %s677, 2
      %s679 = smul.addr %s678, 8
      %s680 = scalar_lea.vmem %s22, %s679
      %p681 = scmp.lt.s32.totalorder %s34, 1
      %s682 = scalar_select %p681, %s34, 1
      %s683 = smul.addr %s682, 2
      %s684 = smul.addr %s683, 8
      %s685 = scalar_lea.vmem %s0, %s684
      %p686 = scmp.lt.s32.totalorder %s34, 1
      %s687 = scalar_select %p686, %s34, 1
      %s688 = smul.addr %s687, 4
      %s689 = scalar_lea.vmem %s21, %s688
      %p690 = scmp.lt.s32.totalorder %s34, 1
      %s691 = scalar_select %p690, %s34, 1
      %s692 = smul.addr %s691, 2
      %s693 = smul.addr %s692, 8
      %s694 = scalar_lea.vmem %s22, %s693
      %v696 = vld [vmem:[%s685] sm:$0xff]
      %v697 = vld [vmem:[%s685 + $0x8] sm:$0xff]
      %v698 = vld [vmem:[%s2] sm:$0xf]
      %v699 = vld [vmem:[%s1] sm:$0xff]
      %v700 = vld [vmem:[%s1 + $0x8] sm:$0xff]
      %v701 = vadd.f32 %v696, %v699
      %v702 = vadd.f32 %v697, %v700
      %v703 = vld [vmem:[%s3] sm:$0xf]
      %v704 = vld [vmem:[%s3 + $0x4] sm:$0xf]
      %v705 = vld [vmem:[%s3 + $0x8] sm:$0xf]
      %v706 = vld [vmem:[%s3 + $0xc] sm:$0xf]
      %v707 = vpack.c.bf16 %v698, %v698
      %v708 = vld [vmem:[%s4] sm:$0x1]
      %v710 = vlaneseq
      %v711 = vshrl.u32 %v710, 7
      %v712 = vsub.s32 0, %v711
      %v713 = vrot.slane %v708, %v712
      %v719 = vunpack.c.l.b16 %v703
      %v720 = vunpack.c.l.b16 %v704
      %v721 = vunpack.c.l.b16 %v705
      %v722 = vunpack.c.l.b16 %v706
      %v723 = vpack.c.b16 %v720, %v719
      %v724 = vpack.c.b16 %v722, %v721
      %vm727 = vcmask 261120
      %v729 = vsel %vm727, %v707, 0
      %731 = vmatprep.subr.bf16.mxu0 0
      %732 = vmatpush1.bf16.msra.mxu0 %v723
      %733 = vmatprep.subr.bf16.mxu0 0
      %734 = vmatpush1.bf16.msra.mxu0 %v724
      %735 = vmatprep.subr.bf16.mxu0 0
      %736 = vmatpush1.bf16.msra.mxu0 0
      %737 = vmatprep.subr.bf16.mxu0 0
      %738 = vmatpush1.bf16.msra.mxu0 0
      %739 = vmatprep.subr.bf16.mxu0 0
      %740 = vmatpush1.bf16.msra.mxu0 0
      %741 = vmatprep.subr.bf16.mxu0 0
      %742 = vmatpush1.bf16.msra.mxu0 0
      %743 = vmatprep.subr.bf16.mxu0 0
      %744 = vmatpush1.bf16.msra.mxu0 0
      %745 = vmatprep.subr.bf16.mxu0 0
      %746 = vmatpush1.bf16.msra.mxu0 0
      %747 = vmatprep.subr.bf16.mxu0 0
      %748 = vmatpush1.bf16.msra.mxu0 0
      %749 = vmatprep.subr.bf16.mxu0 0
      %750 = vmatpush1.bf16.msra.mxu0 0
      %751 = vmatprep.subr.bf16.mxu0 0
      %752 = vmatpush1.bf16.msra.mxu0 0
      %753 = vmatprep.subr.bf16.mxu0 0
      %754 = vmatpush1.bf16.msra.mxu0 0
      %755 = vmatprep.subr.bf16.mxu0 0
      %756 = vmatpush1.bf16.msra.mxu0 0
      %757 = vmatprep.subr.bf16.mxu0 0
      %758 = vmatpush1.bf16.msra.mxu0 0
      %759 = vmatprep.subr.bf16.mxu0 0
      %760 = vmatpush1.bf16.msra.mxu0 0
      %761 = vmatprep.subr.bf16.mxu0 0
      %762 = vmatpush1.bf16.msra.mxu0 0
      %763 = vmatprep.mubr.bf16.mxu0 0
      %764 = vmatmul.mubr.bf16.gmra.mrb[0].mxu0 %v729
      %v765 = vpop.f32.mrb[0].mxu0
      %v766 = vadd.f32 %v713, %v765
      %v767 = vpop.f32.mrb[0].mxu0
      %v768 = vpop.f32.mrb[0].mxu0
      %v769 = vpop.f32.mrb[0].mxu0
      %770 = vdwg.mxu0
      %v771 = vld [vmem:[%s5] sm:$0xf]
      %v772 = vld [vmem:[%s5 + $0x4] sm:$0xf]
      %v773 = vld [vmem:[%s5 + $0x8] sm:$0xf]
      %v774 = vld [vmem:[%s5 + $0xc] sm:$0xf]
      %v775 = vpack.c.bf16 %v702, %v701
      %v776 = vld [vmem:[%s6] sm:$0x1]
      %v778 = vlaneseq
      %v779 = vshrl.u32 %v778, 7
      %v780 = vsub.s32 0, %v779
      %v781 = vrot.slane %v776, %v780
      %v787 = vunpack.c.l.b16 %v771
      %v788 = vunpack.c.l.b16 %v772
      %v789 = vunpack.c.l.b16 %v773
      %v790 = vunpack.c.l.b16 %v774
      %v791 = vpack.c.b16 %v788, %v787
      %v792 = vpack.c.b16 %v790, %v789
      %v796 = vsel %vm727, %v775, 0
      %798 = vmatprep.subr.bf16.mxu0 0
      %799 = vmatpush1.bf16.msra.mxu0 %v791
      %800 = vmatprep.subr.bf16.mxu0 0
      %801 = vmatpush1.bf16.msra.mxu0 %v792
      %802 = vmatprep.subr.bf16.mxu0 0
      %803 = vmatpush1.bf16.msra.mxu0 0
      %804 = vmatprep.subr.bf16.mxu0 0
      %805 = vmatpush1.bf16.msra.mxu0 0
      %806 = vmatprep.subr.bf16.mxu0 0
      %807 = vmatpush1.bf16.msra.mxu0 0
      %808 = vmatprep.subr.bf16.mxu0 0
      %809 = vmatpush1.bf16.msra.mxu0 0
      %810 = vmatprep.subr.bf16.mxu0 0
      %811 = vmatpush1.bf16.msra.mxu0 0
      %812 = vmatprep.subr.bf16.mxu0 0
      %813 = vmatpush1.bf16.msra.mxu0 0
      %814 = vmatprep.subr.bf16.mxu0 0
      %815 = vmatpush1.bf16.msra.mxu0 0
      %816 = vmatprep.subr.bf16.mxu0 0
      %817 = vmatpush1.bf16.msra.mxu0 0
      %818 = vmatprep.subr.bf16.mxu0 0
      %819 = vmatpush1.bf16.msra.mxu0 0
      %820 = vmatprep.subr.bf16.mxu0 0
      %821 = vmatpush1.bf16.msra.mxu0 0
      %822 = vmatprep.subr.bf16.mxu0 0
      %823 = vmatpush1.bf16.msra.mxu0 0
      %824 = vmatprep.subr.bf16.mxu0 0
      %825 = vmatpush1.bf16.msra.mxu0 0
      %826 = vmatprep.subr.bf16.mxu0 0
      %827 = vmatpush1.bf16.msra.mxu0 0
      %828 = vmatprep.subr.bf16.mxu0 0
      %829 = vmatpush1.bf16.msra.mxu0 0
      %830 = vmatprep.mubr.bf16.mxu0 0
      %831 = vmatmul.mubr.bf16.gmra.mrb[0].mxu0 %v796
      %v832 = vpop.f32.mrb[0].mxu0
      %v833 = vadd.f32 %v781, %v832
      %v834 = vpop.f32.mrb[0].mxu0
      %v835 = vpop.f32.mrb[0].mxu0
      %v836 = vadd.f32 %v781, %v835
      %v837 = vpop.f32.mrb[0].mxu0
      %838 = vdwg.mxu0
      %v839 = vld [vmem:[%s7] sm:$0xf]
      %v840 = vld [vmem:[%s7 + $0x4] sm:$0xf]
      %v841 = vld [vmem:[%s7 + $0x8] sm:$0xf]
      %v842 = vld [vmem:[%s7 + $0xc] sm:$0xf]
      %v843 = vpack.c.bf16 %v697, %v696
      %v844 = vld [vmem:[%s8] sm:$0x1]
      %v846 = vlaneseq
      %v847 = vshrl.u32 %v846, 7
      %v848 = vsub.s32 0, %v847
      %v849 = vrot.slane %v844, %v848
      %v855 = vunpack.c.l.b16 %v839
      %v856 = vunpack.c.l.b16 %v840
      %v857 = vunpack.c.l.b16 %v841
      %v858 = vunpack.c.l.b16 %v842
      %v859 = vpack.c.b16 %v856, %v855
      %v860 = vpack.c.b16 %v858, %v857
      %v864 = vsel %vm727, %v843, 0
      %866 = vmatprep.subr.bf16.mxu0 0
      %867 = vmatpush1.bf16.msra.mxu0 %v859
      %868 = vmatprep.subr.bf16.mxu0 0
      %869 = vmatpush1.bf16.msra.mxu0 %v860
      %870 = vmatprep.subr.bf16.mxu0 0
      %871 = vmatpush1.bf16.msra.mxu0 0
      %872 = vmatprep.subr.bf16.mxu0 0
      %873 = vmatpush1.bf16.msra.mxu0 0
      %874 = vmatprep.subr.bf16.mxu0 0
      %875 = vmatpush1.bf16.msra.mxu0 0
      %876 = vmatprep.subr.bf16.mxu0 0
      %877 = vmatpush1.bf16.msra.mxu0 0
      %878 = vmatprep.subr.bf16.mxu0 0
      %879 = vmatpush1.bf16.msra.mxu0 0
      %880 = vmatprep.subr.bf16.mxu0 0
      %881 = vmatpush1.bf16.msra.mxu0 0
      %882 = vmatprep.subr.bf16.mxu0 0
      %883 = vmatpush1.bf16.msra.mxu0 0
      %884 = vmatprep.subr.bf16.mxu0 0
      %885 = vmatpush1.bf16.msra.mxu0 0
      %886 = vmatprep.subr.bf16.mxu0 0
      %887 = vmatpush1.bf16.msra.mxu0 0
      %888 = vmatprep.subr.bf16.mxu0 0
      %889 = vmatpush1.bf16.msra.mxu0 0
      %890 = vmatprep.subr.bf16.mxu0 0
      %891 = vmatpush1.bf16.msra.mxu0 0
      %892 = vmatprep.subr.bf16.mxu0 0
      %893 = vmatpush1.bf16.msra.mxu0 0
      %894 = vmatprep.subr.bf16.mxu0 0
      %895 = vmatpush1.bf16.msra.mxu0 0
      %896 = vmatprep.subr.bf16.mxu0 0
      %897 = vmatpush1.bf16.msra.mxu0 0
      %898 = vmatprep.mubr.bf16.mxu0 0
      %899 = vmatmul.mubr.bf16.gmra.mrb[0].mxu0 %v864
      %v900 = vpop.f32.mrb[0].mxu0
      %v901 = vadd.f32 %v849, %v900
      %v902 = vpop.f32.mrb[0].mxu0
      %v903 = vpop.f32.mrb[0].mxu0
      %v904 = vadd.f32 %v849, %v903
      %v905 = vpop.f32.mrb[0].mxu0
      %906 = vdwg.mxu0
      %v907 = vmul.f32 %v766, 0.25
      %v908 = vpack.c.bf16 %v907, %v907
      %v909 = vpack.c.bf16 %v836, %v833
      %vm910 = vcmask 130048
      %v912 = vsel %vm910, %v908, 0
      %v915 = vsel %vm910, %v909, 0
      %917 = vmatprep.subr.bf16.mxu0 0
      %918 = vmatpush1.bf16.xpose.msra.mxu0 %v915
      %919 = vmatprep.subr.bf16.mxu0 0
      %920 = vmatpush1.bf16.xpose.msra.mxu0 0
      %921 = vmatprep.subr.bf16.mxu0 0
      %922 = vmatpush1.bf16.xpose.msra.mxu0 0
      %923 = vmatprep.subr.bf16.mxu0 0
      %924 = vmatpush1.bf16.xpose.msra.mxu0 0
      %925 = vmatprep.subr.bf16.mxu0 0
      %926 = vmatpush1.bf16.xpose.msra.mxu0 0
      %927 = vmatprep.subr.bf16.mxu0 0
      %928 = vmatpush1.bf16.xpose.msra.mxu0 0
      %929 = vmatprep.subr.bf16.mxu0 0
      %930 = vmatpush1.bf16.xpose.msra.mxu0 0
      %931 = vmatprep.subr.bf16.mxu0 0
      %932 = vmatpush1.bf16.xpose.msra.mxu0 0
      %933 = vmatprep.subr.bf16.mxu0 0
      %934 = vmatpush1.bf16.xpose.msra.mxu0 0
      %935 = vmatprep.subr.bf16.mxu0 0
      %936 = vmatpush1.bf16.xpose.msra.mxu0 0
      %937 = vmatprep.subr.bf16.mxu0 0
      %938 = vmatpush1.bf16.xpose.msra.mxu0 0
      %939 = vmatprep.subr.bf16.mxu0 0
      %940 = vmatpush1.bf16.xpose.msra.mxu0 0
      %941 = vmatprep.subr.bf16.mxu0 0
      %942 = vmatpush1.bf16.xpose.msra.mxu0 0
      %943 = vmatprep.subr.bf16.mxu0 0
      %944 = vmatpush1.bf16.xpose.msra.mxu0 0
      %945 = vmatprep.subr.bf16.mxu0 0
      %946 = vmatpush1.bf16.xpose.msra.mxu0 0
      %947 = vmatprep.subr.bf16.mxu0 0
      %948 = vmatpush1.bf16.xpose.msra.mxu0 0
      %949 = vmatprep.mubr.bf16.mxu0 0
      %950 = vmatmul.mubr.bf16.gmra.mrb[0].mxu0 %v912
      %v951 = vpop.f32.mrb[0].mxu0
      %v952 = vadd.f32 0.0, %v951
      %v953 = vpop.f32.mrb[0].mxu0
      %v954 = vpop.f32.mrb[0].mxu0
      %v955 = vpop.f32.mrb[0].mxu0
      %956 = vdwg.mxu0
      %vm957 = vcmask 125952
      %v958 = vsel %vm957, %v952, -inf
      %959 = vmax.xlane.f32.xlu0 %v958
      %v960 = vpop.xlane.xlu0 %959
      %v961 = vsub.f32 %v952, %v960
      %v962 = vmul.f32 %v961, 1.442695
      %v963 = vpow.pop %v962
      %v964 = vsel %vm957, %v963, 0.0
      %965 = vadd.xlane.f32.xlu0 %v964
      %v966 = vpop.xlane.xlu0 %965
      %v967 = vrcp.pop %v966
      %v968 = vmul.f32 %v963, %v967
      %v969 = vpack.c.bf16 %v968, %v968
      %v970 = vpack.c.bf16 %v904, %v901
      %v972 = vsel %vm910, %v969, 0
      %974 = vmatprep.subr.bf16.mxu0 0
      %975 = vmatpush1.bf16.msra.mxu0 %v970
      %976 = vmatprep.subr.bf16.mxu0 0
      %977 = vmatpush1.bf16.msra.mxu0 0
      %978 = vmatprep.subr.bf16.mxu0 0
      %979 = vmatpush1.bf16.msra.mxu0 0
      %980 = vmatprep.subr.bf16.mxu0 0
      %981 = vmatpush1.bf16.msra.mxu0 0
      %982 = vmatprep.subr.bf16.mxu0 0
      %983 = vmatpush1.bf16.msra.mxu0 0
      %984 = vmatprep.subr.bf16.mxu0 0
      %985 = vmatpush1.bf16.msra.mxu0 0
      %986 = vmatprep.subr.bf16.mxu0 0
      %987 = vmatpush1.bf16.msra.mxu0 0
      %988 = vmatprep.subr.bf16.mxu0 0
      %989 = vmatpush1.bf16.msra.mxu0 0
      %990 = vmatprep.subr.bf16.mxu0 0
      %991 = vmatpush1.bf16.msra.mxu0 0
      %992 = vmatprep.subr.bf16.mxu0 0
      %993 = vmatpush1.bf16.msra.mxu0 0
      %994 = vmatprep.subr.bf16.mxu0 0
      %995 = vmatpush1.bf16.msra.mxu0 0
      %996 = vmatprep.subr.bf16.mxu0 0
      %997 = vmatpush1.bf16.msra.mxu0 0
      %998 = vmatprep.subr.bf16.mxu0 0
      %999 = vmatpush1.bf16.msra.mxu0 0
      %1000 = vmatprep.subr.bf16.mxu0 0
      %1001 = vmatpush1.bf16.msra.mxu0 0
      %1002 = vmatprep.subr.bf16.mxu0 0
      %1003 = vmatpush1.bf16.msra.mxu0 0
      %1004 = vmatprep.subr.bf16.mxu0 0
      %1005 = vmatpush1.bf16.msra.mxu0 0
      %1006 = vmatprep.mubr.bf16.mxu0 0
      %1007 = vmatmul.mubr.bf16.gmra.mrb[0].mxu0 %v972
      %v1008 = vpop.f32.mrb[0].mxu0
      %v1009 = vadd.f32 0.0, %v1008
      %v1010 = vpop.f32.mrb[0].mxu0
      %v1011 = vpop.f32.mrb[0].mxu0
      %v1012 = vpop.f32.mrb[0].mxu0
      %1013 = vdwg.mxu0
      %1015 = vrot.lane.b32.xlu0 %v908, 112
      %v1016 = vpop.permute.xlu0 %1015
      %1018 = vrot.lane.b32.xlu0 %v909, 112
      %v1019 = vpop.permute.xlu0 %1018
      %v1021 = vsel %vm910, %v1016, 0
      %v1024 = vsel %vm910, %v1019, 0
      %1026 = vmatprep.subr.bf16.mxu0 0
      %1027 = vmatpush1.bf16.xpose.msra.mxu0 %v1024
      %1028 = vmatprep.subr.bf16.mxu0 0
      %1029 = vmatpush1.bf16.xpose.msra.mxu0 0
      %1030 = vmatprep.subr.bf16.mxu0 0
      %1031 = vmatpush1.bf16.xpose.msra.mxu0 0
      %1032 = vmatprep.subr.bf16.mxu0 0
      %1033 = vmatpush1.bf16.xpose.msra.mxu0 0
      %1034 = vmatprep.subr.bf16.mxu0 0
      %1035 = vmatpush1.bf16.xpose.msra.mxu0 0
      %1036 = vmatprep.subr.bf16.mxu0 0
      %1037 = vmatpush1.bf16.xpose.msra.mxu0 0
      %1038 = vmatprep.subr.bf16.mxu0 0
      %1039 = vmatpush1.bf16.xpose.msra.mxu0 0
      %1040 = vmatprep.subr.bf16.mxu0 0
      %1041 = vmatpush1.bf16.xpose.msra.mxu0 0
      %1042 = vmatprep.subr.bf16.mxu0 0
      %1043 = vmatpush1.bf16.xpose.msra.mxu0 0
      %1044 = vmatprep.subr.bf16.mxu0 0
      %1045 = vmatpush1.bf16.xpose.msra.mxu0 0
      %1046 = vmatprep.subr.bf16.mxu0 0
      %1047 = vmatpush1.bf16.xpose.msra.mxu0 0
      %1048 = vmatprep.subr.bf16.mxu0 0
      %1049 = vmatpush1.bf16.xpose.msra.mxu0 0
      %1050 = vmatprep.subr.bf16.mxu0 0
      %1051 = vmatpush1.bf16.xpose.msra.mxu0 0
      %1052 = vmatprep.subr.bf16.mxu0 0
      %1053 = vmatpush1.bf16.xpose.msra.mxu0 0
      %1054 = vmatprep.subr.bf16.mxu0 0
      %1055 = vmatpush1.bf16.xpose.msra.mxu0 0
      %1056 = vmatprep.subr.bf16.mxu0 0
      %1057 = vmatpush1.bf16.xpose.msra.mxu0 0
      %1058 = vmatprep.mubr.bf16.mxu0 0
      %1059 = vmatmul.mubr.bf16.gmra.mrb[0].mxu0 %v1021
      %v1060 = vpop.f32.mrb[0].mxu0
      %v1061 = vadd.f32 0.0, %v1060
      %v1062 = vpop.f32.mrb[0].mxu0
      %v1063 = vpop.f32.mrb[0].mxu0
      %v1064 = vpop.f32.mrb[0].mxu0
      %1065 = vdwg.mxu0
      %v1066 = vsel %vm957, %v1061, -inf
      %1067 = vmax.xlane.f32.xlu0 %v1066
      %v1068 = vpop.xlane.xlu0 %1067
      %v1069 = vsub.f32 %v1061, %v1068
      %v1070 = vmul.f32 %v1069, 1.442695
      %v1071 = vpow.pop %v1070
      %v1072 = vsel %vm957, %v1071, 0.0
      %1073 = vadd.xlane.f32.xlu0 %v1072
      %v1074 = vpop.xlane.xlu0 %1073
      %v1075 = vrcp.pop %v1074
      %v1076 = vmul.f32 %v1071, %v1075
      %v1077 = vpack.c.bf16 %v1076, %v1076
      %1079 = vrot.lane.b32.xlu0 %v970, 112
      %v1080 = vpop.permute.xlu0 %1079
      %v1083 = vsel %vm910, %v1077, 0
      %1085 = vmatprep.subr.bf16.mxu0 0
      %1086 = vmatpush1.bf16.msra.mxu0 %v1080
      %1087 = vmatprep.subr.bf16.mxu0 0
      %1088 = vmatpush1.bf16.msra.mxu0 0
      %1089 = vmatprep.subr.bf16.mxu0 0
      %1090 = vmatpush1.bf16.msra.mxu0 0
      %1091 = vmatprep.subr.bf16.mxu0 0
      %1092 = vmatpush1.bf16.msra.mxu0 0
      %1093 = vmatprep.subr.bf16.mxu0 0
      %1094 = vmatpush1.bf16.msra.mxu0 0
      %1095 = vmatprep.subr.bf16.mxu0 0
      %1096 = vmatpush1.bf16.msra.mxu0 0
      %1097 = vmatprep.subr.bf16.mxu0 0
      %1098 = vmatpush1.bf16.msra.mxu0 0
      %1099 = vmatprep.subr.bf16.mxu0 0
      %1100 = vmatpush1.bf16.msra.mxu0 0
      %1101 = vmatprep.subr.bf16.mxu0 0
      %1102 = vmatpush1.bf16.msra.mxu0 0
      %1103 = vmatprep.subr.bf16.mxu0 0
      %1104 = vmatpush1.bf16.msra.mxu0 0
      %1105 = vmatprep.subr.bf16.mxu0 0
      %1106 = vmatpush1.bf16.msra.mxu0 0
      %1107 = vmatprep.subr.bf16.mxu0 0
      %1108 = vmatpush1.bf16.msra.mxu0 0
      %1109 = vmatprep.subr.bf16.mxu0 0
      %1110 = vmatpush1.bf16.msra.mxu0 0
      %1111 = vmatprep.subr.bf16.mxu0 0
      %1112 = vmatpush1.bf16.msra.mxu0 0
      %1113 = vmatprep.subr.bf16.mxu0 0
      %1114 = vmatpush1.bf16.msra.mxu0 0
      %1115 = vmatprep.subr.bf16.mxu0 0
      %1116 = vmatpush1.bf16.msra.mxu0 0
      %1117 = vmatprep.mubr.bf16.mxu0 0
      %1118 = vmatmul.mubr.bf16.gmra.mrb[0].mxu0 %v1083
      %v1119 = vpop.f32.mrb[0].mxu0
      %v1120 = vadd.f32 0.0, %v1119
      %v1121 = vpop.f32.mrb[0].mxu0
      %v1122 = vpop.f32.mrb[0].mxu0
      %v1123 = vpop.f32.mrb[0].mxu0
      %1124 = vdwg.mxu0
      %1126 = vrot.lane.b32.xlu0 %v1120, 16
      %v1127 = vpop.permute.xlu0 %1126
      %v1129 = vsel %vm910, %v1009, %v1127
      %v1130 = vld [vmem:[%s9] sm:$0xf]
      %v1131 = vld [vmem:[%s9 + $0x4] sm:$0xf]
      %v1132 = vld [vmem:[%s9 + $0x8] sm:$0xf]
      %v1133 = vld [vmem:[%s9 + $0xc] sm:$0xf]
      %v1134 = vpack.c.bf16 %v1129, %v1129
      %v1135 = vld [vmem:[%s10] sm:$0x1]
      %v1137 = vlaneseq
      %v1138 = vshrl.u32 %v1137, 7
      %v1139 = vsub.s32 0, %v1138
      %v1140 = vrot.slane %v1135, %v1139
      %v1146 = vunpack.c.l.b16 %v1130
      %v1147 = vunpack.c.l.b16 %v1131
      %v1148 = vunpack.c.l.b16 %v1132
      %v1149 = vunpack.c.l.b16 %v1133
      %v1150 = vpack.c.b16 %v1147, %v1146
      %v1151 = vpack.c.b16 %v1149, %v1148
      %v1155 = vsel %vm727, %v1134, 0
      %1157 = vmatprep.subr.bf16.mxu0 0
      %1158 = vmatpush1.bf16.msra.mxu0 %v1150
      %1159 = vmatprep.subr.bf16.mxu0 0
      %1160 = vmatpush1.bf16.msra.mxu0 %v1151
      %1161 = vmatprep.subr.bf16.mxu0 0
      %1162 = vmatpush1.bf16.msra.mxu0 0
      %1163 = vmatprep.subr.bf16.mxu0 0
      %1164 = vmatpush1.bf16.msra.mxu0 0
      %1165 = vmatprep.subr.bf16.mxu0 0
      %1166 = vmatpush1.bf16.msra.mxu0 0
      %1167 = vmatprep.subr.bf16.mxu0 0
      %1168 = vmatpush1.bf16.msra.mxu0 0
      %1169 = vmatprep.subr.bf16.mxu0 0
      %1170 = vmatpush1.bf16.msra.mxu0 0
      %1171 = vmatprep.subr.bf16.mxu0 0
      %1172 = vmatpush1.bf16.msra.mxu0 0
      %1173 = vmatprep.subr.bf16.mxu0 0
      %1174 = vmatpush1.bf16.msra.mxu0 0
      %1175 = vmatprep.subr.bf16.mxu0 0
      %1176 = vmatpush1.bf16.msra.mxu0 0
      %1177 = vmatprep.subr.bf16.mxu0 0
      %1178 = vmatpush1.bf16.msra.mxu0 0
      %1179 = vmatprep.subr.bf16.mxu0 0
      %1180 = vmatpush1.bf16.msra.mxu0 0
      %1181 = vmatprep.subr.bf16.mxu0 0
      %1182 = vmatpush1.bf16.msra.mxu0 0
      %1183 = vmatprep.subr.bf16.mxu0 0
      %1184 = vmatpush1.bf16.msra.mxu0 0
      %1185 = vmatprep.subr.bf16.mxu0 0
      %1186 = vmatpush1.bf16.msra.mxu0 0
      %1187 = vmatprep.subr.bf16.mxu0 0
      %1188 = vmatpush1.bf16.msra.mxu0 0
      %1189 = vmatprep.mubr.bf16.mxu0 0
      %1190 = vmatmul.mubr.bf16.gmra.mrb[0].mxu0 %v1155
      %v1191 = vpop.f32.mrb[0].mxu0
      %v1192 = vadd.f32 %v1140, %v1191
      %v1193 = vpop.f32.mrb[0].mxu0
      %v1194 = vpop.f32.mrb[0].mxu0
      %v1195 = vpop.f32.mrb[0].mxu0
      %1196 = vdwg.mxu0
      %v1197 = vadd.f32 %v698, %v1192
      %v1198 = vld [vmem:[%s11] sm:$0x1]
      %v1199 = vld [vmem:[%s12] sm:$0x1]
      %vm1200 = vcmask 257024
      %v1201 = vsel %vm1200, %v1197, 0.0
      %1202 = vadd.xlane.f32.xlu0 %v1201
      %v1203 = vpop.xlane.xlu0 %1202
      %v1204 = vrcp.pop 32.0
      %v1205 = vmul.f32 %v1203, %v1204
      %v1206 = vsub.f32 %v1197, %v1205
      %v1207 = vmul.f32 %v1206, %v1206
      %v1208 = vsel %vm1200, %v1207, 0.0
      %1209 = vadd.xlane.f32.xlu0 %v1208
      %v1210 = vpop.xlane.xlu0 %1209
      %v1211 = vmul.f32 %v1210, %v1204
      %v1212 = vadd.f32 %v1211, 1e-06
      %v1213 = vrsqrt.pop %v1212
      %v1214 = vmul.f32 %v1206, %v1213
      %v1216 = vlaneseq
      %v1217 = vshrl.u32 %v1216, 7
      %v1218 = vsub.s32 0, %v1217
      %v1219 = vrot.slane %v1198, %v1218
      %v1221 = vmul.f32 %v1214, %v1219
      %v1223 = vlaneseq
      %v1224 = vshrl.u32 %v1223, 7
      %v1225 = vsub.s32 0, %v1224
      %v1226 = vrot.slane %v1199, %v1225
      %v1228 = vadd.f32 %v1221, %v1226
      %v1229 = vld [vmem:[%s13] sm:$0xf]
      %v1230 = vld [vmem:[%s13 + $0x4] sm:$0xf]
      %v1231 = vld [vmem:[%s13 + $0x8] sm:$0xf]
      %v1232 = vld [vmem:[%s13 + $0xc] sm:$0xf]
      %v1233 = vpack.c.bf16 %v1228, %v1228
      %v1234 = vld [vmem:[%s14] sm:$0x1]
      %v1236 = vlaneseq
      %v1237 = vshrl.u32 %v1236, 7
      %v1238 = vsub.s32 0, %v1237
      %v1239 = vrot.slane %v1234, %v1238
      %v1245 = vunpack.c.l.b16 %v1229
      %v1246 = vunpack.c.l.b16 %v1230
      %v1247 = vunpack.c.l.b16 %v1231
      %v1248 = vunpack.c.l.b16 %v1232
      %v1249 = vpack.c.b16 %v1246, %v1245
      %v1250 = vpack.c.b16 %v1248, %v1247
      %v1254 = vsel %vm727, %v1233, 0
      %1256 = vmatprep.subr.bf16.mxu0 0
      %1257 = vmatpush1.bf16.msra.mxu0 %v1249
      %1258 = vmatprep.subr.bf16.mxu0 0
      %1259 = vmatpush1.bf16.msra.mxu0 %v1250
      %1260 = vmatprep.subr.bf16.mxu0 0
      %1261 = vmatpush1.bf16.msra.mxu0 0
      %1262 = vmatprep.subr.bf16.mxu0 0
      %1263 = vmatpush1.bf16.msra.mxu0 0
      %1264 = vmatprep.subr.bf16.mxu0 0
      %1265 = vmatpush1.bf16.msra.mxu0 0
      %1266 = vmatprep.subr.bf16.mxu0 0
      %1267 = vmatpush1.bf16.msra.mxu0 0
      %1268 = vmatprep.subr.bf16.mxu0 0
      %1269 = vmatpush1.bf16.msra.mxu0 0
      %1270 = vmatprep.subr.bf16.mxu0 0
      %1271 = vmatpush1.bf16.msra.mxu0 0
      %1272 = vmatprep.subr.bf16.mxu0 0
      %1273 = vmatpush1.bf16.msra.mxu0 0
      %1274 = vmatprep.subr.bf16.mxu0 0
      %1275 = vmatpush1.bf16.msra.mxu0 0
      %1276 = vmatprep.subr.bf16.mxu0 0
      %1277 = vmatpush1.bf16.msra.mxu0 0
      %1278 = vmatprep.subr.bf16.mxu0 0
      %1279 = vmatpush1.bf16.msra.mxu0 0
      %1280 = vmatprep.subr.bf16.mxu0 0
      %1281 = vmatpush1.bf16.msra.mxu0 0
      %1282 = vmatprep.subr.bf16.mxu0 0
      %1283 = vmatpush1.bf16.msra.mxu0 0
      %1284 = vmatprep.subr.bf16.mxu0 0
      %1285 = vmatpush1.bf16.msra.mxu0 0
      %1286 = vmatprep.subr.bf16.mxu0 0
      %1287 = vmatpush1.bf16.msra.mxu0 0
      %1288 = vmatprep.mubr.bf16.mxu0 0
      %1289 = vmatmul.mubr.bf16.gmra.mrb[0].mxu0 %v1254
      %v1290 = vpop.f32.mrb[0].mxu0
      %v1291 = vadd.f32 %v1239, %v1290
      %v1292 = vpop.f32.mrb[0].mxu0
      %v1293 = vpop.f32.mrb[0].mxu0
      %v1294 = vpop.f32.mrb[0].mxu0
      %1295 = vdwg.mxu0
      %v1296 = vmul.f32 %v1291, 0.5
      %v1297 = vmul.f32 %v1291, 0.044715
      %v1298 = vmul.f32 %v1297, %v1291
      %v1299 = vmul.f32 %v1298, %v1291
      %v1300 = vadd.f32 %v1291, %v1299
      %v1301 = vmul.f32 %v1300, 0.7978846
      %v1302 = vtanh.pop %v1301
      %v1303 = vadd.f32 %v1302, 1.0
      %v1304 = vmul.f32 %v1296, %v1303
      %v1305 = vld [vmem:[%s15] sm:$0xf]
      %v1306 = vld [vmem:[%s15 + $0x4] sm:$0xf]
      %v1307 = vld [vmem:[%s15 + $0x8] sm:$0xf]
      %v1308 = vld [vmem:[%s15 + $0xc] sm:$0xf]
      %v1309 = vld [vmem:[%s15 + $0x10] sm:$0xf]
      %v1310 = vld [vmem:[%s15 + $0x14] sm:$0xf]
      %v1311 = vld [vmem:[%s15 + $0x18] sm:$0xf]
      %v1312 = vld [vmem:[%s15 + $0x1c] sm:$0xf]
      %v1313 = vpack.c.bf16 %v1304, %v1304
      %v1314 = vld [vmem:[%s16] sm:$0x1]
      %v1316 = vlaneseq
      %v1317 = vshrl.u32 %v1316, 7
      %v1318 = vsub.s32 0, %v1317
      %v1319 = vrot.slane %v1314, %v1318
      %v1329 = vunpack.c.l.b16 %v1305
      %v1330 = vunpack.c.l.b16 %v1306
      %v1331 = vunpack.c.l.b16 %v1307
      %v1332 = vunpack.c.l.b16 %v1308
      %v1333 = vunpack.c.l.b16 %v1309
      %v1334 = vunpack.c.l.b16 %v1310
      %v1335 = vunpack.c.l.b16 %v1311
      %v1336 = vunpack.c.l.b16 %v1312
      %v1337 = vpack.c.b16 %v1330, %v1329
      %v1338 = vpack.c.b16 %v1332, %v1331
      %v1339 = vpack.c.b16 %v1334, %v1333
      %v1340 = vpack.c.b16 %v1336, %v1335
      %vm1345 = vcmask 523264
      %v1347 = vsel %vm1345, %v1313, 0
      %1349 = vmatprep.subr.bf16.mxu0 0
      %1350 = vmatpush1.bf16.msra.mxu0 %v1337
      %1351 = vmatprep.subr.bf16.mxu0 0
      %1352 = vmatpush1.bf16.msra.mxu0 %v1338
      %1353 = vmatprep.subr.bf16.mxu0 0
      %1354 = vmatpush1.bf16.msra.mxu0 %v1339
      %1355 = vmatprep.subr.bf16.mxu0 0
      %1356 = vmatpush1.bf16.msra.mxu0 %v1340
      %1357 = vmatprep.subr.bf16.mxu0 0
      %1358 = vmatpush1.bf16.msra.mxu0 0
      %1359 = vmatprep.subr.bf16.mxu0 0
      %1360 = vmatpush1.bf16.msra.mxu0 0
      %1361 = vmatprep.subr.bf16.mxu0 0
      %1362 = vmatpush1.bf16.msra.mxu0 0
      %1363 = vmatprep.subr.bf16.mxu0 0
      %1364 = vmatpush1.bf16.msra.mxu0 0
      %1365 = vmatprep.subr.bf16.mxu0 0
      %1366 = vmatpush1.bf16.msra.mxu0 0
      %1367 = vmatprep.subr.bf16.mxu0 0
      %1368 = vmatpush1.bf16.msra.mxu0 0
      %1369 = vmatprep.subr.bf16.mxu0 0
      %1370 = vmatpush1.bf16.msra.mxu0 0
      %1371 = vmatprep.subr.bf16.mxu0 0
      %1372 = vmatpush1.bf16.msra.mxu0 0
      %1373 = vmatprep.subr.bf16.mxu0 0
      %1374 = vmatpush1.bf16.msra.mxu0 0
      %1375 = vmatprep.subr.bf16.mxu0 0
      %1376 = vmatpush1.bf16.msra.mxu0 0
      %1377 = vmatprep.subr.bf16.mxu0 0
      %1378 = vmatpush1.bf16.msra.mxu0 0
      %1379 = vmatprep.subr.bf16.mxu0 0
      %1380 = vmatpush1.bf16.msra.mxu0 0
      %1381 = vmatprep.mubr.bf16.mxu0 0
      %1382 = vmatmul.mubr.bf16.gmra.mrb[0].mxu0 %v1347
      %v1383 = vpop.f32.mrb[0].mxu0
      %v1384 = vadd.f32 %v1319, %v1383
      %v1385 = vpop.f32.mrb[0].mxu0
      %v1386 = vpop.f32.mrb[0].mxu0
      %v1387 = vpop.f32.mrb[0].mxu0
      %1388 = vdwg.mxu0
      %v1389 = vadd.f32 %v1197, %v1384
      %v1390 = vld [vmem:[%s19] sm:$0xf]
      %v1391 = vld [vmem:[%s19 + $0x4] sm:$0xf]
      %v1392 = vld [vmem:[%s19 + $0x8] sm:$0xf]
      %v1393 = vld [vmem:[%s19 + $0xc] sm:$0xf]
      %v1394 = vpack.c.bf16 %v1389, %v1389
      %v1395 = vld [vmem:[%s20] sm:$0x1]
      %v1397 = vlaneseq
      %v1398 = vshrl.u32 %v1397, 7
      %v1399 = vsub.s32 0, %v1398
      %v1400 = vrot.slane %v1395, %v1399
      %v1406 = vunpack.c.l.b16 %v1390
      %v1407 = vunpack.c.l.b16 %v1391
      %v1408 = vunpack.c.l.b16 %v1392
      %v1409 = vunpack.c.l.b16 %v1393
      %v1410 = vpack.c.b16 %v1407, %v1406
      %v1411 = vpack.c.b16 %v1409, %v1408
      %v1415 = vsel %vm727, %v1394, 0
      %1417 = vmatprep.subr.bf16.mxu0 0
      %1418 = vmatpush1.bf16.msra.mxu0 %v1410
      %1419 = vmatprep.subr.bf16.mxu0 0
      %1420 = vmatpush1.bf16.msra.mxu0 %v1411
      %1421 = vmatprep.subr.bf16.mxu0 0
      %1422 = vmatpush1.bf16.msra.mxu0 0
      %1423 = vmatprep.subr.bf16.mxu0 0
      %1424 = vmatpush1.bf16.msra.mxu0 0
      %1425 = vmatprep.subr.bf16.mxu0 0
      %1426 = vmatpush1.bf16.msra.mxu0 0
      %1427 = vmatprep.subr.bf16.mxu0 0
      %1428 = vmatpush1.bf16.msra.mxu0 0
      %1429 = vmatprep.subr.bf16.mxu0 0
      %1430 = vmatpush1.bf16.msra.mxu0 0
      %1431 = vmatprep.subr.bf16.mxu0 0
      %1432 = vmatpush1.bf16.msra.mxu0 0
      %1433 = vmatprep.subr.bf16.mxu0 0
      %1434 = vmatpush1.bf16.msra.mxu0 0
      %1435 = vmatprep.subr.bf16.mxu0 0
      %1436 = vmatpush1.bf16.msra.mxu0 0
      %1437 = vmatprep.subr.bf16.mxu0 0
      %1438 = vmatpush1.bf16.msra.mxu0 0
      %1439 = vmatprep.subr.bf16.mxu0 0
      %1440 = vmatpush1.bf16.msra.mxu0 0
      %1441 = vmatprep.subr.bf16.mxu0 0
      %1442 = vmatpush1.bf16.msra.mxu0 0
      %1443 = vmatprep.subr.bf16.mxu0 0
      %1444 = vmatpush1.bf16.msra.mxu0 0
      %1445 = vmatprep.subr.bf16.mxu0 0
      %1446 = vmatpush1.bf16.msra.mxu0 0
      %1447 = vmatprep.subr.bf16.mxu0 0
      %1448 = vmatpush1.bf16.msra.mxu0 0
      %1449 = vmatprep.mubr.bf16.mxu0 0
      %1450 = vmatmul.mubr.bf16.gmra.mrb[0].mxu0 %v1415
      %v1451 = vpop.f32.mrb[0].mxu0
      %v1452 = vadd.f32 %v1400, %v1451
      %v1453 = vpop.f32.mrb[0].mxu0
      %v1454 = vpop.f32.mrb[0].mxu0
      %v1455 = vpop.f32.mrb[0].mxu0
      %1456 = vdwg.mxu0
      %vm1457 = vcmask 60416
      %1458 = vst.msk [vmem:[%s689] sm:$0xf] %vm1457, %v1452
      %v1459 = vld [vmem:[%s17] sm:$0xf]
      %v1460 = vld [vmem:[%s17 + $0x4] sm:$0xf]
      %v1461 = vld [vmem:[%s17 + $0x8] sm:$0xf]
      %v1462 = vld [vmem:[%s17 + $0xc] sm:$0xf]
      %v1463 = vld [vmem:[%s18] sm:$0x1]
      %v1465 = vlaneseq
      %v1466 = vshrl.u32 %v1465, 7
      %v1467 = vsub.s32 0, %v1466
      %v1468 = vrot.slane %v1463, %v1467
      %v1474 = vunpack.c.l.b16 %v1459
      %v1475 = vunpack.c.l.b16 %v1460
      %v1476 = vunpack.c.l.b16 %v1461
      %v1477 = vunpack.c.l.b16 %v1462
      %v1478 = vpack.c.b16 %v1475, %v1474
      %v1479 = vpack.c.b16 %v1477, %v1476
      %1482 = vmatprep.subr.bf16.mxu0 0
      %1483 = vmatpush1.bf16.msra.mxu0 %v1478
      %1484 = vmatprep.subr.bf16.mxu0 0
      %1485 = vmatpush1.bf16.msra.mxu0 %v1479
      %1486 = vmatprep.subr.bf16.mxu0 0
      %1487 = vmatpush1.bf16.msra.mxu0 0
      %1488 = vmatprep.subr.bf16.mxu0 0
      %1489 = vmatpush1.bf16.msra.mxu0 0
      %1490 = vmatprep.subr.bf16.mxu0 0
      %1491 = vmatpush1.bf16.msra.mxu0 0
      %1492 = vmatprep.subr.bf16.mxu0 0
      %1493 = vmatpush1.bf16.msra.mxu0 0
      %1494 = vmatprep.subr.bf16.mxu0 0
      %1495 = vmatpush1.bf16.msra.mxu0 0
      %1496 = vmatprep.subr.bf16.mxu0 0
      %1497 = vmatpush1.bf16.msra.mxu0 0
      %1498 = vmatprep.subr.bf16.mxu0 0
      %1499 = vmatpush1.bf16.msra.mxu0 0
      %1500 = vmatprep.subr.bf16.mxu0 0
      %1501 = vmatpush1.bf16.msra.mxu0 0
      %1502 = vmatprep.subr.bf16.mxu0 0
      %1503 = vmatpush1.bf16.msra.mxu0 0
      %1504 = vmatprep.subr.bf16.mxu0 0
      %1505 = vmatpush1.bf16.msra.mxu0 0
      %1506 = vmatprep.subr.bf16.mxu0 0
      %1507 = vmatpush1.bf16.msra.mxu0 0
      %1508 = vmatprep.subr.bf16.mxu0 0
      %1509 = vmatpush1.bf16.msra.mxu0 0
      %1510 = vmatprep.subr.bf16.mxu0 0
      %1511 = vmatpush1.bf16.msra.mxu0 0
      %1512 = vmatprep.subr.bf16.mxu0 0
      %1513 = vmatpush1.bf16.msra.mxu0 0
      %1514 = vmatprep.mubr.bf16.mxu0 0
      %1515 = vmatmul.mubr.bf16.gmra.mrb[0].mxu0 %v864
      %v1516 = vpop.f32.mrb[0].mxu0
      %v1517 = vadd.f32 %v1468, %v1516
      %v1518 = vpop.f32.mrb[0].mxu0
      %v1519 = vpop.f32.mrb[0].mxu0
      %v1520 = vadd.f32 %v1468, %v1519
      %v1521 = vpop.f32.mrb[0].mxu0
      %1522 = vdwg.mxu0
      %v1523 = vmul.f32 %v1517, 0.5
      %v1524 = vmul.f32 %v1520, 0.5
      %v1525 = vmul.f32 %v1517, 0.044715
      %v1526 = vmul.f32 %v1520, 0.044715
      %v1527 = vmul.f32 %v1525, %v1517
      %v1528 = vmul.f32 %v1526, %v1520
      %v1529 = vmul.f32 %v1527, %v1517
      %v1530 = vmul.f32 %v1528, %v1520
      %v1531 = vadd.f32 %v1517, %v1529
      %v1532 = vadd.f32 %v1520, %v1530
      %v1533 = vmul.f32 %v1531, 0.7978846
      %v1534 = vmul.f32 %v1532, 0.7978846
      %v1535 = vtanh.pop %v1533
      %v1536 = vtanh.pop %v1534
      %v1537 = vadd.f32 %v1535, 1.0
      %v1538 = vadd.f32 %v1536, 1.0
      %v1539 = vmul.f32 %v1523, %v1537
      %v1540 = vmul.f32 %v1524, %v1538
      %1541 = vst [vmem:[%s694] sm:$0xff] %v1539
      %1542 = vst [vmem:[%s694 + $0x8] sm:$0xff] %v1540
      %p1543 = scmp.lt.s32.totalorder %s34, 1
      %s1544 = scalar_select %p1543, %s34, 1
      %s1545 = smul.addr %s1544, 4
      %s1546 = scalar_lea.vmem %s21, %s1545
      %p1547 = scmp.lt.s32.totalorder %s34, 1
      %s1548 = scalar_select %p1547, %s34, 1
      %s1549 = smul.addr %s1548, 2
      %s1550 = smul.addr %s1549, 8
      %s1551 = scalar_lea.vmem %s22, %s1550
      // Predicated region
      $region105: #{sam_forward.6} parent=103 // pred_check
        %p1552 = pneg %p498
      $region106: #{sam_forward.6} parent=103 // pred_check_branch
        %1554 = sbr.rel (%p1552) target = $region108
      $region107: #{sam_forward.6} parent=103 // pred_region
        _
      $region108: #{sam_forward.6} parent=103 // pred_fallthru
        _
      // Predicated region
      $region109: #{sam_forward.6} parent=103 // pred_check
        %p1555 = pneg %p524
      $region110: #{sam_forward.6} parent=103 // pred_check_branch
        %1557 = sbr.rel (%p1555) target = $region112
      $region111: #{sam_forward.6} parent=103 // pred_region
        _
      $region112: #{sam_forward.6} parent=103 // pred_fallthru
        _
    $region104: #{sam_forward.6} parent=5 // pred_fallthru
      _
    %p1558 = scmp.le.s32.totalorder 2, %s29
    // Predicated region
    $region113: #{sam_forward.6} parent=5 // pred_check
      %p1559 = pneg %p1558
    $region114: #{sam_forward.6} parent=5 // pred_check_branch
      %1561 = sbr.rel (%p1559) target = $region116
    $region115: #{sam_forward.6} parent=5 // pred_region
      %s1562 = ssub.s32 %s29, 2
      // Predicated region
      $region117: #{sam_forward.6} parent=115 // pred_check
        %p1563 = pneg %p504
      $region118: #{sam_forward.6} parent=115 // pred_check_branch
        %1565 = sbr.rel (%p1563) target = $region120
      $region119: #{sam_forward.6} parent=115 // pred_region
        %p1566 = scmp.lt.s32.totalorder %s35, 1
        %s1567 = scalar_select %p1566, %s35, 1
        %s1568 = smul.addr %s1567, 4
        %s1569 = scalar_lea.vmem %s21, %s1568
      $region120: #{sam_forward.6} parent=115 // pred_fallthru
        _
      // Predicated region
      $region121: #{sam_forward.6} parent=115 // pred_check
        %p1570 = pneg %p530
      $region122: #{sam_forward.6} parent=115 // pred_check_branch
        %1572 = sbr.rel (%p1570) target = $region124
      $region123: #{sam_forward.6} parent=115 // pred_region
        %p1573 = scmp.lt.s32.totalorder %s35, 1
        %s1574 = scalar_select %p1573, %s35, 1
        %s1575 = smul.addr %s1574, 2
        %s1576 = smul.addr %s1575, 8
        %s1577 = scalar_lea.vmem %s22, %s1576
      $region124: #{sam_forward.6} parent=115 // pred_fallthru
        _
    $region116: #{sam_forward.6} parent=5 // pred_fallthru
      _
  $region6: #{sam_forward.6} parent=0 // loop_footer
    %s33 = sadd.s32 1, %s29
  $region7: #{sam_forward.6} parent=0 // loop_footer_branch
    %28 = sbr.rel target = $region3
  $region8: #{sam_forward.6} parent=0 // loop_exit
    _

// kernel: sam_forward.5
$region0: #{sam_forward.5}
  #allocation0 [shape = 'u32[]', space=smem, size = 0x4, offset = 0x4, fixed_abs, tag = 'smem constant byte address 0x4 - core index']
  #allocation1 [shape = 'u32[144,128]{1,0:T(1,128)}', space=vmem, size = 0x12000, scoped, tag = 'internal scratch']
  %s0 = inlined_call_operand.vmem [shape: f32[2,16,768], index: 0, kind: input, shape index: {}]
  %s1 = inlined_call_operand.vmem [shape: bf16[768,32], index: 1, kind: input, shape index: {}]
  %s2 = inlined_call_operand.vmem [shape: f32[1,32], index: 2, kind: input, shape index: {}]
  %s3 = inlined_call_operand.vmem [shape: f32[16,32], index: 3, kind: input, shape index: {}]
  %s4 = inlined_call_operand.vmem [shape: f32[2,1,32], index: 4, kind: input, shape index: {}]
  %s5 = inlined_call_operand.vmem [shape: f32[2,1,32], index: 5, kind: input, shape index: {}]
  %s6 = inlined_call_operand.vmem [shape: bf16[2,32,96], index: 6, kind: input, shape index: {}]
  %s7 = inlined_call_operand.vmem [shape: f32[2,1,96], index: 7, kind: input, shape index: {}]
  %s8 = inlined_call_operand.vmem [shape: bf16[2,32,32], index: 8, kind: input, shape index: {}]
  %s9 = inlined_call_operand.vmem [shape: f32[2,1,32], index: 9, kind: input, shape index: {}]
  %s10 = inlined_call_operand.vmem [shape: f32[2,1,32], index: 10, kind: input, shape index: {}]
  %s11 = inlined_call_operand.vmem [shape: f32[2,1,32], index: 11, kind: input, shape index: {}]
  %s12 = inlined_call_operand.vmem [shape: bf16[2,32,64], index: 12, kind: input, shape index: {}]
  %s13 = inlined_call_operand.vmem [shape: f32[2,1,64], index: 13, kind: input, shape index: {}]
  %s14 = inlined_call_operand.vmem [shape: bf16[2,64,32], index: 14, kind: input, shape index: {}]
  %s15 = inlined_call_operand.vmem [shape: f32[2,1,32], index: 15, kind: input, shape index: {}]
  %s16 = inlined_call_operand.vmem [shape: bf16[32,32], index: 16, kind: input, shape index: {}]
  %s17 = inlined_call_operand.vmem [shape: f32[1,32], index: 17, kind: input, shape index: {}]
  %s18 = inlined_call_operand.vmem [shape: f32[1,32], index: 18, kind: input, shape index: {}]
  %s19 = inlined_call_operand.vmem [shape: f32[1,32], index: 19, kind: input, shape index: {}]
  %s20 = inlined_call_operand.vmem [shape: f32[9,16,1], index: 20, kind: input, shape index: {}]
  %s21 = inlined_call_operand.vmem [shape: bf16[9,32,32], index: 21, kind: input, shape index: {}]
  %s22 = inlined_call_operand.vmem [shape: f32[1,32], index: 22, kind: input, shape index: {}]
  %s23 = inlined_call_operand.vmem [shape: f32[1,32], index: 23, kind: input, shape index: {}]
  %s24 = inlined_call_operand.vmem [shape: f32[1,32], index: 24, kind: input, shape index: {}]
  %s25 = inlined_call_operand.vmem [shape: f32[2,16,32], index: 25, kind: output, shape index: {}]
  %s26 = sld [smem:[#allocation0]]
  $region133: #{sam_forward.5} parent=0
    _
  %s28 = ssub.s32 1, %s26
  %s29 = scalar_select 0, %s28, %s26
  loop: start=0, step=1, limit=4
  $region2: #{sam_forward.5} parent=0 // loop_pre_header
    _
  $region3: #{sam_forward.5} parent=0 // loop_header
    %s31 = sphi 0, %s35
    %p32 = scmp.ge.s32.totalorder %s31, 4
    %s41 = sphi 0, %s43
    %s44 = sphi 0, %s41
    %s45 = sphi 0, %s44
    %s61 = sphi 0, %s45
    %s65 = sphi 0, %s65
    %s67 = sphi 0, %s65
    %s68 = sphi 0, %s67
    %s82 = sphi 0, %s68
    %s86 = sphi 0, %s86
    %s88 = sphi 0, %s86
    %s89 = sphi 0, %s88
    %s103 = sphi 0, %s89
    %s107 = sphi 0, %s107
    %s109 = sphi 0, %s107
    %s110 = sphi 0, %s109
    %s124 = sphi 0, %s110
    %s128 = sphi 0, %s128
    %s130 = sphi 0, %s128
    %s131 = sphi 0, %s130
    %s145 = sphi 0, %s131
    %s149 = sphi 0, %s149
    %s151 = sphi 0, %s149
    %s152 = sphi 0, %s151
    %s166 = sphi 0, %s152
    %s170 = sphi 0, %s170
    %s172 = sphi 0, %s170
    %s173 = sphi 0, %s172
    %s187 = sphi 0, %s173
    %s191 = sphi 0, %s191
    %s193 = sphi 0, %s191
    %s194 = sphi 0, %s193
    %s208 = sphi 0, %s194
    %s212 = sphi 0, %s212
    %s214 = sphi 0, %s212
    %s215 = sphi 0, %s214
    %s229 = sphi 0, %s215
    %s233 = sphi 0, %s233
    %s235 = sphi 0, %s233
    %s236 = sphi 0, %s235
    %s250 = sphi 0, %s236
    %s254 = sphi 0, %s254
    %s256 = sphi 0, %s254
    %s257 = sphi 0, %s256
    %s271 = sphi 0, %s257
    %s275 = sphi 0, %s275
    %s277 = sphi 0, %s275
    %s278 = sphi 0, %s277
    %s292 = sphi 0, %s278
    %s296 = sphi 0, %s296
    %s298 = sphi 0, %s296
    %s299 = sphi 0, %s298
    %s313 = sphi 0, %s299
    %s317 = sphi 0, %s317
    %s319 = sphi 0, %s317
    %s320 = sphi 0, %s319
    %s334 = sphi 0, %s320
    %s338 = sphi 0, %s338
    %s340 = sphi 0, %s338
    %s341 = sphi 0, %s340
    %s355 = sphi 0, %s341
    %s359 = sphi 0, %s359
    %s361 = sphi 0, %s359
    %s362 = sphi 0, %s361
    %s376 = sphi 0, %s362
    %s380 = sphi 0, %s380
    %s382 = sphi 0, %s380
    %s383 = sphi 0, %s382
    %s397 = sphi 0, %s383
    %s401 = sphi 0, %s401
    %s403 = sphi 0, %s401
    %s404 = sphi 0, %s403
    %s418 = sphi 0, %s404
    %s422 = sphi 0, %s422
    %s424 = sphi 0, %s422
    %s425 = sphi 0, %s424
    %s439 = sphi 0, %s425
    %s443 = sphi 0, %s443
    %s445 = sphi 0, %s443
    %s446 = sphi 0, %s445
    %s460 = sphi 0, %s446
    %s464 = sphi 0, %s464
    %s466 = sphi 0, %s464
    %s467 = sphi 0, %s466
    %s481 = sphi 0, %s467
    %s485 = sphi 0, %s485
    %s487 = sphi 0, %s485
    %s488 = sphi 0, %s487
    %s502 = sphi 0, %s488
    %s506 = sphi 0, %s506
    %s508 = sphi 0, %s506
    %s509 = sphi 0, %s508
    %s523 = sphi 0, %s509
    %s527 = sphi 0, %s527
    %s529 = sphi 0, %s527
    %s530 = sphi 0, %s529
    %s544 = sphi 0, %s530
    %s548 = sphi 0, %s548
    %s550 = sphi 0, %s548
    %s551 = sphi 0, %s550
    %s565 = sphi 0, %s551
    %s571 = sphi 0, %s573
    %s574 = sphi 0, %s571
    %s575 = sphi 0, %s574
    %s591 = sphi 0, %s575
  $region4: #{sam_forward.5} parent=0 // loop_header_branch
    %34 = sbr.rel (%p32) target = $region8
  $region5: #{sam_forward.5} parent=0 // loop_body
    %s36 = ssub.s32 %s31, 1
    %s37 = ssub.s32 %s31, 2
    %s38 = sadd.s32 %s31, 1
    %s39 = ssub.s32 %s31, %s38
    %p40 = scmp.eq.s32.totalorder %s39, 0
    %s42 = sadd.s32 %s41, 1
    %s43 = scalar_select %p40, %s41, %s42
    %p46 = pneg %p40
    %p47 = scmp.eq.s32.totalorder %s31, 1
    %p48 = por %p46, %p47
    %p49 = scmp.ne.s32.totalorder %s41, %s44
    %p50 = scmp.eq.s32.totalorder %s31, 0
    %p51 = por %p49, %p50
    %p52 = scmp.ne.s32.totalorder %s41, %s44
    %p53 = scmp.eq.s32.totalorder %s36, 1
    %p54 = por %p52, %p53
    %p55 = scmp.ne.s32.totalorder %s44, %s45
    %p56 = scmp.eq.s32.totalorder %s36, 0
    %p57 = por %p55, %p56
    %p58 = scmp.ne.s32.totalorder %s44, %s45
    %p59 = scmp.eq.s32.totalorder %s37, 1
    %p60 = por %p58, %p59
    %p62 = scmp.ne.s32.totalorder %s45, %s61
    %p63 = scmp.eq.s32.totalorder %s37, 0
    %p64 = por %p62, %p63
    %s66 = sadd.s32 %s65, 1
    %p69 = scmp.eq.s32.totalorder %s31, 1
    %p70 = scmp.ne.s32.totalorder %s65, %s67
    %p71 = scmp.eq.s32.totalorder %s31, 0
    %p72 = por %p70, %p71
    %p73 = scmp.ne.s32.totalorder %s65, %s67
    %p74 = scmp.eq.s32.totalorder %s36, 1
    %p75 = por %p73, %p74
    %p76 = scmp.ne.s32.totalorder %s67, %s68
    %p77 = scmp.eq.s32.totalorder %s36, 0
    %p78 = por %p76, %p77
    %p79 = scmp.ne.s32.totalorder %s67, %s68
    %p80 = scmp.eq.s32.totalorder %s37, 1
    %p81 = por %p79, %p80
    %p83 = scmp.ne.s32.totalorder %s68, %s82
    %p84 = scmp.eq.s32.totalorder %s37, 0
    %p85 = por %p83, %p84
    %s87 = sadd.s32 %s86, 1
    %p90 = scmp.eq.s32.totalorder %s31, 1
    %p91 = scmp.ne.s32.totalorder %s86, %s88
    %p92 = scmp.eq.s32.totalorder %s31, 0
    %p93 = por %p91, %p92
    %p94 = scmp.ne.s32.totalorder %s86, %s88
    %p95 = scmp.eq.s32.totalorder %s36, 1
    %p96 = por %p94, %p95
    %p97 = scmp.ne.s32.totalorder %s88, %s89
    %p98 = scmp.eq.s32.totalorder %s36, 0
    %p99 = por %p97, %p98
    %p100 = scmp.ne.s32.totalorder %s88, %s89
    %p101 = scmp.eq.s32.totalorder %s37, 1
    %p102 = por %p100, %p101
    %p104 = scmp.ne.s32.totalorder %s89, %s103
    %p105 = scmp.eq.s32.totalorder %s37, 0
    %p106 = por %p104, %p105
    %s108 = sadd.s32 %s107, 1
    %p111 = scmp.eq.s32.totalorder %s31, 1
    %p112 = scmp.ne.s32.totalorder %s107, %s109
    %p113 = scmp.eq.s32.totalorder %s31, 0
    %p114 = por %p112, %p113
    %p115 = scmp.ne.s32.totalorder %s107, %s109
    %p116 = scmp.eq.s32.totalorder %s36, 1
    %p117 = por %p115, %p116
    %p118 = scmp.ne.s32.totalorder %s109, %s110
    %p119 = scmp.eq.s32.totalorder %s36, 0
    %p120 = por %p118, %p119
    %p121 = scmp.ne.s32.totalorder %s109, %s110
    %p122 = scmp.eq.s32.totalorder %s37, 1
    %p123 = por %p121, %p122
    %p125 = scmp.ne.s32.totalorder %s110, %s124
    %p126 = scmp.eq.s32.totalorder %s37, 0
    %p127 = por %p125, %p126
    %s129 = sadd.s32 %s128, 1
    %p132 = scmp.eq.s32.totalorder %s31, 1
    %p133 = scmp.ne.s32.totalorder %s128, %s130
    %p134 = scmp.eq.s32.totalorder %s31, 0
    %p135 = por %p133, %p134
    %p136 = scmp.ne.s32.totalorder %s128, %s130
    %p137 = scmp.eq.s32.totalorder %s36, 1
    %p138 = por %p136, %p137
    %p139 = scmp.ne.s32.totalorder %s130, %s131
    %p140 = scmp.eq.s32.totalorder %s36, 0
    %p141 = por %p139, %p140
    %p142 = scmp.ne.s32.totalorder %s130, %s131
    %p143 = scmp.eq.s32.totalorder %s37, 1
    %p144 = por %p142, %p143
    %p146 = scmp.ne.s32.totalorder %s131, %s145
    %p147 = scmp.eq.s32.totalorder %s37, 0
    %p148 = por %p146, %p147
    %s150 = sadd.s32 %s149, 1
    %p153 = scmp.eq.s32.totalorder %s31, 1
    %p154 = scmp.ne.s32.totalorder %s149, %s151
    %p155 = scmp.eq.s32.totalorder %s31, 0
    %p156 = por %p154, %p155
    %p157 = scmp.ne.s32.totalorder %s149, %s151
    %p158 = scmp.eq.s32.totalorder %s36, 1
    %p159 = por %p157, %p158
    %p160 = scmp.ne.s32.totalorder %s151, %s152
    %p161 = scmp.eq.s32.totalorder %s36, 0
    %p162 = por %p160, %p161
    %p163 = scmp.ne.s32.totalorder %s151, %s152
    %p164 = scmp.eq.s32.totalorder %s37, 1
    %p165 = por %p163, %p164
    %p167 = scmp.ne.s32.totalorder %s152, %s166
    %p168 = scmp.eq.s32.totalorder %s37, 0
    %p169 = por %p167, %p168
    %s171 = sadd.s32 %s170, 1
    %p174 = scmp.eq.s32.totalorder %s31, 1
    %p175 = scmp.ne.s32.totalorder %s170, %s172
    %p176 = scmp.eq.s32.totalorder %s31, 0
    %p177 = por %p175, %p176
    %p178 = scmp.ne.s32.totalorder %s170, %s172
    %p179 = scmp.eq.s32.totalorder %s36, 1
    %p180 = por %p178, %p179
    %p181 = scmp.ne.s32.totalorder %s172, %s173
    %p182 = scmp.eq.s32.totalorder %s36, 0
    %p183 = por %p181, %p182
    %p184 = scmp.ne.s32.totalorder %s172, %s173
    %p185 = scmp.eq.s32.totalorder %s37, 1
    %p186 = por %p184, %p185
    %p188 = scmp.ne.s32.totalorder %s173, %s187
    %p189 = scmp.eq.s32.totalorder %s37, 0
    %p190 = por %p188, %p189
    %s192 = sadd.s32 %s191, 1
    %p195 = scmp.eq.s32.totalorder %s31, 1
    %p196 = scmp.ne.s32.totalorder %s191, %s193
    %p197 = scmp.eq.s32.totalorder %s31, 0
    %p198 = por %p196, %p197
    %p199 = scmp.ne.s32.totalorder %s191, %s193
    %p200 = scmp.eq.s32.totalorder %s36, 1
    %p201 = por %p199, %p200
    %p202 = scmp.ne.s32.totalorder %s193, %s194
    %p203 = scmp.eq.s32.totalorder %s36, 0
    %p204 = por %p202, %p203
    %p205 = scmp.ne.s32.totalorder %s193, %s194
    %p206 = scmp.eq.s32.totalorder %s37, 1
    %p207 = por %p205, %p206
    %p209 = scmp.ne.s32.totalorder %s194, %s208
    %p210 = scmp.eq.s32.totalorder %s37, 0
    %p211 = por %p209, %p210
    %s213 = sadd.s32 %s212, 1
    %p216 = scmp.eq.s32.totalorder %s31, 1
    %p217 = scmp.ne.s32.totalorder %s212, %s214
    %p218 = scmp.eq.s32.totalorder %s31, 0
    %p219 = por %p217, %p218
    %p220 = scmp.ne.s32.totalorder %s212, %s214
    %p221 = scmp.eq.s32.totalorder %s36, 1
    %p222 = por %p220, %p221
    %p223 = scmp.ne.s32.totalorder %s214, %s215
    %p224 = scmp.eq.s32.totalorder %s36, 0
    %p225 = por %p223, %p224
    %p226 = scmp.ne.s32.totalorder %s214, %s215
    %p227 = scmp.eq.s32.totalorder %s37, 1
    %p228 = por %p226, %p227
    %p230 = scmp.ne.s32.totalorder %s215, %s229
    %p231 = scmp.eq.s32.totalorder %s37, 0
    %p232 = por %p230, %p231
    %s234 = sadd.s32 %s233, 1
    %p237 = scmp.eq.s32.totalorder %s31, 1
    %p238 = scmp.ne.s32.totalorder %s233, %s235
    %p239 = scmp.eq.s32.totalorder %s31, 0
    %p240 = por %p238, %p239
    %p241 = scmp.ne.s32.totalorder %s233, %s235
    %p242 = scmp.eq.s32.totalorder %s36, 1
    %p243 = por %p241, %p242
    %p244 = scmp.ne.s32.totalorder %s235, %s236
    %p245 = scmp.eq.s32.totalorder %s36, 0
    %p246 = por %p244, %p245
    %p247 = scmp.ne.s32.totalorder %s235, %s236
    %p248 = scmp.eq.s32.totalorder %s37, 1
    %p249 = por %p247, %p248
    %p251 = scmp.ne.s32.totalorder %s236, %s250
    %p252 = scmp.eq.s32.totalorder %s37, 0
    %p253 = por %p251, %p252
    %s255 = sadd.s32 %s254, 1
    %p258 = scmp.eq.s32.totalorder %s31, 1
    %p259 = scmp.ne.s32.totalorder %s254, %s256
    %p260 = scmp.eq.s32.totalorder %s31, 0
    %p261 = por %p259, %p260
    %p262 = scmp.ne.s32.totalorder %s254, %s256
    %p263 = scmp.eq.s32.totalorder %s36, 1
    %p264 = por %p262, %p263
    %p265 = scmp.ne.s32.totalorder %s256, %s257
    %p266 = scmp.eq.s32.totalorder %s36, 0
    %p267 = por %p265, %p266
    %p268 = scmp.ne.s32.totalorder %s256, %s257
    %p269 = scmp.eq.s32.totalorder %s37, 1
    %p270 = por %p268, %p269
    %p272 = scmp.ne.s32.totalorder %s257, %s271
    %p273 = scmp.eq.s32.totalorder %s37, 0
    %p274 = por %p272, %p273
    %s276 = sadd.s32 %s275, 1
    %p279 = scmp.eq.s32.totalorder %s31, 1
    %p280 = scmp.ne.s32.totalorder %s275, %s277
    %p281 = scmp.eq.s32.totalorder %s31, 0
    %p282 = por %p280, %p281
    %p283 = scmp.ne.s32.totalorder %s275, %s277
    %p284 = scmp.eq.s32.totalorder %s36, 1
    %p285 = por %p283, %p284
    %p286 = scmp.ne.s32.totalorder %s277, %s278
    %p287 = scmp.eq.s32.totalorder %s36, 0
    %p288 = por %p286, %p287
    %p289 = scmp.ne.s32.totalorder %s277, %s278
    %p290 = scmp.eq.s32.totalorder %s37, 1
    %p291 = por %p289, %p290
    %p293 = scmp.ne.s32.totalorder %s278, %s292
    %p294 = scmp.eq.s32.totalorder %s37, 0
    %p295 = por %p293, %p294
    %s297 = sadd.s32 %s296, 1
    %p300 = scmp.eq.s32.totalorder %s31, 1
    %p301 = scmp.ne.s32.totalorder %s296, %s298
    %p302 = scmp.eq.s32.totalorder %s31, 0
    %p303 = por %p301, %p302
    %p304 = scmp.ne.s32.totalorder %s296, %s298
    %p305 = scmp.eq.s32.totalorder %s36, 1
    %p306 = por %p304, %p305
    %p307 = scmp.ne.s32.totalorder %s298, %s299
    %p308 = scmp.eq.s32.totalorder %s36, 0
    %p309 = por %p307, %p308
    %p310 = scmp.ne.s32.totalorder %s298, %s299
    %p311 = scmp.eq.s32.totalorder %s37, 1
    %p312 = por %p310, %p311
    %p314 = scmp.ne.s32.totalorder %s299, %s313
    %p315 = scmp.eq.s32.totalorder %s37, 0
    %p316 = por %p314, %p315
    %s318 = sadd.s32 %s317, 1
    %p321 = scmp.eq.s32.totalorder %s31, 1
    %p322 = scmp.ne.s32.totalorder %s317, %s319
    %p323 = scmp.eq.s32.totalorder %s31, 0
    %p324 = por %p322, %p323
    %p325 = scmp.ne.s32.totalorder %s317, %s319
    %p326 = scmp.eq.s32.totalorder %s36, 1
    %p327 = por %p325, %p326
    %p328 = scmp.ne.s32.totalorder %s319, %s320
    %p329 = scmp.eq.s32.totalorder %s36, 0
    %p330 = por %p328, %p329
    %p331 = scmp.ne.s32.totalorder %s319, %s320
    %p332 = scmp.eq.s32.totalorder %s37, 1
    %p333 = por %p331, %p332
    %p335 = scmp.ne.s32.totalorder %s320, %s334
    %p336 = scmp.eq.s32.totalorder %s37, 0
    %p337 = por %p335, %p336
    %s339 = sadd.s32 %s338, 1
    %p342 = scmp.eq.s32.totalorder %s31, 1
    %p343 = scmp.ne.s32.totalorder %s338, %s340
    %p344 = scmp.eq.s32.totalorder %s31, 0
    %p345 = por %p343, %p344
    %p346 = scmp.ne.s32.totalorder %s338, %s340
    %p347 = scmp.eq.s32.totalorder %s36, 1
    %p348 = por %p346, %p347
    %p349 = scmp.ne.s32.totalorder %s340, %s341
    %p350 = scmp.eq.s32.totalorder %s36, 0
    %p351 = por %p349, %p350
    %p352 = scmp.ne.s32.totalorder %s340, %s341
    %p353 = scmp.eq.s32.totalorder %s37, 1
    %p354 = por %p352, %p353
    %p356 = scmp.ne.s32.totalorder %s341, %s355
    %p357 = scmp.eq.s32.totalorder %s37, 0
    %p358 = por %p356, %p357
    %s360 = sadd.s32 %s359, 1
    %p363 = scmp.eq.s32.totalorder %s31, 1
    %p364 = scmp.ne.s32.totalorder %s359, %s361
    %p365 = scmp.eq.s32.totalorder %s31, 0
    %p366 = por %p364, %p365
    %p367 = scmp.ne.s32.totalorder %s359, %s361
    %p368 = scmp.eq.s32.totalorder %s36, 1
    %p369 = por %p367, %p368
    %p370 = scmp.ne.s32.totalorder %s361, %s362
    %p371 = scmp.eq.s32.totalorder %s36, 0
    %p372 = por %p370, %p371
    %p373 = scmp.ne.s32.totalorder %s361, %s362
    %p374 = scmp.eq.s32.totalorder %s37, 1
    %p375 = por %p373, %p374
    %p377 = scmp.ne.s32.totalorder %s362, %s376
    %p378 = scmp.eq.s32.totalorder %s37, 0
    %p379 = por %p377, %p378
    %s381 = sadd.s32 %s380, 1
    %p384 = scmp.eq.s32.totalorder %s31, 1
    %p385 = scmp.ne.s32.totalorder %s380, %s382
    %p386 = scmp.eq.s32.totalorder %s31, 0
    %p387 = por %p385, %p386
    %p388 = scmp.ne.s32.totalorder %s380, %s382
    %p389 = scmp.eq.s32.totalorder %s36, 1
    %p390 = por %p388, %p389
    %p391 = scmp.ne.s32.totalorder %s382, %s383
    %p392 = scmp.eq.s32.totalorder %s36, 0
    %p393 = por %p391, %p392
    %p394 = scmp.ne.s32.totalorder %s382, %s383
    %p395 = scmp.eq.s32.totalorder %s37, 1
    %p396 = por %p394, %p395
    %p398 = scmp.ne.s32.totalorder %s383, %s397
    %p399 = scmp.eq.s32.totalorder %s37, 0
    %p400 = por %p398, %p399
    %s402 = sadd.s32 %s401, 1
    %p405 = scmp.eq.s32.totalorder %s31, 1
    %p406 = scmp.ne.s32.totalorder %s401, %s403
    %p407 = scmp.eq.s32.totalorder %s31, 0
    %p408 = por %p406, %p407
    %p409 = scmp.ne.s32.totalorder %s401, %s403
    %p410 = scmp.eq.s32.totalorder %s36, 1
    %p411 = por %p409, %p410
    %p412 = scmp.ne.s32.totalorder %s403, %s404
    %p413 = scmp.eq.s32.totalorder %s36, 0
    %p414 = por %p412, %p413
    %p415 = scmp.ne.s32.totalorder %s403, %s404
    %p416 = scmp.eq.s32.totalorder %s37, 1
    %p417 = por %p415, %p416
    %p419 = scmp.ne.s32.totalorder %s404, %s418
    %p420 = scmp.eq.s32.totalorder %s37, 0
    %p421 = por %p419, %p420
    %s423 = sadd.s32 %s422, 1
    %p426 = scmp.eq.s32.totalorder %s31, 1
    %p427 = scmp.ne.s32.totalorder %s422, %s424
    %p428 = scmp.eq.s32.totalorder %s31, 0
    %p429 = por %p427, %p428
    %p430 = scmp.ne.s32.totalorder %s422, %s424
    %p431 = scmp.eq.s32.totalorder %s36, 1
    %p432 = por %p430, %p431
    %p433 = scmp.ne.s32.totalorder %s424, %s425
    %p434 = scmp.eq.s32.totalorder %s36, 0
    %p435 = por %p433, %p434
    %p436 = scmp.ne.s32.totalorder %s424, %s425
    %p437 = scmp.eq.s32.totalorder %s37, 1
    %p438 = por %p436, %p437
    %p440 = scmp.ne.s32.totalorder %s425, %s439
    %p441 = scmp.eq.s32.totalorder %s37, 0
    %p442 = por %p440, %p441
    %s444 = sadd.s32 %s443, 1
    %p447 = scmp.eq.s32.totalorder %s31, 1
    %p448 = scmp.ne.s32.totalorder %s443, %s445
    %p449 = scmp.eq.s32.totalorder %s31, 0
    %p450 = por %p448, %p449
    %p451 = scmp.ne.s32.totalorder %s443, %s445
    %p452 = scmp.eq.s32.totalorder %s36, 1
    %p453 = por %p451, %p452
    %p454 = scmp.ne.s32.totalorder %s445, %s446
    %p455 = scmp.eq.s32.totalorder %s36, 0
    %p456 = por %p454, %p455
    %p457 = scmp.ne.s32.totalorder %s445, %s446
    %p458 = scmp.eq.s32.totalorder %s37, 1
    %p459 = por %p457, %p458
    %p461 = scmp.ne.s32.totalorder %s446, %s460
    %p462 = scmp.eq.s32.totalorder %s37, 0
    %p463 = por %p461, %p462
    %s465 = sadd.s32 %s464, 1
    %p468 = scmp.eq.s32.totalorder %s31, 1
    %p469 = scmp.ne.s32.totalorder %s464, %s466
    %p470 = scmp.eq.s32.totalorder %s31, 0
    %p471 = por %p469, %p470
    %p472 = scmp.ne.s32.totalorder %s464, %s466
    %p473 = scmp.eq.s32.totalorder %s36, 1
    %p474 = por %p472, %p473
    %p475 = scmp.ne.s32.totalorder %s466, %s467
    %p476 = scmp.eq.s32.totalorder %s36, 0
    %p477 = por %p475, %p476
    %p478 = scmp.ne.s32.totalorder %s466, %s467
    %p479 = scmp.eq.s32.totalorder %s37, 1
    %p480 = por %p478, %p479
    %p482 = scmp.ne.s32.totalorder %s467, %s481
    %p483 = scmp.eq.s32.totalorder %s37, 0
    %p484 = por %p482, %p483
    %s486 = sadd.s32 %s485, 1
    %p489 = scmp.eq.s32.totalorder %s31, 1
    %p490 = scmp.ne.s32.totalorder %s485, %s487
    %p491 = scmp.eq.s32.totalorder %s31, 0
    %p492 = por %p490, %p491
    %p493 = scmp.ne.s32.totalorder %s485, %s487
    %p494 = scmp.eq.s32.totalorder %s36, 1
    %p495 = por %p493, %p494
    %p496 = scmp.ne.s32.totalorder %s487, %s488
    %p497 = scmp.eq.s32.totalorder %s36, 0
    %p498 = por %p496, %p497
    %p499 = scmp.ne.s32.totalorder %s487, %s488
    %p500 = scmp.eq.s32.totalorder %s37, 1
    %p501 = por %p499, %p500
    %p503 = scmp.ne.s32.totalorder %s488, %s502
    %p504 = scmp.eq.s32.totalorder %s37, 0
    %p505 = por %p503, %p504
    %s507 = sadd.s32 %s506, 1
    %p510 = scmp.eq.s32.totalorder %s31, 1
    %p511 = scmp.ne.s32.totalorder %s506, %s508
    %p512 = scmp.eq.s32.totalorder %s31, 0
    %p513 = por %p511, %p512
    %p514 = scmp.ne.s32.totalorder %s506, %s508
    %p515 = scmp.eq.s32.totalorder %s36, 1
    %p516 = por %p514, %p515
    %p517 = scmp.ne.s32.totalorder %s508, %s509
    %p518 = scmp.eq.s32.totalorder %s36, 0
    %p519 = por %p517, %p518
    %p520 = scmp.ne.s32.totalorder %s508, %s509
    %p521 = scmp.eq.s32.totalorder %s37, 1
    %p522 = por %p520, %p521
    %p524 = scmp.ne.s32.totalorder %s509, %s523
    %p525 = scmp.eq.s32.totalorder %s37, 0
    %p526 = por %p524, %p525
    %s528 = sadd.s32 %s527, 1
    %p531 = scmp.eq.s32.totalorder %s31, 1
    %p532 = scmp.ne.s32.totalorder %s527, %s529
    %p533 = scmp.eq.s32.totalorder %s31, 0
    %p534 = por %p532, %p533
    %p535 = scmp.ne.s32.totalorder %s527, %s529
    %p536 = scmp.eq.s32.totalorder %s36, 1
    %p537 = por %p535, %p536
    %p538 = scmp.ne.s32.totalorder %s529, %s530
    %p539 = scmp.eq.s32.totalorder %s36, 0
    %p540 = por %p538, %p539
    %p541 = scmp.ne.s32.totalorder %s529, %s530
    %p542 = scmp.eq.s32.totalorder %s37, 1
    %p543 = por %p541, %p542
    %p545 = scmp.ne.s32.totalorder %s530, %s544
    %p546 = scmp.eq.s32.totalorder %s37, 0
    %p547 = por %p545, %p546
    %s549 = sadd.s32 %s548, 1
    %p552 = scmp.eq.s32.totalorder %s31, 1
    %p553 = scmp.ne.s32.totalorder %s548, %s550
    %p554 = scmp.eq.s32.totalorder %s31, 0
    %p555 = por %p553, %p554
    %p556 = scmp.ne.s32.totalorder %s548, %s550
    %p557 = scmp.eq.s32.totalorder %s36, 1
    %p558 = por %p556, %p557
    %p559 = scmp.ne.s32.totalorder %s550, %s551
    %p560 = scmp.eq.s32.totalorder %s36, 0
    %p561 = por %p559, %p560
    %p562 = scmp.ne.s32.totalorder %s550, %s551
    %p563 = scmp.eq.s32.totalorder %s37, 1
    %p564 = por %p562, %p563
    %p566 = scmp.ne.s32.totalorder %s551, %s565
    %p567 = scmp.eq.s32.totalorder %s37, 0
    %p568 = por %p566, %p567
    %s569 = ssub.s32 %s31, %s38
    %p570 = scmp.eq.s32.totalorder %s569, 0
    %s572 = sadd.s32 %s571, 1
    %s573 = scalar_select %p570, %s571, %s572
    %p576 = pneg %p570
    %p577 = scmp.eq.s32.totalorder %s31, 1
    %p578 = por %p576, %p577
    %p579 = scmp.ne.s32.totalorder %s571, %s574
    %p580 = scmp.eq.s32.totalorder %s31, 0
    %p581 = por %p579, %p580
    %p582 = scmp.ne.s32.totalorder %s571, %s574
    %p583 = scmp.eq.s32.totalorder %s36, 1
    %p584 = por %p582, %p583
    %p585 = scmp.ne.s32.totalorder %s574, %s575
    %p586 = scmp.eq.s32.totalorder %s36, 0
    %p587 = por %p585, %p586
    %p588 = scmp.ne.s32.totalorder %s574, %s575
    %p589 = scmp.eq.s32.totalorder %s37, 1
    %p590 = por %p588, %p589
    %p592 = scmp.ne.s32.totalorder %s575, %s591
    %p593 = scmp.eq.s32.totalorder %s37, 0
    %p594 = por %p592, %p593
    %p595 = scmp.le.s32.totalorder 1, %s31
    %p596 = scmp.lt.s32.totalorder %s31, 3
    %p597 = pnand %p595, %p596
    %p598 = pneg %p597
    // Predicated region
    $region9: #{sam_forward.5} parent=5 // pred_check
      _
    $region10: #{sam_forward.5} parent=5 // pred_check_branch
      %600 = sbr.rel (%p597) target = $region12
    $region11: #{sam_forward.5} parent=5 // pred_region
      %s601 = ssub.s32 %s31, 1
      // Predicated region
      $region13: #{sam_forward.5} parent=11 // pred_check
        %p602 = pneg %p78
      $region14: #{sam_forward.5} parent=11 // pred_check_branch
        %604 = sbr.rel (%p602) target = $region16
      $region15: #{sam_forward.5} parent=11 // pred_region
        _
      $region16: #{sam_forward.5} parent=11 // pred_fallthru
        _
      // Predicated region
      $region17: #{sam_forward.5} parent=11 // pred_check
        %p605 = pneg %p99
      $region18: #{sam_forward.5} parent=11 // pred_check_branch
        %607 = sbr.rel (%p605) target = $region20
      $region19: #{sam_forward.5} parent=11 // pred_region
        _
      $region20: #{sam_forward.5} parent=11 // pred_fallthru
        _
      // Predicated region
      $region21: #{sam_forward.5} parent=11 // pred_check
        %p608 = pneg %p120
      $region22: #{sam_forward.5} parent=11 // pred_check_branch
        %610 = sbr.rel (%p608) target = $region24
      $region23: #{sam_forward.5} parent=11 // pred_region
        _
      $region24: #{sam_forward.5} parent=11 // pred_fallthru
        _
      // Predicated region
      $region25: #{sam_forward.5} parent=11 // pred_check
        %p611 = pneg %p141
      $region26: #{sam_forward.5} parent=11 // pred_check_branch
        %613 = sbr.rel (%p611) target = $region28
      $region27: #{sam_forward.5} parent=11 // pred_region
        _
      $region28: #{sam_forward.5} parent=11 // pred_fallthru
        _
      // Predicated region
      $region29: #{sam_forward.5} parent=11 // pred_check
        %p614 = pneg %p162
      $region30: #{sam_forward.5} parent=11 // pred_check_branch
        %616 = sbr.rel (%p614) target = $region32
      $region31: #{sam_forward.5} parent=11 // pred_region
        _
      $region32: #{sam_forward.5} parent=11 // pred_fallthru
        _
      // Predicated region
      $region33: #{sam_forward.5} parent=11 // pred_check
        %p617 = pneg %p183
      $region34: #{sam_forward.5} parent=11 // pred_check_branch
        %619 = sbr.rel (%p617) target = $region36
      $region35: #{sam_forward.5} parent=11 // pred_region
        _
      $region36: #{sam_forward.5} parent=11 // pred_fallthru
        _
      // Predicated region
      $region37: #{sam_forward.5} parent=11 // pred_check
        %p620 = pneg %p204
      $region38: #{sam_forward.5} parent=11 // pred_check_branch
        %622 = sbr.rel (%p620) target = $region40
      $region39: #{sam_forward.5} parent=11 // pred_region
        _
      $region40: #{sam_forward.5} parent=11 // pred_fallthru
        _
      // Predicated region
      $region41: #{sam_forward.5} parent=11 // pred_check
        %p623 = pneg %p225
      $region42: #{sam_forward.5} parent=11 // pred_check_branch
        %625 = sbr.rel (%p623) target = $region44
      $region43: #{sam_forward.5} parent=11 // pred_region
        _
      $region44: #{sam_forward.5} parent=11 // pred_fallthru
        _
      // Predicated region
      $region45: #{sam_forward.5} parent=11 // pred_check
        %p626 = pneg %p246
      $region46: #{sam_forward.5} parent=11 // pred_check_branch
        %628 = sbr.rel (%p626) target = $region48
      $region47: #{sam_forward.5} parent=11 // pred_region
        _
      $region48: #{sam_forward.5} parent=11 // pred_fallthru
        _
      // Predicated region
      $region49: #{sam_forward.5} parent=11 // pred_check
        %p629 = pneg %p267
      $region50: #{sam_forward.5} parent=11 // pred_check_branch
        %631 = sbr.rel (%p629) target = $region52
      $region51: #{sam_forward.5} parent=11 // pred_region
        _
      $region52: #{sam_forward.5} parent=11 // pred_fallthru
        _
      // Predicated region
      $region53: #{sam_forward.5} parent=11 // pred_check
        %p632 = pneg %p288
      $region54: #{sam_forward.5} parent=11 // pred_check_branch
        %634 = sbr.rel (%p632) target = $region56
      $region55: #{sam_forward.5} parent=11 // pred_region
        _
      $region56: #{sam_forward.5} parent=11 // pred_fallthru
        _
      // Predicated region
      $region57: #{sam_forward.5} parent=11 // pred_check
        %p635 = pneg %p309
      $region58: #{sam_forward.5} parent=11 // pred_check_branch
        %637 = sbr.rel (%p635) target = $region60
      $region59: #{sam_forward.5} parent=11 // pred_region
        _
      $region60: #{sam_forward.5} parent=11 // pred_fallthru
        _
      // Predicated region
      $region61: #{sam_forward.5} parent=11 // pred_check
        %p638 = pneg %p330
      $region62: #{sam_forward.5} parent=11 // pred_check_branch
        %640 = sbr.rel (%p638) target = $region64
      $region63: #{sam_forward.5} parent=11 // pred_region
        _
      $region64: #{sam_forward.5} parent=11 // pred_fallthru
        _
      // Predicated region
      $region65: #{sam_forward.5} parent=11 // pred_check
        %p641 = pneg %p351
      $region66: #{sam_forward.5} parent=11 // pred_check_branch
        %643 = sbr.rel (%p641) target = $region68
      $region67: #{sam_forward.5} parent=11 // pred_region
        _
      $region68: #{sam_forward.5} parent=11 // pred_fallthru
        _
      // Predicated region
      $region69: #{sam_forward.5} parent=11 // pred_check
        %p644 = pneg %p372
      $region70: #{sam_forward.5} parent=11 // pred_check_branch
        %646 = sbr.rel (%p644) target = $region72
      $region71: #{sam_forward.5} parent=11 // pred_region
        _
      $region72: #{sam_forward.5} parent=11 // pred_fallthru
        _
      // Predicated region
      $region73: #{sam_forward.5} parent=11 // pred_check
        %p647 = pneg %p393
      $region74: #{sam_forward.5} parent=11 // pred_check_branch
        %649 = sbr.rel (%p647) target = $region76
      $region75: #{sam_forward.5} parent=11 // pred_region
        _
      $region76: #{sam_forward.5} parent=11 // pred_fallthru
        _
      // Predicated region
      $region77: #{sam_forward.5} parent=11 // pred_check
        %p650 = pneg %p414
      $region78: #{sam_forward.5} parent=11 // pred_check_branch
        %652 = sbr.rel (%p650) target = $region80
      $region79: #{sam_forward.5} parent=11 // pred_region
        _
      $region80: #{sam_forward.5} parent=11 // pred_fallthru
        _
      // Predicated region
      $region81: #{sam_forward.5} parent=11 // pred_check
        %p653 = pneg %p435
      $region82: #{sam_forward.5} parent=11 // pred_check_branch
        %655 = sbr.rel (%p653) target = $region84
      $region83: #{sam_forward.5} parent=11 // pred_region
        _
      $region84: #{sam_forward.5} parent=11 // pred_fallthru
        _
      // Predicated region
      $region85: #{sam_forward.5} parent=11 // pred_check
        %p656 = pneg %p456
      $region86: #{sam_forward.5} parent=11 // pred_check_branch
        %658 = sbr.rel (%p656) target = $region88
      $region87: #{sam_forward.5} parent=11 // pred_region
        _
      $region88: #{sam_forward.5} parent=11 // pred_fallthru
        _
      // Predicated region
      $region89: #{sam_forward.5} parent=11 // pred_check
        %p659 = pneg %p477
      $region90: #{sam_forward.5} parent=11 // pred_check_branch
        %661 = sbr.rel (%p659) target = $region92
      $region91: #{sam_forward.5} parent=11 // pred_region
        _
      $region92: #{sam_forward.5} parent=11 // pred_fallthru
        _
      // Predicated region
      $region93: #{sam_forward.5} parent=11 // pred_check
        %p662 = pneg %p498
      $region94: #{sam_forward.5} parent=11 // pred_check_branch
        %664 = sbr.rel (%p662) target = $region96
      $region95: #{sam_forward.5} parent=11 // pred_region
        _
      $region96: #{sam_forward.5} parent=11 // pred_fallthru
        _
      // Predicated region
      $region97: #{sam_forward.5} parent=11 // pred_check
        %p665 = pneg %p519
      $region98: #{sam_forward.5} parent=11 // pred_check_branch
        %667 = sbr.rel (%p665) target = $region100
      $region99: #{sam_forward.5} parent=11 // pred_region
        _
      $region100: #{sam_forward.5} parent=11 // pred_fallthru
        _
      // Predicated region
      $region101: #{sam_forward.5} parent=11 // pred_check
        %p668 = pneg %p540
      $region102: #{sam_forward.5} parent=11 // pred_check_branch
        %670 = sbr.rel (%p668) target = $region104
      $region103: #{sam_forward.5} parent=11 // pred_region
        _
      $region104: #{sam_forward.5} parent=11 // pred_fallthru
        _
      // Predicated region
      $region105: #{sam_forward.5} parent=11 // pred_check
        %p671 = pneg %p561
      $region106: #{sam_forward.5} parent=11 // pred_check_branch
        %673 = sbr.rel (%p671) target = $region108
      $region107: #{sam_forward.5} parent=11 // pred_region
        _
      $region108: #{sam_forward.5} parent=11 // pred_fallthru
        _
    $region12: #{sam_forward.5} parent=5 // pred_fallthru
      _
    %p674 = scmp.lt.s32.totalorder %s31, 2
    // Predicated region
    $region109: #{sam_forward.5} parent=5 // pred_check
      %p675 = pneg %p674
    $region110: #{sam_forward.5} parent=5 // pred_check_branch
      %677 = sbr.rel (%p675) target = $region112
    $region111: #{sam_forward.5} parent=5 // pred_region
      // Predicated region
      $region113: #{sam_forward.5} parent=111 // pred_check
        %p678 = pneg %p51
      $region114: #{sam_forward.5} parent=111 // pred_check_branch
        %680 = sbr.rel (%p678) target = $region116
      $region115: #{sam_forward.5} parent=111 // pred_region
        %p681 = scmp.lt.s32.totalorder %s31, 1
        %s682 = scalar_select %p681, %s31, 1
        %s683 = smul.addr %s682, 12
        %s684 = smul.addr %s683, 8
        %s685 = scalar_lea.vmem %s0, %s684
      $region116: #{sam_forward.5} parent=111 // pred_fallthru
        _
    $region112: #{sam_forward.5} parent=5 // pred_fallthru
      _
    %p686 = scmp.le.s32.totalorder 1, %s31
    %p687 = scmp.lt.s32.totalorder %s31, 3
    %p688 = pnand %p686, %p687
    %p689 = pneg %p688
    // Predicated region
    $region117: #{sam_forward.5} parent=5 // pred_check
      _
    $region118: #{sam_forward.5} parent=5 // pred_check_branch
      %691 = sbr.rel (%p688) target = $region120
    $region119: #{sam_forward.5} parent=5 // pred_region
      %s692 = ssub.s32 %s31, 1
      %p693 = scmp.lt.s32.totalorder %s36, 1
      %s694 = scalar_select %p693, %s36, 1
      %s695 = smul.addr %s694, 12
      %s696 = smul.addr %s695, 8
      %s697 = scalar_lea.vmem %s0, %s696
      %p698 = pneg %p57
      %p699 = pneg %p54
      %p700 = pneg %p78
      %p701 = pneg %p75
      %p702 = pneg %p99
      %p703 = pneg %p96
      %p704 = pneg %p120
      %p705 = pneg %p117
      %p706 = pneg %p141
      %p707 = pneg %p138
      %p708 = pneg %p162
      %p709 = pneg %p159
      %p710 = pneg %p183
      %p711 = pneg %p180
      %p712 = pneg %p204
      %p713 = pneg %p201
      %p714 = pneg %p225
      %p715 = pneg %p222
      %p716 = pneg %p246
      %p717 = pneg %p243
      %p718 = pneg %p267
      %p719 = pneg %p264
      %p720 = pneg %p288
      %p721 = pneg %p285
      %p722 = pneg %p309
      %p723 = pneg %p306
      %p724 = pneg %p330
      %p725 = pneg %p327
      %p726 = pneg %p351
      %p727 = pneg %p348
      %p728 = pneg %p372
      %p729 = pneg %p369
      %p730 = pneg %p393
      %p731 = pneg %p390
      %p732 = pneg %p414
      %p733 = pneg %p411
      %p734 = pneg %p435
      %p735 = pneg %p432
      %p736 = pneg %p456
      %p737 = pneg %p453
      %p738 = pneg %p477
      %p739 = pneg %p474
      %p740 = pneg %p498
      %p741 = pneg %p495
      %p742 = pneg %p519
      %p743 = pneg %p516
      %p744 = pneg %p540
      %p745 = pneg %p537
      %p746 = pneg %p561
      %p747 = pneg %p558
      %p748 = pneg %p587
      %p749 = pneg %p584
      %p750 = scmp.lt.s32.totalorder %s36, 1
      %s751 = scalar_select %p750, %s36, 1
      %s752 = smul.addr %s751, 2
      %s753 = smul.addr %s752, 8
      %s754 = scalar_lea.vmem %s25, %s753
      %p755 = scmp.lt.s32.totalorder %s36, 1
      %s756 = scalar_select %p755, %s36, 1
      %s757 = smul.addr %s756, 12
      %s758 = smul.addr %s757, 8
      %s759 = scalar_lea.vmem %s0, %s758
      %p760 = scmp.lt.s32.totalorder %s36, 1
      %s761 = scalar_select %p760, %s36, 1
      %s762 = smul.addr %s761, 2
      %s763 = smul.addr %s762, 8
      %s764 = scalar_lea.vmem %s25, %s763
      %v766 = vld [vmem:[%s759] sm:$0xff]
      %v767 = vld [vmem:[%s759 + $0x8] sm:$0xff]
      %v768 = vld [vmem:[%s759 + $0x10] sm:$0xff]
      %v769 = vld [vmem:[%s759 + $0x18] sm:$0xff]
      %v770 = vld [vmem:[%s759 + $0x20] sm:$0xff]
      %v771 = vld [vmem:[%s759 + $0x28] sm:$0xff]
      %v772 = vld [vmem:[%s759 + $0x30] sm:$0xff]
      %v773 = vld [vmem:[%s759 + $0x38] sm:$0xff]
      %v774 = vld [vmem:[%s759 + $0x40] sm:$0xff]
      %v775 = vld [vmem:[%s759 + $0x48] sm:$0xff]
      %v776 = vld [vmem:[%s759 + $0x50] sm:$0xff]
      %v777 = vld [vmem:[%s759 + $0x58] sm:$0xff]
      %v778 = vld [vmem:[%s1] sm:$0xf]
      %v779 = vld [vmem:[%s1 + $0x4] sm:$0xf]
      %v780 = vld [vmem:[%s1 + $0x8] sm:$0xf]
      %v781 = vld [vmem:[%s1 + $0xc] sm:$0xf]
      %v782 = vld [vmem:[%s1 + $0x10] sm:$0xf]
      %v783 = vld [vmem:[%s1 + $0x14] sm:$0xf]
      %v784 = vld [vmem:[%s1 + $0x18] sm:$0xf]
      %v785 = vld [vmem:[%s1 + $0x1c] sm:$0xf]
      %v786 = vld [vmem:[%s1 + $0x20] sm:$0xf]
      %v787 = vld [vmem:[%s1 + $0x24] sm:$0xf]
      %v788 = vld [vmem:[%s1 + $0x28] sm:$0xf]
      %v789 = vld [vmem:[%s1 + $0x2c] sm:$0xf]
      %v790 = vld [vmem:[%s1 + $0x30] sm:$0xf]
      %v791 = vld [vmem:[%s1 + $0x34] sm:$0xf]
      %v792 = vld [vmem:[%s1 + $0x38] sm:$0xf]
      %v793 = vld [vmem:[%s1 + $0x3c] sm:$0xf]
      %v794 = vld [vmem:[%s1 + $0x40] sm:$0xf]
      %v795 = vld [vmem:[%s1 + $0x44] sm:$0xf]
      %v796 = vld [vmem:[%s1 + $0x48] sm:$0xf]
      %v797 = vld [vmem:[%s1 + $0x4c] sm:$0xf]
      %v798 = vld [vmem:[%s1 + $0x50] sm:$0xf]
      %v799 = vld [vmem:[%s1 + $0x54] sm:$0xf]
      %v800 = vld [vmem:[%s1 + $0x58] sm:$0xf]
      %v801 = vld [vmem:[%s1 + $0x5c] sm:$0xf]
      %v802 = vld [vmem:[%s1 + $0x60] sm:$0xf]
      %v803 = vld [vmem:[%s1 + $0x64] sm:$0xf]
      %v804 = vld [vmem:[%s1 + $0x68] sm:$0xf]
      %v805 = vld [vmem:[%s1 + $0x6c] sm:$0xf]
      %v806 = vld [vmem:[%s1 + $0x70] sm:$0xf]
      %v807 = vld [vmem:[%s1 + $0x74] sm:$0xf]
      %v808 = vld [vmem:[%s1 + $0x78] sm:$0xf]
      %v809 = vld [vmem:[%s1 + $0x7c] sm:$0xf]
      %v810 = vld [vmem:[%s1 + $0x80] sm:$0xf]
      %v811 = vld [vmem:[%s1 + $0x84] sm:$0xf]
      %v812 = vld [vmem:[%s1 + $0x88] sm:$0xf]
      %v813 = vld [vmem:[%s1 + $0x8c] sm:$0xf]
      %v814 = vld [vmem:[%s1 + $0x90] sm:$0xf]
      %v815 = vld [vmem:[%s1 + $0x94] sm:$0xf]
      %v816 = vld [vmem:[%s1 + $0x98] sm:$0xf]
      %v817 = vld [vmem:[%s1 + $0x9c] sm:$0xf]
      %v818 = vld [vmem:[%s1 + $0xa0] sm:$0xf]
      %v819 = vld [vmem:[%s1 + $0xa4] sm:$0xf]
      %v820 = vld [vmem:[%s1 + $0xa8] sm:$0xf]
      %v821 = vld [vmem:[%s1 + $0xac] sm:$0xf]
      %v822 = vld [vmem:[%s1 + $0xb0] sm:$0xf]
      %v823 = vld [vmem:[%s1 + $0xb4] sm:$0xf]
      %v824 = vld [vmem:[%s1 + $0xb8] sm:$0xf]
      %v825 = vld [vmem:[%s1 + $0xbc] sm:$0xf]
      %v826 = vld [vmem:[%s1 + $0xc0] sm:$0xf]
      %v827 = vld [vmem:[%s1 + $0xc4] sm:$0xf]
      %v828 = vld [vmem:[%s1 + $0xc8] sm:$0xf]
      %v829 = vld [vmem:[%s1 + $0xcc] sm:$0xf]
      %v830 = vld [vmem:[%s1 + $0xd0] sm:$0xf]
      %v831 = vld [vmem:[%s1 + $0xd4] sm:$0xf]
      %v832 = vld [vmem:[%s1 + $0xd8] sm:$0xf]
      %v833 = vld [vmem:[%s1 + $0xdc] sm:$0xf]
      %v834 = vld [vmem:[%s1 + $0xe0] sm:$0xf]
      %v835 = vld [vmem:[%s1 + $0xe4] sm:$0xf]
      %v836 = vld [vmem:[%s1 + $0xe8] sm:$0xf]
      %v837 = vld [vmem:[%s1 + $0xec] sm:$0xf]
      %v838 = vld [vmem:[%s1 + $0xf0] sm:$0xf]
      %v839 = vld [vmem:[%s1 + $0xf4] sm:$0xf]
      %v840 = vld [vmem:[%s1 + $0xf8] sm:$0xf]
      %v841 = vld [vmem:[%s1 + $0xfc] sm:$0xf]
      %v842 = vld [vmem:[%s1 + $0x100] sm:$0xf]
      %v843 = vld [vmem:[%s1 + $0x104] sm:$0xf]
      %v844 = vld [vmem:[%s1 + $0x108] sm:$0xf]
      %v845 = vld [vmem:[%s1 + $0x10c] sm:$0xf]
      %v846 = vld [vmem:[%s1 + $0x110] sm:$0xf]
      %v847 = vld [vmem:[%s1 + $0x114] sm:$0xf]
      %v848 = vld [vmem:[%s1 + $0x118] sm:$0xf]
      %v849 = vld [vmem:[%s1 + $0x11c] sm:$0xf]
      %v850 = vld [vmem:[%s1 + $0x120] sm:$0xf]
      %v851 = vld [vmem:[%s1 + $0x124] sm:$0xf]
      %v852 = vld [vmem:[%s1 + $0x128] sm:$0xf]
      %v853 = vld [vmem:[%s1 + $0x12c] sm:$0xf]
      %v854 = vld [vmem:[%s1 + $0x130] sm:$0xf]
      %v855 = vld [vmem:[%s1 + $0x134] sm:$0xf]
      %v856 = vld [vmem:[%s1 + $0x138] sm:$0xf]
      %v857 = vld [vmem:[%s1 + $0x13c] sm:$0xf]
      %v858 = vld [vmem:[%s1 + $0x140] sm:$0xf]
      %v859 = vld [vmem:[%s1 + $0x144] sm:$0xf]
      %v860 = vld [vmem:[%s1 + $0x148] sm:$0xf]
      %v861 = vld [vmem:[%s1 + $0x14c] sm:$0xf]
      %v862 = vld [vmem:[%s1 + $0x150] sm:$0xf]
      %v863 = vld [vmem:[%s1 + $0x154] sm:$0xf]
      %v864 = vld [vmem:[%s1 + $0x158] sm:$0xf]
      %v865 = vld [vmem:[%s1 + $0x15c] sm:$0xf]
      %v866 = vld [vmem:[%s1 + $0x160] sm:$0xf]
      %v867 = vld [vmem:[%s1 + $0x164] sm:$0xf]
      %v868 = vld [vmem:[%s1 + $0x168] sm:$0xf]
      %v869 = vld [vmem:[%s1 + $0x16c] sm:$0xf]
      %v870 = vld [vmem:[%s1 + $0x170] sm:$0xf]
      %v871 = vld [vmem:[%s1 + $0x174] sm:$0xf]
      %v872 = vld [vmem:[%s1 + $0x178] sm:$0xf]
      %v873 = vld [vmem:[%s1 + $0x17c] sm:$0xf]
      %v874 = vpack.c.bf16 %v772, %v766
      %v875 = vpack.c.bf16 %v773, %v767
      %v876 = vpack.c.bf16 %v774, %v768
      %v877 = vpack.c.bf16 %v775, %v769
      %v878 = vpack.c.bf16 %v776, %v770
      %v879 = vpack.c.bf16 %v777, %v771
      %v880 = vld [vmem:[%s2] sm:$0x1]
      %v882 = vlaneseq
      %v883 = vshrl.u32 %v882, 7
      %v884 = vsub.s32 0, %v883
      %v885 = vrot.slane %v880, %v884
      %v983 = vunpack.c.l.b16 %v778
      %v984 = vunpack.c.l.b16 %v779
      %v985 = vunpack.c.l.b16 %v780
      %v986 = vunpack.c.l.b16 %v781
      %v987 = vunpack.c.l.b16 %v782
      %v988 = vunpack.c.l.b16 %v783
      %v989 = vunpack.c.l.b16 %v784
      %v990 = vunpack.c.l.b16 %v785
      %v991 = vunpack.c.l.b16 %v786
      %v992 = vunpack.c.l.b16 %v787
      %v993 = vunpack.c.l.b16 %v788
      %v994 = vunpack.c.l.b16 %v789
      %v995 = vunpack.c.l.b16 %v790
      %v996 = vunpack.c.l.b16 %v791
      %v997 = vunpack.c.l.b16 %v792
      %v998 = vunpack.c.l.b16 %v793
      %v999 = vunpack.c.l.b16 %v794
      %v1000 = vunpack.c.l.b16 %v795
      %v1001 = vunpack.c.l.b16 %v796
      %v1002 = vunpack.c.l.b16 %v797
      %v1003 = vunpack.c.l.b16 %v798
      %v1004 = vunpack.c.l.b16 %v799
      %v1005 = vunpack.c.l.b16 %v800
      %v1006 = vunpack.c.l.b16 %v801
      %v1007 = vunpack.c.l.b16 %v802
      %v1008 = vunpack.c.l.b16 %v803
      %v1009 = vunpack.c.l.b16 %v804
      %v1010 = vunpack.c.l.b16 %v805
      %v1011 = vunpack.c.l.b16 %v806
      %v1012 = vunpack.c.l.b16 %v807
      %v1013 = vunpack.c.l.b16 %v808
      %v1014 = vunpack.c.l.b16 %v809
      %v1015 = vunpack.c.l.b16 %v810
      %v1016 = vunpack.c.l.b16 %v811
      %v1017 = vunpack.c.l.b16 %v812
      %v1018 = vunpack.c.l.b16 %v813
      %v1019 = vunpack.c.l.b16 %v814
      %v1020 = vunpack.c.l.b16 %v815
      %v1021 = vunpack.c.l.b16 %v816
      %v1022 = vunpack.c.l.b16 %v817
      %v1023 = vunpack.c.l.b16 %v818
      %v1024 = vunpack.c.l.b16 %v819
      %v1025 = vunpack.c.l.b16 %v820
      %v1026 = vunpack.c.l.b16 %v821
      %v1027 = vunpack.c.l.b16 %v822
      %v1028 = vunpack.c.l.b16 %v823
      %v1029 = vunpack.c.l.b16 %v824
      %v1030 = vunpack.c.l.b16 %v825
      %v1031 = vunpack.c.l.b16 %v826
      %v1032 = vunpack.c.l.b16 %v827
      %v1033 = vunpack.c.l.b16 %v828
      %v1034 = vunpack.c.l.b16 %v829
      %v1035 = vunpack.c.l.b16 %v830
      %v1036 = vunpack.c.l.b16 %v831
      %v1037 = vunpack.c.l.b16 %v832
      %v1038 = vunpack.c.l.b16 %v833
      %v1039 = vunpack.c.l.b16 %v834
      %v1040 = vunpack.c.l.b16 %v835
      %v1041 = vunpack.c.l.b16 %v836
      %v1042 = vunpack.c.l.b16 %v837
      %v1043 = vunpack.c.l.b16 %v838
      %v1044 = vunpack.c.l.b16 %v839
      %v1045 = vunpack.c.l.b16 %v840
      %v1046 = vunpack.c.l.b16 %v841
      %v1047 = vunpack.c.l.b16 %v842
      %v1048 = vunpack.c.l.b16 %v843
      %v1049 = vunpack.c.l.b16 %v844
      %v1050 = vunpack.c.l.b16 %v845
      %v1051 = vunpack.c.l.b16 %v846
      %v1052 = vunpack.c.l.b16 %v847
      %v1053 = vunpack.c.l.b16 %v848
      %v1054 = vunpack.c.l.b16 %v849
      %v1055 = vunpack.c.l.b16 %v850
      %v1056 = vunpack.c.l.b16 %v851
      %v1057 = vunpack.c.l.b16 %v852
      %v1058 = vunpack.c.l.b16 %v853
      %v1059 = vunpack.c.l.b16 %v854
      %v1060 = vunpack.c.l.b16 %v855
      %v1061 = vunpack.c.l.b16 %v856
      %v1062 = vunpack.c.l.b16 %v857
      %v1063 = vunpack.c.l.b16 %v858
      %v1064 = vunpack.c.l.b16 %v859
      %v1065 = vunpack.c.l.b16 %v860
      %v1066 = vunpack.c.l.b16 %v861
      %v1067 = vunpack.c.l.b16 %v862
      %v1068 = vunpack.c.l.b16 %v863
      %v1069 = vunpack.c.l.b16 %v864
      %v1070 = vunpack.c.l.b16 %v865
      %v1071 = vunpack.c.l.b16 %v866
      %v1072 = vunpack.c.l.b16 %v867
      %v1073 = vunpack.c.l.b16 %v868
      %v1074 = vunpack.c.l.b16 %v869
      %v1075 = vunpack.c.l.b16 %v870
      %v1076 = vunpack.c.l.b16 %v871
      %v1077 = vunpack.c.l.b16 %v872
      %v1078 = vunpack.c.l.b16 %v873
      %v1079 = vpack.c.b16 %v984, %v983
      %v1080 = vpack.c.b16 %v986, %v985
      %v1081 = vpack.c.b16 %v988, %v987
      %v1082 = vpack.c.b16 %v990, %v989
      %v1083 = vpack.c.b16 %v992, %v991
      %v1084 = vpack.c.b16 %v994, %v993
      %v1085 = vpack.c.b16 %v996, %v995
      %v1086 = vpack.c.b16 %v998, %v997
      %v1087 = vpack.c.b16 %v1000, %v999
      %v1088 = vpack.c.b16 %v1002, %v1001
      %v1089 = vpack.c.b16 %v1004, %v1003
      %v1090 = vpack.c.b16 %v1006, %v1005
      %v1091 = vpack.c.b16 %v1008, %v1007
      %v1092 = vpack.c.b16 %v1010, %v1009
      %v1093 = vpack.c.b16 %v1012, %v1011
      %v1094 = vpack.c.b16 %v1014, %v1013
      %v1095 = vpack.c.b16 %v1016, %v1015
      %v1096 = vpack.c.b16 %v1018, %v1017
      %v1097 = vpack.c.b16 %v1020, %v1019
      %v1098 = vpack.c.b16 %v1022, %v1021
      %v1099 = vpack.c.b16 %v1024, %v1023
      %v1100 = vpack.c.b16 %v1026, %v1025
      %v1101 = vpack.c.b16 %v1028, %v1027
      %v1102 = vpack.c.b16 %v1030, %v1029
      %v1103 = vpack.c.b16 %v1032, %v1031
      %v1104 = vpack.c.b16 %v1034, %v1033
      %v1105 = vpack.c.b16 %v1036, %v1035
      %v1106 = vpack.c.b16 %v1038, %v1037
      %v1107 = vpack.c.b16 %v1040, %v1039
      %v1108 = vpack.c.b16 %v1042, %v1041
      %v1109 = vpack.c.b16 %v1044, %v1043
      %v1110 = vpack.c.b16 %v1046, %v1045
      %v1111 = vpack.c.b16 %v1048, %v1047
      %v1112 = vpack.c.b16 %v1050, %v1049
      %v1113 = vpack.c.b16 %v1052, %v1051
      %v1114 = vpack.c.b16 %v1054, %v1053
      %v1115 = vpack.c.b16 %v1056, %v1055
      %v1116 = vpack.c.b16 %v1058, %v1057
      %v1117 = vpack.c.b16 %v1060, %v1059
      %v1118 = vpack.c.b16 %v1062, %v1061
      %v1119 = vpack.c.b16 %v1064, %v1063
      %v1120 = vpack.c.b16 %v1066, %v1065
      %v1121 = vpack.c.b16 %v1068, %v1067
      %v1122 = vpack.c.b16 %v1070, %v1069
      %v1123 = vpack.c.b16 %v1072, %v1071
      %v1124 = vpack.c.b16 %v1074, %v1073
      %v1125 = vpack.c.b16 %v1076, %v1075
      %v1126 = vpack.c.b16 %v1078, %v1077
      %1175 = vmatprep.subr.bf16.mxu0 0
      %1176 = vmatpush1.bf16.msra.mxu0 %v1079
      %1177 = vmatprep.subr.bf16.mxu0 0
      %1178 = vmatpush1.bf16.msra.mxu0 %v1080
      %1179 = vmatprep.subr.bf16.mxu0 0
      %1180 = vmatpush1.bf16.msra.mxu0 %v1081
      %1181 = vmatprep.subr.bf16.mxu0 0
      %1182 = vmatpush1.bf16.msra.mxu0 %v1082
      %1183 = vmatprep.subr.bf16.mxu0 0
      %1184 = vmatpush1.bf16.msra.mxu0 %v1083
      %1185 = vmatprep.subr.bf16.mxu0 0
      %1186 = vmatpush1.bf16.msra.mxu0 %v1084
      %1187 = vmatprep.subr.bf16.mxu0 0
      %1188 = vmatpush1.bf16.msra.mxu0 %v1085
      %1189 = vmatprep.subr.bf16.mxu0 0
      %1190 = vmatpush1.bf16.msra.mxu0 %v1086
      %1191 = vmatprep.subr.bf16.mxu0 0
      %1192 = vmatpush1.bf16.msra.mxu0 %v1087
      %1193 = vmatprep.subr.bf16.mxu0 0
      %1194 = vmatpush1.bf16.msra.mxu0 %v1088
      %1195 = vmatprep.subr.bf16.mxu0 0
      %1196 = vmatpush1.bf16.msra.mxu0 %v1089
      %1197 = vmatprep.subr.bf16.mxu0 0
      %1198 = vmatpush1.bf16.msra.mxu0 %v1090
      %1199 = vmatprep.subr.bf16.mxu0 0
      %1200 = vmatpush1.bf16.msra.mxu0 %v1091
      %1201 = vmatprep.subr.bf16.mxu0 0
      %1202 = vmatpush1.bf16.msra.mxu0 %v1092
      %1203 = vmatprep.subr.bf16.mxu0 0
      %1204 = vmatpush1.bf16.msra.mxu0 %v1093
      %1205 = vmatprep.subr.bf16.mxu0 0
      %1206 = vmatpush1.bf16.msra.mxu0 %v1094
      %1207 = vmatprep.mubr.bf16.mxu0 %v875
      %1208 = vmatmul.mubr.bf16.gmra.mrb[0].mxu0 %v874
      %v1209 = vpop.f32.mrb[0].mxu0
      %v1210 = vadd.f32 %v885, %v1209
      %v1211 = vpop.f32.mrb[0].mxu0
      %v1212 = vpop.f32.mrb[0].mxu0
      %v1213 = vadd.f32 %v885, %v1212
      %v1214 = vpop.f32.mrb[0].mxu0
      %1215 = vdwg.mxu0
      %1216 = vmatprep.subr.bf16.mxu0 0
      %1217 = vmatpush1.bf16.msra.mxu0 %v1095
      %1218 = vmatprep.subr.bf16.mxu0 0
      %1219 = vmatpush1.bf16.msra.mxu0 %v1096
      %1220 = vmatprep.subr.bf16.mxu0 0
      %1221 = vmatpush1.bf16.msra.mxu0 %v1097
      %1222 = vmatprep.subr.bf16.mxu0 0
      %1223 = vmatpush1.bf16.msra.mxu0 %v1098
      %1224 = vmatprep.subr.bf16.mxu0 0
      %1225 = vmatpush1.bf16.msra.mxu0 %v1099
      %1226 = vmatprep.subr.bf16.mxu0 0
      %1227 = vmatpush1.bf16.msra.mxu0 %v1100
      %1228 = vmatprep.subr.bf16.mxu0 0
      %1229 = vmatpush1.bf16.msra.mxu0 %v1101
      %1230 = vmatprep.subr.bf16.mxu0 0
      %1231 = vmatpush1.bf16.msra.mxu0 %v1102
      %1232 = vmatprep.subr.bf16.mxu0 0
      %1233 = vmatpush1.bf16.msra.mxu0 %v1103
      %1234 = vmatprep.subr.bf16.mxu0 0
      %1235 = vmatpush1.bf16.msra.mxu0 %v1104
      %1236 = vmatprep.subr.bf16.mxu0 0
      %1237 = vmatpush1.bf16.msra.mxu0 %v1105
      %1238 = vmatprep.subr.bf16.mxu0 0
      %1239 = vmatpush1.bf16.msra.mxu0 %v1106
      %1240 = vmatprep.subr.bf16.mxu0 0
      %1241 = vmatpush1.bf16.msra.mxu0 %v1107
      %1242 = vmatprep.subr.bf16.mxu0 0
      %1243 = vmatpush1.bf16.msra.mxu0 %v1108
      %1244 = vmatprep.subr.bf16.mxu0 0
      %1245 = vmatpush1.bf16.msra.mxu0 %v1109
      %1246 = vmatprep.subr.bf16.mxu0 0
      %1247 = vmatpush1.bf16.msra.mxu0 %v1110
      %1248 = vmatprep.mubr.bf16.mxu0 %v877
      %1249 = vmatmul.mubr.bf16.gmra.mrb[0].mxu0 %v876
      %v1250 = vpop.f32.mrb[0].mxu0
      %v1251 = vadd.f32 %v1210, %v1250
      %v1252 = vpop.f32.mrb[0].mxu0
      %v1253 = vpop.f32.mrb[0].mxu0
      %v1254 = vadd.f32 %v1213, %v1253
      %v1255 = vpop.f32.mrb[0].mxu0
      %1256 = vdwg.mxu0
      %1257 = vmatprep.subr.bf16.mxu0 0
      %1258 = vmatpush1.bf16.msra.mxu0 %v1111
      %1259 = vmatprep.subr.bf16.mxu0 0
      %1260 = vmatpush1.bf16.msra.mxu0 %v1112
      %1261 = vmatprep.subr.bf16.mxu0 0
      %1262 = vmatpush1.bf16.msra.mxu0 %v1113
      %1263 = vmatprep.subr.bf16.mxu0 0
      %1264 = vmatpush1.bf16.msra.mxu0 %v1114
      %1265 = vmatprep.subr.bf16.mxu0 0
      %1266 = vmatpush1.bf16.msra.mxu0 %v1115
      %1267 = vmatprep.subr.bf16.mxu0 0
      %1268 = vmatpush1.bf16.msra.mxu0 %v1116
      %1269 = vmatprep.subr.bf16.mxu0 0
      %1270 = vmatpush1.bf16.msra.mxu0 %v1117
      %1271 = vmatprep.subr.bf16.mxu0 0
      %1272 = vmatpush1.bf16.msra.mxu0 %v1118
      %1273 = vmatprep.subr.bf16.mxu0 0
      %1274 = vmatpush1.bf16.msra.mxu0 %v1119
      %1275 = vmatprep.subr.bf16.mxu0 0
      %1276 = vmatpush1.bf16.msra.mxu0 %v1120
      %1277 = vmatprep.subr.bf16.mxu0 0
      %1278 = vmatpush1.bf16.msra.mxu0 %v1121
      %1279 = vmatprep.subr.bf16.mxu0 0
      %1280 = vmatpush1.bf16.msra.mxu0 %v1122
      %1281 = vmatprep.subr.bf16.mxu0 0
      %1282 = vmatpush1.bf16.msra.mxu0 %v1123
      %1283 = vmatprep.subr.bf16.mxu0 0
      %1284 = vmatpush1.bf16.msra.mxu0 %v1124
      %1285 = vmatprep.subr.bf16.mxu0 0
      %1286 = vmatpush1.bf16.msra.mxu0 %v1125
      %1287 = vmatprep.subr.bf16.mxu0 0
      %1288 = vmatpush1.bf16.msra.mxu0 %v1126
      %1289 = vmatprep.mubr.bf16.mxu0 %v879
      %1290 = vmatmul.mubr.bf16.gmra.mrb[0].mxu0 %v878
      %v1291 = vpop.f32.mrb[0].mxu0
      %v1292 = vadd.f32 %v1251, %v1291
      %v1293 = vpop.f32.mrb[0].mxu0
      %v1294 = vpop.f32.mrb[0].mxu0
      %v1295 = vadd.f32 %v1254, %v1294
      %v1296 = vpop.f32.mrb[0].mxu0
      %1297 = vdwg.mxu0
      %v1298 = vld [vmem:[%s3] sm:$0xff]
      %v1299 = vld [vmem:[%s3 + $0x8] sm:$0xff]
      %v1300 = vadd.f32 %v1292, %v1298
      %v1301 = vadd.f32 %v1295, %v1299
      %v1302 = vld [vmem:[%s4] sm:$0x1]
      %v1303 = vld [vmem:[%s5] sm:$0x1]
      %vm1304 = vcmask 261120
      %v1305 = vsel %vm1304, %v1300, 0.0
      %1306 = vadd.xlane.f32.xlu0 %v1305
      %v1307 = vpop.xlane.xlu0 %1306
      %v1308 = vsel %vm1304, %v1301, 0.0
      %1309 = vadd.xlane.f32.xlu0 %v1308
      %v1310 = vpop.xlane.xlu0 %1309
      %v1311 = vrcp.pop 32.0
      %v1312 = vmul.f32 %v1307, %v1311
      %v1313 = vmul.f32 %v1310, %v1311
      %v1314 = vsub.f32 %v1300, %v1312
      %v1315 = vsub.f32 %v1301, %v1313
      %v1316 = vmul.f32 %v1314, %v1314
      %v1317 = vmul.f32 %v1315, %v1315
      %v1318 = vsel %vm1304, %v1316, 0.0
      %1319 = vadd.xlane.f32.xlu0 %v1318
      %v1320 = vpop.xlane.xlu0 %1319
      %v1321 = vsel %vm1304, %v1317, 0.0
      %1322 = vadd.xlane.f32.xlu0 %v1321
      %v1323 = vpop.xlane.xlu0 %1322
      %v1324 = vmul.f32 %v1320, %v1311
      %v1325 = vmul.f32 %v1323, %v1311
      %v1326 = vadd.f32 %v1324, 1e-06
      %v1327 = vadd.f32 %v1325, 1e-06
      %v1328 = vrsqrt.pop %v1326
      %v1329 = vrsqrt.pop %v1327
      %v1330 = vmul.f32 %v1314, %v1328
      %v1331 = vmul.f32 %v1315, %v1329
      %v1333 = vlaneseq
      %v1334 = vshrl.u32 %v1333, 7
      %v1335 = vsub.s32 0, %v1334
      %v1336 = vrot.slane %v1302, %v1335
      %v1338 = vmul.f32 %v1330, %v1336
      %v1339 = vmul.f32 %v1331, %v1336
      %v1341 = vlaneseq
      %v1342 = vshrl.u32 %v1341, 7
      %v1343 = vsub.s32 0, %v1342
      %v1344 = vrot.slane %v1303, %v1343
      %v1346 = vadd.f32 %v1338, %v1344
      %v1347 = vadd.f32 %v1339, %v1344
      %v1348 = vld [vmem:[%s6] sm:$0xf]
      %v1349 = vld [vmem:[%s6 + $0x4] sm:$0xf]
      %v1350 = vld [vmem:[%s6 + $0x8] sm:$0xf]
      %v1351 = vld [vmem:[%s6 + $0xc] sm:$0xf]
      %v1352 = vpack.c.bf16 %v1347, %v1346
      %v1353 = vld [vmem:[%s7] sm:$0x1]
      %v1355 = vlaneseq
      %v1356 = vshrl.u32 %v1355, 7
      %v1357 = vsub.s32 0, %v1356
      %v1358 = vrot.slane %v1353, %v1357
      %v1364 = vunpack.c.l.b16 %v1348
      %v1365 = vunpack.c.l.b16 %v1349
      %v1366 = vunpack.c.l.b16 %v1350
      %v1367 = vunpack.c.l.b16 %v1351
      %v1368 = vpack.c.b16 %v1365, %v1364
      %v1369 = vpack.c.b16 %v1367, %v1366
      %v1373 = vsel %vm1304, %v1352, 0
      %1375 = vmatprep.subr.bf16.mxu0 0
      %1376 = vmatpush1.bf16.msra.mxu0 %v1368
      %1377 = vmatprep.subr.bf16.mxu0 0
      %1378 = vmatpush1.bf16.msra.mxu0 %v1369
      %1379 = vmatprep.subr.bf16.mxu0 0
      %1380 = vmatpush1.bf16.msra.mxu0 0
      %1381 = vmatprep.subr.bf16.mxu0 0
      %1382 = vmatpush1.bf16.msra.mxu0 0
      %1383 = vmatprep.subr.bf16.mxu0 0
      %1384 = vmatpush1.bf16.msra.mxu0 0
      %1385 = vmatprep.subr.bf16.mxu0 0
      %1386 = vmatpush1.bf16.msra.mxu0 0
      %1387 = vmatprep.subr.bf16.mxu0 0
      %1388 = vmatpush1.bf16.msra.mxu0 0
      %1389 = vmatprep.subr.bf16.mxu0 0
      %1390 = vmatpush1.bf16.msra.mxu0 0
      %1391 = vmatprep.subr.bf16.mxu0 0
      %1392 = vmatpush1.bf16.msra.mxu0 0
      %1393 = vmatprep.subr.bf16.mxu0 0
      %1394 = vmatpush1.bf16.msra.mxu0 0
      %1395 = vmatprep.subr.bf16.mxu0 0
      %1396 = vmatpush1.bf16.msra.mxu0 0
      %1397 = vmatprep.subr.bf16.mxu0 0
      %1398 = vmatpush1.bf16.msra.mxu0 0
      %1399 = vmatprep.subr.bf16.mxu0 0
      %1400 = vmatpush1.bf16.msra.mxu0 0
      %1401 = vmatprep.subr.bf16.mxu0 0
      %1402 = vmatpush1.bf16.msra.mxu0 0
      %1403 = vmatprep.subr.bf16.mxu0 0
      %1404 = vmatpush1.bf16.msra.mxu0 0
      %1405 = vmatprep.subr.bf16.mxu0 0
      %1406 = vmatpush1.bf16.msra.mxu0 0
      %1407 = vmatprep.mubr.bf16.mxu0 0
      %1408 = vmatmul.mubr.bf16.gmra.mrb[0].mxu0 %v1373
      %v1409 = vpop.f32.mrb[0].mxu0
      %v1410 = vadd.f32 %v1358, %v1409
      %v1411 = vpop.f32.mrb[0].mxu0
      %v1412 = vpop.f32.mrb[0].mxu0
      %v1413 = vadd.f32 %v1358, %v1412
      %v1414 = vpop.f32.mrb[0].mxu0
      %1415 = vdwg.mxu0
      %v1416 = vmul.f32 %v1410, 0.25
      %v1417 = vmul.f32 %v1413, 0.25
      %v1418 = vpack.c.bf16 %v1417, %v1416
      %v1419 = vpack.c.bf16 %v1413, %v1410
      %1421 = vrot.lane.b32.xlu0 %v1419, 96
      %v1422 = vpop.permute.xlu0 %1421
      %vm1423 = vcmask 130048
      %v1425 = vsel %vm1423, %v1418, 0
      %v1428 = vsel %vm1423, %v1422, 0
      %1430 = vmatprep.subr.bf16.mxu0 0
      %1431 = vmatpush1.bf16.xpose.msra.mxu0 %v1428
      %1432 = vmatprep.subr.bf16.mxu0 0
      %1433 = vmatpush1.bf16.xpose.msra.mxu0 0
      %1434 = vmatprep.subr.bf16.mxu0 0
      %1435 = vmatpush1.bf16.xpose.msra.mxu0 0
      %1436 = vmatprep.subr.bf16.mxu0 0
      %1437 = vmatpush1.bf16.xpose.msra.mxu0 0
      %1438 = vmatprep.subr.bf16.mxu0 0
      %1439 = vmatpush1.bf16.xpose.msra.mxu0 0
      %1440 = vmatprep.subr.bf16.mxu0 0
      %1441 = vmatpush1.bf16.xpose.msra.mxu0 0
      %1442 = vmatprep.subr.bf16.mxu0 0
      %1443 = vmatpush1.bf16.xpose.msra.mxu0 0
      %1444 = vmatprep.subr.bf16.mxu0 0
      %1445 = vmatpush1.bf16.xpose.msra.mxu0 0
      %1446 = vmatprep.subr.bf16.mxu0 0
      %1447 = vmatpush1.bf16.xpose.msra.mxu0 0
      %1448 = vmatprep.subr.bf16.mxu0 0
      %1449 = vmatpush1.bf16.xpose.msra.mxu0 0
      %1450 = vmatprep.subr.bf16.mxu0 0
      %1451 = vmatpush1.bf16.xpose.msra.mxu0 0
      %1452 = vmatprep.subr.bf16.mxu0 0
      %1453 = vmatpush1.bf16.xpose.msra.mxu0 0
      %1454 = vmatprep.subr.bf16.mxu0 0
      %1455 = vmatpush1.bf16.xpose.msra.mxu0 0
      %1456 = vmatprep.subr.bf16.mxu0 0
      %1457 = vmatpush1.bf16.xpose.msra.mxu0 0
      %1458 = vmatprep.subr.bf16.mxu0 0
      %1459 = vmatpush1.bf16.xpose.msra.mxu0 0
      %1460 = vmatprep.subr.bf16.mxu0 0
      %1461 = vmatpush1.bf16.xpose.msra.mxu0 0
      %1462 = vmatprep.mubr.bf16.mxu0 0
      %1463 = vmatmul.mubr.bf16.gmra.mrb[0].mxu0 %v1425
      %v1464 = vpop.f32.mrb[0].mxu0
      %v1465 = vadd.f32 0.0, %v1464
      %v1466 = vpop.f32.mrb[0].mxu0
      %v1467 = vpop.f32.mrb[0].mxu0
      %v1468 = vadd.f32 0.0, %v1467
      %v1469 = vpop.f32.mrb[0].mxu0
      %1470 = vdwg.mxu0
      %v1471 = vsel %vm1423, %v1465, -inf
      %1472 = vmax.xlane.f32.xlu0 %v1471
      %v1473 = vpop.xlane.xlu0 %1472
      %v1474 = vsel %vm1423, %v1468, -inf
      %1475 = vmax.xlane.f32.xlu0 %v1474
      %v1476 = vpop.xlane.xlu0 %1475
      %v1477 = vsub.f32 %v1465, %v1473
      %v1478 = vsub.f32 %v1468, %v1476
      %v1479 = vmul.f32 %v1477, 1.442695
      %v1480 = vpow.pop %v1479
      %v1481 = vmul.f32 %v1478, 1.442695
      %v1482 = vpow.pop %v1481
      %v1483 = vsel %vm1423, %v1480, 0.0
      %1484 = vadd.xlane.f32.xlu0 %v1483
      %v1485 = vpop.xlane.xlu0 %1484
      %v1486 = vsel %vm1423, %v1482, 0.0
      %1487 = vadd.xlane.f32.xlu0 %v1486
      %v1488 = vpop.xlane.xlu0 %1487
      %v1489 = vrcp.pop %v1485
      %v1490 = vrcp.pop %v1488
      %v1491 = vmul.f32 %v1480, %v1489
      %v1492 = vmul.f32 %v1482, %v1490
      %v1493 = vpack.c.bf16 %v1492, %v1491
      %1494 = vrot.lane.b32.xlu0 %v1419, 64
      %v1495 = vpop.permute.xlu0 %1494
      %v1498 = vsel %vm1423, %v1493, 0
      %1500 = vmatprep.subr.bf16.mxu0 0
      %1501 = vmatpush1.bf16.msra.mxu0 %v1495
      %1502 = vmatprep.subr.bf16.mxu0 0
      %1503 = vmatpush1.bf16.msra.mxu0 0
      %1504 = vmatprep.subr.bf16.mxu0 0
      %1505 = vmatpush1.bf16.msra.mxu0 0
      %1506 = vmatprep.subr.bf16.mxu0 0
      %1507 = vmatpush1.bf16.msra.mxu0 0
      %1508 = vmatprep.subr.bf16.mxu0 0
      %1509 = vmatpush1.bf16.msra.mxu0 0
      %1510 = vmatprep.subr.bf16.mxu0 0
      %1511 = vmatpush1.bf16.msra.mxu0 0
      %1512 = vmatprep.subr.bf16.mxu0 0
      %1513 = vmatpush1.bf16.msra.mxu0 0
      %1514 = vmatprep.subr.bf16.mxu0 0
      %1515 = vmatpush1.bf16.msra.mxu0 0
      %1516 = vmatprep.subr.bf16.mxu0 0
      %1517 = vmatpush1.bf16.msra.mxu0 0
      %1518 = vmatprep.subr.bf16.mxu0 0
      %1519 = vmatpush1.bf16.msra.mxu0 0
      %1520 = vmatprep.subr.bf16.mxu0 0
      %1521 = vmatpush1.bf16.msra.mxu0 0
      %1522 = vmatprep.subr.bf16.mxu0 0
      %1523 = vmatpush1.bf16.msra.mxu0 0
      %1524 = vmatprep.subr.bf16.mxu0 0
      %1525 = vmatpush1.bf16.msra.mxu0 0
      %1526 = vmatprep.subr.bf16.mxu0 0
      %1527 = vmatpush1.bf16.msra.mxu0 0
      %1528 = vmatprep.subr.bf16.mxu0 0
      %1529 = vmatpush1.bf16.msra.mxu0 0
      %1530 = vmatprep.subr.bf16.mxu0 0
      %1531 = vmatpush1.bf16.msra.mxu0 0
      %1532 = vmatprep.mubr.bf16.mxu0 0
      %1533 = vmatmul.mubr.bf16.gmra.mrb[0].mxu0 %v1498
      %v1534 = vpop.f32.mrb[0].mxu0
      %v1535 = vadd.f32 0.0, %v1534
      %v1536 = vpop.f32.mrb[0].mxu0
      %v1537 = vpop.f32.mrb[0].mxu0
      %v1538 = vadd.f32 0.0, %v1537
      %v1539 = vpop.f32.mrb[0].mxu0
      %1540 = vdwg.mxu0
      %1542 = vrot.lane.b32.xlu0 %v1418, 112
      %v1543 = vpop.permute.xlu0 %1542
      %1544 = vrot.lane.b32.xlu0 %v1419, 80
      %v1545 = vpop.permute.xlu0 %1544
      %v1547 = vsel %vm1423, %v1543, 0
      %v1550 = vsel %vm1423, %v1545, 0
      %1552 = vmatprep.subr.bf16.mxu0 0
      %1553 = vmatpush1.bf16.xpose.msra.mxu0 %v1550
      %1554 = vmatprep.subr.bf16.mxu0 0
      %1555 = vmatpush1.bf16.xpose.msra.mxu0 0
      %1556 = vmatprep.subr.bf16.mxu0 0
      %1557 = vmatpush1.bf16.xpose.msra.mxu0 0
      %1558 = vmatprep.subr.bf16.mxu0 0
      %1559 = vmatpush1.bf16.xpose.msra.mxu0 0
      %1560 = vmatprep.subr.bf16.mxu0 0
      %1561 = vmatpush1.bf16.xpose.msra.mxu0 0
      %1562 = vmatprep.subr.bf16.mxu0 0
      %1563 = vmatpush1.bf16.xpose.msra.mxu0 0
      %1564 = vmatprep.subr.bf16.mxu0 0
      %1565 = vmatpush1.bf16.xpose.msra.mxu0 0
      %1566 = vmatprep.subr.bf16.mxu0 0
      %1567 = vmatpush1.bf16.xpose.msra.mxu0 0
      %1568 = vmatprep.subr.bf16.mxu0 0
      %1569 = vmatpush1.bf16.xpose.msra.mxu0 0
      %1570 = vmatprep.subr.bf16.mxu0 0
      %1571 = vmatpush1.bf16.xpose.msra.mxu0 0
      %1572 = vmatprep.subr.bf16.mxu0 0
      %1573 = vmatpush1.bf16.xpose.msra.mxu0 0
      %1574 = vmatprep.subr.bf16.mxu0 0
      %1575 = vmatpush1.bf16.xpose.msra.mxu0 0
      %1576 = vmatprep.subr.bf16.mxu0 0
      %1577 = vmatpush1.bf16.xpose.msra.mxu0 0
      %1578 = vmatprep.subr.bf16.mxu0 0
      %1579 = vmatpush1.bf16.xpose.msra.mxu0 0
      %1580 = vmatprep.subr.bf16.mxu0 0
      %1581 = vmatpush1.bf16.xpose.msra.mxu0 0
      %1582 = vmatprep.subr.bf16.mxu0 0
      %1583 = vmatpush1.bf16.xpose.msra.mxu0 0
      %1584 = vmatprep.mubr.bf16.mxu0 0
      %1585 = vmatmul.mubr.bf16.gmra.mrb[0].mxu0 %v1547
      %v1586 = vpop.f32.mrb[0].mxu0
      %v1587 = vadd.f32 0.0, %v1586
      %v1588 = vpop.f32.mrb[0].mxu0
      %v1589 = vpop.f32.mrb[0].mxu0
      %v1590 = vadd.f32 0.0, %v1589
      %v1591 = vpop.f32.mrb[0].mxu0
      %1592 = vdwg.mxu0
      %v1593 = vsel %vm1423, %v1587, -inf
      %1594 = vmax.xlane.f32.xlu0 %v1593
      %v1595 = vpop.xlane.xlu0 %1594
      %v1596 = vsel %vm1423, %v1590, -inf
      %1597 = vmax.xlane.f32.xlu0 %v1596
      %v1598 = vpop.xlane.xlu0 %1597
      %v1599 = vsub.f32 %v1587, %v1595
      %v1600 = vsub.f32 %v1590, %v1598
      %v1601 = vmul.f32 %v1599, 1.442695
      %v1602 = vpow.pop %v1601
      %v1603 = vmul.f32 %v1600, 1.442695
      %v1604 = vpow.pop %v1603
      %v1605 = vsel %vm1423, %v1602, 0.0
      %1606 = vadd.xlane.f32.xlu0 %v1605
      %v1607 = vpop.xlane.xlu0 %1606
      %v1608 = vsel %vm1423, %v1604, 0.0
      %1609 = vadd.xlane.f32.xlu0 %v1608
      %v1610 = vpop.xlane.xlu0 %1609
      %v1611 = vrcp.pop %v1607
      %v1612 = vrcp.pop %v1610
      %v1613 = vmul.f32 %v1602, %v1611
      %v1614 = vmul.f32 %v1604, %v1612
      %v1615 = vpack.c.bf16 %v1614, %v1613
      %1616 = vrot.lane.b32.xlu0 %v1419, 48
      %v1617 = vpop.permute.xlu0 %1616
      %v1620 = vsel %vm1423, %v1615, 0
      %1622 = vmatprep.subr.bf16.mxu0 0
      %1623 = vmatpush1.bf16.msra.mxu0 %v1617
      %1624 = vmatprep.subr.bf16.mxu0 0
      %1625 = vmatpush1.bf16.msra.mxu0 0
      %1626 = vmatprep.subr.bf16.mxu0 0
      %1627 = vmatpush1.bf16.msra.mxu0 0
      %1628 = vmatprep.subr.bf16.mxu0 0
      %1629 = vmatpush1.bf16.msra.mxu0 0
      %1630 = vmatprep.subr.bf16.mxu0 0
      %1631 = vmatpush1.bf16.msra.mxu0 0
      %1632 = vmatprep.subr.bf16.mxu0 0
      %1633 = vmatpush1.bf16.msra.mxu0 0
      %1634 = vmatprep.subr.bf16.mxu0 0
      %1635 = vmatpush1.bf16.msra.mxu0 0
      %1636 = vmatprep.subr.bf16.mxu0 0
      %1637 = vmatpush1.bf16.msra.mxu0 0
      %1638 = vmatprep.subr.bf16.mxu0 0
      %1639 = vmatpush1.bf16.msra.mxu0 0
      %1640 = vmatprep.subr.bf16.mxu0 0
      %1641 = vmatpush1.bf16.msra.mxu0 0
      %1642 = vmatprep.subr.bf16.mxu0 0
      %1643 = vmatpush1.bf16.msra.mxu0 0
      %1644 = vmatprep.subr.bf16.mxu0 0
      %1645 = vmatpush1.bf16.msra.mxu0 0
      %1646 = vmatprep.subr.bf16.mxu0 0
      %1647 = vmatpush1.bf16.msra.mxu0 0
      %1648 = vmatprep.subr.bf16.mxu0 0
      %1649 = vmatpush1.bf16.msra.mxu0 0
      %1650 = vmatprep.subr.bf16.mxu0 0
      %1651 = vmatpush1.bf16.msra.mxu0 0
      %1652 = vmatprep.subr.bf16.mxu0 0
      %1653 = vmatpush1.bf16.msra.mxu0 0
      %1654 = vmatprep.mubr.bf16.mxu0 0
      %1655 = vmatmul.mubr.bf16.gmra.mrb[0].mxu0 %v1620
      %v1656 = vpop.f32.mrb[0].mxu0
      %v1657 = vadd.f32 0.0, %v1656
      %v1658 = vpop.f32.mrb[0].mxu0
      %v1659 = vpop.f32.mrb[0].mxu0
      %v1660 = vadd.f32 0.0, %v1659
      %v1661 = vpop.f32.mrb[0].mxu0
      %1662 = vdwg.mxu0
      %1665 = vrot.lane.b32.xlu0 %v1657, 16
      %v1666 = vpop.permute.xlu0 %1665
      %1667 = vrot.lane.b32.xlu0 %v1660, 16
      %v1668 = vpop.permute.xlu0 %1667
      %v1671 = vsel %vm1423, %v1535, %v1666
      %v1672 = vsel %vm1423, %v1538, %v1668
      %v1673 = vld [vmem:[%s8] sm:$0xf]
      %v1674 = vld [vmem:[%s8 + $0x4] sm:$0xf]
      %v1675 = vld [vmem:[%s8 + $0x8] sm:$0xf]
      %v1676 = vld [vmem:[%s8 + $0xc] sm:$0xf]
      %v1677 = vpack.c.bf16 %v1672, %v1671
      %v1682 = vunpack.c.l.b16 %v1673
      %v1683 = vunpack.c.l.b16 %v1674
      %v1684 = vunpack.c.l.b16 %v1675
      %v1685 = vunpack.c.l.b16 %v1676
      %v1686 = vpack.c.b16 %v1683, %v1682
      %v1687 = vpack.c.b16 %v1685, %v1684
      %v1691 = vsel %vm1304, %v1677, 0
      %1693 = vmatprep.subr.bf16.mxu0 0
      %1694 = vmatpush1.bf16.msra.mxu0 %v1686
      %1695 = vmatprep.subr.bf16.mxu0 0
      %1696 = vmatpush1.bf16.msra.mxu0 %v1687
      %1697 = vmatprep.subr.bf16.mxu0 0
      %1698 = vmatpush1.bf16.msra.mxu0 0
      %1699 = vmatprep.subr.bf16.mxu0 0
      %1700 = vmatpush1.bf16.msra.mxu0 0
      %1701 = vmatprep.subr.bf16.mxu0 0
      %1702 = vmatpush1.bf16.msra.mxu0 0
      %1703 = vmatprep.subr.bf16.mxu0 0
      %1704 = vmatpush1.bf16.msra.mxu0 0
      %1705 = vmatprep.subr.bf16.mxu0 0
      %1706 = vmatpush1.bf16.msra.mxu0 0
      %1707 = vmatprep.subr.bf16.mxu0 0
      %1708 = vmatpush1.bf16.msra.mxu0 0
      %1709 = vmatprep.subr.bf16.mxu0 0
      %1710 = vmatpush1.bf16.msra.mxu0 0
      %1711 = vmatprep.subr.bf16.mxu0 0
      %1712 = vmatpush1.bf16.msra.mxu0 0
      %1713 = vmatprep.subr.bf16.mxu0 0
      %1714 = vmatpush1.bf16.msra.mxu0 0
      %1715 = vmatprep.subr.bf16.mxu0 0
      %1716 = vmatpush1.bf16.msra.mxu0 0
      %1717 = vmatprep.subr.bf16.mxu0 0
      %1718 = vmatpush1.bf16.msra.mxu0 0
      %1719 = vmatprep.subr.bf16.mxu0 0
      %1720 = vmatpush1.bf16.msra.mxu0 0
      %1721 = vmatprep.subr.bf16.mxu0 0
      %1722 = vmatpush1.bf16.msra.mxu0 0
      %1723 = vmatprep.subr.bf16.mxu0 0
      %1724 = vmatpush1.bf16.msra.mxu0 0
      %1725 = vmatprep.mubr.bf16.mxu0 0
      %1726 = vmatmul.mubr.bf16.gmra.mrb[0].mxu0 %v1691
      %v1727 = vpop.f32.mrb[0].mxu0
      %v1728 = vadd.f32 0.0, %v1727
      %v1729 = vpop.f32.mrb[0].mxu0
      %v1730 = vpop.f32.mrb[0].mxu0
      %v1731 = vadd.f32 0.0, %v1730
      %v1732 = vpop.f32.mrb[0].mxu0
      %1733 = vdwg.mxu0
      %v1734 = vadd.f32 %v1300, %v1728
      %v1735 = vadd.f32 %v1301, %v1731
      %v1736 = vld [vmem:[%s9] sm:$0x1]
      %v1738 = vlaneseq
      %v1739 = vshrl.u32 %v1738, 7
      %v1740 = vsub.s32 0, %v1739
      %v1741 = vrot.slane %v1736, %v1740
      %v1743 = vadd.f32 %v1734, %v1741
      %v1744 = vadd.f32 %v1735, %v1741
      %v1745 = vld [vmem:[%s10] sm:$0x1]
      %v1746 = vld [vmem:[%s11] sm:$0x1]
      %v1747 = vsel %vm1304, %v1743, 0.0
      %1748 = vadd.xlane.f32.xlu0 %v1747
      %v1749 = vpop.xlane.xlu0 %1748
      %v1750 = vsel %vm1304, %v1744, 0.0
      %1751 = vadd.xlane.f32.xlu0 %v1750
      %v1752 = vpop.xlane.xlu0 %1751
      %v1753 = vmul.f32 %v1749, %v1311
      %v1754 = vmul.f32 %v1752, %v1311
      %v1755 = vsub.f32 %v1743, %v1753
      %v1756 = vsub.f32 %v1744, %v1754
      %v1757 = vmul.f32 %v1755, %v1755
      %v1758 = vmul.f32 %v1756, %v1756
      %v1759 = vsel %vm1304, %v1757, 0.0
      %1760 = vadd.xlane.f32.xlu0 %v1759
      %v1761 = vpop.xlane.xlu0 %1760
      %v1762 = vsel %vm1304, %v1758, 0.0
      %1763 = vadd.xlane.f32.xlu0 %v1762
      %v1764 = vpop.xlane.xlu0 %1763
      %v1765 = vmul.f32 %v1761, %v1311
      %v1766 = vmul.f32 %v1764, %v1311
      %v1767 = vadd.f32 %v1765, 1e-06
      %v1768 = vadd.f32 %v1766, 1e-06
      %v1769 = vrsqrt.pop %v1767
      %v1770 = vrsqrt.pop %v1768
      %v1771 = vmul.f32 %v1755, %v1769
      %v1772 = vmul.f32 %v1756, %v1770
      %v1774 = vlaneseq
      %v1775 = vshrl.u32 %v1774, 7
      %v1776 = vsub.s32 0, %v1775
      %v1777 = vrot.slane %v1745, %v1776
      %v1779 = vmul.f32 %v1771, %v1777
      %v1780 = vmul.f32 %v1772, %v1777
      %v1782 = vlaneseq
      %v1783 = vshrl.u32 %v1782, 7
      %v1784 = vsub.s32 0, %v1783
      %v1785 = vrot.slane %v1746, %v1784
      %v1787 = vadd.f32 %v1779, %v1785
      %v1788 = vadd.f32 %v1780, %v1785
      %v1789 = vld [vmem:[%s12] sm:$0xf]
      %v1790 = vld [vmem:[%s12 + $0x4] sm:$0xf]
      %v1791 = vld [vmem:[%s12 + $0x8] sm:$0xf]
      %v1792 = vld [vmem:[%s12 + $0xc] sm:$0xf]
      %v1793 = vpack.c.bf16 %v1788, %v1787
      %v1794 = vld [vmem:[%s13] sm:$0x1]
      %v1796 = vlaneseq
      %v1797 = vshrl.u32 %v1796, 7
      %v1798 = vsub.s32 0, %v1797
      %v1799 = vrot.slane %v1794, %v1798
      %v1805 = vunpack.c.l.b16 %v1789
      %v1806 = vunpack.c.l.b16 %v1790
      %v1807 = vunpack.c.l.b16 %v1791
      %v1808 = vunpack.c.l.b16 %v1792
      %v1809 = vpack.c.b16 %v1806, %v1805
      %v1810 = vpack.c.b16 %v1808, %v1807
      %v1814 = vsel %vm1304, %v1793, 0
      %1816 = vmatprep.subr.bf16.mxu0 0
      %1817 = vmatpush1.bf16.msra.mxu0 %v1809
      %1818 = vmatprep.subr.bf16.mxu0 0
      %1819 = vmatpush1.bf16.msra.mxu0 %v1810
      %1820 = vmatprep.subr.bf16.mxu0 0
      %1821 = vmatpush1.bf16.msra.mxu0 0
      %1822 = vmatprep.subr.bf16.mxu0 0
      %1823 = vmatpush1.bf16.msra.mxu0 0
      %1824 = vmatprep.subr.bf16.mxu0 0
      %1825 = vmatpush1.bf16.msra.mxu0 0
      %1826 = vmatprep.subr.bf16.mxu0 0
      %1827 = vmatpush1.bf16.msra.mxu0 0
      %1828 = vmatprep.subr.bf16.mxu0 0
      %1829 = vmatpush1.bf16.msra.mxu0 0
      %1830 = vmatprep.subr.bf16.mxu0 0
      %1831 = vmatpush1.bf16.msra.mxu0 0
      %1832 = vmatprep.subr.bf16.mxu0 0
      %1833 = vmatpush1.bf16.msra.mxu0 0
      %1834 = vmatprep.subr.bf16.mxu0 0
      %1835 = vmatpush1.bf16.msra.mxu0 0
      %1836 = vmatprep.subr.bf16.mxu0 0
      %1837 = vmatpush1.bf16.msra.mxu0 0
      %1838 = vmatprep.subr.bf16.mxu0 0
      %1839 = vmatpush1.bf16.msra.mxu0 0
      %1840 = vmatprep.subr.bf16.mxu0 0
      %1841 = vmatpush1.bf16.msra.mxu0 0
      %1842 = vmatprep.subr.bf16.mxu0 0
      %1843 = vmatpush1.bf16.msra.mxu0 0
      %1844 = vmatprep.subr.bf16.mxu0 0
      %1845 = vmatpush1.bf16.msra.mxu0 0
      %1846 = vmatprep.subr.bf16.mxu0 0
      %1847 = vmatpush1.bf16.msra.mxu0 0
      %1848 = vmatprep.mubr.bf16.mxu0 0
      %1849 = vmatmul.mubr.bf16.gmra.mrb[0].mxu0 %v1814
      %v1850 = vpop.f32.mrb[0].mxu0
      %v1851 = vadd.f32 %v1799, %v1850
      %v1852 = vpop.f32.mrb[0].mxu0
      %v1853 = vpop.f32.mrb[0].mxu0
      %v1854 = vadd.f32 %v1799, %v1853
      %v1855 = vpop.f32.mrb[0].mxu0
      %1856 = vdwg.mxu0
      %v1857 = vmul.f32 %v1851, 0.5
      %v1858 = vmul.f32 %v1854, 0.5
      %v1859 = vmul.f32 %v1851, 0.044715
      %v1860 = vmul.f32 %v1854, 0.044715
      %v1861 = vmul.f32 %v1859, %v1851
      %v1862 = vmul.f32 %v1860, %v1854
      %v1863 = vmul.f32 %v1861, %v1851
      %v1864 = vmul.f32 %v1862, %v1854
      %v1865 = vadd.f32 %v1851, %v1863
      %v1866 = vadd.f32 %v1854, %v1864
      %v1867 = vmul.f32 %v1865, 0.7978846
      %v1868 = vmul.f32 %v1866, 0.7978846
      %v1869 = vtanh.pop %v1867
      %v1870 = vtanh.pop %v1868
      %v1871 = vadd.f32 %v1869, 1.0
      %v1872 = vadd.f32 %v1870, 1.0
      %v1873 = vmul.f32 %v1857, %v1871
      %v1874 = vmul.f32 %v1858, %v1872
      %v1875 = vld [vmem:[%s14] sm:$0xf]
      %v1876 = vld [vmem:[%s14 + $0x4] sm:$0xf]
      %v1877 = vld [vmem:[%s14 + $0x8] sm:$0xf]
      %v1878 = vld [vmem:[%s14 + $0xc] sm:$0xf]
      %v1879 = vld [vmem:[%s14 + $0x10] sm:$0xf]
      %v1880 = vld [vmem:[%s14 + $0x14] sm:$0xf]
      %v1881 = vld [vmem:[%s14 + $0x18] sm:$0xf]
      %v1882 = vld [vmem:[%s14 + $0x1c] sm:$0xf]
      %v1883 = vpack.c.bf16 %v1874, %v1873
      %v1892 = vunpack.c.l.b16 %v1875
      %v1893 = vunpack.c.l.b16 %v1876
      %v1894 = vunpack.c.l.b16 %v1877
      %v1895 = vunpack.c.l.b16 %v1878
      %v1896 = vunpack.c.l.b16 %v1879
      %v1897 = vunpack.c.l.b16 %v1880
      %v1898 = vunpack.c.l.b16 %v1881
      %v1899 = vunpack.c.l.b16 %v1882
      %v1900 = vpack.c.b16 %v1893, %v1892
      %v1901 = vpack.c.b16 %v1895, %v1894
      %v1902 = vpack.c.b16 %v1897, %v1896
      %v1903 = vpack.c.b16 %v1899, %v1898
      %vm1908 = vcmask 523264
      %v1910 = vsel %vm1908, %v1883, 0
      %1912 = vmatprep.subr.bf16.mxu0 0
      %1913 = vmatpush1.bf16.msra.mxu0 %v1900
      %1914 = vmatprep.subr.bf16.mxu0 0
      %1915 = vmatpush1.bf16.msra.mxu0 %v1901
      %1916 = vmatprep.subr.bf16.mxu0 0
      %1917 = vmatpush1.bf16.msra.mxu0 %v1902
      %1918 = vmatprep.subr.bf16.mxu0 0
      %1919 = vmatpush1.bf16.msra.mxu0 %v1903
      %1920 = vmatprep.subr.bf16.mxu0 0
      %1921 = vmatpush1.bf16.msra.mxu0 0
      %1922 = vmatprep.subr.bf16.mxu0 0
      %1923 = vmatpush1.bf16.msra.mxu0 0
      %1924 = vmatprep.subr.bf16.mxu0 0
      %1925 = vmatpush1.bf16.msra.mxu0 0
      %1926 = vmatprep.subr.bf16.mxu0 0
      %1927 = vmatpush1.bf16.msra.mxu0 0
      %1928 = vmatprep.subr.bf16.mxu0 0
      %1929 = vmatpush1.bf16.msra.mxu0 0
      %1930 = vmatprep.subr.bf16.mxu0 0
      %1931 = vmatpush1.bf16.msra.mxu0 0
      %1932 = vmatprep.subr.bf16.mxu0 0
      %1933 = vmatpush1.bf16.msra.mxu0 0
      %1934 = vmatprep.subr.bf16.mxu0 0
      %1935 = vmatpush1.bf16.msra.mxu0 0
      %1936 = vmatprep.subr.bf16.mxu0 0
      %1937 = vmatpush1.bf16.msra.mxu0 0
      %1938 = vmatprep.subr.bf16.mxu0 0
      %1939 = vmatpush1.bf16.msra.mxu0 0
      %1940 = vmatprep.subr.bf16.mxu0 0
      %1941 = vmatpush1.bf16.msra.mxu0 0
      %1942 = vmatprep.subr.bf16.mxu0 0
      %1943 = vmatpush1.bf16.msra.mxu0 0
      %1944 = vmatprep.mubr.bf16.mxu0 0
      %1945 = vmatmul.mubr.bf16.gmra.mrb[0].mxu0 %v1910
      %v1946 = vpop.f32.mrb[0].mxu0
      %v1947 = vadd.f32 0.0, %v1946
      %v1948 = vpop.f32.mrb[0].mxu0
      %v1949 = vpop.f32.mrb[0].mxu0
      %v1950 = vadd.f32 0.0, %v1949
      %v1951 = vpop.f32.mrb[0].mxu0
      %1952 = vdwg.mxu0
      %v1953 = vadd.f32 %v1743, %v1947
      %v1954 = vadd.f32 %v1744, %v1950
      %v1955 = vld [vmem:[%s15] sm:$0x1]
      %v1957 = vlaneseq
      %v1958 = vshrl.u32 %v1957, 7
      %v1959 = vsub.s32 0, %v1958
      %v1960 = vrot.slane %v1955, %v1959
      %v1962 = vadd.f32 %v1953, %v1960
      %v1963 = vadd.f32 %v1954, %v1960
      %s1964 = scalar_lea.vmem %s4, 1
      %v1965 = vld [vmem:[%s1964] sm:$0x1]
      %s1966 = scalar_lea.vmem %s5, 1
      %v1967 = vld [vmem:[%s1966] sm:$0x1]
      %v1968 = vsel %vm1304, %v1962, 0.0
      %1969 = vadd.xlane.f32.xlu0 %v1968
      %v1970 = vpop.xlane.xlu0 %1969
      %v1971 = vsel %vm1304, %v1963, 0.0
      %1972 = vadd.xlane.f32.xlu0 %v1971
      %v1973 = vpop.xlane.xlu0 %1972
      %v1974 = vmul.f32 %v1970, %v1311
      %v1975 = vmul.f32 %v1973, %v1311
      %v1976 = vsub.f32 %v1962, %v1974
      %v1977 = vsub.f32 %v1963, %v1975
      %v1978 = vmul.f32 %v1976, %v1976
      %v1979 = vmul.f32 %v1977, %v1977
      %v1980 = vsel %vm1304, %v1978, 0.0
      %1981 = vadd.xlane.f32.xlu0 %v1980
      %v1982 = vpop.xlane.xlu0 %1981
      %v1983 = vsel %vm1304, %v1979, 0.0
      %1984 = vadd.xlane.f32.xlu0 %v1983
      %v1985 = vpop.xlane.xlu0 %1984
      %v1986 = vmul.f32 %v1982, %v1311
      %v1987 = vmul.f32 %v1985, %v1311
      %v1988 = vadd.f32 %v1986, 1e-06
      %v1989 = vadd.f32 %v1987, 1e-06
      %v1990 = vrsqrt.pop %v1988
      %v1991 = vrsqrt.pop %v1989
      %v1992 = vmul.f32 %v1976, %v1990
      %v1993 = vmul.f32 %v1977, %v1991
      %v1995 = vlaneseq
      %v1996 = vshrl.u32 %v1995, 7
      %v1997 = vsub.s32 0, %v1996
      %v1998 = vrot.slane %v1965, %v1997
      %v2000 = vmul.f32 %v1992, %v1998
      %v2001 = vmul.f32 %v1993, %v1998
      %v2003 = vlaneseq
      %v2004 = vshrl.u32 %v2003, 7
      %v2005 = vsub.s32 0, %v2004
      %v2006 = vrot.slane %v1967, %v2005
      %v2008 = vadd.f32 %v2000, %v2006
      %v2009 = vadd.f32 %v2001, %v2006
      %s2010 = scalar_lea.vmem %s6, 16
      %v2011 = vld [vmem:[%s2010] sm:$0xf]
      %v2012 = vld [vmem:[%s2010 + $0x4] sm:$0xf]
      %v2013 = vld [vmem:[%s2010 + $0x8] sm:$0xf]
      %v2014 = vld [vmem:[%s2010 + $0xc] sm:$0xf]
      %v2015 = vpack.c.bf16 %v2009, %v2008
      %s2016 = scalar_lea.vmem %s7, 1
      %v2017 = vld [vmem:[%s2016] sm:$0x1]
      %v2019 = vlaneseq
      %v2020 = vshrl.u32 %v2019, 7
      %v2021 = vsub.s32 0, %v2020
      %v2022 = vrot.slane %v2017, %v2021
      %v2028 = vunpack.c.l.b16 %v2011
      %v2029 = vunpack.c.l.b16 %v2012
      %v2030 = vunpack.c.l.b16 %v2013
      %v2031 = vunpack.c.l.b16 %v2014
      %v2032 = vpack.c.b16 %v2029, %v2028
      %v2033 = vpack.c.b16 %v2031, %v2030
      %v2037 = vsel %vm1304, %v2015, 0
      %2039 = vmatprep.subr.bf16.mxu0 0
      %2040 = vmatpush1.bf16.msra.mxu0 %v2032
      %2041 = vmatprep.subr.bf16.mxu0 0
      %2042 = vmatpush1.bf16.msra.mxu0 %v2033
      %2043 = vmatprep.subr.bf16.mxu0 0
      %2044 = vmatpush1.bf16.msra.mxu0 0
      %2045 = vmatprep.subr.bf16.mxu0 0
      %2046 = vmatpush1.bf16.msra.mxu0 0
      %2047 = vmatprep.subr.bf16.mxu0 0
      %2048 = vmatpush1.bf16.msra.mxu0 0
      %2049 = vmatprep.subr.bf16.mxu0 0
      %2050 = vmatpush1.bf16.msra.mxu0 0
      %2051 = vmatprep.subr.bf16.mxu0 0
      %2052 = vmatpush1.bf16.msra.mxu0 0
      %2053 = vmatprep.subr.bf16.mxu0 0
      %2054 = vmatpush1.bf16.msra.mxu0 0
      %2055 = vmatprep.subr.bf16.mxu0 0
      %2056 = vmatpush1.bf16.msra.mxu0 0
      %2057 = vmatprep.subr.bf16.mxu0 0
      %2058 = vmatpush1.bf16.msra.mxu0 0
      %2059 = vmatprep.subr.bf16.mxu0 0
      %2060 = vmatpush1.bf16.msra.mxu0 0
      %2061 = vmatprep.subr.bf16.mxu0 0
      %2062 = vmatpush1.bf16.msra.mxu0 0
      %2063 = vmatprep.subr.bf16.mxu0 0
      %2064 = vmatpush1.bf16.msra.mxu0 0
      %2065 = vmatprep.subr.bf16.mxu0 0
      %2066 = vmatpush1.bf16.msra.mxu0 0
      %2067 = vmatprep.subr.bf16.mxu0 0
      %2068 = vmatpush1.bf16.msra.mxu0 0
      %2069 = vmatprep.subr.bf16.mxu0 0
      %2070 = vmatpush1.bf16.msra.mxu0 0
      %2071 = vmatprep.mubr.bf16.mxu0 0
      %2072 = vmatmul.mubr.bf16.gmra.mrb[0].mxu0 %v2037
      %v2073 = vpop.f32.mrb[0].mxu0
      %v2074 = vadd.f32 %v2022, %v2073
      %v2075 = vpop.f32.mrb[0].mxu0
      %v2076 = vpop.f32.mrb[0].mxu0
      %v2077 = vadd.f32 %v2022, %v2076
      %v2078 = vpop.f32.mrb[0].mxu0
      %2079 = vdwg.mxu0
      %v2080 = vmul.f32 %v2074, 0.25
      %v2081 = vmul.f32 %v2077, 0.25
      %v2082 = vpack.c.bf16 %v2081, %v2080
      %v2083 = vpack.c.bf16 %v2077, %v2074
      %2085 = vrot.lane.b32.xlu0 %v2083, 96
      %v2086 = vpop.permute.xlu0 %2085
      %v2088 = vsel %vm1423, %v2082, 0
      %v2091 = vsel %vm1423, %v2086, 0
      %2093 = vmatprep.subr.bf16.mxu0 0
      %2094 = vmatpush1.bf16.xpose.msra.mxu0 %v2091
      %2095 = vmatprep.subr.bf16.mxu0 0
      %2096 = vmatpush1.bf16.xpose.msra.mxu0 0
      %2097 = vmatprep.subr.bf16.mxu0 0
      %2098 = vmatpush1.bf16.xpose.msra.mxu0 0
      %2099 = vmatprep.subr.bf16.mxu0 0
      %2100 = vmatpush1.bf16.xpose.msra.mxu0 0
      %2101 = vmatprep.subr.bf16.mxu0 0
      %2102 = vmatpush1.bf16.xpose.msra.mxu0 0
      %2103 = vmatprep.subr.bf16.mxu0 0
      %2104 = vmatpush1.bf16.xpose.msra.mxu0 0
      %2105 = vmatprep.subr.bf16.mxu0 0
      %2106 = vmatpush1.bf16.xpose.msra.mxu0 0
      %2107 = vmatprep.subr.bf16.mxu0 0
      %2108 = vmatpush1.bf16.xpose.msra.mxu0 0
      %2109 = vmatprep.subr.bf16.mxu0 0
      %2110 = vmatpush1.bf16.xpose.msra.mxu0 0
      %2111 = vmatprep.subr.bf16.mxu0 0
      %2112 = vmatpush1.bf16.xpose.msra.mxu0 0
      %2113 = vmatprep.subr.bf16.mxu0 0
      %2114 = vmatpush1.bf16.xpose.msra.mxu0 0
      %2115 = vmatprep.subr.bf16.mxu0 0
      %2116 = vmatpush1.bf16.xpose.msra.mxu0 0
      %2117 = vmatprep.subr.bf16.mxu0 0
      %2118 = vmatpush1.bf16.xpose.msra.mxu0 0
      %2119 = vmatprep.subr.bf16.mxu0 0
      %2120 = vmatpush1.bf16.xpose.msra.mxu0 0
      %2121 = vmatprep.subr.bf16.mxu0 0
      %2122 = vmatpush1.bf16.xpose.msra.mxu0 0
      %2123 = vmatprep.subr.bf16.mxu0 0
      %2124 = vmatpush1.bf16.xpose.msra.mxu0 0
      %2125 = vmatprep.mubr.bf16.mxu0 0
      %2126 = vmatmul.mubr.bf16.gmra.mrb[0].mxu0 %v2088
      %v2127 = vpop.f32.mrb[0].mxu0
      %v2128 = vadd.f32 0.0, %v2127
      %v2129 = vpop.f32.mrb[0].mxu0
      %v2130 = vpop.f32.mrb[0].mxu0
      %v2131 = vadd.f32 0.0, %v2130
      %v2132 = vpop.f32.mrb[0].mxu0
      %2133 = vdwg.mxu0
      %v2134 = vsel %vm1423, %v2128, -inf
      %2135 = vmax.xlane.f32.xlu0 %v2134
      %v2136 = vpop.xlane.xlu0 %2135
      %v2137 = vsel %vm1423, %v2131, -inf
      %2138 = vmax.xlane.f32.xlu0 %v2137
      %v2139 = vpop.xlane.xlu0 %2138
      %v2140 = vsub.f32 %v2128, %v2136
      %v2141 = vsub.f32 %v2131, %v2139
      %v2142 = vmul.f32 %v2140, 1.442695
      %v2143 = vpow.pop %v2142
      %v2144 = vmul.f32 %v2141, 1.442695
      %v2145 = vpow.pop %v2144
      %v2146 = vsel %vm1423, %v2143, 0.0
      %2147 = vadd.xlane.f32.xlu0 %v2146
      %v2148 = vpop.xlane.xlu0 %2147
      %v2149 = vsel %vm1423, %v2145, 0.0
      %2150 = vadd.xlane.f32.xlu0 %v2149
      %v2151 = vpop.xlane.xlu0 %2150
      %v2152 = vrcp.pop %v2148
      %v2153 = vrcp.pop %v2151
      %v2154 = vmul.f32 %v2143, %v2152
      %v2155 = vmul.f32 %v2145, %v2153
      %v2156 = vpack.c.bf16 %v2155, %v2154
      %2157 = vrot.lane.b32.xlu0 %v2083, 64
      %v2158 = vpop.permute.xlu0 %2157
      %v2161 = vsel %vm1423, %v2156, 0
      %2163 = vmatprep.subr.bf16.mxu0 0
      %2164 = vmatpush1.bf16.msra.mxu0 %v2158
      %2165 = vmatprep.subr.bf16.mxu0 0
      %2166 = vmatpush1.bf16.msra.mxu0 0
      %2167 = vmatprep.subr.bf16.mxu0 0
      %2168 = vmatpush1.bf16.msra.mxu0 0
      %2169 = vmatprep.subr.bf16.mxu0 0
      %2170 = vmatpush1.bf16.msra.mxu0 0
      %2171 = vmatprep.subr.bf16.mxu0 0
      %2172 = vmatpush1.bf16.msra.mxu0 0
      %2173 = vmatprep.subr.bf16.mxu0 0
      %2174 = vmatpush1.bf16.msra.mxu0 0
      %2175 = vmatprep.subr.bf16.mxu0 0
      %2176 = vmatpush1.bf16.msra.mxu0 0
      %2177 = vmatprep.subr.bf16.mxu0 0
      %2178 = vmatpush1.bf16.msra.mxu0 0
      %2179 = vmatprep.subr.bf16.mxu0 0
      %2180 = vmatpush1.bf16.msra.mxu0 0
      %2181 = vmatprep.subr.bf16.mxu0 0
      %2182 = vmatpush1.bf16.msra.mxu0 0
      %2183 = vmatprep.subr.bf16.mxu0 0
      %2184 = vmatpush1.bf16.msra.mxu0 0
      %2185 = vmatprep.subr.bf16.mxu0 0
      %2186 = vmatpush1.bf16.msra.mxu0 0
      %2187 = vmatprep.subr.bf16.mxu0 0
      %2188 = vmatpush1.bf16.msra.mxu0 0
      %2189 = vmatprep.subr.bf16.mxu0 0
      %2190 = vmatpush1.bf16.msra.mxu0 0
      %2191 = vmatprep.subr.bf16.mxu0 0
      %2192 = vmatpush1.bf16.msra.mxu0 0
      %2193 = vmatprep.subr.bf16.mxu0 0
      %2194 = vmatpush1.bf16.msra.mxu0 0
      %2195 = vmatprep.mubr.bf16.mxu0 0
      %2196 = vmatmul.mubr.bf16.gmra.mrb[0].mxu0 %v2161
      %v2197 = vpop.f32.mrb[0].mxu0
      %v2198 = vadd.f32 0.0, %v2197
      %v2199 = vpop.f32.mrb[0].mxu0
      %v2200 = vpop.f32.mrb[0].mxu0
      %v2201 = vadd.f32 0.0, %v2200
      %v2202 = vpop.f32.mrb[0].mxu0
      %2203 = vdwg.mxu0
      %2205 = vrot.lane.b32.xlu0 %v2082, 112
      %v2206 = vpop.permute.xlu0 %2205
      %2207 = vrot.lane.b32.xlu0 %v2083, 80
      %v2208 = vpop.permute.xlu0 %2207
      %v2210 = vsel %vm1423, %v2206, 0
      %v2213 = vsel %vm1423, %v2208, 0
      %2215 = vmatprep.subr.bf16.mxu0 0
      %2216 = vmatpush1.bf16.xpose.msra.mxu0 %v2213
      %2217 = vmatprep.subr.bf16.mxu0 0
      %2218 = vmatpush1.bf16.xpose.msra.mxu0 0
      %2219 = vmatprep.subr.bf16.mxu0 0
      %2220 = vmatpush1.bf16.xpose.msra.mxu0 0
      %2221 = vmatprep.subr.bf16.mxu0 0
      %2222 = vmatpush1.bf16.xpose.msra.mxu0 0
      %2223 = vmatprep.subr.bf16.mxu0 0
      %2224 = vmatpush1.bf16.xpose.msra.mxu0 0
      %2225 = vmatprep.subr.bf16.mxu0 0
      %2226 = vmatpush1.bf16.xpose.msra.mxu0 0
      %2227 = vmatprep.subr.bf16.mxu0 0
      %2228 = vmatpush1.bf16.xpose.msra.mxu0 0
      %2229 = vmatprep.subr.bf16.mxu0 0
      %2230 = vmatpush1.bf16.xpose.msra.mxu0 0
      %2231 = vmatprep.subr.bf16.mxu0 0
      %2232 = vmatpush1.bf16.xpose.msra.mxu0 0
      %2233 = vmatprep.subr.bf16.mxu0 0
      %2234 = vmatpush1.bf16.xpose.msra.mxu0 0
      %2235 = vmatprep.subr.bf16.mxu0 0
      %2236 = vmatpush1.bf16.xpose.msra.mxu0 0
      %2237 = vmatprep.subr.bf16.mxu0 0
      %2238 = vmatpush1.bf16.xpose.msra.mxu0 0
      %2239 = vmatprep.subr.bf16.mxu0 0
      %2240 = vmatpush1.bf16.xpose.msra.mxu0 0
      %2241 = vmatprep.subr.bf16.mxu0 0
      %2242 = vmatpush1.bf16.xpose.msra.mxu0 0
      %2243 = vmatprep.subr.bf16.mxu0 0
      %2244 = vmatpush1.bf16.xpose.msra.mxu0 0
      %2245 = vmatprep.subr.bf16.mxu0 0
      %2246 = vmatpush1.bf16.xpose.msra.mxu0 0
      %2247 = vmatprep.mubr.bf16.mxu0 0
      %2248 = vmatmul.mubr.bf16.gmra.mrb[0].mxu0 %v2210
      %v2249 = vpop.f32.mrb[0].mxu0
      %v2250 = vadd.f32 0.0, %v2249
      %v2251 = vpop.f32.mrb[0].mxu0
      %v2252 = vpop.f32.mrb[0].mxu0
      %v2253 = vadd.f32 0.0, %v2252
      %v2254 = vpop.f32.mrb[0].mxu0
      %2255 = vdwg.mxu0
      %v2256 = vsel %vm1423, %v2250, -inf
      %2257 = vmax.xlane.f32.xlu0 %v2256
      %v2258 = vpop.xlane.xlu0 %2257
      %v2259 = vsel %vm1423, %v2253, -inf
      %2260 = vmax.xlane.f32.xlu0 %v2259
      %v2261 = vpop.xlane.xlu0 %2260
      %v2262 = vsub.f32 %v2250, %v2258
      %v2263 = vsub.f32 %v2253, %v2261
      %v2264 = vmul.f32 %v2262, 1.442695
      %v2265 = vpow.pop %v2264
      %v2266 = vmul.f32 %v2263, 1.442695
      %v2267 = vpow.pop %v2266
      %v2268 = vsel %vm1423, %v2265, 0.0
      %2269 = vadd.xlane.f32.xlu0 %v2268
      %v2270 = vpop.xlane.xlu0 %2269
      %v2271 = vsel %vm1423, %v2267, 0.0
      %2272 = vadd.xlane.f32.xlu0 %v2271
      %v2273 = vpop.xlane.xlu0 %2272
      %v2274 = vrcp.pop %v2270
      %v2275 = vrcp.pop %v2273
      %v2276 = vmul.f32 %v2265, %v2274
      %v2277 = vmul.f32 %v2267, %v2275
      %v2278 = vpack.c.bf16 %v2277, %v2276
      %2279 = vrot.lane.b32.xlu0 %v2083, 48
      %v2280 = vpop.permute.xlu0 %2279
      %v2283 = vsel %vm1423, %v2278, 0
      %2285 = vmatprep.subr.bf16.mxu0 0
      %2286 = vmatpush1.bf16.msra.mxu0 %v2280
      %2287 = vmatprep.subr.bf16.mxu0 0
      %2288 = vmatpush1.bf16.msra.mxu0 0
      %2289 = vmatprep.subr.bf16.mxu0 0
      %2290 = vmatpush1.bf16.msra.mxu0 0
      %2291 = vmatprep.subr.bf16.mxu0 0
      %2292 = vmatpush1.bf16.msra.mxu0 0
      %2293 = vmatprep.subr.bf16.mxu0 0
      %2294 = vmatpush1.bf16.msra.mxu0 0
      %2295 = vmatprep.subr.bf16.mxu0 0
      %2296 = vmatpush1.bf16.msra.mxu0 0
      %2297 = vmatprep.subr.bf16.mxu0 0
      %2298 = vmatpush1.bf16.msra.mxu0 0
      %2299 = vmatprep.subr.bf16.mxu0 0
      %2300 = vmatpush1.bf16.msra.mxu0 0
      %2301 = vmatprep.subr.bf16.mxu0 0
      %2302 = vmatpush1.bf16.msra.mxu0 0
      %2303 = vmatprep.subr.bf16.mxu0 0
      %2304 = vmatpush1.bf16.msra.mxu0 0
      %2305 = vmatprep.subr.bf16.mxu0 0
      %2306 = vmatpush1.bf16.msra.mxu0 0
      %2307 = vmatprep.subr.bf16.mxu0 0
      %2308 = vmatpush1.bf16.msra.mxu0 0
      %2309 = vmatprep.subr.bf16.mxu0 0
      %2310 = vmatpush1.bf16.msra.mxu0 0
      %2311 = vmatprep.subr.bf16.mxu0 0
      %2312 = vmatpush1.bf16.msra.mxu0 0
      %2313 = vmatprep.subr.bf16.mxu0 0
      %2314 = vmatpush1.bf16.msra.mxu0 0
      %2315 = vmatprep.subr.bf16.mxu0 0
      %2316 = vmatpush1.bf16.msra.mxu0 0
      %2317 = vmatprep.mubr.bf16.mxu0 0
      %2318 = vmatmul.mubr.bf16.gmra.mrb[0].mxu0 %v2283
      %v2319 = vpop.f32.mrb[0].mxu0
      %v2320 = vadd.f32 0.0, %v2319
      %v2321 = vpop.f32.mrb[0].mxu0
      %v2322 = vpop.f32.mrb[0].mxu0
      %v2323 = vadd.f32 0.0, %v2322
      %v2324 = vpop.f32.mrb[0].mxu0
      %2325 = vdwg.mxu0
      %2328 = vrot.lane.b32.xlu0 %v2320, 16
      %v2329 = vpop.permute.xlu0 %2328
      %2330 = vrot.lane.b32.xlu0 %v2323, 16
      %v2331 = vpop.permute.xlu0 %2330
      %v2334 = vsel %vm1423, %v2198, %v2329
      %v2335 = vsel %vm1423, %v2201, %v2331
      %s2336 = scalar_lea.vmem %s8, 16
      %v2337 = vld [vmem:[%s2336] sm:$0xf]
      %v2338 = vld [vmem:[%s2336 + $0x4] sm:$0xf]
      %v2339 = vld [vmem:[%s2336 + $0x8] sm:$0xf]
      %v2340 = vld [vmem:[%s2336 + $0xc] sm:$0xf]
      %v2341 = vpack.c.bf16 %v2335, %v2334
      %v2346 = vunpack.c.l.b16 %v2337
      %v2347 = vunpack.c.l.b16 %v2338
      %v2348 = vunpack.c.l.b16 %v2339
      %v2349 = vunpack.c.l.b16 %v2340
      %v2350 = vpack.c.b16 %v2347, %v2346
      %v2351 = vpack.c.b16 %v2349, %v2348
      %v2355 = vsel %vm1304, %v2341, 0
      %2357 = vmatprep.subr.bf16.mxu0 0
      %2358 = vmatpush1.bf16.msra.mxu0 %v2350
      %2359 = vmatprep.subr.bf16.mxu0 0
      %2360 = vmatpush1.bf16.msra.mxu0 %v2351
      %2361 = vmatprep.subr.bf16.mxu0 0
      %2362 = vmatpush1.bf16.msra.mxu0 0
      %2363 = vmatprep.subr.bf16.mxu0 0
      %2364 = vmatpush1.bf16.msra.mxu0 0
      %2365 = vmatprep.subr.bf16.mxu0 0
      %2366 = vmatpush1.bf16.msra.mxu0 0
      %2367 = vmatprep.subr.bf16.mxu0 0
      %2368 = vmatpush1.bf16.msra.mxu0 0
      %2369 = vmatprep.subr.bf16.mxu0 0
      %2370 = vmatpush1.bf16.msra.mxu0 0
      %2371 = vmatprep.subr.bf16.mxu0 0
      %2372 = vmatpush1.bf16.msra.mxu0 0
      %2373 = vmatprep.subr.bf16.mxu0 0
      %2374 = vmatpush1.bf16.msra.mxu0 0
      %2375 = vmatprep.subr.bf16.mxu0 0
      %2376 = vmatpush1.bf16.msra.mxu0 0
      %2377 = vmatprep.subr.bf16.mxu0 0
      %2378 = vmatpush1.bf16.msra.mxu0 0
      %2379 = vmatprep.subr.bf16.mxu0 0
      %2380 = vmatpush1.bf16.msra.mxu0 0
      %2381 = vmatprep.subr.bf16.mxu0 0
      %2382 = vmatpush1.bf16.msra.mxu0 0
      %2383 = vmatprep.subr.bf16.mxu0 0
      %2384 = vmatpush1.bf16.msra.mxu0 0
      %2385 = vmatprep.subr.bf16.mxu0 0
      %2386 = vmatpush1.bf16.msra.mxu0 0
      %2387 = vmatprep.subr.bf16.mxu0 0
      %2388 = vmatpush1.bf16.msra.mxu0 0
      %2389 = vmatprep.mubr.bf16.mxu0 0
      %2390 = vmatmul.mubr.bf16.gmra.mrb[0].mxu0 %v2355
      %v2391 = vpop.f32.mrb[0].mxu0
      %v2392 = vadd.f32 0.0, %v2391
      %v2393 = vpop.f32.mrb[0].mxu0
      %v2394 = vpop.f32.mrb[0].mxu0
      %v2395 = vadd.f32 0.0, %v2394
      %v2396 = vpop.f32.mrb[0].mxu0
      %2397 = vdwg.mxu0
      %v2398 = vadd.f32 %v1962, %v2392
      %v2399 = vadd.f32 %v1963, %v2395
      %s2400 = scalar_lea.vmem %s9, 1
      %v2401 = vld [vmem:[%s2400] sm:$0x1]
      %v2403 = vlaneseq
      %v2404 = vshrl.u32 %v2403, 7
      %v2405 = vsub.s32 0, %v2404
      %v2406 = vrot.slane %v2401, %v2405
      %v2408 = vadd.f32 %v2398, %v2406
      %v2409 = vadd.f32 %v2399, %v2406
      %s2410 = scalar_lea.vmem %s10, 1
      %v2411 = vld [vmem:[%s2410] sm:$0x1]
      %s2412 = scalar_lea.vmem %s11, 1
      %v2413 = vld [vmem:[%s2412] sm:$0x1]
      %v2414 = vsel %vm1304, %v2408, 0.0
      %2415 = vadd.xlane.f32.xlu0 %v2414
      %v2416 = vpop.xlane.xlu0 %2415
      %v2417 = vsel %vm1304, %v2409, 0.0
      %2418 = vadd.xlane.f32.xlu0 %v2417
      %v2419 = vpop.xlane.xlu0 %2418
      %v2420 = vmul.f32 %v2416, %v1311
      %v2421 = vmul.f32 %v2419, %v1311
      %v2422 = vsub.f32 %v2408, %v2420
      %v2423 = vsub.f32 %v2409, %v2421
      %v2424 = vmul.f32 %v2422, %v2422
      %v2425 = vmul.f32 %v2423, %v2423
      %v2426 = vsel %vm1304, %v2424, 0.0
      %2427 = vadd.xlane.f32.xlu0 %v2426
      %v2428 = vpop.xlane.xlu0 %2427
      %v2429 = vsel %vm1304, %v2425, 0.0
      %2430 = vadd.xlane.f32.xlu0 %v2429
      %v2431 = vpop.xlane.xlu0 %2430
      %v2432 = vmul.f32 %v2428, %v1311
      %v2433 = vmul.f32 %v2431, %v1311
      %v2434 = vadd.f32 %v2432, 1e-06
      %v2435 = vadd.f32 %v2433, 1e-06
      %v2436 = vrsqrt.pop %v2434
      %v2437 = vrsqrt.pop %v2435
      %v2438 = vmul.f32 %v2422, %v2436
      %v2439 = vmul.f32 %v2423, %v2437
      %v2441 = vlaneseq
      %v2442 = vshrl.u32 %v2441, 7
      %v2443 = vsub.s32 0, %v2442
      %v2444 = vrot.slane %v2411, %v2443
      %v2446 = vmul.f32 %v2438, %v2444
      %v2447 = vmul.f32 %v2439, %v2444
      %v2449 = vlaneseq
      %v2450 = vshrl.u32 %v2449, 7
      %v2451 = vsub.s32 0, %v2450
      %v2452 = vrot.slane %v2413, %v2451
      %v2454 = vadd.f32 %v2446, %v2452
      %v2455 = vadd.f32 %v2447, %v2452
      %s2456 = scalar_lea.vmem %s12, 16
      %v2457 = vld [vmem:[%s2456] sm:$0xf]
      %v2458 = vld [vmem:[%s2456 + $0x4] sm:$0xf]
      %v2459 = vld [vmem:[%s2456 + $0x8] sm:$0xf]
      %v2460 = vld [vmem:[%s2456 + $0xc] sm:$0xf]
      %v2461 = vpack.c.bf16 %v2455, %v2454
      %s2462 = scalar_lea.vmem %s13, 1
      %v2463 = vld [vmem:[%s2462] sm:$0x1]
      %v2465 = vlaneseq
      %v2466 = vshrl.u32 %v2465, 7
      %v2467 = vsub.s32 0, %v2466
      %v2468 = vrot.slane %v2463, %v2467
      %v2474 = vunpack.c.l.b16 %v2457
      %v2475 = vunpack.c.l.b16 %v2458
      %v2476 = vunpack.c.l.b16 %v2459
      %v2477 = vunpack.c.l.b16 %v2460
      %v2478 = vpack.c.b16 %v2475, %v2474
      %v2479 = vpack.c.b16 %v2477, %v2476
      %v2483 = vsel %vm1304, %v2461, 0
      %2485 = vmatprep.subr.bf16.mxu0 0
      %2486 = vmatpush1.bf16.msra.mxu0 %v2478
      %2487 = vmatprep.subr.bf16.mxu0 0
      %2488 = vmatpush1.bf16.msra.mxu0 %v2479
      %2489 = vmatprep.subr.bf16.mxu0 0
      %2490 = vmatpush1.bf16.msra.mxu0 0
      %2491 = vmatprep.subr.bf16.mxu0 0
      %2492 = vmatpush1.bf16.msra.mxu0 0
      %2493 = vmatprep.subr.bf16.mxu0 0
      %2494 = vmatpush1.bf16.msra.mxu0 0
      %2495 = vmatprep.subr.bf16.mxu0 0
      %2496 = vmatpush1.bf16.msra.mxu0 0
      %2497 = vmatprep.subr.bf16.mxu0 0
      %2498 = vmatpush1.bf16.msra.mxu0 0
      %2499 = vmatprep.subr.bf16.mxu0 0
      %2500 = vmatpush1.bf16.msra.mxu0 0
      %2501 = vmatprep.subr.bf16.mxu0 0
      %2502 = vmatpush1.bf16.msra.mxu0 0
      %2503 = vmatprep.subr.bf16.mxu0 0
      %2504 = vmatpush1.bf16.msra.mxu0 0
      %2505 = vmatprep.subr.bf16.mxu0 0
      %2506 = vmatpush1.bf16.msra.mxu0 0
      %2507 = vmatprep.subr.bf16.mxu0 0
      %2508 = vmatpush1.bf16.msra.mxu0 0
      %2509 = vmatprep.subr.bf16.mxu0 0
      %2510 = vmatpush1.bf16.msra.mxu0 0
      %2511 = vmatprep.subr.bf16.mxu0 0
      %2512 = vmatpush1.bf16.msra.mxu0 0
      %2513 = vmatprep.subr.bf16.mxu0 0
      %2514 = vmatpush1.bf16.msra.mxu0 0
      %2515 = vmatprep.subr.bf16.mxu0 0
      %2516 = vmatpush1.bf16.msra.mxu0 0
      %2517 = vmatprep.mubr.bf16.mxu0 0
      %2518 = vmatmul.mubr.bf16.gmra.mrb[0].mxu0 %v2483
      %v2519 = vpop.f32.mrb[0].mxu0
      %v2520 = vadd.f32 %v2468, %v2519
      %v2521 = vpop.f32.mrb[0].mxu0
      %v2522 = vpop.f32.mrb[0].mxu0
      %v2523 = vadd.f32 %v2468, %v2522
      %v2524 = vpop.f32.mrb[0].mxu0
      %2525 = vdwg.mxu0
      %v2526 = vmul.f32 %v2520, 0.5
      %v2527 = vmul.f32 %v2523, 0.5
      %v2528 = vmul.f32 %v2520, 0.044715
      %v2529 = vmul.f32 %v2523, 0.044715
      %v2530 = vmul.f32 %v2528, %v2520
      %v2531 = vmul.f32 %v2529, %v2523
      %v2532 = vmul.f32 %v2530, %v2520
      %v2533 = vmul.f32 %v2531, %v2523
      %v2534 = vadd.f32 %v2520, %v2532
      %v2535 = vadd.f32 %v2523, %v2533
      %v2536 = vmul.f32 %v2534, 0.7978846
      %v2537 = vmul.f32 %v2535, 0.7978846
      %v2538 = vtanh.pop %v2536
      %v2539 = vtanh.pop %v2537
      %v2540 = vadd.f32 %v2538, 1.0
      %v2541 = vadd.f32 %v2539, 1.0
      %v2542 = vmul.f32 %v2526, %v2540
      %v2543 = vmul.f32 %v2527, %v2541
      %s2544 = scalar_lea.vmem %s14, 32
      %v2545 = vld [vmem:[%s2544] sm:$0xf]
      %v2546 = vld [vmem:[%s2544 + $0x4] sm:$0xf]
      %v2547 = vld [vmem:[%s2544 + $0x8] sm:$0xf]
      %v2548 = vld [vmem:[%s2544 + $0xc] sm:$0xf]
      %v2549 = vld [vmem:[%s2544 + $0x10] sm:$0xf]
      %v2550 = vld [vmem:[%s2544 + $0x14] sm:$0xf]
      %v2551 = vld [vmem:[%s2544 + $0x18] sm:$0xf]
      %v2552 = vld [vmem:[%s2544 + $0x1c] sm:$0xf]
      %v2553 = vpack.c.bf16 %v2543, %v2542
      %v2562 = vunpack.c.l.b16 %v2545
      %v2563 = vunpack.c.l.b16 %v2546
      %v2564 = vunpack.c.l.b16 %v2547
      %v2565 = vunpack.c.l.b16 %v2548
      %v2566 = vunpack.c.l.b16 %v2549
      %v2567 = vunpack.c.l.b16 %v2550
      %v2568 = vunpack.c.l.b16 %v2551
      %v2569 = vunpack.c.l.b16 %v2552
      %v2570 = vpack.c.b16 %v2563, %v2562
      %v2571 = vpack.c.b16 %v2565, %v2564
      %v2572 = vpack.c.b16 %v2567, %v2566
      %v2573 = vpack.c.b16 %v2569, %v2568
      %v2579 = vsel %vm1908, %v2553, 0
      %2581 = vmatprep.subr.bf16.mxu0 0
      %2582 = vmatpush1.bf16.msra.mxu0 %v2570
      %2583 = vmatprep.subr.bf16.mxu0 0
      %2584 = vmatpush1.bf16.msra.mxu0 %v2571
      %2585 = vmatprep.subr.bf16.mxu0 0
      %2586 = vmatpush1.bf16.msra.mxu0 %v2572
      %2587 = vmatprep.subr.bf16.mxu0 0
      %2588 = vmatpush1.bf16.msra.mxu0 %v2573
      %2589 = vmatprep.subr.bf16.mxu0 0
      %2590 = vmatpush1.bf16.msra.mxu0 0
      %2591 = vmatprep.subr.bf16.mxu0 0
      %2592 = vmatpush1.bf16.msra.mxu0 0
      %2593 = vmatprep.subr.bf16.mxu0 0
      %2594 = vmatpush1.bf16.msra.mxu0 0
      %2595 = vmatprep.subr.bf16.mxu0 0
      %2596 = vmatpush1.bf16.msra.mxu0 0
      %2597 = vmatprep.subr.bf16.mxu0 0
      %2598 = vmatpush1.bf16.msra.mxu0 0
      %2599 = vmatprep.subr.bf16.mxu0 0
      %2600 = vmatpush1.bf16.msra.mxu0 0
      %2601 = vmatprep.subr.bf16.mxu0 0
      %2602 = vmatpush1.bf16.msra.mxu0 0
      %2603 = vmatprep.subr.bf16.mxu0 0
      %2604 = vmatpush1.bf16.msra.mxu0 0
      %2605 = vmatprep.subr.bf16.mxu0 0
      %2606 = vmatpush1.bf16.msra.mxu0 0
      %2607 = vmatprep.subr.bf16.mxu0 0
      %2608 = vmatpush1.bf16.msra.mxu0 0
      %2609 = vmatprep.subr.bf16.mxu0 0
      %2610 = vmatpush1.bf16.msra.mxu0 0
      %2611 = vmatprep.subr.bf16.mxu0 0
      %2612 = vmatpush1.bf16.msra.mxu0 0
      %2613 = vmatprep.mubr.bf16.mxu0 0
      %2614 = vmatmul.mubr.bf16.gmra.mrb[0].mxu0 %v2579
      %v2615 = vpop.f32.mrb[0].mxu0
      %v2616 = vadd.f32 0.0, %v2615
      %v2617 = vpop.f32.mrb[0].mxu0
      %v2618 = vpop.f32.mrb[0].mxu0
      %v2619 = vadd.f32 0.0, %v2618
      %v2620 = vpop.f32.mrb[0].mxu0
      %2621 = vdwg.mxu0
      %v2622 = vadd.f32 %v2408, %v2616
      %v2623 = vadd.f32 %v2409, %v2619
      %s2624 = scalar_lea.vmem %s15, 1
      %v2625 = vld [vmem:[%s2624] sm:$0x1]
      %v2627 = vlaneseq
      %v2628 = vshrl.u32 %v2627, 7
      %v2629 = vsub.s32 0, %v2628
      %v2630 = vrot.slane %v2625, %v2629
      %v2632 = vadd.f32 %v2622, %v2630
      %v2633 = vadd.f32 %v2623, %v2630
      %v2634 = vld [vmem:[%s16] sm:$0xf]
      %v2635 = vld [vmem:[%s16 + $0x4] sm:$0xf]
      %v2636 = vld [vmem:[%s16 + $0x8] sm:$0xf]
      %v2637 = vld [vmem:[%s16 + $0xc] sm:$0xf]
      %v2638 = vpack.c.bf16 %v2633, %v2632
      %v2639 = vld [vmem:[%s17] sm:$0x1]
      %v2641 = vlaneseq
      %v2642 = vshrl.u32 %v2641, 7
      %v2643 = vsub.s32 0, %v2642
      %v2644 = vrot.slane %v2639, %v2643
      %v2650 = vunpack.c.l.b16 %v2634
      %v2651 = vunpack.c.l.b16 %v2635
      %v2652 = vunpack.c.l.b16 %v2636
      %v2653 = vunpack.c.l.b16 %v2637
      %v2654 = vpack.c.b16 %v2651, %v2650
      %v2655 = vpack.c.b16 %v2653, %v2652
      %v2659 = vsel %vm1304, %v2638, 0
      %2661 = vmatprep.subr.bf16.mxu0 0
      %2662 = vmatpush1.bf16.msra.mxu0 %v2654
      %2663 = vmatprep.subr.bf16.mxu0 0
      %2664 = vmatpush1.bf16.msra.mxu0 %v2655
      %2665 = vmatprep.subr.bf16.mxu0 0
      %2666 = vmatpush1.bf16.msra.mxu0 0
      %2667 = vmatprep.subr.bf16.mxu0 0
      %2668 = vmatpush1.bf16.msra.mxu0 0
      %2669 = vmatprep.subr.bf16.mxu0 0
      %2670 = vmatpush1.bf16.msra.mxu0 0
      %2671 = vmatprep.subr.bf16.mxu0 0
      %2672 = vmatpush1.bf16.msra.mxu0 0
      %2673 = vmatprep.subr.bf16.mxu0 0
      %2674 = vmatpush1.bf16.msra.mxu0 0
      %2675 = vmatprep.subr.bf16.mxu0 0
      %2676 = vmatpush1.bf16.msra.mxu0 0
      %2677 = vmatprep.subr.bf16.mxu0 0
      %2678 = vmatpush1.bf16.msra.mxu0 0
      %2679 = vmatprep.subr.bf16.mxu0 0
      %2680 = vmatpush1.bf16.msra.mxu0 0
      %2681 = vmatprep.subr.bf16.mxu0 0
      %2682 = vmatpush1.bf16.msra.mxu0 0
      %2683 = vmatprep.subr.bf16.mxu0 0
      %2684 = vmatpush1.bf16.msra.mxu0 0
      %2685 = vmatprep.subr.bf16.mxu0 0
      %2686 = vmatpush1.bf16.msra.mxu0 0
      %2687 = vmatprep.subr.bf16.mxu0 0
      %2688 = vmatpush1.bf16.msra.mxu0 0
      %2689 = vmatprep.subr.bf16.mxu0 0
      %2690 = vmatpush1.bf16.msra.mxu0 0
      %2691 = vmatprep.subr.bf16.mxu0 0
      %2692 = vmatpush1.bf16.msra.mxu0 0
      %2693 = vmatprep.mubr.bf16.mxu0 0
      %2694 = vmatmul.mubr.bf16.gmra.mrb[0].mxu0 %v2659
      %v2695 = vpop.f32.mrb[0].mxu0
      %v2696 = vadd.f32 %v2644, %v2695
      %v2697 = vpop.f32.mrb[0].mxu0
      %v2698 = vpop.f32.mrb[0].mxu0
      %v2699 = vadd.f32 %v2644, %v2698
      %v2700 = vpop.f32.mrb[0].mxu0
      %2701 = vdwg.mxu0
      %v2702 = vld [vmem:[%s18] sm:$0x1]
      %v2703 = vld [vmem:[%s19] sm:$0x1]
      %v2704 = vsel %vm1304, %v2696, 0.0
      %2705 = vadd.xlane.f32.xlu0 %v2704
      %v2706 = vpop.xlane.xlu0 %2705
      %v2707 = vsel %vm1304, %v2699, 0.0
      %2708 = vadd.xlane.f32.xlu0 %v2707
      %v2709 = vpop.xlane.xlu0 %2708
      %v2710 = vmul.f32 %v2706, %v1311
      %v2711 = vmul.f32 %v2709, %v1311
      %v2712 = vsub.f32 %v2696, %v2710
      %v2713 = vsub.f32 %v2699, %v2711
      %v2714 = vmul.f32 %v2712, %v2712
      %v2715 = vmul.f32 %v2713, %v2713
      %v2716 = vsel %vm1304, %v2714, 0.0
      %2717 = vadd.xlane.f32.xlu0 %v2716
      %v2718 = vpop.xlane.xlu0 %2717
      %v2719 = vsel %vm1304, %v2715, 0.0
      %2720 = vadd.xlane.f32.xlu0 %v2719
      %v2721 = vpop.xlane.xlu0 %2720
      %v2722 = vmul.f32 %v2718, %v1311
      %v2723 = vmul.f32 %v2721, %v1311
      %v2724 = vadd.f32 %v2722, 1e-06
      %v2725 = vadd.f32 %v2723, 1e-06
      %v2726 = vrsqrt.pop %v2724
      %v2727 = vrsqrt.pop %v2725
      %v2728 = vmul.f32 %v2712, %v2726
      %v2729 = vmul.f32 %v2713, %v2727
      %v2731 = vlaneseq
      %v2732 = vshrl.u32 %v2731, 7
      %v2733 = vsub.s32 0, %v2732
      %v2734 = vrot.slane %v2702, %v2733
      %v2736 = vmul.f32 %v2728, %v2734
      %v2737 = vmul.f32 %v2729, %v2734
      %v2739 = vlaneseq
      %v2740 = vshrl.u32 %v2739, 7
      %v2741 = vsub.s32 0, %v2740
      %v2742 = vrot.slane %v2703, %v2741
      %v2744 = vadd.f32 %v2736, %v2742
      %v2745 = vadd.f32 %v2737, %v2742
      %vm2748 = vcmask 1044480
      %v2749 = vrot.slane %v2744, 3
      %v2750 = vrot.slane %v2745, 3
      %v2751 = vsel %vm2748, %v2749, %v2750
      %v2754 = vsel %vm2748, 0.0, %v2749
      %v2755 = vld [vmem:[%s20] sm:$0xff]
      %v2756 = vld [vmem:[%s20 + $0x8] sm:$0xff]
      %2758 = vset.pattern.permute.xlu0 0
      %2759 = vperm.xlu0 %2758, %v2755
      %v2760 = vpop.permute.xlu0 %2759
      %2763 = vset.pattern.permute.xlu0 0
      %2764 = vperm.xlu0 %2763, %v2756
      %v2765 = vpop.permute.xlu0 %2764
      %v2767 = vmul.f32 %v2754, %v2760
      %v2768 = vmul.f32 %v2751, %v2765
      %v2769 = vld [vmem:[%s21] sm:$0xf]
      %v2770 = vld [vmem:[%s21 + $0x4] sm:$0xf]
      %v2771 = vld [vmem:[%s21 + $0x8] sm:$0xf]
      %v2772 = vld [vmem:[%s21 + $0xc] sm:$0xf]
      %v2773 = vpack.c.bf16 %v2768, %v2767
      %vm2774 = vcmask 1043456
      %v2775 = vrot.slane %v2744, 4
      %v2776 = vrot.slane %v2745, 4
      %v2777 = vsel %vm2774, %v2775, %v2776
      %v2780 = vsel %vm2774, 0.0, %v2775
      %s2781 = scalar_lea.vmem %s20, 16
      %v2782 = vld [vmem:[%s2781] sm:$0xff]
      %v2783 = vld [vmem:[%s2781 + $0x8] sm:$0xff]
      %2785 = vset.pattern.permute.xlu0 0
      %2786 = vperm.xlu0 %2785, %v2782
      %v2787 = vpop.permute.xlu0 %2786
      %2790 = vset.pattern.permute.xlu0 0
      %2791 = vperm.xlu0 %2790, %v2783
      %v2792 = vpop.permute.xlu0 %2791
      %v2794 = vmul.f32 %v2780, %v2787
      %v2795 = vmul.f32 %v2777, %v2792
      %s2796 = scalar_lea.vmem %s21, 16
      %v2797 = vld [vmem:[%s2796] sm:$0xf]
      %v2798 = vld [vmem:[%s2796 + $0x4] sm:$0xf]
      %v2799 = vld [vmem:[%s2796 + $0x8] sm:$0xf]
      %v2800 = vld [vmem:[%s2796 + $0xc] sm:$0xf]
      %v2801 = vpack.c.bf16 %v2795, %v2794
      %v2806 = vunpack.c.l.b16 %v2797
      %v2807 = vunpack.c.l.b16 %v2798
      %v2808 = vunpack.c.l.b16 %v2799
      %v2809 = vunpack.c.l.b16 %v2800
      %v2810 = vpack.c.b16 %v2807, %v2806
      %v2811 = vpack.c.b16 %v2809, %v2808
      %v2815 = vsel %vm1304, %v2801, 0
      %2817 = vmatprep.subr.bf16.mxu0 0
      %2818 = vmatpush1.bf16.msra.mxu0 %v2810
      %2819 = vmatprep.subr.bf16.mxu0 0
      %2820 = vmatpush1.bf16.msra.mxu0 %v2811
      %2821 = vmatprep.subr.bf16.mxu0 0
      %2822 = vmatpush1.bf16.msra.mxu0 0
      %2823 = vmatprep.subr.bf16.mxu0 0
      %2824 = vmatpush1.bf16.msra.mxu0 0
      %2825 = vmatprep.subr.bf16.mxu0 0
      %2826 = vmatpush1.bf16.msra.mxu0 0
      %2827 = vmatprep.subr.bf16.mxu0 0
      %2828 = vmatpush1.bf16.msra.mxu0 0
      %2829 = vmatprep.subr.bf16.mxu0 0
      %2830 = vmatpush1.bf16.msra.mxu0 0
      %2831 = vmatprep.subr.bf16.mxu0 0
      %2832 = vmatpush1.bf16.msra.mxu0 0
      %2833 = vmatprep.subr.bf16.mxu0 0
      %2834 = vmatpush1.bf16.msra.mxu0 0
      %2835 = vmatprep.subr.bf16.mxu0 0
      %2836 = vmatpush1.bf16.msra.mxu0 0
      %2837 = vmatprep.subr.bf16.mxu0 0
      %2838 = vmatpush1.bf16.msra.mxu0 0
      %2839 = vmatprep.subr.bf16.mxu0 0
      %2840 = vmatpush1.bf16.msra.mxu0 0
      %2841 = vmatprep.subr.bf16.mxu0 0
      %2842 = vmatpush1.bf16.msra.mxu0 0
      %2843 = vmatprep.subr.bf16.mxu0 0
      %2844 = vmatpush1.bf16.msra.mxu0 0
      %2845 = vmatprep.subr.bf16.mxu0 0
      %2846 = vmatpush1.bf16.msra.mxu0 0
      %2847 = vmatprep.subr.bf16.mxu0 0
      %2848 = vmatpush1.bf16.msra.mxu0 0
      %2849 = vmatprep.mubr.bf16.mxu0 0
      %2850 = vmatmul.mubr.bf16.gmra.mrb[0].mxu0 %v2815
      %v2851 = vpop.f32.mrb[0].mxu0
      %v2852 = vadd.f32 0.0, %v2851
      %v2853 = vpop.f32.mrb[0].mxu0
      %v2854 = vpop.f32.mrb[0].mxu0
      %v2855 = vadd.f32 0.0, %v2854
      %v2856 = vpop.f32.mrb[0].mxu0
      %2857 = vdwg.mxu0
      %v2862 = vunpack.c.l.b16 %v2769
      %v2863 = vunpack.c.l.b16 %v2770
      %v2864 = vunpack.c.l.b16 %v2771
      %v2865 = vunpack.c.l.b16 %v2772
      %v2866 = vpack.c.b16 %v2863, %v2862
      %v2867 = vpack.c.b16 %v2865, %v2864
      %v2871 = vsel %vm1304, %v2773, 0
      %2873 = vmatprep.subr.bf16.mxu0 0
      %2874 = vmatpush1.bf16.msra.mxu0 %v2866
      %2875 = vmatprep.subr.bf16.mxu0 0
      %2876 = vmatpush1.bf16.msra.mxu0 %v2867
      %2877 = vmatprep.subr.bf16.mxu0 0
      %2878 = vmatpush1.bf16.msra.mxu0 0
      %2879 = vmatprep.subr.bf16.mxu0 0
      %2880 = vmatpush1.bf16.msra.mxu0 0
      %2881 = vmatprep.subr.bf16.mxu0 0
      %2882 = vmatpush1.bf16.msra.mxu0 0
      %2883 = vmatprep.subr.bf16.mxu0 0
      %2884 = vmatpush1.bf16.msra.mxu0 0
      %2885 = vmatprep.subr.bf16.mxu0 0
      %2886 = vmatpush1.bf16.msra.mxu0 0
      %2887 = vmatprep.subr.bf16.mxu0 0
      %2888 = vmatpush1.bf16.msra.mxu0 0
      %2889 = vmatprep.subr.bf16.mxu0 0
      %2890 = vmatpush1.bf16.msra.mxu0 0
      %2891 = vmatprep.subr.bf16.mxu0 0
      %2892 = vmatpush1.bf16.msra.mxu0 0
      %2893 = vmatprep.subr.bf16.mxu0 0
      %2894 = vmatpush1.bf16.msra.mxu0 0
      %2895 = vmatprep.subr.bf16.mxu0 0
      %2896 = vmatpush1.bf16.msra.mxu0 0
      %2897 = vmatprep.subr.bf16.mxu0 0
      %2898 = vmatpush1.bf16.msra.mxu0 0
      %2899 = vmatprep.subr.bf16.mxu0 0
      %2900 = vmatpush1.bf16.msra.mxu0 0
      %2901 = vmatprep.subr.bf16.mxu0 0
      %2902 = vmatpush1.bf16.msra.mxu0 0
      %2903 = vmatprep.subr.bf16.mxu0 0
      %2904 = vmatpush1.bf16.msra.mxu0 0
      %2905 = vmatprep.mubr.bf16.mxu0 0
      %2906 = vmatmul.mubr.bf16.gmra.mrb[0].mxu0 %v2871
      %v2907 = vpop.f32.mrb[0].mxu0
      %v2908 = vadd.f32 %v2852, %v2907
      %v2909 = vpop.f32.mrb[0].mxu0
      %v2910 = vpop.f32.mrb[0].mxu0
      %v2911 = vadd.f32 %v2855, %v2910
      %v2912 = vpop.f32.mrb[0].mxu0
      %2913 = vdwg.mxu0
      %vm2914 = vcmask 1042432
      %v2915 = vrot.slane %v2744, 5
      %v2916 = vrot.slane %v2745, 5
      %v2917 = vsel %vm2914, %v2915, %v2916
      %v2920 = vsel %vm2914, 0.0, %v2915
      %s2921 = scalar_lea.vmem %s20, 32
      %v2922 = vld [vmem:[%s2921] sm:$0xff]
      %v2923 = vld [vmem:[%s2921 + $0x8] sm:$0xff]
      %2925 = vset.pattern.permute.xlu0 0
      %2926 = vperm.xlu0 %2925, %v2922
      %v2927 = vpop.permute.xlu0 %2926
      %2930 = vset.pattern.permute.xlu0 0
      %2931 = vperm.xlu0 %2930, %v2923
      %v2932 = vpop.permute.xlu0 %2931
      %v2934 = vmul.f32 %v2920, %v2927
      %v2935 = vmul.f32 %v2917, %v2932
      %s2936 = scalar_lea.vmem %s21, 32
      %v2937 = vld [vmem:[%s2936] sm:$0xf]
      %v2938 = vld [vmem:[%s2936 + $0x4] sm:$0xf]
      %v2939 = vld [vmem:[%s2936 + $0x8] sm:$0xf]
      %v2940 = vld [vmem:[%s2936 + $0xc] sm:$0xf]
      %v2941 = vpack.c.bf16 %v2935, %v2934
      %v2946 = vunpack.c.l.b16 %v2937
      %v2947 = vunpack.c.l.b16 %v2938
      %v2948 = vunpack.c.l.b16 %v2939
      %v2949 = vunpack.c.l.b16 %v2940
      %v2950 = vpack.c.b16 %v2947, %v2946
      %v2951 = vpack.c.b16 %v2949, %v2948
      %v2955 = vsel %vm1304, %v2941, 0
      %2957 = vmatprep.subr.bf16.mxu0 0
      %2958 = vmatpush1.bf16.msra.mxu0 %v2950
      %2959 = vmatprep.subr.bf16.mxu0 0
      %2960 = vmatpush1.bf16.msra.mxu0 %v2951
      %2961 = vmatprep.subr.bf16.mxu0 0
      %2962 = vmatpush1.bf16.msra.mxu0 0
      %2963 = vmatprep.subr.bf16.mxu0 0
      %2964 = vmatpush1.bf16.msra.mxu0 0
      %2965 = vmatprep.subr.bf16.mxu0 0
      %2966 = vmatpush1.bf16.msra.mxu0 0
      %2967 = vmatprep.subr.bf16.mxu0 0
      %2968 = vmatpush1.bf16.msra.mxu0 0
      %2969 = vmatprep.subr.bf16.mxu0 0
      %2970 = vmatpush1.bf16.msra.mxu0 0
      %2971 = vmatprep.subr.bf16.mxu0 0
      %2972 = vmatpush1.bf16.msra.mxu0 0
      %2973 = vmatprep.subr.bf16.mxu0 0
      %2974 = vmatpush1.bf16.msra.mxu0 0
      %2975 = vmatprep.subr.bf16.mxu0 0
      %2976 = vmatpush1.bf16.msra.mxu0 0
      %2977 = vmatprep.subr.bf16.mxu0 0
      %2978 = vmatpush1.bf16.msra.mxu0 0
      %2979 = vmatprep.subr.bf16.mxu0 0
      %2980 = vmatpush1.bf16.msra.mxu0 0
      %2981 = vmatprep.subr.bf16.mxu0 0
      %2982 = vmatpush1.bf16.msra.mxu0 0
      %2983 = vmatprep.subr.bf16.mxu0 0
      %2984 = vmatpush1.bf16.msra.mxu0 0
      %2985 = vmatprep.subr.bf16.mxu0 0
      %2986 = vmatpush1.bf16.msra.mxu0 0
      %2987 = vmatprep.subr.bf16.mxu0 0
      %2988 = vmatpush1.bf16.msra.mxu0 0
      %2989 = vmatprep.mubr.bf16.mxu0 0
      %2990 = vmatmul.mubr.bf16.gmra.mrb[0].mxu0 %v2955
      %v2991 = vpop.f32.mrb[0].mxu0
      %v2992 = vadd.f32 0.0, %v2991
      %v2993 = vpop.f32.mrb[0].mxu0
      %v2994 = vpop.f32.mrb[0].mxu0
      %v2995 = vadd.f32 0.0, %v2994
      %v2996 = vpop.f32.mrb[0].mxu0
      %2997 = vdwg.mxu0
      %v2998 = vadd.f32 %v2908, %v2992
      %v2999 = vadd.f32 %v2911, %v2995
      %vm3000 = vcmask 1040384
      %v3001 = vrot.slane %v2744, 7
      %v3002 = vrot.slane %v2745, 7
      %v3003 = vsel %vm3000, %v3001, %v3002
      %v3006 = vsel %vm3000, 0.0, %v3001
      %s3007 = scalar_lea.vmem %s20, 48
      %v3008 = vld [vmem:[%s3007] sm:$0xff]
      %v3009 = vld [vmem:[%s3007 + $0x8] sm:$0xff]
      %3011 = vset.pattern.permute.xlu0 0
      %3012 = vperm.xlu0 %3011, %v3008
      %v3013 = vpop.permute.xlu0 %3012
      %3016 = vset.pattern.permute.xlu0 0
      %3017 = vperm.xlu0 %3016, %v3009
      %v3018 = vpop.permute.xlu0 %3017
      %v3020 = vmul.f32 %v3006, %v3013
      %v3021 = vmul.f32 %v3003, %v3018
      %s3022 = scalar_lea.vmem %s21, 48
      %v3023 = vld [vmem:[%s3022] sm:$0xf]
      %v3024 = vld [vmem:[%s3022 + $0x4] sm:$0xf]
      %v3025 = vld [vmem:[%s3022 + $0x8] sm:$0xf]
      %v3026 = vld [vmem:[%s3022 + $0xc] sm:$0xf]
      %v3027 = vpack.c.bf16 %v3021, %v3020
      %v3032 = vunpack.c.l.b16 %v3023
      %v3033 = vunpack.c.l.b16 %v3024
      %v3034 = vunpack.c.l.b16 %v3025
      %v3035 = vunpack.c.l.b16 %v3026
      %v3036 = vpack.c.b16 %v3033, %v3032
      %v3037 = vpack.c.b16 %v3035, %v3034
      %v3041 = vsel %vm1304, %v3027, 0
      %3043 = vmatprep.subr.bf16.mxu0 0
      %3044 = vmatpush1.bf16.msra.mxu0 %v3036
      %3045 = vmatprep.subr.bf16.mxu0 0
      %3046 = vmatpush1.bf16.msra.mxu0 %v3037
      %3047 = vmatprep.subr.bf16.mxu0 0
      %3048 = vmatpush1.bf16.msra.mxu0 0
      %3049 = vmatprep.subr.bf16.mxu0 0
      %3050 = vmatpush1.bf16.msra.mxu0 0
      %3051 = vmatprep.subr.bf16.mxu0 0
      %3052 = vmatpush1.bf16.msra.mxu0 0
      %3053 = vmatprep.subr.bf16.mxu0 0
      %3054 = vmatpush1.bf16.msra.mxu0 0
      %3055 = vmatprep.subr.bf16.mxu0 0
      %3056 = vmatpush1.bf16.msra.mxu0 0
      %3057 = vmatprep.subr.bf16.mxu0 0
      %3058 = vmatpush1.bf16.msra.mxu0 0
      %3059 = vmatprep.subr.bf16.mxu0 0
      %3060 = vmatpush1.bf16.msra.mxu0 0
      %3061 = vmatprep.subr.bf16.mxu0 0
      %3062 = vmatpush1.bf16.msra.mxu0 0
      %3063 = vmatprep.subr.bf16.mxu0 0
      %3064 = vmatpush1.bf16.msra.mxu0 0
      %3065 = vmatprep.subr.bf16.mxu0 0
      %3066 = vmatpush1.bf16.msra.mxu0 0
      %3067 = vmatprep.subr.bf16.mxu0 0
      %3068 = vmatpush1.bf16.msra.mxu0 0
      %3069 = vmatprep.subr.bf16.mxu0 0
      %3070 = vmatpush1.bf16.msra.mxu0 0
      %3071 = vmatprep.subr.bf16.mxu0 0
      %3072 = vmatpush1.bf16.msra.mxu0 0
      %3073 = vmatprep.subr.bf16.mxu0 0
      %3074 = vmatpush1.bf16.msra.mxu0 0
      %3075 = vmatprep.mubr.bf16.mxu0 0
      %3076 = vmatmul.mubr.bf16.gmra.mrb[0].mxu0 %v3041
      %v3077 = vpop.f32.mrb[0].mxu0
      %v3078 = vadd.f32 0.0, %v3077
      %v3079 = vpop.f32.mrb[0].mxu0
      %v3080 = vpop.f32.mrb[0].mxu0
      %v3081 = vadd.f32 0.0, %v3080
      %v3082 = vpop.f32.mrb[0].mxu0
      %3083 = vdwg.mxu0
      %v3084 = vadd.f32 %v2998, %v3078
      %v3085 = vadd.f32 %v2999, %v3081
      %s3086 = scalar_lea.vmem %s20, 64
      %v3087 = vld [vmem:[%s3086] sm:$0xff]
      %v3088 = vld [vmem:[%s3086 + $0x8] sm:$0xff]
      %3090 = vset.pattern.permute.xlu0 0
      %3091 = vperm.xlu0 %3090, %v3087
      %v3092 = vpop.permute.xlu0 %3091
      %3095 = vset.pattern.permute.xlu0 0
      %3096 = vperm.xlu0 %3095, %v3088
      %v3097 = vpop.permute.xlu0 %3096
      %v3099 = vmul.f32 %v2744, %v3092
      %v3100 = vmul.f32 %v2745, %v3097
      %s3101 = scalar_lea.vmem %s21, 64
      %v3102 = vld [vmem:[%s3101] sm:$0xf]
      %v3103 = vld [vmem:[%s3101 + $0x4] sm:$0xf]
      %v3104 = vld [vmem:[%s3101 + $0x8] sm:$0xf]
      %v3105 = vld [vmem:[%s3101 + $0xc] sm:$0xf]
      %v3106 = vpack.c.bf16 %v3100, %v3099
      %v3111 = vunpack.c.l.b16 %v3102
      %v3112 = vunpack.c.l.b16 %v3103
      %v3113 = vunpack.c.l.b16 %v3104
      %v3114 = vunpack.c.l.b16 %v3105
      %v3115 = vpack.c.b16 %v3112, %v3111
      %v3116 = vpack.c.b16 %v3114, %v3113
      %v3120 = vsel %vm1304, %v3106, 0
      %3122 = vmatprep.subr.bf16.mxu0 0
      %3123 = vmatpush1.bf16.msra.mxu0 %v3115
      %3124 = vmatprep.subr.bf16.mxu0 0
      %3125 = vmatpush1.bf16.msra.mxu0 %v3116
      %3126 = vmatprep.subr.bf16.mxu0 0
      %3127 = vmatpush1.bf16.msra.mxu0 0
      %3128 = vmatprep.subr.bf16.mxu0 0
      %3129 = vmatpush1.bf16.msra.mxu0 0
      %3130 = vmatprep.subr.bf16.mxu0 0
      %3131 = vmatpush1.bf16.msra.mxu0 0
      %3132 = vmatprep.subr.bf16.mxu0 0
      %3133 = vmatpush1.bf16.msra.mxu0 0
      %3134 = vmatprep.subr.bf16.mxu0 0
      %3135 = vmatpush1.bf16.msra.mxu0 0
      %3136 = vmatprep.subr.bf16.mxu0 0
      %3137 = vmatpush1.bf16.msra.mxu0 0
      %3138 = vmatprep.subr.bf16.mxu0 0
      %3139 = vmatpush1.bf16.msra.mxu0 0
      %3140 = vmatprep.subr.bf16.mxu0 0
      %3141 = vmatpush1.bf16.msra.mxu0 0
      %3142 = vmatprep.subr.bf16.mxu0 0
      %3143 = vmatpush1.bf16.msra.mxu0 0
      %3144 = vmatprep.subr.bf16.mxu0 0
      %3145 = vmatpush1.bf16.msra.mxu0 0
      %3146 = vmatprep.subr.bf16.mxu0 0
      %3147 = vmatpush1.bf16.msra.mxu0 0
      %3148 = vmatprep.subr.bf16.mxu0 0
      %3149 = vmatpush1.bf16.msra.mxu0 0
      %3150 = vmatprep.subr.bf16.mxu0 0
      %3151 = vmatpush1.bf16.msra.mxu0 0
      %3152 = vmatprep.subr.bf16.mxu0 0
      %3153 = vmatpush1.bf16.msra.mxu0 0
      %3154 = vmatprep.mubr.bf16.mxu0 0
      %3155 = vmatmul.mubr.bf16.gmra.mrb[0].mxu0 %v3120
      %v3156 = vpop.f32.mrb[0].mxu0
      %v3157 = vadd.f32 0.0, %v3156
      %v3158 = vpop.f32.mrb[0].mxu0
      %v3159 = vpop.f32.mrb[0].mxu0
      %v3160 = vadd.f32 0.0, %v3159
      %v3161 = vpop.f32.mrb[0].mxu0
      %3162 = vdwg.mxu0
      %v3163 = vadd.f32 %v3084, %v3157
      %v3164 = vadd.f32 %v3085, %v3160
      %vm3165 = vcmask 1046528
      %v3166 = vrot.slane %v2744, 1
      %v3167 = vrot.slane %v2745, 1
      %v3168 = vsel %vm3165, %v3166, %v3167
      %v3171 = vsel %vm3165, %v3167, 0.0
      %s3172 = scalar_lea.vmem %s20, 80
      %v3173 = vld [vmem:[%s3172] sm:$0xff]
      %v3174 = vld [vmem:[%s3172 + $0x8] sm:$0xff]
      %3176 = vset.pattern.permute.xlu0 0
      %3177 = vperm.xlu0 %3176, %v3173
      %v3178 = vpop.permute.xlu0 %3177
      %3181 = vset.pattern.permute.xlu0 0
      %3182 = vperm.xlu0 %3181, %v3174
      %v3183 = vpop.permute.xlu0 %3182
      %v3185 = vmul.f32 %v3168, %v3178
      %v3186 = vmul.f32 %v3171, %v3183
      %s3187 = scalar_lea.vmem %s21, 80
      %v3188 = vld [vmem:[%s3187] sm:$0xf]
      %v3189 = vld [vmem:[%s3187 + $0x4] sm:$0xf]
      %v3190 = vld [vmem:[%s3187 + $0x8] sm:$0xf]
      %v3191 = vld [vmem:[%s3187 + $0xc] sm:$0xf]
      %v3192 = vpack.c.bf16 %v3186, %v3185
      %v3197 = vunpack.c.l.b16 %v3188
      %v3198 = vunpack.c.l.b16 %v3189
      %v3199 = vunpack.c.l.b16 %v3190
      %v3200 = vunpack.c.l.b16 %v3191
      %v3201 = vpack.c.b16 %v3198, %v3197
      %v3202 = vpack.c.b16 %v3200, %v3199
      %v3206 = vsel %vm1304, %v3192, 0
      %3208 = vmatprep.subr.bf16.mxu0 0
      %3209 = vmatpush1.bf16.msra.mxu0 %v3201
      %3210 = vmatprep.subr.bf16.mxu0 0
      %3211 = vmatpush1.bf16.msra.mxu0 %v3202
      %3212 = vmatprep.subr.bf16.mxu0 0
      %3213 = vmatpush1.bf16.msra.mxu0 0
      %3214 = vmatprep.subr.bf16.mxu0 0
      %3215 = vmatpush1.bf16.msra.mxu0 0
      %3216 = vmatprep.subr.bf16.mxu0 0
      %3217 = vmatpush1.bf16.msra.mxu0 0
      %3218 = vmatprep.subr.bf16.mxu0 0
      %3219 = vmatpush1.bf16.msra.mxu0 0
      %3220 = vmatprep.subr.bf16.mxu0 0
      %3221 = vmatpush1.bf16.msra.mxu0 0
      %3222 = vmatprep.subr.bf16.mxu0 0
      %3223 = vmatpush1.bf16.msra.mxu0 0
      %3224 = vmatprep.subr.bf16.mxu0 0
      %3225 = vmatpush1.bf16.msra.mxu0 0
      %3226 = vmatprep.subr.bf16.mxu0 0
      %3227 = vmatpush1.bf16.msra.mxu0 0
      %3228 = vmatprep.subr.bf16.mxu0 0
      %3229 = vmatpush1.bf16.msra.mxu0 0
      %3230 = vmatprep.subr.bf16.mxu0 0
      %3231 = vmatpush1.bf16.msra.mxu0 0
      %3232 = vmatprep.subr.bf16.mxu0 0
      %3233 = vmatpush1.bf16.msra.mxu0 0
      %3234 = vmatprep.subr.bf16.mxu0 0
      %3235 = vmatpush1.bf16.msra.mxu0 0
      %3236 = vmatprep.subr.bf16.mxu0 0
      %3237 = vmatpush1.bf16.msra.mxu0 0
      %3238 = vmatprep.subr.bf16.mxu0 0
      %3239 = vmatpush1.bf16.msra.mxu0 0
      %3240 = vmatprep.mubr.bf16.mxu0 0
      %3241 = vmatmul.mubr.bf16.gmra.mrb[0].mxu0 %v3206
      %v3242 = vpop.f32.mrb[0].mxu0
      %v3243 = vadd.f32 0.0, %v3242
      %v3244 = vpop.f32.mrb[0].mxu0
      %v3245 = vpop.f32.mrb[0].mxu0
      %v3246 = vadd.f32 0.0, %v3245
      %v3247 = vpop.f32.mrb[0].mxu0
      %3248 = vdwg.mxu0
      %v3249 = vadd.f32 %v3163, %v3243
      %v3250 = vadd.f32 %v3164, %v3246
      %v3252 = vsel %vm2748, %v2750, 0.0
      %s3253 = scalar_lea.vmem %s20, 96
      %v3254 = vld [vmem:[%s3253] sm:$0xff]
      %v3255 = vld [vmem:[%s3253 + $0x8] sm:$0xff]
      %3257 = vset.pattern.permute.xlu0 0
      %3258 = vperm.xlu0 %3257, %v3254
      %v3259 = vpop.permute.xlu0 %3258
      %3262 = vset.pattern.permute.xlu0 0
      %3263 = vperm.xlu0 %3262, %v3255
      %v3264 = vpop.permute.xlu0 %3263
      %v3266 = vmul.f32 %v2751, %v3259
      %v3267 = vmul.f32 %v3252, %v3264
      %s3268 = scalar_lea.vmem %s21, 96
      %v3269 = vld [vmem:[%s3268] sm:$0xf]
      %v3270 = vld [vmem:[%s3268 + $0x4] sm:$0xf]
      %v3271 = vld [vmem:[%s3268 + $0x8] sm:$0xf]
      %v3272 = vld [vmem:[%s3268 + $0xc] sm:$0xf]
      %v3273 = vpack.c.bf16 %v3267, %v3266
      %v3278 = vunpack.c.l.b16 %v3269
      %v3279 = vunpack.c.l.b16 %v3270
      %v3280 = vunpack.c.l.b16 %v3271
      %v3281 = vunpack.c.l.b16 %v3272
      %v3282 = vpack.c.b16 %v3279, %v3278
      %v3283 = vpack.c.b16 %v3281, %v3280
      %v3287 = vsel %vm1304, %v3273, 0
      %3289 = vmatprep.subr.bf16.mxu0 0
      %3290 = vmatpush1.bf16.msra.mxu0 %v3282
      %3291 = vmatprep.subr.bf16.mxu0 0
      %3292 = vmatpush1.bf16.msra.mxu0 %v3283
      %3293 = vmatprep.subr.bf16.mxu0 0
      %3294 = vmatpush1.bf16.msra.mxu0 0
      %3295 = vmatprep.subr.bf16.mxu0 0
      %3296 = vmatpush1.bf16.msra.mxu0 0
      %3297 = vmatprep.subr.bf16.mxu0 0
      %3298 = vmatpush1.bf16.msra.mxu0 0
      %3299 = vmatprep.subr.bf16.mxu0 0
      %3300 = vmatpush1.bf16.msra.mxu0 0
      %3301 = vmatprep.subr.bf16.mxu0 0
      %3302 = vmatpush1.bf16.msra.mxu0 0
      %3303 = vmatprep.subr.bf16.mxu0 0
      %3304 = vmatpush1.bf16.msra.mxu0 0
      %3305 = vmatprep.subr.bf16.mxu0 0
      %3306 = vmatpush1.bf16.msra.mxu0 0
      %3307 = vmatprep.subr.bf16.mxu0 0
      %3308 = vmatpush1.bf16.msra.mxu0 0
      %3309 = vmatprep.subr.bf16.mxu0 0
      %3310 = vmatpush1.bf16.msra.mxu0 0
      %3311 = vmatprep.subr.bf16.mxu0 0
      %3312 = vmatpush1.bf16.msra.mxu0 0
      %3313 = vmatprep.subr.bf16.mxu0 0
      %3314 = vmatpush1.bf16.msra.mxu0 0
      %3315 = vmatprep.subr.bf16.mxu0 0
      %3316 = vmatpush1.bf16.msra.mxu0 0
      %3317 = vmatprep.subr.bf16.mxu0 0
      %3318 = vmatpush1.bf16.msra.mxu0 0
      %3319 = vmatprep.subr.bf16.mxu0 0
      %3320 = vmatpush1.bf16.msra.mxu0 0
      %3321 = vmatprep.mubr.bf16.mxu0 0
      %3322 = vmatmul.mubr.bf16.gmra.mrb[0].mxu0 %v3287
      %v3323 = vpop.f32.mrb[0].mxu0
      %v3324 = vadd.f32 0.0, %v3323
      %v3325 = vpop.f32.mrb[0].mxu0
      %v3326 = vpop.f32.mrb[0].mxu0
      %v3327 = vadd.f32 0.0, %v3326
      %v3328 = vpop.f32.mrb[0].mxu0
      %3329 = vdwg.mxu0
      %v3330 = vadd.f32 %v3249, %v3324
      %v3331 = vadd.f32 %v3250, %v3327
      %v3333 = vsel %vm2774, %v2776, 0.0
      %s3334 = scalar_lea.vmem %s20, 112
      %v3335 = vld [vmem:[%s3334] sm:$0xff]
      %v3336 = vld [vmem:[%s3334 + $0x8] sm:$0xff]
      %3338 = vset.pattern.permute.xlu0 0
      %3339 = vperm.xlu0 %3338, %v3335
      %v3340 = vpop.permute.xlu0 %3339
      %3343 = vset.pattern.permute.xlu0 0
      %3344 = vperm.xlu0 %3343, %v3336
      %v3345 = vpop.permute.xlu0 %3344
      %v3347 = vmul.f32 %v2777, %v3340
      %v3348 = vmul.f32 %v3333, %v3345
      %s3349 = scalar_lea.vmem %s21, 112
      %v3350 = vld [vmem:[%s3349] sm:$0xf]
      %v3351 = vld [vmem:[%s3349 + $0x4] sm:$0xf]
      %v3352 = vld [vmem:[%s3349 + $0x8] sm:$0xf]
      %v3353 = vld [vmem:[%s3349 + $0xc] sm:$0xf]
      %v3354 = vpack.c.bf16 %v3348, %v3347
      %v3359 = vunpack.c.l.b16 %v3350
      %v3360 = vunpack.c.l.b16 %v3351
      %v3361 = vunpack.c.l.b16 %v3352
      %v3362 = vunpack.c.l.b16 %v3353
      %v3363 = vpack.c.b16 %v3360, %v3359
      %v3364 = vpack.c.b16 %v3362, %v3361
      %v3368 = vsel %vm1304, %v3354, 0
      %3370 = vmatprep.subr.bf16.mxu0 0
      %3371 = vmatpush1.bf16.msra.mxu0 %v3363
      %3372 = vmatprep.subr.bf16.mxu0 0
      %3373 = vmatpush1.bf16.msra.mxu0 %v3364
      %3374 = vmatprep.subr.bf16.mxu0 0
      %3375 = vmatpush1.bf16.msra.mxu0 0
      %3376 = vmatprep.subr.bf16.mxu0 0
      %3377 = vmatpush1.bf16.msra.mxu0 0
      %3378 = vmatprep.subr.bf16.mxu0 0
      %3379 = vmatpush1.bf16.msra.mxu0 0
      %3380 = vmatprep.subr.bf16.mxu0 0
      %3381 = vmatpush1.bf16.msra.mxu0 0
      %3382 = vmatprep.subr.bf16.mxu0 0
      %3383 = vmatpush1.bf16.msra.mxu0 0
      %3384 = vmatprep.subr.bf16.mxu0 0
      %3385 = vmatpush1.bf16.msra.mxu0 0
      %3386 = vmatprep.subr.bf16.mxu0 0
      %3387 = vmatpush1.bf16.msra.mxu0 0
      %3388 = vmatprep.subr.bf16.mxu0 0
      %3389 = vmatpush1.bf16.msra.mxu0 0
      %3390 = vmatprep.subr.bf16.mxu0 0
      %3391 = vmatpush1.bf16.msra.mxu0 0
      %3392 = vmatprep.subr.bf16.mxu0 0
      %3393 = vmatpush1.bf16.msra.mxu0 0
      %3394 = vmatprep.subr.bf16.mxu0 0
      %3395 = vmatpush1.bf16.msra.mxu0 0
      %3396 = vmatprep.subr.bf16.mxu0 0
      %3397 = vmatpush1.bf16.msra.mxu0 0
      %3398 = vmatprep.subr.bf16.mxu0 0
      %3399 = vmatpush1.bf16.msra.mxu0 0
      %3400 = vmatprep.subr.bf16.mxu0 0
      %3401 = vmatpush1.bf16.msra.mxu0 0
      %3402 = vmatprep.mubr.bf16.mxu0 0
      %3403 = vmatmul.mubr.bf16.gmra.mrb[0].mxu0 %v3368
      %v3404 = vpop.f32.mrb[0].mxu0
      %v3405 = vadd.f32 0.0, %v3404
      %v3406 = vpop.f32.mrb[0].mxu0
      %v3407 = vpop.f32.mrb[0].mxu0
      %v3408 = vadd.f32 0.0, %v3407
      %v3409 = vpop.f32.mrb[0].mxu0
      %3410 = vdwg.mxu0
      %v3411 = vadd.f32 %v3330, %v3405
      %v3412 = vadd.f32 %v3331, %v3408
      %v3414 = vsel %vm2914, %v2916, 0.0
      %s3415 = scalar_lea.vmem %s20, 128
      %v3416 = vld [vmem:[%s3415] sm:$0xff]
      %v3417 = vld [vmem:[%s3415 + $0x8] sm:$0xff]
      %3419 = vset.pattern.permute.xlu0 0
      %3420 = vperm.xlu0 %3419, %v3416
      %v3421 = vpop.permute.xlu0 %3420
      %3424 = vset.pattern.permute.xlu0 0
      %3425 = vperm.xlu0 %3424, %v3417
      %v3426 = vpop.permute.xlu0 %3425
      %v3428 = vmul.f32 %v2917, %v3421
      %v3429 = vmul.f32 %v3414, %v3426
      %s3430 = scalar_lea.vmem %s21, 128
      %v3431 = vld [vmem:[%s3430] sm:$0xf]
      %v3432 = vld [vmem:[%s3430 + $0x4] sm:$0xf]
      %v3433 = vld [vmem:[%s3430 + $0x8] sm:$0xf]
      %v3434 = vld [vmem:[%s3430 + $0xc] sm:$0xf]
      %v3435 = vpack.c.bf16 %v3429, %v3428
      %v3440 = vunpack.c.l.b16 %v3431
      %v3441 = vunpack.c.l.b16 %v3432
      %v3442 = vunpack.c.l.b16 %v3433
      %v3443 = vunpack.c.l.b16 %v3434
      %v3444 = vpack.c.b16 %v3441, %v3440
      %v3445 = vpack.c.b16 %v3443, %v3442
      %v3449 = vsel %vm1304, %v3435, 0
      %3451 = vmatprep.subr.bf16.mxu0 0
      %3452 = vmatpush1.bf16.msra.mxu0 %v3444
      %3453 = vmatprep.subr.bf16.mxu0 0
      %3454 = vmatpush1.bf16.msra.mxu0 %v3445
      %3455 = vmatprep.subr.bf16.mxu0 0
      %3456 = vmatpush1.bf16.msra.mxu0 0
      %3457 = vmatprep.subr.bf16.mxu0 0
      %3458 = vmatpush1.bf16.msra.mxu0 0
      %3459 = vmatprep.subr.bf16.mxu0 0
      %3460 = vmatpush1.bf16.msra.mxu0 0
      %3461 = vmatprep.subr.bf16.mxu0 0
      %3462 = vmatpush1.bf16.msra.mxu0 0
      %3463 = vmatprep.subr.bf16.mxu0 0
      %3464 = vmatpush1.bf16.msra.mxu0 0
      %3465 = vmatprep.subr.bf16.mxu0 0
      %3466 = vmatpush1.bf16.msra.mxu0 0
      %3467 = vmatprep.subr.bf16.mxu0 0
      %3468 = vmatpush1.bf16.msra.mxu0 0
      %3469 = vmatprep.subr.bf16.mxu0 0
      %3470 = vmatpush1.bf16.msra.mxu0 0
      %3471 = vmatprep.subr.bf16.mxu0 0
      %3472 = vmatpush1.bf16.msra.mxu0 0
      %3473 = vmatprep.subr.bf16.mxu0 0
      %3474 = vmatpush1.bf16.msra.mxu0 0
      %3475 = vmatprep.subr.bf16.mxu0 0
      %3476 = vmatpush1.bf16.msra.mxu0 0
      %3477 = vmatprep.subr.bf16.mxu0 0
      %3478 = vmatpush1.bf16.msra.mxu0 0
      %3479 = vmatprep.subr.bf16.mxu0 0
      %3480 = vmatpush1.bf16.msra.mxu0 0
      %3481 = vmatprep.subr.bf16.mxu0 0
      %3482 = vmatpush1.bf16.msra.mxu0 0
      %3483 = vmatprep.mubr.bf16.mxu0 0
      %3484 = vmatmul.mubr.bf16.gmra.mrb[0].mxu0 %v3449
      %v3485 = vpop.f32.mrb[0].mxu0
      %v3486 = vadd.f32 0.0, %v3485
      %v3487 = vpop.f32.mrb[0].mxu0
      %v3488 = vpop.f32.mrb[0].mxu0
      %v3489 = vadd.f32 0.0, %v3488
      %v3490 = vpop.f32.mrb[0].mxu0
      %3491 = vdwg.mxu0
      %v3492 = vadd.f32 %v3411, %v3486
      %v3493 = vadd.f32 %v3412, %v3489
      %v3494 = vld [vmem:[%s22] sm:$0x1]
      %v3496 = vlaneseq
      %v3497 = vshrl.u32 %v3496, 7
      %v3498 = vsub.s32 0, %v3497
      %v3499 = vrot.slane %v3494, %v3498
      %v3501 = vadd.f32 %v3492, %v3499
      %v3502 = vadd.f32 %v3493, %v3499
      %v3503 = vld [vmem:[%s23] sm:$0x1]
      %v3504 = vld [vmem:[%s24] sm:$0x1]
      %v3505 = vsel %vm1304, %v3501, 0.0
      %3506 = vadd.xlane.f32.xlu0 %v3505
      %v3507 = vpop.xlane.xlu0 %3506
      %v3508 = vsel %vm1304, %v3502, 0.0
      %3509 = vadd.xlane.f32.xlu0 %v3508
      %v3510 = vpop.xlane.xlu0 %3509
      %v3511 = vmul.f32 %v3507, %v1311
      %v3512 = vmul.f32 %v3510, %v1311
      %v3513 = vsub.f32 %v3501, %v3511
      %v3514 = vsub.f32 %v3502, %v3512
      %v3515 = vmul.f32 %v3513, %v3513
      %v3516 = vmul.f32 %v3514, %v3514
      %v3517 = vsel %vm1304, %v3515, 0.0
      %3518 = vadd.xlane.f32.xlu0 %v3517
      %v3519 = vpop.xlane.xlu0 %3518
      %v3520 = vsel %vm1304, %v3516, 0.0
      %3521 = vadd.xlane.f32.xlu0 %v3520
      %v3522 = vpop.xlane.xlu0 %3521
      %v3523 = vmul.f32 %v3519, %v1311
      %v3524 = vmul.f32 %v3522, %v1311
      %v3525 = vadd.f32 %v3523, 1e-06
      %v3526 = vadd.f32 %v3524, 1e-06
      %v3527 = vrsqrt.pop %v3525
      %v3528 = vrsqrt.pop %v3526
      %v3529 = vmul.f32 %v3513, %v3527
      %v3530 = vmul.f32 %v3514, %v3528
      %v3532 = vlaneseq
      %v3533 = vshrl.u32 %v3532, 7
      %v3534 = vsub.s32 0, %v3533
      %v3535 = vrot.slane %v3503, %v3534
      %v3537 = vmul.f32 %v3529, %v3535
      %v3538 = vmul.f32 %v3530, %v3535
      %v3540 = vlaneseq
      %v3541 = vshrl.u32 %v3540, 7
      %v3542 = vsub.s32 0, %v3541
      %v3543 = vrot.slane %v3504, %v3542
      %v3545 = vadd.f32 %v3537, %v3543
      %v3546 = vadd.f32 %v3538, %v3543
      %3547 = vst.msk [vmem:[%s764] sm:$0xff] %vm1304, %v3545
      %3548 = vst.msk [vmem:[%s764 + $0x8] sm:$0xff] %vm1304, %v3546
      %p3549 = scmp.lt.s32.totalorder %s36, 1
      %s3550 = scalar_select %p3549, %s36, 1
      %s3551 = smul.addr %s3550, 2
      %s3552 = smul.addr %s3551, 8
      %s3553 = scalar_lea.vmem %s25, %s3552
      // Predicated region
      $region121: #{sam_forward.5} parent=119 // pred_check
        %p3554 = pneg %p584
      $region122: #{sam_forward.5} parent=119 // pred_check_branch
        %3556 = sbr.rel (%p3554) target = $region124
      $region123: #{sam_forward.5} parent=119 // pred_region
        _
      $region124: #{sam_forward.5} parent=119 // pred_fallthru
        _
    $region120: #{sam_forward.5} parent=5 // pred_fallthru
      _
    %p3557 = scmp.le.s32.totalorder 2, %s31
    // Predicated region
    $region125: #{sam_forward.5} parent=5 // pred_check
      %p3558 = pneg %p3557
    $region126: #{sam_forward.5} parent=5 // pred_check_branch
      %3560 = sbr.rel (%p3558) target = $region128
    $region127: #{sam_forward.5} parent=5 // pred_region
      %s3561 = ssub.s32 %s31, 2
      // Predicated region
      $region129: #{sam_forward.5} parent=127 // pred_check
        %p3562 = pneg %p590
      $region130: #{sam_forward.5} parent=127 // pred_check_branch
        %3564 = sbr.rel (%p3562) target = $region132
      $region131: #{sam_forward.5} parent=127 // pred_region
        %p3565 = scmp.lt.s32.totalorder %s37, 1
        %s3566 = scalar_select %p3565, %s37, 1
        %s3567 = smul.addr %s3566, 2
        %s3568 = smul.addr %s3567, 8
        %s3569 = scalar_lea.vmem %s25, %s3568
      $region132: #{sam_forward.5} parent=127 // pred_fallthru
        _
    $region128: #{sam_forward.5} parent=5 // pred_fallthru
      _
  $region6: #{sam_forward.5} parent=0 // loop_footer
    %s35 = sadd.s32 1, %s31
  $region7: #{sam_forward.5} parent=0 // loop_footer_branch
    %30 = sbr.rel target = $region3
  $region8: #{sam_forward.5} parent=0 // loop_exit
    _

// kernel: sam_forward.7
$region0: #{sam_forward.7}
  #allocation0 [shape = 'u32[]', space=smem, size = 0x4, offset = 0x4, fixed_abs, tag = 'smem constant byte address 0x4 - core index']
  #allocation1 [shape = 'u32[144,128]{1,0:T(1,128)}', space=vmem, size = 0x12000, scoped, tag = 'internal scratch']
  %s0 = inlined_call_operand.vmem [shape: f32[64], index: 0, kind: input, shape index: {}]
  %s1 = inlined_call_operand.vmem [shape: f32[2,8,16,16], index: 1, kind: input, shape index: {}]
  %s2 = inlined_call_operand.vmem [shape: f32[64,16], index: 2, kind: input, shape index: {}]
  %s3 = inlined_call_operand.vmem [shape: f32[16,64], index: 3, kind: input, shape index: {}]
  %s4 = inlined_call_operand.vmem [shape: f32[2,64,256], index: 4, kind: output, shape index: {}]
  %s5 = sld [smem:[#allocation0]]
  $region53: #{sam_forward.7} parent=0
    _
  %s7 = ssub.s32 1, %s5
  %s8 = scalar_select 0, %s7, %s5
  $region1: #{sam_forward.7} parent=0
    #allocation2 [shape = 'u8[512]{0}', space=smem, size = 0x200, scoped, tag = 'input window, operand 0, single buffered']
    #allocation3 [shape = 's32[2]{0}', space=sflag, size = 0x8, scoped, tag = 'scoped memory for sam_forward.7']
    %9 = vsyncpa [#allocation3], 0
    loop: start=0, step=1, limit=4
    $region2: #{sam_forward.7} parent=1 // loop_pre_header
      _
    $region3: #{sam_forward.7} parent=1 // loop_header
      %s11 = sphi 0, %s15
      %p12 = scmp.ge.s32.totalorder %s11, 4
      %s19 = sphi 0, %s19
      %s21 = sphi 0, %s19
      %s22 = sphi 0, %s21
      %s36 = sphi 0, %s22
      %s42 = sphi 0, %s44
      %s45 = sphi 0, %s42
      %s46 = sphi 0, %s45
      %s62 = sphi 0, %s46
      %s66 = sphi 0, %s66
      %s68 = sphi 0, %s66
      %s69 = sphi 0, %s68
      %s83 = sphi 0, %s69
      %s87 = sphi 0, %s87
      %s89 = sphi 0, %s87
      %s90 = sphi 0, %s89
      %s104 = sphi 0, %s90
      %s110 = sphi 0, %s112
      %s113 = sphi 0, %s110
      %s114 = sphi 0, %s113
      %s130 = sphi 0, %s114
    $region4: #{sam_forward.7} parent=1 // loop_header_branch
      %14 = sbr.rel (%p12) target = $region8
    $region5: #{sam_forward.7} parent=1 // loop_body
      %s16 = ssub.s32 %s11, 1
      %s17 = ssub.s32 %s11, 2
      %s18 = sadd.s32 %s11, 1
      %s20 = sadd.s32 %s19, 1
      %p23 = scmp.eq.s32.totalorder %s11, 1
      %p24 = scmp.ne.s32.totalorder %s19, %s21
      %p25 = scmp.eq.s32.totalorder %s11, 0
      %p26 = por %p24, %p25
      %p27 = scmp.ne.s32.totalorder %s19, %s21
      %p28 = scmp.eq.s32.totalorder %s16, 1
      %p29 = por %p27, %p28
      %p30 = scmp.ne.s32.totalorder %s21, %s22
      %p31 = scmp.eq.s32.totalorder %s16, 0
      %p32 = por %p30, %p31
      %p33 = scmp.ne.s32.totalorder %s21, %s22
      %p34 = scmp.eq.s32.totalorder %s17, 1
      %p35 = por %p33, %p34
      %p37 = scmp.ne.s32.totalorder %s22, %s36
      %p38 = scmp.eq.s32.totalorder %s17, 0
      %p39 = por %p37, %p38
      %s40 = ssub.s32 %s11, %s18
      %p41 = scmp.eq.s32.totalorder %s40, 0
      %s43 = sadd.s32 %s42, 1
      %s44 = scalar_select %p41, %s42, %s43
      %p47 = pneg %p41
      %p48 = scmp.eq.s32.totalorder %s11, 1
      %p49 = por %p47, %p48
      %p50 = scmp.ne.s32.totalorder %s42, %s45
      %p51 = scmp.eq.s32.totalorder %s11, 0
      %p52 = por %p50, %p51
      %p53 = scmp.ne.s32.totalorder %s42, %s45
      %p54 = scmp.eq.s32.totalorder %s16, 1
      %p55 = por %p53, %p54
      %p56 = scmp.ne.s32.totalorder %s45, %s46
      %p57 = scmp.eq.s32.totalorder %s16, 0
      %p58 = por %p56, %p57
      %p59 = scmp.ne.s32.totalorder %s45, %s46
      %p60 = scmp.eq.s32.totalorder %s17, 1
      %p61 = por %p59, %p60
      %p63 = scmp.ne.s32.totalorder %s46, %s62
      %p64 = scmp.eq.s32.totalorder %s17, 0
      %p65 = por %p63, %p64
      %s67 = sadd.s32 %s66, 1
      %p70 = scmp.eq.s32.totalorder %s11, 1
      %p71 = scmp.ne.s32.totalorder %s66, %s68
      %p72 = scmp.eq.s32.totalorder %s11, 0
      %p73 = por %p71, %p72
      %p74 = scmp.ne.s32.totalorder %s66, %s68
      %p75 = scmp.eq.s32.totalorder %s16, 1
      %p76 = por %p74, %p75
      %p77 = scmp.ne.s32.totalorder %s68, %s69
      %p78 = scmp.eq.s32.totalorder %s16, 0
      %p79 = por %p77, %p78
      %p80 = scmp.ne.s32.totalorder %s68, %s69
      %p81 = scmp.eq.s32.totalorder %s17, 1
      %p82 = por %p80, %p81
      %p84 = scmp.ne.s32.totalorder %s69, %s83
      %p85 = scmp.eq.s32.totalorder %s17, 0
      %p86 = por %p84, %p85
      %s88 = sadd.s32 %s87, 1
      %p91 = scmp.eq.s32.totalorder %s11, 1
      %p92 = scmp.ne.s32.totalorder %s87, %s89
      %p93 = scmp.eq.s32.totalorder %s11, 0
      %p94 = por %p92, %p93
      %p95 = scmp.ne.s32.totalorder %s87, %s89
      %p96 = scmp.eq.s32.totalorder %s16, 1
      %p97 = por %p95, %p96
      %p98 = scmp.ne.s32.totalorder %s89, %s90
      %p99 = scmp.eq.s32.totalorder %s16, 0
      %p100 = por %p98, %p99
      %p101 = scmp.ne.s32.totalorder %s89, %s90
      %p102 = scmp.eq.s32.totalorder %s17, 1
      %p103 = por %p101, %p102
      %p105 = scmp.ne.s32.totalorder %s90, %s104
      %p106 = scmp.eq.s32.totalorder %s17, 0
      %p107 = por %p105, %p106
      %s108 = ssub.s32 %s11, %s18
      %p109 = scmp.eq.s32.totalorder %s108, 0
      %s111 = sadd.s32 %s110, 1
      %s112 = scalar_select %p109, %s110, %s111
      %p115 = pneg %p109
      %p116 = scmp.eq.s32.totalorder %s11, 1
      %p117 = por %p115, %p116
      %p118 = scmp.ne.s32.totalorder %s110, %s113
      %p119 = scmp.eq.s32.totalorder %s11, 0
      %p120 = por %p118, %p119
      %p121 = scmp.ne.s32.totalorder %s110, %s113
      %p122 = scmp.eq.s32.totalorder %s16, 1
      %p123 = por %p121, %p122
      %p124 = scmp.ne.s32.totalorder %s113, %s114
      %p125 = scmp.eq.s32.totalorder %s16, 0
      %p126 = por %p124, %p125
      %p127 = scmp.ne.s32.totalorder %s113, %s114
      %p128 = scmp.eq.s32.totalorder %s17, 1
      %p129 = por %p127, %p128
      %p131 = scmp.ne.s32.totalorder %s114, %s130
      %p132 = scmp.eq.s32.totalorder %s17, 0
      %p133 = por %p131, %p132
      %p134 = scmp.le.s32.totalorder 1, %s11
      %p135 = scmp.lt.s32.totalorder %s11, 3
      %p136 = pnand %p134, %p135
      %p137 = pneg %p136
      // Predicated region
      $region9: #{sam_forward.7} parent=5 // pred_check
        _
      $region10: #{sam_forward.7} parent=5 // pred_check_branch
        %139 = sbr.rel (%p136) target = $region12
      $region11: #{sam_forward.7} parent=5 // pred_region
        %s140 = ssub.s32 %s11, 1
        // Predicated region
        $region13: #{sam_forward.7} parent=11 // pred_check
          %p141 = pneg %p32
        $region14: #{sam_forward.7} parent=11 // pred_check_branch
          %143 = sbr.rel (%p141) target = $region16
        $region15: #{sam_forward.7} parent=11 // pred_region
          %s145 = ssub.s32 16, 16
          %146 = vsyncadd [#allocation3], %s145
          %s148 = sshll.u32 %s0, 4
          %s149 = int_to_ptr.vmem [resolvable:$true] %s148
          %151 = dma.vmem_to_smem %s149, 16, [#allocation2], [#allocation3]
        $region16: #{sam_forward.7} parent=11 // pred_fallthru
          _
        // Predicated region
        $region17: #{sam_forward.7} parent=11 // pred_check
          %p152 = pneg %p79
        $region18: #{sam_forward.7} parent=11 // pred_check_branch
          %154 = sbr.rel (%p152) target = $region20
        $region19: #{sam_forward.7} parent=11 // pred_region
          _
        $region20: #{sam_forward.7} parent=11 // pred_fallthru
          _
        // Predicated region
        $region21: #{sam_forward.7} parent=11 // pred_check
          %p155 = pneg %p100
        $region22: #{sam_forward.7} parent=11 // pred_check_branch
          %157 = sbr.rel (%p155) target = $region24
        $region23: #{sam_forward.7} parent=11 // pred_region
          _
        $region24: #{sam_forward.7} parent=11 // pred_fallthru
          _
      $region12: #{sam_forward.7} parent=5 // pred_fallthru
        _
      %p158 = scmp.lt.s32.totalorder %s11, 2
      // Predicated region
      $region25: #{sam_forward.7} parent=5 // pred_check
        %p159 = pneg %p158
      $region26: #{sam_forward.7} parent=5 // pred_check_branch
        %161 = sbr.rel (%p159) target = $region28
      $region27: #{sam_forward.7} parent=5 // pred_region
        // Predicated region
        $region29: #{sam_forward.7} parent=27 // pred_check
          %p162 = pneg %p52
        $region30: #{sam_forward.7} parent=27 // pred_check_branch
          %164 = sbr.rel (%p162) target = $region32
        $region31: #{sam_forward.7} parent=27 // pred_region
          %p165 = scmp.lt.s32.totalorder %s11, 1
          %s166 = scalar_select %p165, %s11, 1
          %s167 = smul.addr %s166, 16
          %s168 = smul.addr %s167, 8
          %s169 = scalar_lea.vmem %s1, %s168
        $region32: #{sam_forward.7} parent=27 // pred_fallthru
          _
      $region28: #{sam_forward.7} parent=5 // pred_fallthru
        _
      %p170 = scmp.le.s32.totalorder 1, %s11
      %p171 = scmp.lt.s32.totalorder %s11, 3
      %p172 = pnand %p170, %p171
      %p173 = pneg %p172
      // Predicated region
      $region33: #{sam_forward.7} parent=5 // pred_check
        _
      $region34: #{sam_forward.7} parent=5 // pred_check_branch
        %175 = sbr.rel (%p172) target = $region36
      $region35: #{sam_forward.7} parent=5 // pred_region
        %s176 = ssub.s32 %s11, 1
        // Predicated region
        $region37: #{sam_forward.7} parent=35 // pred_check
          %p177 = pneg %p32
        $region38: #{sam_forward.7} parent=35 // pred_check_branch
          %179 = sbr.rel (%p177) target = $region40
        $region39: #{sam_forward.7} parent=35 // pred_region
          %180 = dma.done [#allocation3], 16
        $region40: #{sam_forward.7} parent=35 // pred_fallthru
          _
        %181 = sfence
        %p182 = pneg %p32
        %p183 = pneg %p29
        %p184 = scmp.lt.s32.totalorder %s16, 1
        %s185 = scalar_select %p184, %s16, 1
        %s186 = smul.addr %s185, 16
        %s187 = smul.addr %s186, 8
        %s188 = scalar_lea.vmem %s1, %s187
        %p189 = pneg %p58
        %p190 = pneg %p55
        %p191 = pneg %p79
        %p192 = pneg %p76
        %p193 = pneg %p100
        %p194 = pneg %p97
        %p195 = pneg %p126
        %p196 = pneg %p123
        %p197 = scmp.lt.s32.totalorder %s16, 1
        %s198 = scalar_select %p197, %s16, 1
        %s199 = smul.addr %s198, 16
        %s200 = smul.addr %s199, 8
        %s201 = scalar_lea.vmem %s4, %s200
        %p202 = scmp.lt.s32.totalorder %s16, 1
        %s203 = scalar_select %p202, %s16, 1
        %s204 = smul.addr %s203, 16
        %s205 = smul.addr %s204, 8
        %s206 = scalar_lea.vmem %s1, %s205
        %p207 = scmp.lt.s32.totalorder %s16, 1
        %s208 = scalar_select %p207, %s16, 1
        %s209 = smul.addr %s208, 16
        %s210 = smul.addr %s209, 8
        %s211 = scalar_lea.vmem %s4, %s210
        %v212 = vld [vmem:[%s2] sm:$0xff]
        %v213 = vld [vmem:[%s2 + $0x8] sm:$0xff]
        %v214 = vld [vmem:[%s2 + $0x10] sm:$0xff]
        %v215 = vld [vmem:[%s2 + $0x18] sm:$0xff]
        %v216 = vld [vmem:[%s2 + $0x20] sm:$0xff]
        %v217 = vld [vmem:[%s2 + $0x28] sm:$0xff]
        %v218 = vld [vmem:[%s2 + $0x30] sm:$0xff]
        %v219 = vld [vmem:[%s2 + $0x38] sm:$0xff]
        %v220 = vld [vmem:[%s3] sm:$0xff]
        %v221 = vld [vmem:[%s3 + $0x8] sm:$0xff]
        %s222 = smul.u32 %s16, 32
        %s223 = sld [smem:[#allocation2 + %s222]]
        %v224 = vld [vmem:[%s206] sm:$0xff]
        %v225 = vld [vmem:[%s206 + $0x8] sm:$0xff]
        %v226 = vstv %s223
        %v227 = vmul.f32 %v226, %v224
        %v228 = vmul.f32 %v226, %v225
        %v229 = vadd.f32 %v227, 0.0
        %v230 = vadd.f32 %v228, 0.0
        %s231 = sadd.s32 %s222, 1
        %s232 = sld [smem:[#allocation2 + %s231]]
        %s233 = scalar_lea.vmem %s206, 16
        %v234 = vld [vmem:[%s233] sm:$0xff]
        %v235 = vld [vmem:[%s233 + $0x8] sm:$0xff]
        %v236 = vstv %s232
        %v237 = vmul.f32 %v236, %v234
        %v238 = vmul.f32 %v236, %v235
        %v239 = vadd.f32 %v229, %v237
        %v240 = vadd.f32 %v230, %v238
        %s241 = sadd.s32 %s222, 2
        %s242 = sld [smem:[#allocation2 + %s241]]
        %s243 = scalar_lea.vmem %s206, 32
        %v244 = vld [vmem:[%s243] sm:$0xff]
        %v245 = vld [vmem:[%s243 + $0x8] sm:$0xff]
        %v246 = vstv %s242
        %v247 = vmul.f32 %v246, %v244
        %v248 = vmul.f32 %v246, %v245
        %v249 = vadd.f32 %v239, %v247
        %v250 = vadd.f32 %v240, %v248
        %s251 = sadd.s32 %s222, 3
        %s252 = sld [smem:[#allocation2 + %s251]]
        %s253 = scalar_lea.vmem %s206, 48
        %v254 = vld [vmem:[%s253] sm:$0xff]
        %v255 = vld [vmem:[%s253 + $0x8] sm:$0xff]
        %v256 = vstv %s252
        %v257 = vmul.f32 %v256, %v254
        %v258 = vmul.f32 %v256, %v255
        %v259 = vadd.f32 %v249, %v257
        %v260 = vadd.f32 %v250, %v258
        %s261 = sadd.s32 %s222, 4
        %s262 = sld [smem:[#allocation2 + %s261]]
        %s263 = scalar_lea.vmem %s206, 64
        %v264 = vld [vmem:[%s263] sm:$0xff]
        %v265 = vld [vmem:[%s263 + $0x8] sm:$0xff]
        %v266 = vstv %s262
        %v267 = vmul.f32 %v266, %v264
        %v268 = vmul.f32 %v266, %v265
        %v269 = vadd.f32 %v259, %v267
        %v270 = vadd.f32 %v260, %v268
        %s271 = sadd.s32 %s222, 5
        %s272 = sld [smem:[#allocation2 + %s271]]
        %s273 = scalar_lea.vmem %s206, 80
        %v274 = vld [vmem:[%s273] sm:$0xff]
        %v275 = vld [vmem:[%s273 + $0x8] sm:$0xff]
        %v276 = vstv %s272
        %v277 = vmul.f32 %v276, %v274
        %v278 = vmul.f32 %v276, %v275
        %v279 = vadd.f32 %v269, %v277
        %v280 = vadd.f32 %v270, %v278
        %s281 = sadd.s32 %s222, 6
        %s282 = sld [smem:[#allocation2 + %s281]]
        %s283 = scalar_lea.vmem %s206, 96
        %v284 = vld [vmem:[%s283] sm:$0xff]
        %v285 = vld [vmem:[%s283 + $0x8] sm:$0xff]
        %v286 = vstv %s282
        %v287 = vmul.f32 %v286, %v284
        %v288 = vmul.f32 %v286, %v285
        %v289 = vadd.f32 %v279, %v287
        %v290 = vadd.f32 %v280, %v288
        %s291 = sadd.s32 %s222, 7
        %s292 = sld [smem:[#allocation2 + %s291]]
        %s293 = scalar_lea.vmem %s206, 112
        %v294 = vld [vmem:[%s293] sm:$0xff]
        %v295 = vld [vmem:[%s293 + $0x8] sm:$0xff]
        %v296 = vstv %s292
        %v297 = vmul.f32 %v296, %v294
        %v298 = vmul.f32 %v296, %v295
        %v299 = vadd.f32 %v289, %v297
        %v300 = vadd.f32 %v290, %v298
        %vm301 = vcmask 130048
        %v303 = vsel %vm301, %v212, 0
        %v306 = vsel %vm301, %v213, 0
        %v309 = vsel %vm301, %v214, 0
        %v312 = vsel %vm301, %v215, 0
        %v315 = vsel %vm301, %v216, 0
        %v318 = vsel %vm301, %v217, 0
        %v321 = vsel %vm301, %v218, 0
        %v324 = vsel %vm301, %v219, 0
        %326 = vmatprep.subr.mxu0 0.0
        %327 = vmatpush1.msra.mxu0 %v299
        %328 = vmatprep.subr.mxu0 0.0
        %329 = vmatpush1.msra.mxu0 %v300
        %330 = vmatprep.subr.mxu0 0.0
        %331 = vmatpush1.msra.mxu0 0.0
        %332 = vmatprep.subr.mxu0 0.0
        %333 = vmatpush1.msra.mxu0 0.0
        %334 = vmatprep.subr.mxu0 0.0
        %335 = vmatpush1.msra.mxu0 0.0
        %336 = vmatprep.subr.mxu0 0.0
        %337 = vmatpush1.msra.mxu0 0.0
        %338 = vmatprep.subr.mxu0 0.0
        %339 = vmatpush1.msra.mxu0 0.0
        %340 = vmatprep.subr.mxu0 0.0
        %341 = vmatpush1.msra.mxu0 0.0
        %342 = vmatprep.subr.mxu0 0.0
        %343 = vmatpush1.msra.mxu0 0.0
        %344 = vmatprep.subr.mxu0 0.0
        %345 = vmatpush1.msra.mxu0 0.0
        %346 = vmatprep.subr.mxu0 0.0
        %347 = vmatpush1.msra.mxu0 0.0
        %348 = vmatprep.subr.mxu0 0.0
        %349 = vmatpush1.msra.mxu0 0.0
        %350 = vmatprep.subr.mxu0 0.0
        %351 = vmatpush1.msra.mxu0 0.0
        %352 = vmatprep.subr.mxu0 0.0
        %353 = vmatpush1.msra.mxu0 0.0
        %354 = vmatprep.subr.mxu0 0.0
        %355 = vmatpush1.msra.mxu0 0.0
        %356 = vmatprep.subr.mxu0 0.0
        %357 = vmatpush1.msra.mxu0 0.0
        %358 = vmatprep.subr.mxu0 0.0
        %359 = vmatpush1.msra.mxu0 0.0
        %360 = vmatprep.subr.mxu0 0.0
        %361 = vmatpush1.msra.mxu0 0.0
        %362 = vmatprep.subr.mxu0 0.0
        %363 = vmatpush1.msra.mxu0 0.0
        %364 = vmatprep.subr.mxu0 0.0
        %365 = vmatpush1.msra.mxu0 0.0
        %366 = vmatprep.subr.mxu0 0.0
        %367 = vmatpush1.msra.mxu0 0.0
        %368 = vmatprep.subr.mxu0 0.0
        %369 = vmatpush1.msra.mxu0 0.0
        %370 = vmatprep.subr.mxu0 0.0
        %371 = vmatpush1.msra.mxu0 0.0
        %372 = vmatprep.subr.mxu0 0.0
        %373 = vmatpush1.msra.mxu0 0.0
        %374 = vmatprep.subr.mxu0 0.0
        %375 = vmatpush1.msra.mxu0 0.0
        %376 = vmatprep.subr.mxu0 0.0
        %377 = vmatpush1.msra.mxu0 0.0
        %378 = vmatprep.subr.mxu0 0.0
        %379 = vmatpush1.msra.mxu0 0.0
        %380 = vmatprep.subr.mxu0 0.0
        %381 = vmatpush1.msra.mxu0 0.0
        %382 = vmatprep.subr.mxu0 0.0
        %383 = vmatpush1.msra.mxu0 0.0
        %384 = vmatprep.subr.mxu0 0.0
        %385 = vmatpush1.msra.mxu0 0.0
        %386 = vmatprep.subr.mxu0 0.0
        %387 = vmatpush1.msra.mxu0 0.0
        %388 = vmatprep.subr.mxu0 0.0
        %389 = vmatpush1.msra.mxu0 0.0
        %390 = vmatprep.mubr.f32.mxu0 0.0
        %391 = vmatmul.mubr.f32.gmra.mrb[0].mxu0 %v303
        %v392 = vpop.f32.mrb[0].mxu0
        %v393 = vadd.f32 0.0, %v392
        %v394 = vpop.f32.mrb[0].mxu0
        %395 = vmatprep.mubr.f32.mxu0 0.0
        %396 = vmatmul.mubr.f32.gmra.mrb[0].mxu0 %v306
        %v397 = vpop.f32.mrb[0].mxu0
        %v398 = vadd.f32 0.0, %v397
        %v399 = vpop.f32.mrb[0].mxu0
        %400 = vmatprep.mubr.f32.mxu0 0.0
        %401 = vmatmul.mubr.f32.gmra.mrb[0].mxu0 %v309
        %v402 = vpop.f32.mrb[0].mxu0
        %v403 = vadd.f32 0.0, %v402
        %v404 = vpop.f32.mrb[0].mxu0
        %405 = vmatprep.mubr.f32.mxu0 0.0
        %406 = vmatmul.mubr.f32.gmra.mrb[0].mxu0 %v312
        %v407 = vpop.f32.mrb[0].mxu0
        %v408 = vadd.f32 0.0, %v407
        %v409 = vpop.f32.mrb[0].mxu0
        %410 = vmatprep.mubr.f32.mxu0 0.0
        %411 = vmatmul.mubr.f32.gmra.mrb[0].mxu0 %v315
        %v412 = vpop.f32.mrb[0].mxu0
        %v413 = vadd.f32 0.0, %v412
        %v414 = vpop.f32.mrb[0].mxu0
        %415 = vmatprep.mubr.f32.mxu0 0.0
        %416 = vmatmul.mubr.f32.gmra.mrb[0].mxu0 %v318
        %v417 = vpop.f32.mrb[0].mxu0
        %v418 = vadd.f32 0.0, %v417
        %v419 = vpop.f32.mrb[0].mxu0
        %420 = vmatprep.mubr.f32.mxu0 0.0
        %421 = vmatmul.mubr.f32.gmra.mrb[0].mxu0 %v321
        %v422 = vpop.f32.mrb[0].mxu0
        %v423 = vadd.f32 0.0, %v422
        %v424 = vpop.f32.mrb[0].mxu0
        %425 = vmatprep.mubr.f32.mxu0 0.0
        %426 = vmatmul.mubr.f32.gmra.mrb[0].mxu0 %v324
        %v427 = vpop.f32.mrb[0].mxu0
        %v428 = vadd.f32 0.0, %v427
        %v429 = vpop.f32.mrb[0].mxu0
        %430 = vdwg.mxu0
        %v432 = vsel %vm301, %v393, 0
        %v435 = vsel %vm301, %v398, 0
        %v438 = vsel %vm301, %v403, 0
        %v441 = vsel %vm301, %v408, 0
        %v444 = vsel %vm301, %v413, 0
        %v447 = vsel %vm301, %v418, 0
        %v450 = vsel %vm301, %v423, 0
        %v453 = vsel %vm301, %v428, 0
        %455 = vmatprep.subr.mxu0 0.0
        %456 = vmatpush1.msra.mxu0 %v220
        %457 = vmatprep.subr.mxu0 0.0
        %458 = vmatpush1.msra.mxu0 %v221
        %459 = vmatprep.subr.mxu0 0.0
        %460 = vmatpush1.msra.mxu0 0.0
        %461 = vmatprep.subr.mxu0 0.0
        %462 = vmatpush1.msra.mxu0 0.0
        %463 = vmatprep.subr.mxu0 0.0
        %464 = vmatpush1.msra.mxu0 0.0
        %465 = vmatprep.subr.mxu0 0.0
        %466 = vmatpush1.msra.mxu0 0.0
        %467 = vmatprep.subr.mxu0 0.0
        %468 = vmatpush1.msra.mxu0 0.0
        %469 = vmatprep.subr.mxu0 0.0
        %470 = vmatpush1.msra.mxu0 0.0
        %471 = vmatprep.subr.mxu0 0.0
        %472 = vmatpush1.msra.mxu0 0.0
        %473 = vmatprep.subr.mxu0 0.0
        %474 = vmatpush1.msra.mxu0 0.0
        %475 = vmatprep.subr.mxu0 0.0
        %476 = vmatpush1.msra.mxu0 0.0
        %477 = vmatprep.subr.mxu0 0.0
        %478 = vmatpush1.msra.mxu0 0.0
        %479 = vmatprep.subr.mxu0 0.0
        %480 = vmatpush1.msra.mxu0 0.0
        %481 = vmatprep.subr.mxu0 0.0
        %482 = vmatpush1.msra.mxu0 0.0
        %483 = vmatprep.subr.mxu0 0.0
        %484 = vmatpush1.msra.mxu0 0.0
        %485 = vmatprep.subr.mxu0 0.0
        %486 = vmatpush1.msra.mxu0 0.0
        %487 = vmatprep.subr.mxu0 0.0
        %488 = vmatpush1.msra.mxu0 0.0
        %489 = vmatprep.subr.mxu0 0.0
        %490 = vmatpush1.msra.mxu0 0.0
        %491 = vmatprep.subr.mxu0 0.0
        %492 = vmatpush1.msra.mxu0 0.0
        %493 = vmatprep.subr.mxu0 0.0
        %494 = vmatpush1.msra.mxu0 0.0
        %495 = vmatprep.subr.mxu0 0.0
        %496 = vmatpush1.msra.mxu0 0.0
        %497 = vmatprep.subr.mxu0 0.0
        %498 = vmatpush1.msra.mxu0 0.0
        %499 = vmatprep.subr.mxu0 0.0
        %500 = vmatpush1.msra.mxu0 0.0
        %501 = vmatprep.subr.mxu0 0.0
        %502 = vmatpush1.msra.mxu0 0.0
        %503 = vmatprep.subr.mxu0 0.0
        %504 = vmatpush1.msra.mxu0 0.0
        %505 = vmatprep.subr.mxu0 0.0
        %506 = vmatpush1.msra.mxu0 0.0
        %507 = vmatprep.subr.mxu0 0.0
        %508 = vmatpush1.msra.mxu0 0.0
        %509 = vmatprep.subr.mxu0 0.0
        %510 = vmatpush1.msra.mxu0 0.0
        %511 = vmatprep.subr.mxu0 0.0
        %512 = vmatpush1.msra.mxu0 0.0
        %513 = vmatprep.subr.mxu0 0.0
        %514 = vmatpush1.msra.mxu0 0.0
        %515 = vmatprep.subr.mxu0 0.0
        %516 = vmatpush1.msra.mxu0 0.0
        %517 = vmatprep.subr.mxu0 0.0
        %518 = vmatpush1.msra.mxu0 0.0
        %519 = vmatprep.mubr.f32.mxu0 0.0
        %520 = vmatmul.mubr.f32.gmra.mrb[0].mxu0 %v432
        %v521 = vpop.f32.mrb[0].mxu0
        %v522 = vadd.f32 0.0, %v521
        %v523 = vpop.f32.mrb[0].mxu0
        %524 = vmatprep.mubr.f32.mxu0 0.0
        %525 = vmatmul.mubr.f32.gmra.mrb[0].mxu0 %v435
        %v526 = vpop.f32.mrb[0].mxu0
        %v527 = vadd.f32 0.0, %v526
        %v528 = vpop.f32.mrb[0].mxu0
        %529 = vmatprep.mubr.f32.mxu0 0.0
        %530 = vmatmul.mubr.f32.gmra.mrb[0].mxu0 %v438
        %v531 = vpop.f32.mrb[0].mxu0
        %v532 = vadd.f32 0.0, %v531
        %v533 = vpop.f32.mrb[0].mxu0
        %534 = vmatprep.mubr.f32.mxu0 0.0
        %535 = vmatmul.mubr.f32.gmra.mrb[0].mxu0 %v441
        %v536 = vpop.f32.mrb[0].mxu0
        %v537 = vadd.f32 0.0, %v536
        %v538 = vpop.f32.mrb[0].mxu0
        %539 = vmatprep.mubr.f32.mxu0 0.0
        %540 = vmatmul.mubr.f32.gmra.mrb[0].mxu0 %v444
        %v541 = vpop.f32.mrb[0].mxu0
        %v542 = vadd.f32 0.0, %v541
        %v543 = vpop.f32.mrb[0].mxu0
        %544 = vmatprep.mubr.f32.mxu0 0.0
        %545 = vmatmul.mubr.f32.gmra.mrb[0].mxu0 %v447
        %v546 = vpop.f32.mrb[0].mxu0
        %v547 = vadd.f32 0.0, %v546
        %v548 = vpop.f32.mrb[0].mxu0
        %549 = vmatprep.mubr.f32.mxu0 0.0
        %550 = vmatmul.mubr.f32.gmra.mrb[0].mxu0 %v450
        %v551 = vpop.f32.mrb[0].mxu0
        %v552 = vadd.f32 0.0, %v551
        %v553 = vpop.f32.mrb[0].mxu0
        %554 = vmatprep.mubr.f32.mxu0 0.0
        %555 = vmatmul.mubr.f32.gmra.mrb[0].mxu0 %v453
        %v556 = vpop.f32.mrb[0].mxu0
        %v557 = vadd.f32 0.0, %v556
        %v558 = vpop.f32.mrb[0].mxu0
        %559 = vdwg.mxu0
        %s560 = sadd.s32 %s222, 8
        %s561 = sld [smem:[#allocation2 + %s560]]
        %v562 = vstv %s561
        %v563 = vmul.f32 %v562, %v224
        %v564 = vmul.f32 %v562, %v225
        %v565 = vadd.f32 %v563, 0.0
        %v566 = vadd.f32 %v564, 0.0
        %s567 = sadd.s32 %s222, 9
        %s568 = sld [smem:[#allocation2 + %s567]]
        %v569 = vstv %s568
        %v570 = vmul.f32 %v569, %v234
        %v571 = vmul.f32 %v569, %v235
        %v572 = vadd.f32 %v565, %v570
        %v573 = vadd.f32 %v566, %v571
        %s574 = sadd.s32 %s222, 10
        %s575 = sld [smem:[#allocation2 + %s574]]
        %v576 = vstv %s575
        %v577 = vmul.f32 %v576, %v244
        %v578 = vmul.f32 %v576, %v245
        %v579 = vadd.f32 %v572, %v577
        %v580 = vadd.f32 %v573, %v578
        %s581 = sadd.s32 %s222, 11
        %s582 = sld [smem:[#allocation2 + %s581]]
        %v583 = vstv %s582
        %v584 = vmul.f32 %v583, %v254
        %v585 = vmul.f32 %v583, %v255
        %v586 = vadd.f32 %v579, %v584
        %v587 = vadd.f32 %v580, %v585
        %s588 = sadd.s32 %s222, 12
        %s589 = sld [smem:[#allocation2 + %s588]]
        %v590 = vstv %s589
        %v591 = vmul.f32 %v590, %v264
        %v592 = vmul.f32 %v590, %v265
        %v593 = vadd.f32 %v586, %v591
        %v594 = vadd.f32 %v587, %v592
        %s595 = sadd.s32 %s222, 13
        %s596 = sld [smem:[#allocation2 + %s595]]
        %v597 = vstv %s596
        %v598 = vmul.f32 %v597, %v274
        %v599 = vmul.f32 %v597, %v275
        %v600 = vadd.f32 %v593, %v598
        %v601 = vadd.f32 %v594, %v599
        %s602 = sadd.s32 %s222, 14
        %s603 = sld [smem:[#allocation2 + %s602]]
        %v604 = vstv %s603
        %v605 = vmul.f32 %v604, %v284
        %v606 = vmul.f32 %v604, %v285
        %v607 = vadd.f32 %v600, %v605
        %v608 = vadd.f32 %v601, %v606
        %s609 = sadd.s32 %s222, 15
        %s610 = sld [smem:[#allocation2 + %s609]]
        %v611 = vstv %s610
        %v612 = vmul.f32 %v611, %v294
        %v613 = vmul.f32 %v611, %v295
        %v614 = vadd.f32 %v607, %v612
        %v615 = vadd.f32 %v608, %v613
        %616 = vmatprep.subr.mxu0 0.0
        %617 = vmatpush1.msra.mxu0 %v614
        %618 = vmatprep.subr.mxu0 0.0
        %619 = vmatpush1.msra.mxu0 %v615
        %620 = vmatprep.subr.mxu0 0.0
        %621 = vmatpush1.msra.mxu0 0.0
        %622 = vmatprep.subr.mxu0 0.0
        %623 = vmatpush1.msra.mxu0 0.0
        %624 = vmatprep.subr.mxu0 0.0
        %625 = vmatpush1.msra.mxu0 0.0
        %626 = vmatprep.subr.mxu0 0.0
        %627 = vmatpush1.msra.mxu0 0.0
        %628 = vmatprep.subr.mxu0 0.0
        %629 = vmatpush1.msra.mxu0 0.0
        %630 = vmatprep.subr.mxu0 0.0
        %631 = vmatpush1.msra.mxu0 0.0
        %632 = vmatprep.subr.mxu0 0.0
        %633 = vmatpush1.msra.mxu0 0.0
        %634 = vmatprep.subr.mxu0 0.0
        %635 = vmatpush1.msra.mxu0 0.0
        %636 = vmatprep.subr.mxu0 0.0
        %637 = vmatpush1.msra.mxu0 0.0
        %638 = vmatprep.subr.mxu0 0.0
        %639 = vmatpush1.msra.mxu0 0.0
        %640 = vmatprep.subr.mxu0 0.0
        %641 = vmatpush1.msra.mxu0 0.0
        %642 = vmatprep.subr.mxu0 0.0
        %643 = vmatpush1.msra.mxu0 0.0
        %644 = vmatprep.subr.mxu0 0.0
        %645 = vmatpush1.msra.mxu0 0.0
        %646 = vmatprep.subr.mxu0 0.0
        %647 = vmatpush1.msra.mxu0 0.0
        %648 = vmatprep.subr.mxu0 0.0
        %649 = vmatpush1.msra.mxu0 0.0
        %650 = vmatprep.subr.mxu0 0.0
        %651 = vmatpush1.msra.mxu0 0.0
        %652 = vmatprep.subr.mxu0 0.0
        %653 = vmatpush1.msra.mxu0 0.0
        %654 = vmatprep.subr.mxu0 0.0
        %655 = vmatpush1.msra.mxu0 0.0
        %656 = vmatprep.subr.mxu0 0.0
        %657 = vmatpush1.msra.mxu0 0.0
        %658 = vmatprep.subr.mxu0 0.0
        %659 = vmatpush1.msra.mxu0 0.0
        %660 = vmatprep.subr.mxu0 0.0
        %661 = vmatpush1.msra.mxu0 0.0
        %662 = vmatprep.subr.mxu0 0.0
        %663 = vmatpush1.msra.mxu0 0.0
        %664 = vmatprep.subr.mxu0 0.0
        %665 = vmatpush1.msra.mxu0 0.0
        %666 = vmatprep.subr.mxu0 0.0
        %667 = vmatpush1.msra.mxu0 0.0
        %668 = vmatprep.subr.mxu0 0.0
        %669 = vmatpush1.msra.mxu0 0.0
        %670 = vmatprep.subr.mxu0 0.0
        %671 = vmatpush1.msra.mxu0 0.0
        %672 = vmatprep.subr.mxu0 0.0
        %673 = vmatpush1.msra.mxu0 0.0
        %674 = vmatprep.subr.mxu0 0.0
        %675 = vmatpush1.msra.mxu0 0.0
        %676 = vmatprep.subr.mxu0 0.0
        %677 = vmatpush1.msra.mxu0 0.0
        %678 = vmatprep.subr.mxu0 0.0
        %679 = vmatpush1.msra.mxu0 0.0
        %680 = vmatprep.mubr.f32.mxu0 0.0
        %681 = vmatmul.mubr.f32.gmra.mrb[0].mxu0 %v303
        %v682 = vpop.f32.mrb[0].mxu0
        %v683 = vadd.f32 0.0, %v682
        %v684 = vpop.f32.mrb[0].mxu0
        %685 = vmatprep.mubr.f32.mxu0 0.0
        %686 = vmatmul.mubr.f32.gmra.mrb[0].mxu0 %v306
        %v687 = vpop.f32.mrb[0].mxu0
        %v688 = vadd.f32 0.0, %v687
        %v689 = vpop.f32.mrb[0].mxu0
        %690 = vmatprep.mubr.f32.mxu0 0.0
        %691 = vmatmul.mubr.f32.gmra.mrb[0].mxu0 %v309
        %v692 = vpop.f32.mrb[0].mxu0
        %v693 = vadd.f32 0.0, %v692
        %v694 = vpop.f32.mrb[0].mxu0
        %695 = vmatprep.mubr.f32.mxu0 0.0
        %696 = vmatmul.mubr.f32.gmra.mrb[0].mxu0 %v312
        %v697 = vpop.f32.mrb[0].mxu0
        %v698 = vadd.f32 0.0, %v697
        %v699 = vpop.f32.mrb[0].mxu0
        %700 = vmatprep.mubr.f32.mxu0 0.0
        %701 = vmatmul.mubr.f32.gmra.mrb[0].mxu0 %v315
        %v702 = vpop.f32.mrb[0].mxu0
        %v703 = vadd.f32 0.0, %v702
        %v704 = vpop.f32.mrb[0].mxu0
        %705 = vmatprep.mubr.f32.mxu0 0.0
        %706 = vmatmul.mubr.f32.gmra.mrb[0].mxu0 %v318
        %v707 = vpop.f32.mrb[0].mxu0
        %v708 = vadd.f32 0.0, %v707
        %v709 = vpop.f32.mrb[0].mxu0
        %710 = vmatprep.mubr.f32.mxu0 0.0
        %711 = vmatmul.mubr.f32.gmra.mrb[0].mxu0 %v321
        %v712 = vpop.f32.mrb[0].mxu0
        %v713 = vadd.f32 0.0, %v712
        %v714 = vpop.f32.mrb[0].mxu0
        %715 = vmatprep.mubr.f32.mxu0 0.0
        %716 = vmatmul.mubr.f32.gmra.mrb[0].mxu0 %v324
        %v717 = vpop.f32.mrb[0].mxu0
        %v718 = vadd.f32 0.0, %v717
        %v719 = vpop.f32.mrb[0].mxu0
        %720 = vdwg.mxu0
        %v722 = vsel %vm301, %v683, 0
        %v725 = vsel %vm301, %v688, 0
        %v728 = vsel %vm301, %v693, 0
        %v731 = vsel %vm301, %v698, 0
        %v734 = vsel %vm301, %v703, 0
        %v737 = vsel %vm301, %v708, 0
        %v740 = vsel %vm301, %v713, 0
        %v743 = vsel %vm301, %v718, 0
        %745 = vmatprep.subr.mxu0 0.0
        %746 = vmatpush1.msra.mxu0 %v220
        %747 = vmatprep.subr.mxu0 0.0
        %748 = vmatpush1.msra.mxu0 %v221
        %749 = vmatprep.subr.mxu0 0.0
        %750 = vmatpush1.msra.mxu0 0.0
        %751 = vmatprep.subr.mxu0 0.0
        %752 = vmatpush1.msra.mxu0 0.0
        %753 = vmatprep.subr.mxu0 0.0
        %754 = vmatpush1.msra.mxu0 0.0
        %755 = vmatprep.subr.mxu0 0.0
        %756 = vmatpush1.msra.mxu0 0.0
        %757 = vmatprep.subr.mxu0 0.0
        %758 = vmatpush1.msra.mxu0 0.0
        %759 = vmatprep.subr.mxu0 0.0
        %760 = vmatpush1.msra.mxu0 0.0
        %761 = vmatprep.subr.mxu0 0.0
        %762 = vmatpush1.msra.mxu0 0.0
        %763 = vmatprep.subr.mxu0 0.0
        %764 = vmatpush1.msra.mxu0 0.0
        %765 = vmatprep.subr.mxu0 0.0
        %766 = vmatpush1.msra.mxu0 0.0
        %767 = vmatprep.subr.mxu0 0.0
        %768 = vmatpush1.msra.mxu0 0.0
        %769 = vmatprep.subr.mxu0 0.0
        %770 = vmatpush1.msra.mxu0 0.0
        %771 = vmatprep.subr.mxu0 0.0
        %772 = vmatpush1.msra.mxu0 0.0
        %773 = vmatprep.subr.mxu0 0.0
        %774 = vmatpush1.msra.mxu0 0.0
        %775 = vmatprep.subr.mxu0 0.0
        %776 = vmatpush1.msra.mxu0 0.0
        %777 = vmatprep.subr.mxu0 0.0
        %778 = vmatpush1.msra.mxu0 0.0
        %779 = vmatprep.subr.mxu0 0.0
        %780 = vmatpush1.msra.mxu0 0.0
        %781 = vmatprep.subr.mxu0 0.0
        %782 = vmatpush1.msra.mxu0 0.0
        %783 = vmatprep.subr.mxu0 0.0
        %784 = vmatpush1.msra.mxu0 0.0
        %785 = vmatprep.subr.mxu0 0.0
        %786 = vmatpush1.msra.mxu0 0.0
        %787 = vmatprep.subr.mxu0 0.0
        %788 = vmatpush1.msra.mxu0 0.0
        %789 = vmatprep.subr.mxu0 0.0
        %790 = vmatpush1.msra.mxu0 0.0
        %791 = vmatprep.subr.mxu0 0.0
        %792 = vmatpush1.msra.mxu0 0.0
        %793 = vmatprep.subr.mxu0 0.0
        %794 = vmatpush1.msra.mxu0 0.0
        %795 = vmatprep.subr.mxu0 0.0
        %796 = vmatpush1.msra.mxu0 0.0
        %797 = vmatprep.subr.mxu0 0.0
        %798 = vmatpush1.msra.mxu0 0.0
        %799 = vmatprep.subr.mxu0 0.0
        %800 = vmatpush1.msra.mxu0 0.0
        %801 = vmatprep.subr.mxu0 0.0
        %802 = vmatpush1.msra.mxu0 0.0
        %803 = vmatprep.subr.mxu0 0.0
        %804 = vmatpush1.msra.mxu0 0.0
        %805 = vmatprep.subr.mxu0 0.0
        %806 = vmatpush1.msra.mxu0 0.0
        %807 = vmatprep.subr.mxu0 0.0
        %808 = vmatpush1.msra.mxu0 0.0
        %809 = vmatprep.mubr.f32.mxu0 0.0
        %810 = vmatmul.mubr.f32.gmra.mrb[0].mxu0 %v722
        %v811 = vpop.f32.mrb[0].mxu0
        %v812 = vadd.f32 0.0, %v811
        %v813 = vpop.f32.mrb[0].mxu0
        %814 = vmatprep.mubr.f32.mxu0 0.0
        %815 = vmatmul.mubr.f32.gmra.mrb[0].mxu0 %v725
        %v816 = vpop.f32.mrb[0].mxu0
        %v817 = vadd.f32 0.0, %v816
        %v818 = vpop.f32.mrb[0].mxu0
        %819 = vmatprep.mubr.f32.mxu0 0.0
        %820 = vmatmul.mubr.f32.gmra.mrb[0].mxu0 %v728
        %v821 = vpop.f32.mrb[0].mxu0
        %v822 = vadd.f32 0.0, %v821
        %v823 = vpop.f32.mrb[0].mxu0
        %824 = vmatprep.mubr.f32.mxu0 0.0
        %825 = vmatmul.mubr.f32.gmra.mrb[0].mxu0 %v731
        %v826 = vpop.f32.mrb[0].mxu0
        %v827 = vadd.f32 0.0, %v826
        %v828 = vpop.f32.mrb[0].mxu0
        %829 = vmatprep.mubr.f32.mxu0 0.0
        %830 = vmatmul.mubr.f32.gmra.mrb[0].mxu0 %v734
        %v831 = vpop.f32.mrb[0].mxu0
        %v832 = vadd.f32 0.0, %v831
        %v833 = vpop.f32.mrb[0].mxu0
        %834 = vmatprep.mubr.f32.mxu0 0.0
        %835 = vmatmul.mubr.f32.gmra.mrb[0].mxu0 %v737
        %v836 = vpop.f32.mrb[0].mxu0
        %v837 = vadd.f32 0.0, %v836
        %v838 = vpop.f32.mrb[0].mxu0
        %839 = vmatprep.mubr.f32.mxu0 0.0
        %840 = vmatmul.mubr.f32.gmra.mrb[0].mxu0 %v740
        %v841 = vpop.f32.mrb[0].mxu0
        %v842 = vadd.f32 0.0, %v841
        %v843 = vpop.f32.mrb[0].mxu0
        %844 = vmatprep.mubr.f32.mxu0 0.0
        %845 = vmatmul.mubr.f32.gmra.mrb[0].mxu0 %v743
        %v846 = vpop.f32.mrb[0].mxu0
        %v847 = vadd.f32 0.0, %v846
        %v848 = vpop.f32.mrb[0].mxu0
        %849 = vdwg.mxu0
        %s850 = sadd.s32 %s222, 16
        %s851 = sld [smem:[#allocation2 + %s850]]
        %v852 = vstv %s851
        %v853 = vmul.f32 %v852, %v224
        %v854 = vmul.f32 %v852, %v225
        %v855 = vadd.f32 %v853, 0.0
        %v856 = vadd.f32 %v854, 0.0
        %s857 = sadd.s32 %s222, 17
        %s858 = sld [smem:[#allocation2 + %s857]]
        %v859 = vstv %s858
        %v860 = vmul.f32 %v859, %v234
        %v861 = vmul.f32 %v859, %v235
        %v862 = vadd.f32 %v855, %v860
        %v863 = vadd.f32 %v856, %v861
        %s864 = sadd.s32 %s222, 18
        %s865 = sld [smem:[#allocation2 + %s864]]
        %v866 = vstv %s865
        %v867 = vmul.f32 %v866, %v244
        %v868 = vmul.f32 %v866, %v245
        %v869 = vadd.f32 %v862, %v867
        %v870 = vadd.f32 %v863, %v868
        %s871 = sadd.s32 %s222, 19
        %s872 = sld [smem:[#allocation2 + %s871]]
        %v873 = vstv %s872
        %v874 = vmul.f32 %v873, %v254
        %v875 = vmul.f32 %v873, %v255
        %v876 = vadd.f32 %v869, %v874
        %v877 = vadd.f32 %v870, %v875
        %s878 = sadd.s32 %s222, 20
        %s879 = sld [smem:[#allocation2 + %s878]]
        %v880 = vstv %s879
        %v881 = vmul.f32 %v880, %v264
        %v882 = vmul.f32 %v880, %v265
        %v883 = vadd.f32 %v876, %v881
        %v884 = vadd.f32 %v877, %v882
        %s885 = sadd.s32 %s222, 21
        %s886 = sld [smem:[#allocation2 + %s885]]
        %v887 = vstv %s886
        %v888 = vmul.f32 %v887, %v274
        %v889 = vmul.f32 %v887, %v275
        %v890 = vadd.f32 %v883, %v888
        %v891 = vadd.f32 %v884, %v889
        %s892 = sadd.s32 %s222, 22
        %s893 = sld [smem:[#allocation2 + %s892]]
        %v894 = vstv %s893
        %v895 = vmul.f32 %v894, %v284
        %v896 = vmul.f32 %v894, %v285
        %v897 = vadd.f32 %v890, %v895
        %v898 = vadd.f32 %v891, %v896
        %s899 = sadd.s32 %s222, 23
        %s900 = sld [smem:[#allocation2 + %s899]]
        %v901 = vstv %s900
        %v902 = vmul.f32 %v901, %v294
        %v903 = vmul.f32 %v901, %v295
        %v904 = vadd.f32 %v897, %v902
        %v905 = vadd.f32 %v898, %v903
        %906 = vmatprep.subr.mxu0 0.0
        %907 = vmatpush1.msra.mxu0 %v904
        %908 = vmatprep.subr.mxu0 0.0
        %909 = vmatpush1.msra.mxu0 %v905
        %910 = vmatprep.subr.mxu0 0.0
        %911 = vmatpush1.msra.mxu0 0.0
        %912 = vmatprep.subr.mxu0 0.0
        %913 = vmatpush1.msra.mxu0 0.0
        %914 = vmatprep.subr.mxu0 0.0
        %915 = vmatpush1.msra.mxu0 0.0
        %916 = vmatprep.subr.mxu0 0.0
        %917 = vmatpush1.msra.mxu0 0.0
        %918 = vmatprep.subr.mxu0 0.0
        %919 = vmatpush1.msra.mxu0 0.0
        %920 = vmatprep.subr.mxu0 0.0
        %921 = vmatpush1.msra.mxu0 0.0
        %922 = vmatprep.subr.mxu0 0.0
        %923 = vmatpush1.msra.mxu0 0.0
        %924 = vmatprep.subr.mxu0 0.0
        %925 = vmatpush1.msra.mxu0 0.0
        %926 = vmatprep.subr.mxu0 0.0
        %927 = vmatpush1.msra.mxu0 0.0
        %928 = vmatprep.subr.mxu0 0.0
        %929 = vmatpush1.msra.mxu0 0.0
        %930 = vmatprep.subr.mxu0 0.0
        %931 = vmatpush1.msra.mxu0 0.0
        %932 = vmatprep.subr.mxu0 0.0
        %933 = vmatpush1.msra.mxu0 0.0
        %934 = vmatprep.subr.mxu0 0.0
        %935 = vmatpush1.msra.mxu0 0.0
        %936 = vmatprep.subr.mxu0 0.0
        %937 = vmatpush1.msra.mxu0 0.0
        %938 = vmatprep.subr.mxu0 0.0
        %939 = vmatpush1.msra.mxu0 0.0
        %940 = vmatprep.subr.mxu0 0.0
        %941 = vmatpush1.msra.mxu0 0.0
        %942 = vmatprep.subr.mxu0 0.0
        %943 = vmatpush1.msra.mxu0 0.0
        %944 = vmatprep.subr.mxu0 0.0
        %945 = vmatpush1.msra.mxu0 0.0
        %946 = vmatprep.subr.mxu0 0.0
        %947 = vmatpush1.msra.mxu0 0.0
        %948 = vmatprep.subr.mxu0 0.0
        %949 = vmatpush1.msra.mxu0 0.0
        %950 = vmatprep.subr.mxu0 0.0
        %951 = vmatpush1.msra.mxu0 0.0
        %952 = vmatprep.subr.mxu0 0.0
        %953 = vmatpush1.msra.mxu0 0.0
        %954 = vmatprep.subr.mxu0 0.0
        %955 = vmatpush1.msra.mxu0 0.0
        %956 = vmatprep.subr.mxu0 0.0
        %957 = vmatpush1.msra.mxu0 0.0
        %958 = vmatprep.subr.mxu0 0.0
        %959 = vmatpush1.msra.mxu0 0.0
        %960 = vmatprep.subr.mxu0 0.0
        %961 = vmatpush1.msra.mxu0 0.0
        %962 = vmatprep.subr.mxu0 0.0
        %963 = vmatpush1.msra.mxu0 0.0
        %964 = vmatprep.subr.mxu0 0.0
        %965 = vmatpush1.msra.mxu0 0.0
        %966 = vmatprep.subr.mxu0 0.0
        %967 = vmatpush1.msra.mxu0 0.0
        %968 = vmatprep.subr.mxu0 0.0
        %969 = vmatpush1.msra.mxu0 0.0
        %970 = vmatprep.mubr.f32.mxu0 0.0
        %971 = vmatmul.mubr.f32.gmra.mrb[0].mxu0 %v303
        %v972 = vpop.f32.mrb[0].mxu0
        %v973 = vadd.f32 0.0, %v972
        %v974 = vpop.f32.mrb[0].mxu0
        %975 = vmatprep.mubr.f32.mxu0 0.0
        %976 = vmatmul.mubr.f32.gmra.mrb[0].mxu0 %v306
        %v977 = vpop.f32.mrb[0].mxu0
        %v978 = vadd.f32 0.0, %v977
        %v979 = vpop.f32.mrb[0].mxu0
        %980 = vmatprep.mubr.f32.mxu0 0.0
        %981 = vmatmul.mubr.f32.gmra.mrb[0].mxu0 %v309
        %v982 = vpop.f32.mrb[0].mxu0
        %v983 = vadd.f32 0.0, %v982
        %v984 = vpop.f32.mrb[0].mxu0
        %985 = vmatprep.mubr.f32.mxu0 0.0
        %986 = vmatmul.mubr.f32.gmra.mrb[0].mxu0 %v312
        %v987 = vpop.f32.mrb[0].mxu0
        %v988 = vadd.f32 0.0, %v987
        %v989 = vpop.f32.mrb[0].mxu0
        %990 = vmatprep.mubr.f32.mxu0 0.0
        %991 = vmatmul.mubr.f32.gmra.mrb[0].mxu0 %v315
        %v992 = vpop.f32.mrb[0].mxu0
        %v993 = vadd.f32 0.0, %v992
        %v994 = vpop.f32.mrb[0].mxu0
        %995 = vmatprep.mubr.f32.mxu0 0.0
        %996 = vmatmul.mubr.f32.gmra.mrb[0].mxu0 %v318
        %v997 = vpop.f32.mrb[0].mxu0
        %v998 = vadd.f32 0.0, %v997
        %v999 = vpop.f32.mrb[0].mxu0
        %1000 = vmatprep.mubr.f32.mxu0 0.0
        %1001 = vmatmul.mubr.f32.gmra.mrb[0].mxu0 %v321
        %v1002 = vpop.f32.mrb[0].mxu0
        %v1003 = vadd.f32 0.0, %v1002
        %v1004 = vpop.f32.mrb[0].mxu0
        %1005 = vmatprep.mubr.f32.mxu0 0.0
        %1006 = vmatmul.mubr.f32.gmra.mrb[0].mxu0 %v324
        %v1007 = vpop.f32.mrb[0].mxu0
        %v1008 = vadd.f32 0.0, %v1007
        %v1009 = vpop.f32.mrb[0].mxu0
        %1010 = vdwg.mxu0
        %v1012 = vsel %vm301, %v973, 0
        %v1015 = vsel %vm301, %v978, 0
        %v1018 = vsel %vm301, %v983, 0
        %v1021 = vsel %vm301, %v988, 0
        %v1024 = vsel %vm301, %v993, 0
        %v1027 = vsel %vm301, %v998, 0
        %v1030 = vsel %vm301, %v1003, 0
        %v1033 = vsel %vm301, %v1008, 0
        %1035 = vmatprep.subr.mxu0 0.0
        %1036 = vmatpush1.msra.mxu0 %v220
        %1037 = vmatprep.subr.mxu0 0.0
        %1038 = vmatpush1.msra.mxu0 %v221
        %1039 = vmatprep.subr.mxu0 0.0
        %1040 = vmatpush1.msra.mxu0 0.0
        %1041 = vmatprep.subr.mxu0 0.0
        %1042 = vmatpush1.msra.mxu0 0.0
        %1043 = vmatprep.subr.mxu0 0.0
        %1044 = vmatpush1.msra.mxu0 0.0
        %1045 = vmatprep.subr.mxu0 0.0
        %1046 = vmatpush1.msra.mxu0 0.0
        %1047 = vmatprep.subr.mxu0 0.0
        %1048 = vmatpush1.msra.mxu0 0.0
        %1049 = vmatprep.subr.mxu0 0.0
        %1050 = vmatpush1.msra.mxu0 0.0
        %1051 = vmatprep.subr.mxu0 0.0
        %1052 = vmatpush1.msra.mxu0 0.0
        %1053 = vmatprep.subr.mxu0 0.0
        %1054 = vmatpush1.msra.mxu0 0.0
        %1055 = vmatprep.subr.mxu0 0.0
        %1056 = vmatpush1.msra.mxu0 0.0
        %1057 = vmatprep.subr.mxu0 0.0
        %1058 = vmatpush1.msra.mxu0 0.0
        %1059 = vmatprep.subr.mxu0 0.0
        %1060 = vmatpush1.msra.mxu0 0.0
        %1061 = vmatprep.subr.mxu0 0.0
        %1062 = vmatpush1.msra.mxu0 0.0
        %1063 = vmatprep.subr.mxu0 0.0
        %1064 = vmatpush1.msra.mxu0 0.0
        %1065 = vmatprep.subr.mxu0 0.0
        %1066 = vmatpush1.msra.mxu0 0.0
        %1067 = vmatprep.subr.mxu0 0.0
        %1068 = vmatpush1.msra.mxu0 0.0
        %1069 = vmatprep.subr.mxu0 0.0
        %1070 = vmatpush1.msra.mxu0 0.0
        %1071 = vmatprep.subr.mxu0 0.0
        %1072 = vmatpush1.msra.mxu0 0.0
        %1073 = vmatprep.subr.mxu0 0.0
        %1074 = vmatpush1.msra.mxu0 0.0
        %1075 = vmatprep.subr.mxu0 0.0
        %1076 = vmatpush1.msra.mxu0 0.0
        %1077 = vmatprep.subr.mxu0 0.0
        %1078 = vmatpush1.msra.mxu0 0.0
        %1079 = vmatprep.subr.mxu0 0.0
        %1080 = vmatpush1.msra.mxu0 0.0
        %1081 = vmatprep.subr.mxu0 0.0
        %1082 = vmatpush1.msra.mxu0 0.0
        %1083 = vmatprep.subr.mxu0 0.0
        %1084 = vmatpush1.msra.mxu0 0.0
        %1085 = vmatprep.subr.mxu0 0.0
        %1086 = vmatpush1.msra.mxu0 0.0
        %1087 = vmatprep.subr.mxu0 0.0
        %1088 = vmatpush1.msra.mxu0 0.0
        %1089 = vmatprep.subr.mxu0 0.0
        %1090 = vmatpush1.msra.mxu0 0.0
        %1091 = vmatprep.subr.mxu0 0.0
        %1092 = vmatpush1.msra.mxu0 0.0
        %1093 = vmatprep.subr.mxu0 0.0
        %1094 = vmatpush1.msra.mxu0 0.0
        %1095 = vmatprep.subr.mxu0 0.0
        %1096 = vmatpush1.msra.mxu0 0.0
        %1097 = vmatprep.subr.mxu0 0.0
        %1098 = vmatpush1.msra.mxu0 0.0
        %1099 = vmatprep.mubr.f32.mxu0 0.0
        %1100 = vmatmul.mubr.f32.gmra.mrb[0].mxu0 %v1012
        %v1101 = vpop.f32.mrb[0].mxu0
        %v1102 = vadd.f32 0.0, %v1101
        %v1103 = vpop.f32.mrb[0].mxu0
        %1104 = vmatprep.mubr.f32.mxu0 0.0
        %1105 = vmatmul.mubr.f32.gmra.mrb[0].mxu0 %v1015
        %v1106 = vpop.f32.mrb[0].mxu0
        %v1107 = vadd.f32 0.0, %v1106
        %v1108 = vpop.f32.mrb[0].mxu0
        %1109 = vmatprep.mubr.f32.mxu0 0.0
        %1110 = vmatmul.mubr.f32.gmra.mrb[0].mxu0 %v1018
        %v1111 = vpop.f32.mrb[0].mxu0
        %v1112 = vadd.f32 0.0, %v1111
        %v1113 = vpop.f32.mrb[0].mxu0
        %1114 = vmatprep.mubr.f32.mxu0 0.0
        %1115 = vmatmul.mubr.f32.gmra.mrb[0].mxu0 %v1021
        %v1116 = vpop.f32.mrb[0].mxu0
        %v1117 = vadd.f32 0.0, %v1116
        %v1118 = vpop.f32.mrb[0].mxu0
        %1119 = vmatprep.mubr.f32.mxu0 0.0
        %1120 = vmatmul.mubr.f32.gmra.mrb[0].mxu0 %v1024
        %v1121 = vpop.f32.mrb[0].mxu0
        %v1122 = vadd.f32 0.0, %v1121
        %v1123 = vpop.f32.mrb[0].mxu0
        %1124 = vmatprep.mubr.f32.mxu0 0.0
        %1125 = vmatmul.mubr.f32.gmra.mrb[0].mxu0 %v1027
        %v1126 = vpop.f32.mrb[0].mxu0
        %v1127 = vadd.f32 0.0, %v1126
        %v1128 = vpop.f32.mrb[0].mxu0
        %1129 = vmatprep.mubr.f32.mxu0 0.0
        %1130 = vmatmul.mubr.f32.gmra.mrb[0].mxu0 %v1030
        %v1131 = vpop.f32.mrb[0].mxu0
        %v1132 = vadd.f32 0.0, %v1131
        %v1133 = vpop.f32.mrb[0].mxu0
        %1134 = vmatprep.mubr.f32.mxu0 0.0
        %1135 = vmatmul.mubr.f32.gmra.mrb[0].mxu0 %v1033
        %v1136 = vpop.f32.mrb[0].mxu0
        %v1137 = vadd.f32 0.0, %v1136
        %v1138 = vpop.f32.mrb[0].mxu0
        %1139 = vdwg.mxu0
        %s1140 = sadd.s32 %s222, 24
        %s1141 = sld [smem:[#allocation2 + %s1140]]
        %v1142 = vstv %s1141
        %v1143 = vmul.f32 %v1142, %v224
        %v1144 = vmul.f32 %v1142, %v225
        %v1145 = vadd.f32 %v1143, 0.0
        %v1146 = vadd.f32 %v1144, 0.0
        %s1147 = sadd.s32 %s222, 25
        %s1148 = sld [smem:[#allocation2 + %s1147]]
        %v1149 = vstv %s1148
        %v1150 = vmul.f32 %v1149, %v234
        %v1151 = vmul.f32 %v1149, %v235
        %v1152 = vadd.f32 %v1145, %v1150
        %v1153 = vadd.f32 %v1146, %v1151
        %s1154 = sadd.s32 %s222, 26
        %s1155 = sld [smem:[#allocation2 + %s1154]]
        %v1156 = vstv %s1155
        %v1157 = vmul.f32 %v1156, %v244
        %v1158 = vmul.f32 %v1156, %v245
        %v1159 = vadd.f32 %v1152, %v1157
        %v1160 = vadd.f32 %v1153, %v1158
        %s1161 = sadd.s32 %s222, 27
        %s1162 = sld [smem:[#allocation2 + %s1161]]
        %v1163 = vstv %s1162
        %v1164 = vmul.f32 %v1163, %v254
        %v1165 = vmul.f32 %v1163, %v255
        %v1166 = vadd.f32 %v1159, %v1164
        %v1167 = vadd.f32 %v1160, %v1165
        %s1168 = sadd.s32 %s222, 28
        %s1169 = sld [smem:[#allocation2 + %s1168]]
        %v1170 = vstv %s1169
        %v1171 = vmul.f32 %v1170, %v264
        %v1172 = vmul.f32 %v1170, %v265
        %v1173 = vadd.f32 %v1166, %v1171
        %v1174 = vadd.f32 %v1167, %v1172
        %s1175 = sadd.s32 %s222, 29
        %s1176 = sld [smem:[#allocation2 + %s1175]]
        %v1177 = vstv %s1176
        %v1178 = vmul.f32 %v1177, %v274
        %v1179 = vmul.f32 %v1177, %v275
        %v1180 = vadd.f32 %v1173, %v1178
        %v1181 = vadd.f32 %v1174, %v1179
        %s1182 = sadd.s32 %s222, 30
        %s1183 = sld [smem:[#allocation2 + %s1182]]
        %v1184 = vstv %s1183
        %v1185 = vmul.f32 %v1184, %v284
        %v1186 = vmul.f32 %v1184, %v285
        %v1187 = vadd.f32 %v1180, %v1185
        %v1188 = vadd.f32 %v1181, %v1186
        %s1189 = sadd.s32 %s222, 31
        %s1190 = sld [smem:[#allocation2 + %s1189]]
        %v1191 = vstv %s1190
        %v1192 = vmul.f32 %v1191, %v294
        %v1193 = vmul.f32 %v1191, %v295
        %v1194 = vadd.f32 %v1187, %v1192
        %v1195 = vadd.f32 %v1188, %v1193
        %1196 = vmatprep.subr.mxu0 0.0
        %1197 = vmatpush1.msra.mxu0 %v1194
        %1198 = vmatprep.subr.mxu0 0.0
        %1199 = vmatpush1.msra.mxu0 %v1195
        %1200 = vmatprep.subr.mxu0 0.0
        %1201 = vmatpush1.msra.mxu0 0.0
        %1202 = vmatprep.subr.mxu0 0.0
        %1203 = vmatpush1.msra.mxu0 0.0
        %1204 = vmatprep.subr.mxu0 0.0
        %1205 = vmatpush1.msra.mxu0 0.0
        %1206 = vmatprep.subr.mxu0 0.0
        %1207 = vmatpush1.msra.mxu0 0.0
        %1208 = vmatprep.subr.mxu0 0.0
        %1209 = vmatpush1.msra.mxu0 0.0
        %1210 = vmatprep.subr.mxu0 0.0
        %1211 = vmatpush1.msra.mxu0 0.0
        %1212 = vmatprep.subr.mxu0 0.0
        %1213 = vmatpush1.msra.mxu0 0.0
        %1214 = vmatprep.subr.mxu0 0.0
        %1215 = vmatpush1.msra.mxu0 0.0
        %1216 = vmatprep.subr.mxu0 0.0
        %1217 = vmatpush1.msra.mxu0 0.0
        %1218 = vmatprep.subr.mxu0 0.0
        %1219 = vmatpush1.msra.mxu0 0.0
        %1220 = vmatprep.subr.mxu0 0.0
        %1221 = vmatpush1.msra.mxu0 0.0
        %1222 = vmatprep.subr.mxu0 0.0
        %1223 = vmatpush1.msra.mxu0 0.0
        %1224 = vmatprep.subr.mxu0 0.0
        %1225 = vmatpush1.msra.mxu0 0.0
        %1226 = vmatprep.subr.mxu0 0.0
        %1227 = vmatpush1.msra.mxu0 0.0
        %1228 = vmatprep.subr.mxu0 0.0
        %1229 = vmatpush1.msra.mxu0 0.0
        %1230 = vmatprep.subr.mxu0 0.0
        %1231 = vmatpush1.msra.mxu0 0.0
        %1232 = vmatprep.subr.mxu0 0.0
        %1233 = vmatpush1.msra.mxu0 0.0
        %1234 = vmatprep.subr.mxu0 0.0
        %1235 = vmatpush1.msra.mxu0 0.0
        %1236 = vmatprep.subr.mxu0 0.0
        %1237 = vmatpush1.msra.mxu0 0.0
        %1238 = vmatprep.subr.mxu0 0.0
        %1239 = vmatpush1.msra.mxu0 0.0
        %1240 = vmatprep.subr.mxu0 0.0
        %1241 = vmatpush1.msra.mxu0 0.0
        %1242 = vmatprep.subr.mxu0 0.0
        %1243 = vmatpush1.msra.mxu0 0.0
        %1244 = vmatprep.subr.mxu0 0.0
        %1245 = vmatpush1.msra.mxu0 0.0
        %1246 = vmatprep.subr.mxu0 0.0
        %1247 = vmatpush1.msra.mxu0 0.0
        %1248 = vmatprep.subr.mxu0 0.0
        %1249 = vmatpush1.msra.mxu0 0.0
        %1250 = vmatprep.subr.mxu0 0.0
        %1251 = vmatpush1.msra.mxu0 0.0
        %1252 = vmatprep.subr.mxu0 0.0
        %1253 = vmatpush1.msra.mxu0 0.0
        %1254 = vmatprep.subr.mxu0 0.0
        %1255 = vmatpush1.msra.mxu0 0.0
        %1256 = vmatprep.subr.mxu0 0.0
        %1257 = vmatpush1.msra.mxu0 0.0
        %1258 = vmatprep.subr.mxu0 0.0
        %1259 = vmatpush1.msra.mxu0 0.0
        %1260 = vmatprep.mubr.f32.mxu0 0.0
        %1261 = vmatmul.mubr.f32.gmra.mrb[0].mxu0 %v303
        %v1262 = vpop.f32.mrb[0].mxu0
        %v1263 = vadd.f32 0.0, %v1262
        %v1264 = vpop.f32.mrb[0].mxu0
        %1265 = vmatprep.mubr.f32.mxu0 0.0
        %1266 = vmatmul.mubr.f32.gmra.mrb[0].mxu0 %v306
        %v1267 = vpop.f32.mrb[0].mxu0
        %v1268 = vadd.f32 0.0, %v1267
        %v1269 = vpop.f32.mrb[0].mxu0
        %1270 = vmatprep.mubr.f32.mxu0 0.0
        %1271 = vmatmul.mubr.f32.gmra.mrb[0].mxu0 %v309
        %v1272 = vpop.f32.mrb[0].mxu0
        %v1273 = vadd.f32 0.0, %v1272
        %v1274 = vpop.f32.mrb[0].mxu0
        %1275 = vmatprep.mubr.f32.mxu0 0.0
        %1276 = vmatmul.mubr.f32.gmra.mrb[0].mxu0 %v312
        %v1277 = vpop.f32.mrb[0].mxu0
        %v1278 = vadd.f32 0.0, %v1277
        %v1279 = vpop.f32.mrb[0].mxu0
        %1280 = vmatprep.mubr.f32.mxu0 0.0
        %1281 = vmatmul.mubr.f32.gmra.mrb[0].mxu0 %v315
        %v1282 = vpop.f32.mrb[0].mxu0
        %v1283 = vadd.f32 0.0, %v1282
        %v1284 = vpop.f32.mrb[0].mxu0
        %1285 = vmatprep.mubr.f32.mxu0 0.0
        %1286 = vmatmul.mubr.f32.gmra.mrb[0].mxu0 %v318
        %v1287 = vpop.f32.mrb[0].mxu0
        %v1288 = vadd.f32 0.0, %v1287
        %v1289 = vpop.f32.mrb[0].mxu0
        %1290 = vmatprep.mubr.f32.mxu0 0.0
        %1291 = vmatmul.mubr.f32.gmra.mrb[0].mxu0 %v321
        %v1292 = vpop.f32.mrb[0].mxu0
        %v1293 = vadd.f32 0.0, %v1292
        %v1294 = vpop.f32.mrb[0].mxu0
        %1295 = vmatprep.mubr.f32.mxu0 0.0
        %1296 = vmatmul.mubr.f32.gmra.mrb[0].mxu0 %v324
        %v1297 = vpop.f32.mrb[0].mxu0
        %v1298 = vadd.f32 0.0, %v1297
        %v1299 = vpop.f32.mrb[0].mxu0
        %1300 = vdwg.mxu0
        %v1302 = vsel %vm301, %v1263, 0
        %v1305 = vsel %vm301, %v1268, 0
        %v1308 = vsel %vm301, %v1273, 0
        %v1311 = vsel %vm301, %v1278, 0
        %v1314 = vsel %vm301, %v1283, 0
        %v1317 = vsel %vm301, %v1288, 0
        %v1320 = vsel %vm301, %v1293, 0
        %v1323 = vsel %vm301, %v1298, 0
        %1325 = vmatprep.subr.mxu0 0.0
        %1326 = vmatpush1.msra.mxu0 %v220
        %1327 = vmatprep.subr.mxu0 0.0
        %1328 = vmatpush1.msra.mxu0 %v221
        %1329 = vmatprep.subr.mxu0 0.0
        %1330 = vmatpush1.msra.mxu0 0.0
        %1331 = vmatprep.subr.mxu0 0.0
        %1332 = vmatpush1.msra.mxu0 0.0
        %1333 = vmatprep.subr.mxu0 0.0
        %1334 = vmatpush1.msra.mxu0 0.0
        %1335 = vmatprep.subr.mxu0 0.0
        %1336 = vmatpush1.msra.mxu0 0.0
        %1337 = vmatprep.subr.mxu0 0.0
        %1338 = vmatpush1.msra.mxu0 0.0
        %1339 = vmatprep.subr.mxu0 0.0
        %1340 = vmatpush1.msra.mxu0 0.0
        %1341 = vmatprep.subr.mxu0 0.0
        %1342 = vmatpush1.msra.mxu0 0.0
        %1343 = vmatprep.subr.mxu0 0.0
        %1344 = vmatpush1.msra.mxu0 0.0
        %1345 = vmatprep.subr.mxu0 0.0
        %1346 = vmatpush1.msra.mxu0 0.0
        %1347 = vmatprep.subr.mxu0 0.0
        %1348 = vmatpush1.msra.mxu0 0.0
        %1349 = vmatprep.subr.mxu0 0.0
        %1350 = vmatpush1.msra.mxu0 0.0
        %1351 = vmatprep.subr.mxu0 0.0
        %1352 = vmatpush1.msra.mxu0 0.0
        %1353 = vmatprep.subr.mxu0 0.0
        %1354 = vmatpush1.msra.mxu0 0.0
        %1355 = vmatprep.subr.mxu0 0.0
        %1356 = vmatpush1.msra.mxu0 0.0
        %1357 = vmatprep.subr.mxu0 0.0
        %1358 = vmatpush1.msra.mxu0 0.0
        %1359 = vmatprep.subr.mxu0 0.0
        %1360 = vmatpush1.msra.mxu0 0.0
        %1361 = vmatprep.subr.mxu0 0.0
        %1362 = vmatpush1.msra.mxu0 0.0
        %1363 = vmatprep.subr.mxu0 0.0
        %1364 = vmatpush1.msra.mxu0 0.0
        %1365 = vmatprep.subr.mxu0 0.0
        %1366 = vmatpush1.msra.mxu0 0.0
        %1367 = vmatprep.subr.mxu0 0.0
        %1368 = vmatpush1.msra.mxu0 0.0
        %1369 = vmatprep.subr.mxu0 0.0
        %1370 = vmatpush1.msra.mxu0 0.0
        %1371 = vmatprep.subr.mxu0 0.0
        %1372 = vmatpush1.msra.mxu0 0.0
        %1373 = vmatprep.subr.mxu0 0.0
        %1374 = vmatpush1.msra.mxu0 0.0
        %1375 = vmatprep.subr.mxu0 0.0
        %1376 = vmatpush1.msra.mxu0 0.0
        %1377 = vmatprep.subr.mxu0 0.0
        %1378 = vmatpush1.msra.mxu0 0.0
        %1379 = vmatprep.subr.mxu0 0.0
        %1380 = vmatpush1.msra.mxu0 0.0
        %1381 = vmatprep.subr.mxu0 0.0
        %1382 = vmatpush1.msra.mxu0 0.0
        %1383 = vmatprep.subr.mxu0 0.0
        %1384 = vmatpush1.msra.mxu0 0.0
        %1385 = vmatprep.subr.mxu0 0.0
        %1386 = vmatpush1.msra.mxu0 0.0
        %1387 = vmatprep.subr.mxu0 0.0
        %1388 = vmatpush1.msra.mxu0 0.0
        %1389 = vmatprep.mubr.f32.mxu0 0.0
        %1390 = vmatmul.mubr.f32.gmra.mrb[0].mxu0 %v1302
        %v1391 = vpop.f32.mrb[0].mxu0
        %v1392 = vadd.f32 0.0, %v1391
        %v1393 = vpop.f32.mrb[0].mxu0
        %1394 = vmatprep.mubr.f32.mxu0 0.0
        %1395 = vmatmul.mubr.f32.gmra.mrb[0].mxu0 %v1305
        %v1396 = vpop.f32.mrb[0].mxu0
        %v1397 = vadd.f32 0.0, %v1396
        %v1398 = vpop.f32.mrb[0].mxu0
        %1399 = vmatprep.mubr.f32.mxu0 0.0
        %1400 = vmatmul.mubr.f32.gmra.mrb[0].mxu0 %v1308
        %v1401 = vpop.f32.mrb[0].mxu0
        %v1402 = vadd.f32 0.0, %v1401
        %v1403 = vpop.f32.mrb[0].mxu0
        %1404 = vmatprep.mubr.f32.mxu0 0.0
        %1405 = vmatmul.mubr.f32.gmra.mrb[0].mxu0 %v1311
        %v1406 = vpop.f32.mrb[0].mxu0
        %v1407 = vadd.f32 0.0, %v1406
        %v1408 = vpop.f32.mrb[0].mxu0
        %1409 = vmatprep.mubr.f32.mxu0 0.0
        %1410 = vmatmul.mubr.f32.gmra.mrb[0].mxu0 %v1314
        %v1411 = vpop.f32.mrb[0].mxu0
        %v1412 = vadd.f32 0.0, %v1411
        %v1413 = vpop.f32.mrb[0].mxu0
        %1414 = vmatprep.mubr.f32.mxu0 0.0
        %1415 = vmatmul.mubr.f32.gmra.mrb[0].mxu0 %v1317
        %v1416 = vpop.f32.mrb[0].mxu0
        %v1417 = vadd.f32 0.0, %v1416
        %v1418 = vpop.f32.mrb[0].mxu0
        %1419 = vmatprep.mubr.f32.mxu0 0.0
        %1420 = vmatmul.mubr.f32.gmra.mrb[0].mxu0 %v1320
        %v1421 = vpop.f32.mrb[0].mxu0
        %v1422 = vadd.f32 0.0, %v1421
        %v1423 = vpop.f32.mrb[0].mxu0
        %1424 = vmatprep.mubr.f32.mxu0 0.0
        %1425 = vmatmul.mubr.f32.gmra.mrb[0].mxu0 %v1323
        %v1426 = vpop.f32.mrb[0].mxu0
        %v1427 = vadd.f32 0.0, %v1426
        %v1428 = vpop.f32.mrb[0].mxu0
        %1429 = vdwg.mxu0
        %v1430 = vmax.f32 %v522, %v812
        %v1431 = vmax.f32 %v527, %v817
        %v1432 = vmax.f32 %v532, %v822
        %v1433 = vmax.f32 %v537, %v827
        %v1434 = vmax.f32 %v542, %v832
        %v1435 = vmax.f32 %v547, %v837
        %v1436 = vmax.f32 %v552, %v842
        %v1437 = vmax.f32 %v557, %v847
        %v1438 = vmax.f32 %v1430, %v1102
        %v1439 = vmax.f32 %v1431, %v1107
        %v1440 = vmax.f32 %v1432, %v1112
        %v1441 = vmax.f32 %v1433, %v1117
        %v1442 = vmax.f32 %v1434, %v1122
        %v1443 = vmax.f32 %v1435, %v1127
        %v1444 = vmax.f32 %v1436, %v1132
        %v1445 = vmax.f32 %v1437, %v1137
        %v1446 = vmax.f32 %v1438, %v1392
        %v1447 = vmax.f32 %v1439, %v1397
        %v1448 = vmax.f32 %v1440, %v1402
        %v1449 = vmax.f32 %v1441, %v1407
        %v1450 = vmax.f32 %v1442, %v1412
        %v1451 = vmax.f32 %v1443, %v1417
        %v1452 = vmax.f32 %v1444, %v1422
        %v1453 = vmax.f32 %v1445, %v1427
        %v1454 = vsub.f32 %v522, %v1446
        %v1455 = vsub.f32 %v527, %v1447
        %v1456 = vsub.f32 %v532, %v1448
        %v1457 = vsub.f32 %v537, %v1449
        %v1458 = vsub.f32 %v542, %v1450
        %v1459 = vsub.f32 %v547, %v1451
        %v1460 = vsub.f32 %v552, %v1452
        %v1461 = vsub.f32 %v557, %v1453
        %v1462 = vmul.f32 %v1454, 1.442695
        %v1463 = vpow.pop %v1462
        %v1464 = vmul.f32 %v1455, 1.442695
        %v1465 = vpow.pop %v1464
        %v1466 = vmul.f32 %v1456, 1.442695
        %v1467 = vpow.pop %v1466
        %v1468 = vmul.f32 %v1457, 1.442695
        %v1469 = vpow.pop %v1468
        %v1470 = vmul.f32 %v1458, 1.442695
        %v1471 = vpow.pop %v1470
        %v1472 = vmul.f32 %v1459, 1.442695
        %v1473 = vpow.pop %v1472
        %v1474 = vmul.f32 %v1460, 1.442695
        %v1475 = vpow.pop %v1474
        %v1476 = vmul.f32 %v1461, 1.442695
        %v1477 = vpow.pop %v1476
        %v1478 = vsub.f32 %v812, %v1446
        %v1479 = vsub.f32 %v817, %v1447
        %v1480 = vsub.f32 %v822, %v1448
        %v1481 = vsub.f32 %v827, %v1449
        %v1482 = vsub.f32 %v832, %v1450
        %v1483 = vsub.f32 %v837, %v1451
        %v1484 = vsub.f32 %v842, %v1452
        %v1485 = vsub.f32 %v847, %v1453
        %v1486 = vmul.f32 %v1478, 1.442695
        %v1487 = vpow.pop %v1486
        %v1488 = vmul.f32 %v1479, 1.442695
        %v1489 = vpow.pop %v1488
        %v1490 = vmul.f32 %v1480, 1.442695
        %v1491 = vpow.pop %v1490
        %v1492 = vmul.f32 %v1481, 1.442695
        %v1493 = vpow.pop %v1492
        %v1494 = vmul.f32 %v1482, 1.442695
        %v1495 = vpow.pop %v1494
        %v1496 = vmul.f32 %v1483, 1.442695
        %v1497 = vpow.pop %v1496
        %v1498 = vmul.f32 %v1484, 1.442695
        %v1499 = vpow.pop %v1498
        %v1500 = vmul.f32 %v1485, 1.442695
        %v1501 = vpow.pop %v1500
        %v1502 = vsub.f32 %v1102, %v1446
        %v1503 = vsub.f32 %v1107, %v1447
        %v1504 = vsub.f32 %v1112, %v1448
        %v1505 = vsub.f32 %v1117, %v1449
        %v1506 = vsub.f32 %v1122, %v1450
        %v1507 = vsub.f32 %v1127, %v1451
        %v1508 = vsub.f32 %v1132, %v1452
        %v1509 = vsub.f32 %v1137, %v1453
        %v1510 = vmul.f32 %v1502, 1.442695
        %v1511 = vpow.pop %v1510
        %v1512 = vmul.f32 %v1503, 1.442695
        %v1513 = vpow.pop %v1512
        %v1514 = vmul.f32 %v1504, 1.442695
        %v1515 = vpow.pop %v1514
        %v1516 = vmul.f32 %v1505, 1.442695
        %v1517 = vpow.pop %v1516
        %v1518 = vmul.f32 %v1506, 1.442695
        %v1519 = vpow.pop %v1518
        %v1520 = vmul.f32 %v1507, 1.442695
        %v1521 = vpow.pop %v1520
        %v1522 = vmul.f32 %v1508, 1.442695
        %v1523 = vpow.pop %v1522
        %v1524 = vmul.f32 %v1509, 1.442695
        %v1525 = vpow.pop %v1524
        %v1526 = vsub.f32 %v1392, %v1446
        %v1527 = vsub.f32 %v1397, %v1447
        %v1528 = vsub.f32 %v1402, %v1448
        %v1529 = vsub.f32 %v1407, %v1449
        %v1530 = vsub.f32 %v1412, %v1450
        %v1531 = vsub.f32 %v1417, %v1451
        %v1532 = vsub.f32 %v1422, %v1452
        %v1533 = vsub.f32 %v1427, %v1453
        %v1534 = vmul.f32 %v1526, 1.442695
        %v1535 = vpow.pop %v1534
        %v1536 = vmul.f32 %v1527, 1.442695
        %v1537 = vpow.pop %v1536
        %v1538 = vmul.f32 %v1528, 1.442695
        %v1539 = vpow.pop %v1538
        %v1540 = vmul.f32 %v1529, 1.442695
        %v1541 = vpow.pop %v1540
        %v1542 = vmul.f32 %v1530, 1.442695
        %v1543 = vpow.pop %v1542
        %v1544 = vmul.f32 %v1531, 1.442695
        %v1545 = vpow.pop %v1544
        %v1546 = vmul.f32 %v1532, 1.442695
        %v1547 = vpow.pop %v1546
        %v1548 = vmul.f32 %v1533, 1.442695
        %v1549 = vpow.pop %v1548
        %v1550 = vadd.f32 %v1463, %v1487
        %v1551 = vadd.f32 %v1465, %v1489
        %v1552 = vadd.f32 %v1467, %v1491
        %v1553 = vadd.f32 %v1469, %v1493
        %v1554 = vadd.f32 %v1471, %v1495
        %v1555 = vadd.f32 %v1473, %v1497
        %v1556 = vadd.f32 %v1475, %v1499
        %v1557 = vadd.f32 %v1477, %v1501
        %v1558 = vadd.f32 %v1550, %v1511
        %v1559 = vadd.f32 %v1551, %v1513
        %v1560 = vadd.f32 %v1552, %v1515
        %v1561 = vadd.f32 %v1553, %v1517
        %v1562 = vadd.f32 %v1554, %v1519
        %v1563 = vadd.f32 %v1555, %v1521
        %v1564 = vadd.f32 %v1556, %v1523
        %v1565 = vadd.f32 %v1557, %v1525
        %v1566 = vadd.f32 %v1558, %v1535
        %v1567 = vadd.f32 %v1559, %v1537
        %v1568 = vadd.f32 %v1560, %v1539
        %v1569 = vadd.f32 %v1561, %v1541
        %v1570 = vadd.f32 %v1562, %v1543
        %v1571 = vadd.f32 %v1563, %v1545
        %v1572 = vadd.f32 %v1564, %v1547
        %v1573 = vadd.f32 %v1565, %v1549
        %v1574 = vrcp.pop %v1566
        %v1575 = vrcp.pop %v1567
        %v1576 = vrcp.pop %v1568
        %v1577 = vrcp.pop %v1569
        %v1578 = vrcp.pop %v1570
        %v1579 = vrcp.pop %v1571
        %v1580 = vrcp.pop %v1572
        %v1581 = vrcp.pop %v1573
        %v1582 = vmul.f32 %v1463, %v1574
        %v1583 = vmul.f32 %v1465, %v1575
        %v1584 = vmul.f32 %v1467, %v1576
        %v1585 = vmul.f32 %v1469, %v1577
        %v1586 = vmul.f32 %v1471, %v1578
        %v1587 = vmul.f32 %v1473, %v1579
        %v1588 = vmul.f32 %v1475, %v1580
        %v1589 = vmul.f32 %v1477, %v1581
        %v1590 = vmul.f32 %v1487, %v1574
        %v1591 = vmul.f32 %v1489, %v1575
        %v1592 = vmul.f32 %v1491, %v1576
        %v1593 = vmul.f32 %v1493, %v1577
        %v1594 = vmul.f32 %v1495, %v1578
        %v1595 = vmul.f32 %v1497, %v1579
        %v1596 = vmul.f32 %v1499, %v1580
        %v1597 = vmul.f32 %v1501, %v1581
        %v1598 = vmul.f32 %v1511, %v1574
        %v1599 = vmul.f32 %v1513, %v1575
        %v1600 = vmul.f32 %v1515, %v1576
        %v1601 = vmul.f32 %v1517, %v1577
        %v1602 = vmul.f32 %v1519, %v1578
        %v1603 = vmul.f32 %v1521, %v1579
        %v1604 = vmul.f32 %v1523, %v1580
        %v1605 = vmul.f32 %v1525, %v1581
        %v1606 = vmul.f32 %v1535, %v1574
        %v1607 = vmul.f32 %v1537, %v1575
        %v1608 = vmul.f32 %v1539, %v1576
        %v1609 = vmul.f32 %v1541, %v1577
        %v1610 = vmul.f32 %v1543, %v1578
        %v1611 = vmul.f32 %v1545, %v1579
        %v1612 = vmul.f32 %v1547, %v1580
        %v1613 = vmul.f32 %v1549, %v1581
        %1622 = vrot.lane.b32.xlu0 %v1590, 64
        %v1623 = vpop.permute.xlu0 %1622
        %1624 = vrot.lane.b32.xlu0 %v1591, 64
        %v1625 = vpop.permute.xlu0 %1624
        %1626 = vrot.lane.b32.xlu0 %v1592, 64
        %v1627 = vpop.permute.xlu0 %1626
        %1628 = vrot.lane.b32.xlu0 %v1593, 64
        %v1629 = vpop.permute.xlu0 %1628
        %1630 = vrot.lane.b32.xlu0 %v1594, 64
        %v1631 = vpop.permute.xlu0 %1630
        %1632 = vrot.lane.b32.xlu0 %v1595, 64
        %v1633 = vpop.permute.xlu0 %1632
        %1634 = vrot.lane.b32.xlu0 %v1596, 64
        %v1635 = vpop.permute.xlu0 %1634
        %1636 = vrot.lane.b32.xlu0 %v1597, 64
        %v1637 = vpop.permute.xlu0 %1636
        %1654 = vrot.lane.b32.xlu0 %v1606, 64
        %v1655 = vpop.permute.xlu0 %1654
        %1656 = vrot.lane.b32.xlu0 %v1607, 64
        %v1657 = vpop.permute.xlu0 %1656
        %1658 = vrot.lane.b32.xlu0 %v1608, 64
        %v1659 = vpop.permute.xlu0 %1658
        %1660 = vrot.lane.b32.xlu0 %v1609, 64
        %v1661 = vpop.permute.xlu0 %1660
        %1662 = vrot.lane.b32.xlu0 %v1610, 64
        %v1663 = vpop.permute.xlu0 %1662
        %1664 = vrot.lane.b32.xlu0 %v1611, 64
        %v1665 = vpop.permute.xlu0 %1664
        %1666 = vrot.lane.b32.xlu0 %v1612, 64
        %v1667 = vpop.permute.xlu0 %1666
        %1668 = vrot.lane.b32.xlu0 %v1613, 64
        %v1669 = vpop.permute.xlu0 %1668
        %vm1678 = vcmask 523264
        %v1679 = vsel %vm1678, %v1582, %v1623
        %v1680 = vsel %vm1678, %v1583, %v1625
        %v1681 = vsel %vm1678, %v1584, %v1627
        %v1682 = vsel %vm1678, %v1585, %v1629
        %v1683 = vsel %vm1678, %v1586, %v1631
        %v1684 = vsel %vm1678, %v1587, %v1633
        %v1685 = vsel %vm1678, %v1588, %v1635
        %v1686 = vsel %vm1678, %v1589, %v1637
        %v1687 = vsel %vm1678, %v1598, %v1655
        %v1688 = vsel %vm1678, %v1599, %v1657
        %v1689 = vsel %vm1678, %v1600, %v1659
        %v1690 = vsel %vm1678, %v1601, %v1661
        %v1691 = vsel %vm1678, %v1602, %v1663
        %v1692 = vsel %vm1678, %v1603, %v1665
        %v1693 = vsel %vm1678, %v1604, %v1667
        %v1694 = vsel %vm1678, %v1605, %v1669
        %1695 = vst [vmem:[%s211] sm:$0xff] %v1679
        %1696 = vst [vmem:[%s211 + $0x8] sm:$0xff] %v1687
        %1697 = vst [vmem:[%s211 + $0x10] sm:$0xff] %v1680
        %1698 = vst [vmem:[%s211 + $0x18] sm:$0xff] %v1688
        %1699 = vst [vmem:[%s211 + $0x20] sm:$0xff] %v1681
        %1700 = vst [vmem:[%s211 + $0x28] sm:$0xff] %v1689
        %1701 = vst [vmem:[%s211 + $0x30] sm:$0xff] %v1682
        %1702 = vst [vmem:[%s211 + $0x38] sm:$0xff] %v1690
        %1703 = vst [vmem:[%s211 + $0x40] sm:$0xff] %v1683
        %1704 = vst [vmem:[%s211 + $0x48] sm:$0xff] %v1691
        %1705 = vst [vmem:[%s211 + $0x50] sm:$0xff] %v1684
        %1706 = vst [vmem:[%s211 + $0x58] sm:$0xff] %v1692
        %1707 = vst [vmem:[%s211 + $0x60] sm:$0xff] %v1685
        %1708 = vst [vmem:[%s211 + $0x68] sm:$0xff] %v1693
        %1709 = vst [vmem:[%s211 + $0x70] sm:$0xff] %v1686
        %1710 = vst [vmem:[%s211 + $0x78] sm:$0xff] %v1694
        %p1711 = scmp.lt.s32.totalorder %s16, 1
        %s1712 = scalar_select %p1711, %s16, 1
        %s1713 = smul.addr %s1712, 16
        %s1714 = smul.addr %s1713, 8
        %s1715 = scalar_lea.vmem %s4, %s1714
        // Predicated region
        $region41: #{sam_forward.7} parent=35 // pred_check
          %p1716 = pneg %p123
        $region42: #{sam_forward.7} parent=35 // pred_check_branch
          %1718 = sbr.rel (%p1716) target = $region44
        $region43: #{sam_forward.7} parent=35 // pred_region
          _
        $region44: #{sam_forward.7} parent=35 // pred_fallthru
          _
      $region36: #{sam_forward.7} parent=5 // pred_fallthru
        _
      %p1719 = scmp.le.s32.totalorder 2, %s11
      // Predicated region
      $region45: #{sam_forward.7} parent=5 // pred_check
        %p1720 = pneg %p1719
      $region46: #{sam_forward.7} parent=5 // pred_check_branch
        %1722 = sbr.rel (%p1720) target = $region48
      $region47: #{sam_forward.7} parent=5 // pred_region
        %s1723 = ssub.s32 %s11, 2
        // Predicated region
        $region49: #{sam_forward.7} parent=47 // pred_check
          %p1724 = pneg %p129
        $region50: #{sam_forward.7} parent=47 // pred_check_branch
          %1726 = sbr.rel (%p1724) target = $region52
        $region51: #{sam_forward.7} parent=47 // pred_region
          %p1727 = scmp.lt.s32.totalorder %s17, 1
          %s1728 = scalar_select %p1727, %s17, 1
          %s1729 = smul.addr %s1728, 16
          %s1730 = smul.addr %s1729, 8
          %s1731 = scalar_lea.vmem %s4, %s1730
        $region52: #{sam_forward.7} parent=47 // pred_fallthru
          _
      $region48: #{sam_forward.7} parent=5 // pred_fallthru
        _
    $region6: #{sam_forward.7} parent=1 // loop_footer
      %s15 = sadd.s32 1, %s11
    $region7: #{sam_forward.7} parent=1 // loop_footer_branch
      %10 = sbr.rel target = $region3
    $region8: #{sam_forward.7} parent=1 // loop_exit
      _
    %1732 = vsyncpa [#allocation3], 1
    %s1733 = scalar_lea.sflag [#allocation3], 1
    %1734 = vsyncpa %s1733, 1

</llo_original>
